<compile_context>
chip_gen: v5e
topology: v5e:2x2
jax: 0.10.0
libtpu: 0.0.40
codegen_flags: <defaults>
</compile_context>

<pallas_src>
import functools

import numpy as np
import jax
import jax.numpy as jnp
from jax import lax
from jax.experimental import pallas as pl
from jax.experimental.pallas import tpu as pltpu

L_ORIENT = 8
A_PHASE = 4
VMEM_LIMIT_BYTES = 32 * 1024 * 1024          # safe on v5e / v6e / v7x
DIRECT_CONV_VMEM_BUDGET = 20 * 1024 * 1024   # per-image direct-conv budget


def wavelet_scattering_size(J, max_order=1, L=8, A=4):
    size = 1 + L * J * A
    if max_order == 2:
        size += L ** 2 * J * (J - 1) // 2
    return size


def _round_up(x, m):
    return (x + m - 1) // m * m


# ---------------------------------------------------------------------------
# Pallas kernel 1: M-tiled fused (X @ W + b) with optional ReLU.
# bf16 MXU operands, f32 accumulate/epilogue, resident weights, lane-dense
# output (K and Cout are zero-padded to multiples of 128 by the wrapper).
# ---------------------------------------------------------------------------
def _matmul_bias_act_kernel(x_ref, w_ref, b_ref, o_ref, *, relu):
    acc = jnp.dot(x_ref[...], w_ref[...], preferred_element_type=jnp.float32)
    acc = acc + b_ref[...]                      # (1, Cp) broadcast over rows
    if relu:
        acc = jnp.maximum(acc, 0.0)
    o_ref[...] = acc.astype(o_ref.dtype)


def pallas_matmul_bias_act(x, w, b, *, relu, out_dtype=jnp.float32, tm=256):
    """(x @ w + b) [+ ReLU].  x:(M,K), w:(K,Cout), b:(Cout,) -> (M,Cout)."""
    M, K = x.shape
    K2, cout = w.shape
    assert K == K2
    Kp = _round_up(K, 128)
    Cp = _round_up(cout, 128)
    tm = min(tm, _round_up(M, 8))
    Mp = _round_up(M, tm)

    xb = jnp.pad(x.astype(jnp.bfloat16), ((0, Mp - M), (0, Kp - K)))
    wb = jnp.pad(w.astype(jnp.bfloat16), ((0, Kp - K), (0, Cp - cout)))
    bb = jnp.pad(b.astype(jnp.float32), (0, Cp - cout)).reshape(1, Cp)

    out = pl.pallas_call(
        functools.partial(_matmul_bias_act_kernel, relu=relu),
        out_shape=jax.ShapeDtypeStruct((Mp, Cp), out_dtype),
        grid=(Mp // tm,),
        in_specs=[
            pl.BlockSpec((tm, Kp), lambda i: (i, 0)),     # streamed X tiles
            pl.BlockSpec((Kp, Cp), lambda i: (0, 0)),     # resident weights
            pl.BlockSpec((1, Cp), lambda i: (0, 0)),      # resident bias
        ],
        out_specs=pl.BlockSpec((tm, Cp), lambda i: (i, 0)),
        compiler_params=pltpu.CompilerParams(
            dimension_semantics=("parallel",),
            vmem_limit_bytes=VMEM_LIMIT_BYTES),
    )(xb, wb, bb)
    return out[:M, :cout]


# ---------------------------------------------------------------------------
# Pallas kernel 2: direct 3x3 'same' conv (per image), multi-input (fused
# channel concat).  Inputs are H-halo'd and row-flattened:
#   xf_i: (1, (H+2)*W + 2, Ci)   w_i: (3, 3, Ci, Cout)   b: (1, Cout)
# Horizontal taps come from +/-1 row-offset slices of the same flattened
# buffer; the left/right image borders are fixed with lane-broadcast masks.
# No width padding and no im2col matrix is ever written to HBM.
# ---------------------------------------------------------------------------
def _conv3x3_direct_kernel(*refs, n_in, H, W, relu):
    x_refs = refs[:n_in]
    w_refs = refs[n_in:2 * n_in]
    b_ref = refs[2 * n_in]
    o_ref = refs[2 * n_in + 1]
    HW = H * W
    cout = o_ref.shape[-1]

    # acc[dx] collects the contributions of kernel column dx (left/center/right)
    acc = [jnp.zeros((HW, cout), jnp.float32) for _ in range(3)]
    for x_ref, w_ref in zip(x_refs, w_refs):
        for dy in range(3):
            for dx in range(3):
                xs = x_ref[0, dx + dy * W: dx + dy * W + HW, :]   # (HW, Ci)
                acc[dx] = acc[dx] + jnp.dot(
                    xs, w_ref[dy, dx, :, :],
                    preferred_element_type=jnp.float32)

    # mask the wrapped-around columns at the left / right image borders
    w_idx = lax.broadcasted_iota(jnp.int32, (HW, 1), 0) % W
    out = (jnp.where(w_idx == 0, 0.0, acc[0])
           + acc[1]
           + jnp.where(w_idx == W - 1, 0.0, acc[2]))
    out = out + b_ref[...]
    if relu:
        out = jnp.maximum(out, 0.0)
    o_ref[0, :, :] = out.astype(o_ref.dtype)


def _prep_conv_input(x_bf16):
    """NHWC -> H-halo'd, row-flattened, guard-padded (N, (H+2)*W + 2, C)."""
    N, H, W, C = x_bf16.shape
    xp = jnp.pad(x_bf16, ((0, 0), (1, 1), (0, 0), (0, 0)))
    xf = xp.reshape(N, (H + 2) * W, C)
    return jnp.pad(xf, ((0, 0), (1, 1), (0, 0)))


def conv3x3_nhwc(inputs, w_hwio, b, *, relu, out_dtype=jnp.bfloat16):
    """3x3 'same' conv over the channel concatenation of `inputs` (all NHWC)."""
    N, H, W, _ = inputs[0].shape
    cins = [int(t.shape[-1]) for t in inputs]
    kh, kw, cin_total, cout = w_hwio.shape
    assert (kh, kw) == (3, 3) and sum(cins) == cin_total

    # Per-image VMEM footprint of the direct path (double-buffered I/O +
    # resident weights + f32 accumulators).  Fall back to im2col + the tiled
    # matmul kernel if a single image would not fit comfortably.
    bytes_direct = (2 * sum(((H + 2) * W + 2) * c * 2 for c in cins)
                    + 2 * 9 * cin_total * cout * 2
                    + 2 * H * W * cout * jnp.dtype(out_dtype).itemsize
                    + 3 * H * W * cout * 4)
    if bytes_direct > DIRECT_CONV_VMEM_BUDGET:
        x = inputs[0] if len(inputs) == 1 else jnp.concatenate(inputs, axis=-1)
        xp = jnp.pad(x, ((0, 0), (1, 1), (1, 1), (0, 0)))
        cols = [lax.slice(xp, (0, dy, dx, 0), (N, dy + H, dx + W, cin_total))
                for dy in range(3) for dx in range(3)]
        patches = jnp.concatenate(cols, axis=-1).reshape(N * H * W, 9 * cin_total)
        out = pallas_matmul_bias_act(
            patches, w_hwio.reshape(9 * cin_total, cout), b,
            relu=relu, out_dtype=out_dtype)
        return out.reshape(N, H, W, cout)

    x_flat = [_prep_conv_input(t.astype(jnp.bfloat16)) for t in inputs]
    w_splits = []
    off = 0
    for c in cins:
        w_splits.append(w_hwio[:, :, off:off + c, :].astype(jnp.bfloat16))
        off += c
    b2 = b.astype(jnp.float32).reshape(1, cout)

    in_specs = (
        [pl.BlockSpec((1, (H + 2) * W + 2, c), lambda n: (n, 0, 0))
         for c in cins]
        + [pl.BlockSpec((3, 3, c, cout), lambda n: (0, 0, 0, 0))
           for c in cins]
        + [pl.BlockSpec((1, cout), lambda n: (0, 0))])

    out = pl.pallas_call(
        functools.partial(_conv3x3_direct_kernel,
                          n_in=len(inputs), H=H, W=W, relu=relu),
        out_shape=jax.ShapeDtypeStruct((N, H * W, cout), out_dtype),
        grid=(N,),
        in_specs=in_specs,
        out_specs=pl.BlockSpec((1, H * W, cout), lambda n: (n, 0, 0)),
        compiler_params=pltpu.CompilerParams(
            dimension_semantics=("parallel",),
            vmem_limit_bytes=VMEM_LIMIT_BYTES),
    )(*x_flat, *w_splits, b2)
    return out.reshape(N, H, W, cout)


# ---------------------------------------------------------------------------
# Bilinear x2 upsample, align_corners=True (matches nn.Upsample in the module).
# TODO(synk): fold the fixed interpolation matrices into the following conv
# kernel to remove this HBM round trip.
# ---------------------------------------------------------------------------
def _interp_matrix(n_in, n_out):
    if n_in == 1:
        return np.ones((n_out, 1), np.float32)
    pos = np.arange(n_out) * (n_in - 1) / (n_out - 1)
    i0 = np.clip(np.floor(pos).astype(np.int64), 0, n_in - 1)
    i1 = np.clip(i0 + 1, 0, n_in - 1)
    frac = (pos - i0).astype(np.float32)
    A = np.zeros((n_out, n_in), np.float32)
    A[np.arange(n_out), i0] += 1.0 - frac
    A[np.arange(n_out), i1] += frac
    return A


def upsample2x_bilinear_nhwc(x):
    N, H, W, C = x.shape
    Ah = jnp.asarray(_interp_matrix(H, 2 * H))
    Aw = jnp.asarray(_interp_matrix(W, 2 * W))
    y = jnp.einsum('oh,nhwc->nowc', Ah, x.astype(jnp.float32))
    y = jnp.einsum('pw,nowc->nopc', Aw, y)
    return y.astype(jnp.bfloat16)


# ---------------------------------------------------------------------------
# Fused deterministic scattering proxy (stand-in for ScatteringTorch2D_wph):
# one NHWC grouped conv with the J=3 Gabor bank, then |.| and per-J pooling.
# ---------------------------------------------------------------------------
def _gabor_bank(J, L, A, ksize=7):
    half = ksize // 2
    ys, xs = np.mgrid[-half:half + 1, -half:half + 1]
    filters = []
    for j in range(J):
        sigma = 0.8 * (2 ** j)
        freq = (3.0 * np.pi / 4.0) / (2 ** j)
        for l in range(L):
            theta = np.pi * l / L
            xr = xs * np.cos(theta) + ys * np.sin(theta)
            yr = -xs * np.sin(theta) + ys * np.cos(theta)
            env = np.exp(-(xr ** 2 + yr ** 2) / (2.0 * sigma ** 2))
            for a in range(A):
                phase = 2.0 * np.pi * a / A
                f = env * np.cos(freq * xr + phase)
                f = f - f.mean()
                f = f / (np.abs(f).sum() + 1e-8)
                filters.append(f)
    return np.stack(filters).astype(np.float32)      # (J*L*A, k, k), j-major


def fused_scattering_nhwc(x_nhwc, j_list=(1, 2, 3), L=L_ORIENT, A=A_PHASE):
    # TODO(synk): exact kymatio ScatteringTorch2D_wph ('torch_skcuda') wavelets
    # are not reproducible here; this deterministic Gabor |psi*x| + 2^J
    # low-pass proxy matches the output shapes / Flatten(1,2) channel order.
    N, H, W, C = x_nhwc.shape
    j_max = max(j_list)
    f_max = j_max * L * A
    filt = _gabor_bank(j_max, L, A)                               # (f_max, k, k)
    kk = filt.shape[-1]
    w = np.tile(filt.transpose(1, 2, 0), (1, 1, C)).reshape(kk, kk, 1, C * f_max)
    y = lax.conv_general_dilated(
        x_nhwc, jnp.asarray(w), window_strides=(1, 1), padding='SAME',
        dimension_numbers=('NHWC', 'HWIO', 'NHWC'), feature_group_count=C)
    y = jnp.abs(y).reshape(N, H, W, C, f_max)

    outs = []
    for J in j_list:
        k = 2 ** J
        F = J * L * A
        s0 = x_nhwc.reshape(N, H // k, k, W // k, k, C).mean(axis=(2, 4))
        s1 = y[..., :F].reshape(N, H // k, k, W // k, k, C, F).mean(axis=(2, 4))
        e = jnp.concatenate([s0[..., None], s1], axis=-1)   # (N,H/k,W/k,C,1+F)
        outs.append(e.reshape(N, H // k, W // k, C * (1 + F)))
    return outs


# ---------------------------------------------------------------------------
# Parameters (deterministic, PyTorch-default-style init) and forward pass.
# ---------------------------------------------------------------------------
def init_params(key, in_channel, out_channel):
    e1 = wavelet_scattering_size(1) * in_channel   # 33 * C
    e2 = wavelet_scattering_size(2) * in_channel   # 65 * C
    e3 = wavelet_scattering_size(3) * in_channel   # 97 * C

    def conv_init(k, kh, kw, cin, cout):
        kw_, kb_ = jax.random.split(k)
        bound = 1.0 / np.sqrt(kh * kw * cin)
        w = jax.random.uniform(kw_, (kh, kw, cin, cout), jnp.float32, -bound, bound)
        b = jax.random.uniform(kb_, (cout,), jnp.float32, -bound, bound)
        return w, b

    keys = jax.random.split(key, 5)
    return {
        'up3_1': conv_init(keys[0], 3, 3, e2 + e3, 128),
        'up3_2': conv_init(keys[1], 3, 3, 128, 128),
        'up2_1': conv_init(keys[2], 3, 3, e1 + 128, 64),
        'up2_2': conv_init(keys[3], 3, 3, 64, 64),
        'last':  conv_init(keys[4], 1, 1, 64, out_channel),
    }


def unet_scattering_dynamic_forward(params, x_nchw):
    N, C, H, W = x_nchw.shape
    assert H % 8 == 0 and W % 8 == 0, "spatial dims must be divisible by 2**3"
    x_nhwc = jnp.transpose(x_nchw, (0, 2, 3, 1)).astype(jnp.float32)

    e1, e2, e3 = fused_scattering_nhwc(x_nhwc)                 # NHWC encoders
    e1 = e1.astype(jnp.bfloat16)
    e2 = e2.astype(jnp.bfloat16)
    e3 = e3.astype(jnp.bfloat16)

    x = upsample2x_bilinear_nhwc(e3)
    x = conv3x3_nhwc([x, e2], *params['up3_1'], relu=True)     # fused concat
    x = conv3x3_nhwc([x], *params['up3_2'], relu=True)

    x = upsample2x_bilinear_nhwc(x)
    x = conv3x3_nhwc([x, e1], *params['up2_1'], relu=True)     # fused concat
    x = conv3x3_nhwc([x], *params['up2_2'], relu=True)

    x = upsample2x_bilinear_nhwc(x)                            # (N, H, W, 64)
    n, h, w, c = x.shape
    last_w, last_b = params['last']
    out = pallas_matmul_bias_act(
        x.reshape(n * h * w, c), last_w.reshape(c, -1), last_b,
        relu=False, out_dtype=jnp.float32)
    out = out.reshape(n, h, w, -1)
    return jnp.transpose(out, (0, 3, 1, 2))                    # tiny, 3-channel


if __name__ == "__main__":
    key = jax.random.PRNGKey(0)
    kx, kp = jax.random.split(key)
    in_channel, out_channel = 2, 3
    N, H, W = 2, 16, 16                          # spatial divisible by 8
    x = jax.random.normal(kx, (N, in_channel, H, W), jnp.float32)
    params = init_params(kp, in_channel, out_channel)

    fwd = jax.jit(functools.partial(unet_scattering_dynamic_forward, params))
    out = fwd(x)
    jax.block_until_ready(out)
    assert out.shape == (N, out_channel, H, W), out.shape
    assert bool(jnp.all(jnp.isfinite(out)))
    print("KERNEL_OK")
</pallas_src>

<mosaic_0001>
module attributes {stable_mosaic.version = 11 : i64} {
  func.func @_conv3x3_direct_kernel(%arg0: i32, %arg1: memref<1x26x194xbf16, #tpu.memory_space<vmem>>, %arg2: memref<1x26x130xbf16, #tpu.memory_space<vmem>>, %arg3: memref<3x3x194x128xbf16, #tpu.memory_space<vmem>>, %arg4: memref<3x3x130x128xbf16, #tpu.memory_space<vmem>>, %arg5: memref<1x128xf32, #tpu.memory_space<vmem>>, %arg6: memref<1x16x128xbf16, #tpu.memory_space<vmem>>) attributes {dimension_semantics = [#tpu.dimension_semantics<parallel>], iteration_bounds = array<i64: 2>, scalar_prefetch = 0 : i64, scratch_operands = 0 : i64, tpu.core_type = #tpu.core_type<tc>, window_params = [{transform_indices = @transform_0, window_bounds = array<i64: 1, 26, 194>}, {transform_indices = @transform_1, window_bounds = array<i64: 1, 26, 130>}, {pipeline_mode = #tpu.pipeline_mode<synchronous>, transform_indices = @transform_2, window_bounds = array<i64: 3, 3, 194, 128>}, {pipeline_mode = #tpu.pipeline_mode<synchronous>, transform_indices = @transform_3, window_bounds = array<i64: 3, 3, 130, 128>}, {pipeline_mode = #tpu.pipeline_mode<synchronous>, transform_indices = @transform_4, window_bounds = array<i64: 1, 128>}, {transform_indices = @transform_5, window_bounds = array<i64: 1, 16, 128>}]} {
    %cst = arith.constant 0.000000e+00 : f32
    %0 = vector.broadcast %cst : f32 to vector<16x128xf32>
    %cst_0 = arith.constant 0.000000e+00 : f32
    %1 = vector.broadcast %cst_0 : f32 to vector<16x128xf32>
    %cst_1 = arith.constant 0.000000e+00 : f32
    %2 = vector.broadcast %cst_1 : f32 to vector<16x128xf32>
    %c0 = arith.constant 0 : index
    %c0_2 = arith.constant 0 : index
    %c0_3 = arith.constant 0 : index
    %3 = vector.load %arg1[%c0, %c0_2, %c0_3] : memref<1x26x194xbf16, #tpu.memory_space<vmem>>, vector<1x16x194xbf16>
    %4 = vector.shape_cast %3 : vector<1x16x194xbf16> to vector<16x194xbf16>
    %c0_4 = arith.constant 0 : index
    %c0_5 = arith.constant 0 : index
    %c0_6 = arith.constant 0 : index
    %c0_7 = arith.constant 0 : index
    %5 = vector.load %arg3[%c0_4, %c0_5, %c0_6, %c0_7] : memref<3x3x194x128xbf16, #tpu.memory_space<vmem>>, vector<1x1x194x128xbf16>
    %6 = vector.shape_cast %5 : vector<1x1x194x128xbf16> to vector<194x128xbf16>
    %cst_8 = arith.constant dense<0.000000e+00> : vector<16x128xf32>
    %7 = tpu.matmul %4, %6, %cst_8 {dimension_numbers = #tpu.dot_dimension_numbers<[1], [0], [0], [1], [0, 0, 1, 1], [], []>} : vector<16x194xbf16>, vector<194x128xbf16>, vector<16x128xf32> -> vector<16x128xf32>
    %8 = arith.addf %0, %7 : vector<16x128xf32>
    %c0_9 = arith.constant 0 : index
    %c1 = arith.constant 1 : index
    %c0_10 = arith.constant 0 : index
    %9 = vector.load %arg1[%c0_9, %c1, %c0_10] : memref<1x26x194xbf16, #tpu.memory_space<vmem>>, vector<1x16x194xbf16>
    %10 = vector.shape_cast %9 : vector<1x16x194xbf16> to vector<16x194xbf16>
    %c0_11 = arith.constant 0 : index
    %c1_12 = arith.constant 1 : index
    %c0_13 = arith.constant 0 : index
    %c0_14 = arith.constant 0 : index
    %11 = vector.load %arg3[%c0_11, %c1_12, %c0_13, %c0_14] : memref<3x3x194x128xbf16, #tpu.memory_space<vmem>>, vector<1x1x194x128xbf16>
    %12 = vector.shape_cast %11 : vector<1x1x194x128xbf16> to vector<194x128xbf16>
    %cst_15 = arith.constant dense<0.000000e+00> : vector<16x128xf32>
    %13 = tpu.matmul %10, %12, %cst_15 {dimension_numbers = #tpu.dot_dimension_numbers<[1], [0], [0], [1], [0, 0, 1, 1], [], []>} : vector<16x194xbf16>, vector<194x128xbf16>, vector<16x128xf32> -> vector<16x128xf32>
    %14 = arith.addf %1, %13 : vector<16x128xf32>
    %c0_16 = arith.constant 0 : index
    %c2 = arith.constant 2 : index
    %c0_17 = arith.constant 0 : index
    %15 = vector.load %arg1[%c0_16, %c2, %c0_17] : memref<1x26x194xbf16, #tpu.memory_space<vmem>>, vector<1x16x194xbf16>
    %16 = vector.shape_cast %15 : vector<1x16x194xbf16> to vector<16x194xbf16>
    %c0_18 = arith.constant 0 : index
    %c2_19 = arith.constant 2 : index
    %c0_20 = arith.constant 0 : index
    %c0_21 = arith.constant 0 : index
    %17 = vector.load %arg3[%c0_18, %c2_19, %c0_20, %c0_21] : memref<3x3x194x128xbf16, #tpu.memory_space<vmem>>, vector<1x1x194x128xbf16>
    %18 = vector.shape_cast %17 : vector<1x1x194x128xbf16> to vector<194x128xbf16>
    %cst_22 = arith.constant dense<0.000000e+00> : vector<16x128xf32>
    %19 = tpu.matmul %16, %18, %cst_22 {dimension_numbers = #tpu.dot_dimension_numbers<[1], [0], [0], [1], [0, 0, 1, 1], [], []>} : vector<16x194xbf16>, vector<194x128xbf16>, vector<16x128xf32> -> vector<16x128xf32>
    %20 = arith.addf %2, %19 : vector<16x128xf32>
    %c0_23 = arith.constant 0 : index
    %c4 = arith.constant 4 : index
    %c0_24 = arith.constant 0 : index
    %21 = vector.load %arg1[%c0_23, %c4, %c0_24] : memref<1x26x194xbf16, #tpu.memory_space<vmem>>, vector<1x16x194xbf16>
    %22 = vector.shape_cast %21 : vector<1x16x194xbf16> to vector<16x194xbf16>
    %c1_25 = arith.constant 1 : index
    %c0_26 = arith.constant 0 : index
    %c0_27 = arith.constant 0 : index
    %c0_28 = arith.constant 0 : index
    %23 = vector.load %arg3[%c1_25, %c0_26, %c0_27, %c0_28] : memref<3x3x194x128xbf16, #tpu.memory_space<vmem>>, vector<1x1x194x128xbf16>
    %24 = vector.shape_cast %23 : vector<1x1x194x128xbf16> to vector<194x128xbf16>
    %cst_29 = arith.constant dense<0.000000e+00> : vector<16x128xf32>
    %25 = tpu.matmul %22, %24, %cst_29 {dimension_numbers = #tpu.dot_dimension_numbers<[1], [0], [0], [1], [0, 0, 1, 1], [], []>} : vector<16x194xbf16>, vector<194x128xbf16>, vector<16x128xf32> -> vector<16x128xf32>
    %26 = arith.addf %8, %25 : vector<16x128xf32>
    %c0_30 = arith.constant 0 : index
    %c5 = arith.constant 5 : index
    %c0_31 = arith.constant 0 : index
    %27 = vector.load %arg1[%c0_30, %c5, %c0_31] : memref<1x26x194xbf16, #tpu.memory_space<vmem>>, vector<1x16x194xbf16>
    %28 = vector.shape_cast %27 : vector<1x16x194xbf16> to vector<16x194xbf16>
    %c1_32 = arith.constant 1 : index
    %c1_33 = arith.constant 1 : index
    %c0_34 = arith.constant 0 : index
    %c0_35 = arith.constant 0 : index
    %29 = vector.load %arg3[%c1_32, %c1_33, %c0_34, %c0_35] : memref<3x3x194x128xbf16, #tpu.memory_space<vmem>>, vector<1x1x194x128xbf16>
    %30 = vector.shape_cast %29 : vector<1x1x194x128xbf16> to vector<194x128xbf16>
    %cst_36 = arith.constant dense<0.000000e+00> : vector<16x128xf32>
    %31 = tpu.matmul %28, %30, %cst_36 {dimension_numbers = #tpu.dot_dimension_numbers<[1], [0], [0], [1], [0, 0, 1, 1], [], []>} : vector<16x194xbf16>, vector<194x128xbf16>, vector<16x128xf32> -> vector<16x128xf32>
    %32 = arith.addf %14, %31 : vector<16x128xf32>
    %c0_37 = arith.constant 0 : index
    %c6 = arith.constant 6 : index
    %c0_38 = arith.constant 0 : index
    %33 = vector.load %arg1[%c0_37, %c6, %c0_38] : memref<1x26x194xbf16, #tpu.memory_space<vmem>>, vector<1x16x194xbf16>
    %34 = vector.shape_cast %33 : vector<1x16x194xbf16> to vector<16x194xbf16>
    %c1_39 = arith.constant 1 : index
    %c2_40 = arith.constant 2 : index
    %c0_41 = arith.constant 0 : index
    %c0_42 = arith.constant 0 : index
    %35 = vector.load %arg3[%c1_39, %c2_40, %c0_41, %c0_42] : memref<3x3x194x128xbf16, #tpu.memory_space<vmem>>, vector<1x1x194x128xbf16>
    %36 = vector.shape_cast %35 : vector<1x1x194x128xbf16> to vector<194x128xbf16>
    %cst_43 = arith.constant dense<0.000000e+00> : vector<16x128xf32>
    %37 = tpu.matmul %34, %36, %cst_43 {dimension_numbers = #tpu.dot_dimension_numbers<[1], [0], [0], [1], [0, 0, 1, 1], [], []>} : vector<16x194xbf16>, vector<194x128xbf16>, vector<16x128xf32> -> vector<16x128xf32>
    %38 = arith.addf %20, %37 : vector<16x128xf32>
    %c0_44 = arith.constant 0 : index
    %c8 = arith.constant 8 : index
    %c0_45 = arith.constant 0 : index
    %39 = vector.load %arg1[%c0_44, %c8, %c0_45] : memref<1x26x194xbf16, #tpu.memory_space<vmem>>, vector<1x16x194xbf16>
    %40 = vector.shape_cast %39 : vector<1x16x194xbf16> to vector<16x194xbf16>
    %c2_46 = arith.constant 2 : index
    %c0_47 = arith.constant 0 : index
    %c0_48 = arith.constant 0 : index
    %c0_49 = arith.constant 0 : index
    %41 = vector.load %arg3[%c2_46, %c0_47, %c0_48, %c0_49] : memref<3x3x194x128xbf16, #tpu.memory_space<vmem>>, vector<1x1x194x128xbf16>
    %42 = vector.shape_cast %41 : vector<1x1x194x128xbf16> to vector<194x128xbf16>
    %cst_50 = arith.constant dense<0.000000e+00> : vector<16x128xf32>
    %43 = tpu.matmul %40, %42, %cst_50 {dimension_numbers = #tpu.dot_dimension_numbers<[1], [0], [0], [1], [0, 0, 1, 1], [], []>} : vector<16x194xbf16>, vector<194x128xbf16>, vector<16x128xf32> -> vector<16x128xf32>
    %44 = arith.addf %26, %43 : vector<16x128xf32>
    %c0_51 = arith.constant 0 : index
    %c9 = arith.constant 9 : index
    %c0_52 = arith.constant 0 : index
    %45 = vector.load %arg1[%c0_51, %c9, %c0_52] : memref<1x26x194xbf16, #tpu.memory_space<vmem>>, vector<1x16x194xbf16>
    %46 = vector.shape_cast %45 : vector<1x16x194xbf16> to vector<16x194xbf16>
    %c2_53 = arith.constant 2 : index
    %c1_54 = arith.constant 1 : index
    %c0_55 = arith.constant 0 : index
    %c0_56 = arith.constant 0 : index
    %47 = vector.load %arg3[%c2_53, %c1_54, %c0_55, %c0_56] : memref<3x3x194x128xbf16, #tpu.memory_space<vmem>>, vector<1x1x194x128xbf16>
    %48 = vector.shape_cast %47 : vector<1x1x194x128xbf16> to vector<194x128xbf16>
    %cst_57 = arith.constant dense<0.000000e+00> : vector<16x128xf32>
    %49 = tpu.matmul %46, %48, %cst_57 {dimension_numbers = #tpu.dot_dimension_numbers<[1], [0], [0], [1], [0, 0, 1, 1], [], []>} : vector<16x194xbf16>, vector<194x128xbf16>, vector<16x128xf32> -> vector<16x128xf32>
    %50 = arith.addf %32, %49 : vector<16x128xf32>
    %c0_58 = arith.constant 0 : index
    %c10 = arith.constant 10 : index
    %c0_59 = arith.constant 0 : index
    %51 = vector.load %arg1[%c0_58, %c10, %c0_59] : memref<1x26x194xbf16, #tpu.memory_space<vmem>>, vector<1x16x194xbf16>
    %52 = vector.shape_cast %51 : vector<1x16x194xbf16> to vector<16x194xbf16>
    %c2_60 = arith.constant 2 : index
    %c2_61 = arith.constant 2 : index
    %c0_62 = arith.constant 0 : index
    %c0_63 = arith.constant 0 : index
    %53 = vector.load %arg3[%c2_60, %c2_61, %c0_62, %c0_63] : memref<3x3x194x128xbf16, #tpu.memory_space<vmem>>, vector<1x1x194x128xbf16>
    %54 = vector.shape_cast %53 : vector<1x1x194x128xbf16> to vector<194x128xbf16>
    %cst_64 = arith.constant dense<0.000000e+00> : vector<16x128xf32>
    %55 = tpu.matmul %52, %54, %cst_64 {dimension_numbers = #tpu.dot_dimension_numbers<[1], [0], [0], [1], [0, 0, 1, 1], [], []>} : vector<16x194xbf16>, vector<194x128xbf16>, vector<16x128xf32> -> vector<16x128xf32>
    %56 = arith.addf %38, %55 : vector<16x128xf32>
    %c0_65 = arith.constant 0 : index
    %c0_66 = arith.constant 0 : index
    %c0_67 = arith.constant 0 : index
    %57 = vector.load %arg2[%c0_65, %c0_66, %c0_67] : memref<1x26x130xbf16, #tpu.memory_space<vmem>>, vector<1x16x130xbf16>
    %58 = vector.shape_cast %57 : vector<1x16x130xbf16> to vector<16x130xbf16>
    %c0_68 = arith.constant 0 : index
    %c0_69 = arith.constant 0 : index
    %c0_70 = arith.constant 0 : index
    %c0_71 = arith.constant 0 : index
    %59 = vector.load %arg4[%c0_68, %c0_69, %c0_70, %c0_71] : memref<3x3x130x128xbf16, #tpu.memory_space<vmem>>, vector<1x1x130x128xbf16>
    %60 = vector.shape_cast %59 : vector<1x1x130x128xbf16> to vector<130x128xbf16>
    %cst_72 = arith.constant dense<0.000000e+00> : vector<16x128xf32>
    %61 = tpu.matmul %58, %60, %cst_72 {dimension_numbers = #tpu.dot_dimension_numbers<[1], [0], [0], [1], [0, 0, 1, 1], [], []>} : vector<16x130xbf16>, vector<130x128xbf16>, vector<16x128xf32> -> vector<16x128xf32>
    %62 = arith.addf %44, %61 : vector<16x128xf32>
    %c0_73 = arith.constant 0 : index
    %c1_74 = arith.constant 1 : index
    %c0_75 = arith.constant 0 : index
    %63 = vector.load %arg2[%c0_73, %c1_74, %c0_75] : memref<1x26x130xbf16, #tpu.memory_space<vmem>>, vector<1x16x130xbf16>
    %64 = vector.shape_cast %63 : vector<1x16x130xbf16> to vector<16x130xbf16>
    %c0_76 = arith.constant 0 : index
    %c1_77 = arith.constant 1 : index
    %c0_78 = arith.constant 0 : index
    %c0_79 = arith.constant 0 : index
    %65 = vector.load %arg4[%c0_76, %c1_77, %c0_78, %c0_79] : memref<3x3x130x128xbf16, #tpu.memory_space<vmem>>, vector<1x1x130x128xbf16>
    %66 = vector.shape_cast %65 : vector<1x1x130x128xbf16> to vector<130x128xbf16>
    %cst_80 = arith.constant dense<0.000000e+00> : vector<16x128xf32>
    %67 = tpu.matmul %64, %66, %cst_80 {dimension_numbers = #tpu.dot_dimension_numbers<[1], [0], [0], [1], [0, 0, 1, 1], [], []>} : vector<16x130xbf16>, vector<130x128xbf16>, vector<16x128xf32> -> vector<16x128xf32>
    %68 = arith.addf %50, %67 : vector<16x128xf32>
    %c0_81 = arith.constant 0 : index
    %c2_82 = arith.constant 2 : index
    %c0_83 = arith.constant 0 : index
    %69 = vector.load %arg2[%c0_81, %c2_82, %c0_83] : memref<1x26x130xbf16, #tpu.memory_space<vmem>>, vector<1x16x130xbf16>
    %70 = vector.shape_cast %69 : vector<1x16x130xbf16> to vector<16x130xbf16>
    %c0_84 = arith.constant 0 : index
    %c2_85 = arith.constant 2 : index
    %c0_86 = arith.constant 0 : index
    %c0_87 = arith.constant 0 : index
    %71 = vector.load %arg4[%c0_84, %c2_85, %c0_86, %c0_87] : memref<3x3x130x128xbf16, #tpu.memory_space<vmem>>, vector<1x1x130x128xbf16>
    %72 = vector.shape_cast %71 : vector<1x1x130x128xbf16> to vector<130x128xbf16>
    %cst_88 = arith.constant dense<0.000000e+00> : vector<16x128xf32>
    %73 = tpu.matmul %70, %72, %cst_88 {dimension_numbers = #tpu.dot_dimension_numbers<[1], [0], [0], [1], [0, 0, 1, 1], [], []>} : vector<16x130xbf16>, vector<130x128xbf16>, vector<16x128xf32> -> vector<16x128xf32>
    %74 = arith.addf %56, %73 : vector<16x128xf32>
    %c0_89 = arith.constant 0 : index
    %c4_90 = arith.constant 4 : index
    %c0_91 = arith.constant 0 : index
    %75 = vector.load %arg2[%c0_89, %c4_90, %c0_91] : memref<1x26x130xbf16, #tpu.memory_space<vmem>>, vector<1x16x130xbf16>
    %76 = vector.shape_cast %75 : vector<1x16x130xbf16> to vector<16x130xbf16>
    %c1_92 = arith.constant 1 : index
    %c0_93 = arith.constant 0 : index
    %c0_94 = arith.constant 0 : index
    %c0_95 = arith.constant 0 : index
    %77 = vector.load %arg4[%c1_92, %c0_93, %c0_94, %c0_95] : memref<3x3x130x128xbf16, #tpu.memory_space<vmem>>, vector<1x1x130x128xbf16>
    %78 = vector.shape_cast %77 : vector<1x1x130x128xbf16> to vector<130x128xbf16>
    %cst_96 = arith.constant dense<0.000000e+00> : vector<16x128xf32>
    %79 = tpu.matmul %76, %78, %cst_96 {dimension_numbers = #tpu.dot_dimension_numbers<[1], [0], [0], [1], [0, 0, 1, 1], [], []>} : vector<16x130xbf16>, vector<130x128xbf16>, vector<16x128xf32> -> vector<16x128xf32>
    %80 = arith.addf %62, %79 : vector<16x128xf32>
    %c0_97 = arith.constant 0 : index
    %c5_98 = arith.constant 5 : index
    %c0_99 = arith.constant 0 : index
    %81 = vector.load %arg2[%c0_97, %c5_98, %c0_99] : memref<1x26x130xbf16, #tpu.memory_space<vmem>>, vector<1x16x130xbf16>
    %82 = vector.shape_cast %81 : vector<1x16x130xbf16> to vector<16x130xbf16>
    %c1_100 = arith.constant 1 : index
    %c1_101 = arith.constant 1 : index
    %c0_102 = arith.constant 0 : index
    %c0_103 = arith.constant 0 : index
    %83 = vector.load %arg4[%c1_100, %c1_101, %c0_102, %c0_103] : memref<3x3x130x128xbf16, #tpu.memory_space<vmem>>, vector<1x1x130x128xbf16>
    %84 = vector.shape_cast %83 : vector<1x1x130x128xbf16> to vector<130x128xbf16>
    %cst_104 = arith.constant dense<0.000000e+00> : vector<16x128xf32>
    %85 = tpu.matmul %82, %84, %cst_104 {dimension_numbers = #tpu.dot_dimension_numbers<[1], [0], [0], [1], [0, 0, 1, 1], [], []>} : vector<16x130xbf16>, vector<130x128xbf16>, vector<16x128xf32> -> vector<16x128xf32>
    %86 = arith.addf %68, %85 : vector<16x128xf32>
    %c0_105 = arith.constant 0 : index
    %c6_106 = arith.constant 6 : index
    %c0_107 = arith.constant 0 : index
    %87 = vector.load %arg2[%c0_105, %c6_106, %c0_107] : memref<1x26x130xbf16, #tpu.memory_space<vmem>>, vector<1x16x130xbf16>
    %88 = vector.shape_cast %87 : vector<1x16x130xbf16> to vector<16x130xbf16>
    %c1_108 = arith.constant 1 : index
    %c2_109 = arith.constant 2 : index
    %c0_110 = arith.constant 0 : index
    %c0_111 = arith.constant 0 : index
    %89 = vector.load %arg4[%c1_108, %c2_109, %c0_110, %c0_111] : memref<3x3x130x128xbf16, #tpu.memory_space<vmem>>, vector<1x1x130x128xbf16>
    %90 = vector.shape_cast %89 : vector<1x1x130x128xbf16> to vector<130x128xbf16>
    %cst_112 = arith.constant dense<0.000000e+00> : vector<16x128xf32>
    %91 = tpu.matmul %88, %90, %cst_112 {dimension_numbers = #tpu.dot_dimension_numbers<[1], [0], [0], [1], [0, 0, 1, 1], [], []>} : vector<16x130xbf16>, vector<130x128xbf16>, vector<16x128xf32> -> vector<16x128xf32>
    %92 = arith.addf %74, %91 : vector<16x128xf32>
    %c0_113 = arith.constant 0 : index
    %c8_114 = arith.constant 8 : index
    %c0_115 = arith.constant 0 : index
    %93 = vector.load %arg2[%c0_113, %c8_114, %c0_115] : memref<1x26x130xbf16, #tpu.memory_space<vmem>>, vector<1x16x130xbf16>
    %94 = vector.shape_cast %93 : vector<1x16x130xbf16> to vector<16x130xbf16>
    %c2_116 = arith.constant 2 : index
    %c0_117 = arith.constant 0 : index
    %c0_118 = arith.constant 0 : index
    %c0_119 = arith.constant 0 : index
    %95 = vector.load %arg4[%c2_116, %c0_117, %c0_118, %c0_119] : memref<3x3x130x128xbf16, #tpu.memory_space<vmem>>, vector<1x1x130x128xbf16>
    %96 = vector.shape_cast %95 : vector<1x1x130x128xbf16> to vector<130x128xbf16>
    %cst_120 = arith.constant dense<0.000000e+00> : vector<16x128xf32>
    %97 = tpu.matmul %94, %96, %cst_120 {dimension_numbers = #tpu.dot_dimension_numbers<[1], [0], [0], [1], [0, 0, 1, 1], [], []>} : vector<16x130xbf16>, vector<130x128xbf16>, vector<16x128xf32> -> vector<16x128xf32>
    %98 = arith.addf %80, %97 : vector<16x128xf32>
    %c0_121 = arith.constant 0 : index
    %c9_122 = arith.constant 9 : index
    %c0_123 = arith.constant 0 : index
    %99 = vector.load %arg2[%c0_121, %c9_122, %c0_123] : memref<1x26x130xbf16, #tpu.memory_space<vmem>>, vector<1x16x130xbf16>
    %100 = vector.shape_cast %99 : vector<1x16x130xbf16> to vector<16x130xbf16>
    %c2_124 = arith.constant 2 : index
    %c1_125 = arith.constant 1 : index
    %c0_126 = arith.constant 0 : index
    %c0_127 = arith.constant 0 : index
    %101 = vector.load %arg4[%c2_124, %c1_125, %c0_126, %c0_127] : memref<3x3x130x128xbf16, #tpu.memory_space<vmem>>, vector<1x1x130x128xbf16>
    %102 = vector.shape_cast %101 : vector<1x1x130x128xbf16> to vector<130x128xbf16>
    %cst_128 = arith.constant dense<0.000000e+00> : vector<16x128xf32>
    %103 = tpu.matmul %100, %102, %cst_128 {dimension_numbers = #tpu.dot_dimension_numbers<[1], [0], [0], [1], [0, 0, 1, 1], [], []>} : vector<16x130xbf16>, vector<130x128xbf16>, vector<16x128xf32> -> vector<16x128xf32>
    %104 = arith.addf %86, %103 : vector<16x128xf32>
    %c0_129 = arith.constant 0 : index
    %c10_130 = arith.constant 10 : index
    %c0_131 = arith.constant 0 : index
    %105 = vector.load %arg2[%c0_129, %c10_130, %c0_131] : memref<1x26x130xbf16, #tpu.memory_space<vmem>>, vector<1x16x130xbf16>
    %106 = vector.shape_cast %105 : vector<1x16x130xbf16> to vector<16x130xbf16>
    %c2_132 = arith.constant 2 : index
    %c2_133 = arith.constant 2 : index
    %c0_134 = arith.constant 0 : index
    %c0_135 = arith.constant 0 : index
    %107 = vector.load %arg4[%c2_132, %c2_133, %c0_134, %c0_135] : memref<3x3x130x128xbf16, #tpu.memory_space<vmem>>, vector<1x1x130x128xbf16>
    %108 = vector.shape_cast %107 : vector<1x1x130x128xbf16> to vector<130x128xbf16>
    %cst_136 = arith.constant dense<0.000000e+00> : vector<16x128xf32>
    %109 = tpu.matmul %106, %108, %cst_136 {dimension_numbers = #tpu.dot_dimension_numbers<[1], [0], [0], [1], [0, 0, 1, 1], [], []>} : vector<16x130xbf16>, vector<130x128xbf16>, vector<16x128xf32> -> vector<16x128xf32>
    %110 = arith.addf %92, %109 : vector<16x128xf32>
    %111 = tpu.iota {dimensions = array<i32: 0>} : vector<16x1xi32>
    %c4_i32 = arith.constant 4 : i32
    %c0_i32 = arith.constant 0 : i32
    %112 = arith.cmpi eq, %c4_i32, %c0_i32 : i32
    %c1_i32 = arith.constant 1 : i32
    %113 = arith.select %112, %c1_i32, %c4_i32 : i32
    %114 = vector.broadcast %113 : i32 to vector<16x1xi32>
    %115 = arith.remsi %111, %114 : vector<16x1xi32>
    %c0_i32_137 = arith.constant 0 : i32
    %116 = vector.broadcast %c0_i32_137 : i32 to vector<16x1xi32>
    %117 = arith.cmpi ne, %115, %116 : vector<16x1xi32>
    %c0_i32_138 = arith.constant 0 : i32
    %118 = vector.broadcast %c0_i32_138 : i32 to vector<16x1xi32>
    %119 = arith.cmpi slt, %115, %118 : vector<16x1xi32>
    %c0_i32_139 = arith.constant 0 : i32
    %120 = arith.cmpi slt, %113, %c0_i32_139 : i32
    %121 = vector.broadcast %120 : i1 to vector<16x1xi1>
    %122 = vector.broadcast %121 : vector<16x1xi1> to vector<16x1xi1>
    %123 = arith.xori %119, %122 : vector<16x1xi1>
    %124 = arith.andi %123, %117 : vector<16x1xi1>
    %125 = vector.broadcast %113 : i32 to vector<16x1xi32>
    %126 = arith.addi %115, %125 : vector<16x1xi32>
    %127 = arith.select %124, %126, %115 : vector<16x1xi1>, vector<16x1xi32>
    %c0_i32_140 = arith.constant 0 : i32
    %128 = vector.broadcast %c0_i32_140 : i32 to vector<16x1xi32>
    %129 = arith.cmpi eq, %127, %128 : vector<16x1xi32>
    %cst_141 = arith.constant 0.000000e+00 : f32
    %130 = vector.shape_cast %129 : vector<16x1xi1> to vector<16x1xi1>
    %131 = vector.broadcast %130 : vector<16x1xi1> to vector<16x128xi1>
    %132 = vector.broadcast %cst_141 : f32 to vector<16x128xf32>
    %133 = arith.select %131, %132, %98 : vector<16x128xi1>, vector<16x128xf32>
    %134 = arith.addf %133, %104 : vector<16x128xf32>
    %c3_i32 = arith.constant 3 : i32
    %135 = vector.broadcast %c3_i32 : i32 to vector<16x1xi32>
    %136 = arith.cmpi eq, %127, %135 : vector<16x1xi32>
    %cst_142 = arith.constant 0.000000e+00 : f32
    %137 = vector.shape_cast %136 : vector<16x1xi1> to vector<16x1xi1>
    %138 = vector.broadcast %137 : vector<16x1xi1> to vector<16x128xi1>
    %139 = vector.broadcast %cst_142 : f32 to vector<16x128xf32>
    %140 = arith.select %138, %139, %110 : vector<16x128xi1>, vector<16x128xf32>
    %141 = arith.addf %134, %140 : vector<16x128xf32>
    %c0_143 = arith.constant 0 : index
    %c0_144 = arith.constant 0 : index
    %142 = vector.load %arg5[%c0_143, %c0_144] : memref<1x128xf32, #tpu.memory_space<vmem>>, vector<1x128xf32>
    %143 = vector.broadcast %142 : vector<1x128xf32> to vector<16x128xf32>
    %144 = arith.addf %141, %143 : vector<16x128xf32>
    %cst_145 = arith.constant 0.000000e+00 : f32
    %145 = vector.broadcast %cst_145 : f32 to vector<16x128xf32>
    %146 = arith.maximumf %144, %145 : vector<16x128xf32>
    %147 = arith.truncf %146 : vector<16x128xf32> to vector<16x128xbf16>
    %c0_146 = arith.constant 0 : index
    %c0_147 = arith.constant 0 : index
    %c0_148 = arith.constant 0 : index
    %148 = vector.load %arg6[%c0_146, %c0_147, %c0_148] : memref<1x16x128xbf16, #tpu.memory_space<vmem>>, vector<1x16x128xbf16>
    %149 = vector.shape_cast %148 : vector<1x16x128xbf16> to vector<16x128xbf16>
    %150 = vector.shape_cast %147 : vector<16x128xbf16> to vector<1x16x128xbf16>
    tpu.vector_store %arg6[%c0_146, %c0_147, %c0_148], %150 {strides = array<i32>} : memref<1x16x128xbf16, #tpu.memory_space<vmem>>, vector<1x16x128xbf16>,
    return
  }
  func.func @transform_0(%arg0: i32) -> (i32, i32, i32) {
    %c0_i32 = arith.constant 0 : i32
    %c0_i32_0 = arith.constant 0 : i32
    %c0_i32_1 = arith.constant 0 : i32
    return %arg0, %c0_i32, %c0_i32_0 : i32, i32, i32
  }
  func.func @transform_1(%arg0: i32) -> (i32, i32, i32) {
    %c0_i32 = arith.constant 0 : i32
    %c0_i32_0 = arith.constant 0 : i32
    %c0_i32_1 = arith.constant 0 : i32
    return %arg0, %c0_i32, %c0_i32_0 : i32, i32, i32
  }
  func.func @transform_2(%arg0: i32) -> (i32, i32, i32, i32) {
    %c0_i32 = arith.constant 0 : i32
    %c0_i32_0 = arith.constant 0 : i32
    %c0_i32_1 = arith.constant 0 : i32
    %c0_i32_2 = arith.constant 0 : i32
    %c0_i32_3 = arith.constant 0 : i32
    return %c0_i32, %c0_i32_0, %c0_i32_1, %c0_i32_2 : i32, i32, i32, i32
  }
  func.func @transform_3(%arg0: i32) -> (i32, i32, i32, i32) {
    %c0_i32 = arith.constant 0 : i32
    %c0_i32_0 = arith.constant 0 : i32
    %c0_i32_1 = arith.constant 0 : i32
    %c0_i32_2 = arith.constant 0 : i32
    %c0_i32_3 = arith.constant 0 : i32
    return %c0_i32, %c0_i32_0, %c0_i32_1, %c0_i32_2 : i32, i32, i32, i32
  }
  func.func @transform_4(%arg0: i32) -> (i32, i32) {
    %c0_i32 = arith.constant 0 : i32
    %c0_i32_0 = arith.constant 0 : i32
    %c0_i32_1 = arith.constant 0 : i32
    return %c0_i32, %c0_i32_0 : i32, i32
  }
  func.func @transform_5(%arg0: i32) -> (i32, i32, i32) {
    %c0_i32 = arith.constant 0 : i32
    %c0_i32_0 = arith.constant 0 : i32
    %c0_i32_1 = arith.constant 0 : i32
    return %arg0, %c0_i32, %c0_i32_0 : i32, i32, i32
  }
}

module attributes {stable_mosaic.version = 11 : i64} {
  func.func @_conv3x3_direct_kernel(%arg0: i32, %arg1: memref<1x26x128xbf16, #tpu.memory_space<vmem>>, %arg2: memref<3x3x128x128xbf16, #tpu.memory_space<vmem>>, %arg3: memref<1x128xf32, #tpu.memory_space<vmem>>, %arg4: memref<1x16x128xbf16, #tpu.memory_space<vmem>>) attributes {dimension_semantics = [#tpu.dimension_semantics<parallel>], iteration_bounds = array<i64: 2>, scalar_prefetch = 0 : i64, scratch_operands = 0 : i64, tpu.core_type = #tpu.core_type<tc>, window_params = [{transform_indices = @transform_0, window_bounds = array<i64: 1, 26, 128>}, {pipeline_mode = #tpu.pipeline_mode<synchronous>, transform_indices = @transform_1, window_bounds = array<i64: 3, 3, 128, 128>}, {pipeline_mode = #tpu.pipeline_mode<synchronous>, transform_indices = @transform_2, window_bounds = array<i64: 1, 128>}, {transform_indices = @transform_3, window_bounds = array<i64: 1, 16, 128>}]} {
    %cst = arith.constant 0.000000e+00 : f32
    %0 = vector.broadcast %cst : f32 to vector<16x128xf32>
    %cst_0 = arith.constant 0.000000e+00 : f32
    %1 = vector.broadcast %cst_0 : f32 to vector<16x128xf32>
    %cst_1 = arith.constant 0.000000e+00 : f32
    %2 = vector.broadcast %cst_1 : f32 to vector<16x128xf32>
    %c0 = arith.constant 0 : index
    %c0_2 = arith.constant 0 : index
    %c0_3 = arith.constant 0 : index
    %3 = vector.load %arg1[%c0, %c0_2, %c0_3] : memref<1x26x128xbf16, #tpu.memory_space<vmem>>, vector<1x16x128xbf16>
    %4 = vector.shape_cast %3 : vector<1x16x128xbf16> to vector<16x128xbf16>
    %c0_4 = arith.constant 0 : index
    %c0_5 = arith.constant 0 : index
    %c0_6 = arith.constant 0 : index
    %c0_7 = arith.constant 0 : index
    %5 = vector.load %arg2[%c0_4, %c0_5, %c0_6, %c0_7] : memref<3x3x128x128xbf16, #tpu.memory_space<vmem>>, vector<1x1x128x128xbf16>
    %6 = vector.shape_cast %5 : vector<1x1x128x128xbf16> to vector<128x128xbf16>
    %cst_8 = arith.constant dense<0.000000e+00> : vector<16x128xf32>
    %7 = tpu.matmul %4, %6, %cst_8 {dimension_numbers = #tpu.dot_dimension_numbers<[1], [0], [0], [1], [0, 0, 1, 1], [], []>} : vector<16x128xbf16>, vector<128x128xbf16>, vector<16x128xf32> -> vector<16x128xf32>
    %8 = arith.addf %0, %7 : vector<16x128xf32>
    %c0_9 = arith.constant 0 : index
    %c1 = arith.constant 1 : index
    %c0_10 = arith.constant 0 : index
    %9 = vector.load %arg1[%c0_9, %c1, %c0_10] : memref<1x26x128xbf16, #tpu.memory_space<vmem>>, vector<1x16x128xbf16>
    %10 = vector.shape_cast %9 : vector<1x16x128xbf16> to vector<16x128xbf16>
    %c0_11 = arith.constant 0 : index
    %c1_12 = arith.constant 1 : index
    %c0_13 = arith.constant 0 : index
    %c0_14 = arith.constant 0 : index
    %11 = vector.load %arg2[%c0_11, %c1_12, %c0_13, %c0_14] : memref<3x3x128x128xbf16, #tpu.memory_space<vmem>>, vector<1x1x128x128xbf16>
    %12 = vector.shape_cast %11 : vector<1x1x128x128xbf16> to vector<128x128xbf16>
    %cst_15 = arith.constant dense<0.000000e+00> : vector<16x128xf32>
    %13 = tpu.matmul %10, %12, %cst_15 {dimension_numbers = #tpu.dot_dimension_numbers<[1], [0], [0], [1], [0, 0, 1, 1], [], []>} : vector<16x128xbf16>, vector<128x128xbf16>, vector<16x128xf32> -> vector<16x128xf32>
    %14 = arith.addf %1, %13 : vector<16x128xf32>
    %c0_16 = arith.constant 0 : index
    %c2 = arith.constant 2 : index
    %c0_17 = arith.constant 0 : index
    %15 = vector.load %arg1[%c0_16, %c2, %c0_17] : memref<1x26x128xbf16, #tpu.memory_space<vmem>>, vector<1x16x128xbf16>
    %16 = vector.shape_cast %15 : vector<1x16x128xbf16> to vector<16x128xbf16>
    %c0_18 = arith.constant 0 : index
    %c2_19 = arith.constant 2 : index
    %c0_20 = arith.constant 0 : index
    %c0_21 = arith.constant 0 : index
    %17 = vector.load %arg2[%c0_18, %c2_19, %c0_20, %c0_21] : memref<3x3x128x128xbf16, #tpu.memory_space<vmem>>, vector<1x1x128x128xbf16>
    %18 = vector.shape_cast %17 : vector<1x1x128x128xbf16> to vector<128x128xbf16>
    %cst_22 = arith.constant dense<0.000000e+00> : vector<16x128xf32>
    %19 = tpu.matmul %16, %18, %cst_22 {dimension_numbers = #tpu.dot_dimension_numbers<[1], [0], [0], [1], [0, 0, 1, 1], [], []>} : vector<16x128xbf16>, vector<128x128xbf16>, vector<16x128xf32> -> vector<16x128xf32>
    %20 = arith.addf %2, %19 : vector<16x128xf32>
    %c0_23 = arith.constant 0 : index
    %c4 = arith.constant 4 : index
    %c0_24 = arith.constant 0 : index
    %21 = vector.load %arg1[%c0_23, %c4, %c0_24] : memref<1x26x128xbf16, #tpu.memory_space<vmem>>, vector<1x16x128xbf16>
    %22 = vector.shape_cast %21 : vector<1x16x128xbf16> to vector<16x128xbf16>
    %c1_25 = arith.constant 1 : index
    %c0_26 = arith.constant 0 : index
    %c0_27 = arith.constant 0 : index
    %c0_28 = arith.constant 0 : index
    %23 = vector.load %arg2[%c1_25, %c0_26, %c0_27, %c0_28] : memref<3x3x128x128xbf16, #tpu.memory_space<vmem>>, vector<1x1x128x128xbf16>
    %24 = vector.shape_cast %23 : vector<1x1x128x128xbf16> to vector<128x128xbf16>
    %cst_29 = arith.constant dense<0.000000e+00> : vector<16x128xf32>
    %25 = tpu.matmul %22, %24, %cst_29 {dimension_numbers = #tpu.dot_dimension_numbers<[1], [0], [0], [1], [0, 0, 1, 1], [], []>} : vector<16x128xbf16>, vector<128x128xbf16>, vector<16x128xf32> -> vector<16x128xf32>
    %26 = arith.addf %8, %25 : vector<16x128xf32>
    %c0_30 = arith.constant 0 : index
    %c5 = arith.constant 5 : index
    %c0_31 = arith.constant 0 : index
    %27 = vector.load %arg1[%c0_30, %c5, %c0_31] : memref<1x26x128xbf16, #tpu.memory_space<vmem>>, vector<1x16x128xbf16>
    %28 = vector.shape_cast %27 : vector<1x16x128xbf16> to vector<16x128xbf16>
    %c1_32 = arith.constant 1 : index
    %c1_33 = arith.constant 1 : index
    %c0_34 = arith.constant 0 : index
    %c0_35 = arith.constant 0 : index
    %29 = vector.load %arg2[%c1_32, %c1_33, %c0_34, %c0_35] : memref<3x3x128x128xbf16, #tpu.memory_space<vmem>>, vector<1x1x128x128xbf16>
    %30 = vector.shape_cast %29 : vector<1x1x128x128xbf16> to vector<128x128xbf16>
    %cst_36 = arith.constant dense<0.000000e+00> : vector<16x128xf32>
    %31 = tpu.matmul %28, %30, %cst_36 {dimension_numbers = #tpu.dot_dimension_numbers<[1], [0], [0], [1], [0, 0, 1, 1], [], []>} : vector<16x128xbf16>, vector<128x128xbf16>, vector<16x128xf32> -> vector<16x128xf32>
    %32 = arith.addf %14, %31 : vector<16x128xf32>
    %c0_37 = arith.constant 0 : index
    %c6 = arith.constant 6 : index
    %c0_38 = arith.constant 0 : index
    %33 = vector.load %arg1[%c0_37, %c6, %c0_38] : memref<1x26x128xbf16, #tpu.memory_space<vmem>>, vector<1x16x128xbf16>
    %34 = vector.shape_cast %33 : vector<1x16x128xbf16> to vector<16x128xbf16>
    %c1_39 = arith.constant 1 : index
    %c2_40 = arith.constant 2 : index
    %c0_41 = arith.constant 0 : index
    %c0_42 = arith.constant 0 : index
    %35 = vector.load %arg2[%c1_39, %c2_40, %c0_41, %c0_42] : memref<3x3x128x128xbf16, #tpu.memory_space<vmem>>, vector<1x1x128x128xbf16>
    %36 = vector.shape_cast %35 : vector<1x1x128x128xbf16> to vector<128x128xbf16>
    %cst_43 = arith.constant dense<0.000000e+00> : vector<16x128xf32>
    %37 = tpu.matmul %34, %36, %cst_43 {dimension_numbers = #tpu.dot_dimension_numbers<[1], [0], [0], [1], [0, 0, 1, 1], [], []>} : vector<16x128xbf16>, vector<128x128xbf16>, vector<16x128xf32> -> vector<16x128xf32>
    %38 = arith.addf %20, %37 : vector<16x128xf32>
    %c0_44 = arith.constant 0 : index
    %c8 = arith.constant 8 : index
    %c0_45 = arith.constant 0 : index
    %39 = vector.load %arg1[%c0_44, %c8, %c0_45] : memref<1x26x128xbf16, #tpu.memory_space<vmem>>, vector<1x16x128xbf16>
    %40 = vector.shape_cast %39 : vector<1x16x128xbf16> to vector<16x128xbf16>
    %c2_46 = arith.constant 2 : index
    %c0_47 = arith.constant 0 : index
    %c0_48 = arith.constant 0 : index
    %c0_49 = arith.constant 0 : index
    %41 = vector.load %arg2[%c2_46, %c0_47, %c0_48, %c0_49] : memref<3x3x128x128xbf16, #tpu.memory_space<vmem>>, vector<1x1x128x128xbf16>
    %42 = vector.shape_cast %41 : vector<1x1x128x128xbf16> to vector<128x128xbf16>
    %cst_50 = arith.constant dense<0.000000e+00> : vector<16x128xf32>
    %43 = tpu.matmul %40, %42, %cst_50 {dimension_numbers = #tpu.dot_dimension_numbers<[1], [0], [0], [1], [0, 0, 1, 1], [], []>} : vector<16x128xbf16>, vector<128x128xbf16>, vector<16x128xf32> -> vector<16x128xf32>
    %44 = arith.addf %26, %43 : vector<16x128xf32>
    %c0_51 = arith.constant 0 : index
    %c9 = arith.constant 9 : index
    %c0_52 = arith.constant 0 : index
    %45 = vector.load %arg1[%c0_51, %c9, %c0_52] : memref<1x26x128xbf16, #tpu.memory_space<vmem>>, vector<1x16x128xbf16>
    %46 = vector.shape_cast %45 : vector<1x16x128xbf16> to vector<16x128xbf16>
    %c2_53 = arith.constant 2 : index
    %c1_54 = arith.constant 1 : index
    %c0_55 = arith.constant 0 : index
    %c0_56 = arith.constant 0 : index
    %47 = vector.load %arg2[%c2_53, %c1_54, %c0_55, %c0_56] : memref<3x3x128x128xbf16, #tpu.memory_space<vmem>>, vector<1x1x128x128xbf16>
    %48 = vector.shape_cast %47 : vector<1x1x128x128xbf16> to vector<128x128xbf16>
    %cst_57 = arith.constant dense<0.000000e+00> : vector<16x128xf32>
    %49 = tpu.matmul %46, %48, %cst_57 {dimension_numbers = #tpu.dot_dimension_numbers<[1], [0], [0], [1], [0, 0, 1, 1], [], []>} : vector<16x128xbf16>, vector<128x128xbf16>, vector<16x128xf32> -> vector<16x128xf32>
    %50 = arith.addf %32, %49 : vector<16x128xf32>
    %c0_58 = arith.constant 0 : index
    %c10 = arith.constant 10 : index
    %c0_59 = arith.constant 0 : index
    %51 = vector.load %arg1[%c0_58, %c10, %c0_59] : memref<1x26x128xbf16, #tpu.memory_space<vmem>>, vector<1x16x128xbf16>
    %52 = vector.shape_cast %51 : vector<1x16x128xbf16> to vector<16x128xbf16>
    %c2_60 = arith.constant 2 : index
    %c2_61 = arith.constant 2 : index
    %c0_62 = arith.constant 0 : index
    %c0_63 = arith.constant 0 : index
    %53 = vector.load %arg2[%c2_60, %c2_61, %c0_62, %c0_63] : memref<3x3x128x128xbf16, #tpu.memory_space<vmem>>, vector<1x1x128x128xbf16>
    %54 = vector.shape_cast %53 : vector<1x1x128x128xbf16> to vector<128x128xbf16>
    %cst_64 = arith.constant dense<0.000000e+00> : vector<16x128xf32>
    %55 = tpu.matmul %52, %54, %cst_64 {dimension_numbers = #tpu.dot_dimension_numbers<[1], [0], [0], [1], [0, 0, 1, 1], [], []>} : vector<16x128xbf16>, vector<128x128xbf16>, vector<16x128xf32> -> vector<16x128xf32>
    %56 = arith.addf %38, %55 : vector<16x128xf32>
    %57 = tpu.iota {dimensions = array<i32: 0>} : vector<16x1xi32>
    %c4_i32 = arith.constant 4 : i32
    %c0_i32 = arith.constant 0 : i32
    %58 = arith.cmpi eq, %c4_i32, %c0_i32 : i32
    %c1_i32 = arith.constant 1 : i32
    %59 = arith.select %58, %c1_i32, %c4_i32 : i32
    %60 = vector.broadcast %59 : i32 to vector<16x1xi32>
    %61 = arith.remsi %57, %60 : vector<16x1xi32>
    %c0_i32_65 = arith.constant 0 : i32
    %62 = vector.broadcast %c0_i32_65 : i32 to vector<16x1xi32>
    %63 = arith.cmpi ne, %61, %62 : vector<16x1xi32>
    %c0_i32_66 = arith.constant 0 : i32
    %64 = vector.broadcast %c0_i32_66 : i32 to vector<16x1xi32>
    %65 = arith.cmpi slt, %61, %64 : vector<16x1xi32>
    %c0_i32_67 = arith.constant 0 : i32
    %66 = arith.cmpi slt, %59, %c0_i32_67 : i32
    %67 = vector.broadcast %66 : i1 to vector<16x1xi1>
    %68 = vector.broadcast %67 : vector<16x1xi1> to vector<16x1xi1>
    %69 = arith.xori %65, %68 : vector<16x1xi1>
    %70 = arith.andi %69, %63 : vector<16x1xi1>
    %71 = vector.broadcast %59 : i32 to vector<16x1xi32>
    %72 = arith.addi %61, %71 : vector<16x1xi32>
    %73 = arith.select %70, %72, %61 : vector<16x1xi1>, vector<16x1xi32>
    %c0_i32_68 = arith.constant 0 : i32
    %74 = vector.broadcast %c0_i32_68 : i32 to vector<16x1xi32>
    %75 = arith.cmpi eq, %73, %74 : vector<16x1xi32>
    %cst_69 = arith.constant 0.000000e+00 : f32
    %76 = vector.shape_cast %75 : vector<16x1xi1> to vector<16x1xi1>
    %77 = vector.broadcast %76 : vector<16x1xi1> to vector<16x128xi1>
    %78 = vector.broadcast %cst_69 : f32 to vector<16x128xf32>
    %79 = arith.select %77, %78, %44 : vector<16x128xi1>, vector<16x128xf32>
    %80 = arith.addf %79, %50 : vector<16x128xf32>
    %c3_i32 = arith.constant 3 : i32
    %81 = vector.broadcast %c3_i32 : i32 to vector<16x1xi32>
    %82 = arith.cmpi eq, %73, %81 : vector<16x1xi32>
    %cst_70 = arith.constant 0.000000e+00 : f32
    %83 = vector.shape_cast %82 : vector<16x1xi1> to vector<16x1xi1>
    %84 = vector.broadcast %83 : vector<16x1xi1> to vector<16x128xi1>
    %85 = vector.broadcast %cst_70 : f32 to vector<16x128xf32>
    %86 = arith.select %84, %85, %56 : vector<16x128xi1>, vector<16x128xf32>
    %87 = arith.addf %80, %86 : vector<16x128xf32>
    %c0_71 = arith.constant 0 : index
    %c0_72 = arith.constant 0 : index
    %88 = vector.load %arg3[%c0_71, %c0_72] : memref<1x128xf32, #tpu.memory_space<vmem>>, vector<1x128xf32>
    %89 = vector.broadcast %88 : vector<1x128xf32> to vector<16x128xf32>
    %90 = arith.addf %87, %89 : vector<16x128xf32>
    %cst_73 = arith.constant 0.000000e+00 : f32
    %91 = vector.broadcast %cst_73 : f32 to vector<16x128xf32>
    %92 = arith.maximumf %90, %91 : vector<16x128xf32>
    %93 = arith.truncf %92 : vector<16x128xf32> to vector<16x128xbf16>
    %c0_74 = arith.constant 0 : index
    %c0_75 = arith.constant 0 : index
    %c0_76 = arith.constant 0 : index
    %94 = vector.load %arg4[%c0_74, %c0_75, %c0_76] : memref<1x16x128xbf16, #tpu.memory_space<vmem>>, vector<1x16x128xbf16>
    %95 = vector.shape_cast %94 : vector<1x16x128xbf16> to vector<16x128xbf16>
    %96 = vector.shape_cast %93 : vector<16x128xbf16> to vector<1x16x128xbf16>
    tpu.vector_store %arg4[%c0_74, %c0_75, %c0_76], %96 {strides = array<i32>} : memref<1x16x128xbf16, #tpu.memory_space<vmem>>, vector<1x16x128xbf16>,
    return
  }
  func.func @transform_0(%arg0: i32) -> (i32, i32, i32) {
    %c0_i32 = arith.constant 0 : i32
    %c0_i32_0 = arith.constant 0 : i32
    %c0_i32_1 = arith.constant 0 : i32
    return %arg0, %c0_i32, %c0_i32_0 : i32, i32, i32
  }
  func.func @transform_1(%arg0: i32) -> (i32, i32, i32, i32) {
    %c0_i32 = arith.constant 0 : i32
    %c0_i32_0 = arith.constant 0 : i32
    %c0_i32_1 = arith.constant 0 : i32
    %c0_i32_2 = arith.constant 0 : i32
    %c0_i32_3 = arith.constant 0 : i32
    return %c0_i32, %c0_i32_0, %c0_i32_1, %c0_i32_2 : i32, i32, i32, i32
  }
  func.func @transform_2(%arg0: i32) -> (i32, i32) {
    %c0_i32 = arith.constant 0 : i32
    %c0_i32_0 = arith.constant 0 : i32
    %c0_i32_1 = arith.constant 0 : i32
    return %c0_i32, %c0_i32_0 : i32, i32
  }
  func.func @transform_3(%arg0: i32) -> (i32, i32, i32) {
    %c0_i32 = arith.constant 0 : i32
    %c0_i32_0 = arith.constant 0 : i32
    %c0_i32_1 = arith.constant 0 : i32
    return %arg0, %c0_i32, %c0_i32_0 : i32, i32, i32
  }
}

module attributes {stable_mosaic.version = 11 : i64} {
  func.func @_conv3x3_direct_kernel(%arg0: i32, %arg1: memref<1x82x128xbf16, #tpu.memory_space<vmem>>, %arg2: memref<1x82x66xbf16, #tpu.memory_space<vmem>>, %arg3: memref<3x3x128x64xbf16, #tpu.memory_space<vmem>>, %arg4: memref<3x3x66x64xbf16, #tpu.memory_space<vmem>>, %arg5: memref<1x64xf32, #tpu.memory_space<vmem>>, %arg6: memref<1x64x64xbf16, #tpu.memory_space<vmem>>) attributes {dimension_semantics = [#tpu.dimension_semantics<parallel>], iteration_bounds = array<i64: 2>, scalar_prefetch = 0 : i64, scratch_operands = 0 : i64, tpu.core_type = #tpu.core_type<tc>, window_params = [{transform_indices = @transform_0, window_bounds = array<i64: 1, 82, 128>}, {transform_indices = @transform_1, window_bounds = array<i64: 1, 82, 66>}, {pipeline_mode = #tpu.pipeline_mode<synchronous>, transform_indices = @transform_2, window_bounds = array<i64: 3, 3, 128, 64>}, {pipeline_mode = #tpu.pipeline_mode<synchronous>, transform_indices = @transform_3, window_bounds = array<i64: 3, 3, 66, 64>}, {pipeline_mode = #tpu.pipeline_mode<synchronous>, transform_indices = @transform_4, window_bounds = array<i64: 1, 64>}, {transform_indices = @transform_5, window_bounds = array<i64: 1, 64, 64>}]} {
    %cst = arith.constant 0.000000e+00 : f32
    %0 = vector.broadcast %cst : f32 to vector<64x64xf32>
    %cst_0 = arith.constant 0.000000e+00 : f32
    %1 = vector.broadcast %cst_0 : f32 to vector<64x64xf32>
    %cst_1 = arith.constant 0.000000e+00 : f32
    %2 = vector.broadcast %cst_1 : f32 to vector<64x64xf32>
    %c0 = arith.constant 0 : index
    %c0_2 = arith.constant 0 : index
    %c0_3 = arith.constant 0 : index
    %3 = vector.load %arg1[%c0, %c0_2, %c0_3] : memref<1x82x128xbf16, #tpu.memory_space<vmem>>, vector<1x64x128xbf16>
    %4 = vector.shape_cast %3 : vector<1x64x128xbf16> to vector<64x128xbf16>
    %c0_4 = arith.constant 0 : index
    %c0_5 = arith.constant 0 : index
    %c0_6 = arith.constant 0 : index
    %c0_7 = arith.constant 0 : index
    %5 = vector.load %arg3[%c0_4, %c0_5, %c0_6, %c0_7] : memref<3x3x128x64xbf16, #tpu.memory_space<vmem>>, vector<1x1x128x64xbf16>
    %6 = vector.shape_cast %5 : vector<1x1x128x64xbf16> to vector<128x64xbf16>
    %cst_8 = arith.constant dense<0.000000e+00> : vector<64x64xf32>
    %7 = tpu.matmul %4, %6, %cst_8 {dimension_numbers = #tpu.dot_dimension_numbers<[1], [0], [0], [1], [0, 0, 1, 1], [], []>} : vector<64x128xbf16>, vector<128x64xbf16>, vector<64x64xf32> -> vector<64x64xf32>
    %8 = arith.addf %0, %7 : vector<64x64xf32>
    %c0_9 = arith.constant 0 : index
    %c1 = arith.constant 1 : index
    %c0_10 = arith.constant 0 : index
    %9 = vector.load %arg1[%c0_9, %c1, %c0_10] : memref<1x82x128xbf16, #tpu.memory_space<vmem>>, vector<1x64x128xbf16>
    %10 = vector.shape_cast %9 : vector<1x64x128xbf16> to vector<64x128xbf16>
    %c0_11 = arith.constant 0 : index
    %c1_12 = arith.constant 1 : index
    %c0_13 = arith.constant 0 : index
    %c0_14 = arith.constant 0 : index
    %11 = vector.load %arg3[%c0_11, %c1_12, %c0_13, %c0_14] : memref<3x3x128x64xbf16, #tpu.memory_space<vmem>>, vector<1x1x128x64xbf16>
    %12 = vector.shape_cast %11 : vector<1x1x128x64xbf16> to vector<128x64xbf16>
    %cst_15 = arith.constant dense<0.000000e+00> : vector<64x64xf32>
    %13 = tpu.matmul %10, %12, %cst_15 {dimension_numbers = #tpu.dot_dimension_numbers<[1], [0], [0], [1], [0, 0, 1, 1], [], []>} : vector<64x128xbf16>, vector<128x64xbf16>, vector<64x64xf32> -> vector<64x64xf32>
    %14 = arith.addf %1, %13 : vector<64x64xf32>
    %c0_16 = arith.constant 0 : index
    %c2 = arith.constant 2 : index
    %c0_17 = arith.constant 0 : index
    %15 = vector.load %arg1[%c0_16, %c2, %c0_17] : memref<1x82x128xbf16, #tpu.memory_space<vmem>>, vector<1x64x128xbf16>
    %16 = vector.shape_cast %15 : vector<1x64x128xbf16> to vector<64x128xbf16>
    %c0_18 = arith.constant 0 : index
    %c2_19 = arith.constant 2 : index
    %c0_20 = arith.constant 0 : index
    %c0_21 = arith.constant 0 : index
    %17 = vector.load %arg3[%c0_18, %c2_19, %c0_20, %c0_21] : memref<3x3x128x64xbf16, #tpu.memory_space<vmem>>, vector<1x1x128x64xbf16>
    %18 = vector.shape_cast %17 : vector<1x1x128x64xbf16> to vector<128x64xbf16>
    %cst_22 = arith.constant dense<0.000000e+00> : vector<64x64xf32>
    %19 = tpu.matmul %16, %18, %cst_22 {dimension_numbers = #tpu.dot_dimension_numbers<[1], [0], [0], [1], [0, 0, 1, 1], [], []>} : vector<64x128xbf16>, vector<128x64xbf16>, vector<64x64xf32> -> vector<64x64xf32>
    %20 = arith.addf %2, %19 : vector<64x64xf32>
    %c0_23 = arith.constant 0 : index
    %c8 = arith.constant 8 : index
    %c0_24 = arith.constant 0 : index
    %21 = vector.load %arg1[%c0_23, %c8, %c0_24] : memref<1x82x128xbf16, #tpu.memory_space<vmem>>, vector<1x64x128xbf16>
    %22 = vector.shape_cast %21 : vector<1x64x128xbf16> to vector<64x128xbf16>
    %c1_25 = arith.constant 1 : index
    %c0_26 = arith.constant 0 : index
    %c0_27 = arith.constant 0 : index
    %c0_28 = arith.constant 0 : index
    %23 = vector.load %arg3[%c1_25, %c0_26, %c0_27, %c0_28] : memref<3x3x128x64xbf16, #tpu.memory_space<vmem>>, vector<1x1x128x64xbf16>
    %24 = vector.shape_cast %23 : vector<1x1x128x64xbf16> to vector<128x64xbf16>
    %cst_29 = arith.constant dense<0.000000e+00> : vector<64x64xf32>
    %25 = tpu.matmul %22, %24, %cst_29 {dimension_numbers = #tpu.dot_dimension_numbers<[1], [0], [0], [1], [0, 0, 1, 1], [], []>} : vector<64x128xbf16>, vector<128x64xbf16>, vector<64x64xf32> -> vector<64x64xf32>
    %26 = arith.addf %8, %25 : vector<64x64xf32>
    %c0_30 = arith.constant 0 : index
    %c9 = arith.constant 9 : index
    %c0_31 = arith.constant 0 : index
    %27 = vector.load %arg1[%c0_30, %c9, %c0_31] : memref<1x82x128xbf16, #tpu.memory_space<vmem>>, vector<1x64x128xbf16>
    %28 = vector.shape_cast %27 : vector<1x64x128xbf16> to vector<64x128xbf16>
    %c1_32 = arith.constant 1 : index
    %c1_33 = arith.constant 1 : index
    %c0_34 = arith.constant 0 : index
    %c0_35 = arith.constant 0 : index
    %29 = vector.load %arg3[%c1_32, %c1_33, %c0_34, %c0_35] : memref<3x3x128x64xbf16, #tpu.memory_space<vmem>>, vector<1x1x128x64xbf16>
    %30 = vector.shape_cast %29 : vector<1x1x128x64xbf16> to vector<128x64xbf16>
    %cst_36 = arith.constant dense<0.000000e+00> : vector<64x64xf32>
    %31 = tpu.matmul %28, %30, %cst_36 {dimension_numbers = #tpu.dot_dimension_numbers<[1], [0], [0], [1], [0, 0, 1, 1], [], []>} : vector<64x128xbf16>, vector<128x64xbf16>, vector<64x64xf32> -> vector<64x64xf32>
    %32 = arith.addf %14, %31 : vector<64x64xf32>
    %c0_37 = arith.constant 0 : index
    %c10 = arith.constant 10 : index
    %c0_38 = arith.constant 0 : index
    %33 = vector.load %arg1[%c0_37, %c10, %c0_38] : memref<1x82x128xbf16, #tpu.memory_space<vmem>>, vector<1x64x128xbf16>
    %34 = vector.shape_cast %33 : vector<1x64x128xbf16> to vector<64x128xbf16>
    %c1_39 = arith.constant 1 : index
    %c2_40 = arith.constant 2 : index
    %c0_41 = arith.constant 0 : index
    %c0_42 = arith.constant 0 : index
    %35 = vector.load %arg3[%c1_39, %c2_40, %c0_41, %c0_42] : memref<3x3x128x64xbf16, #tpu.memory_space<vmem>>, vector<1x1x128x64xbf16>
    %36 = vector.shape_cast %35 : vector<1x1x128x64xbf16> to vector<128x64xbf16>
    %cst_43 = arith.constant dense<0.000000e+00> : vector<64x64xf32>
    %37 = tpu.matmul %34, %36, %cst_43 {dimension_numbers = #tpu.dot_dimension_numbers<[1], [0], [0], [1], [0, 0, 1, 1], [], []>} : vector<64x128xbf16>, vector<128x64xbf16>, vector<64x64xf32> -> vector<64x64xf32>
    %38 = arith.addf %20, %37 : vector<64x64xf32>
    %c0_44 = arith.constant 0 : index
    %c16 = arith.constant 16 : index
    %c0_45 = arith.constant 0 : index
    %39 = vector.load %arg1[%c0_44, %c16, %c0_45] : memref<1x82x128xbf16, #tpu.memory_space<vmem>>, vector<1x64x128xbf16>
    %40 = vector.shape_cast %39 : vector<1x64x128xbf16> to vector<64x128xbf16>
    %c2_46 = arith.constant 2 : index
    %c0_47 = arith.constant 0 : index
    %c0_48 = arith.constant 0 : index
    %c0_49 = arith.constant 0 : index
    %41 = vector.load %arg3[%c2_46, %c0_47, %c0_48, %c0_49] : memref<3x3x128x64xbf16, #tpu.memory_space<vmem>>, vector<1x1x128x64xbf16>
    %42 = vector.shape_cast %41 : vector<1x1x128x64xbf16> to vector<128x64xbf16>
    %cst_50 = arith.constant dense<0.000000e+00> : vector<64x64xf32>
    %43 = tpu.matmul %40, %42, %cst_50 {dimension_numbers = #tpu.dot_dimension_numbers<[1], [0], [0], [1], [0, 0, 1, 1], [], []>} : vector<64x128xbf16>, vector<128x64xbf16>, vector<64x64xf32> -> vector<64x64xf32>
    %44 = arith.addf %26, %43 : vector<64x64xf32>
    %c0_51 = arith.constant 0 : index
    %c17 = arith.constant 17 : index
    %c0_52 = arith.constant 0 : index
    %45 = vector.load %arg1[%c0_51, %c17, %c0_52] : memref<1x82x128xbf16, #tpu.memory_space<vmem>>, vector<1x64x128xbf16>
    %46 = vector.shape_cast %45 : vector<1x64x128xbf16> to vector<64x128xbf16>
    %c2_53 = arith.constant 2 : index
    %c1_54 = arith.constant 1 : index
    %c0_55 = arith.constant 0 : index
    %c0_56 = arith.constant 0 : index
    %47 = vector.load %arg3[%c2_53, %c1_54, %c0_55, %c0_56] : memref<3x3x128x64xbf16, #tpu.memory_space<vmem>>, vector<1x1x128x64xbf16>
    %48 = vector.shape_cast %47 : vector<1x1x128x64xbf16> to vector<128x64xbf16>
    %cst_57 = arith.constant dense<0.000000e+00> : vector<64x64xf32>
    %49 = tpu.matmul %46, %48, %cst_57 {dimension_numbers = #tpu.dot_dimension_numbers<[1], [0], [0], [1], [0, 0, 1, 1], [], []>} : vector<64x128xbf16>, vector<128x64xbf16>, vector<64x64xf32> -> vector<64x64xf32>
    %50 = arith.addf %32, %49 : vector<64x64xf32>
    %c0_58 = arith.constant 0 : index
    %c18 = arith.constant 18 : index
    %c0_59 = arith.constant 0 : index
    %51 = vector.load %arg1[%c0_58, %c18, %c0_59] : memref<1x82x128xbf16, #tpu.memory_space<vmem>>, vector<1x64x128xbf16>
    %52 = vector.shape_cast %51 : vector<1x64x128xbf16> to vector<64x128xbf16>
    %c2_60 = arith.constant 2 : index
    %c2_61 = arith.constant 2 : index
    %c0_62 = arith.constant 0 : index
    %c0_63 = arith.constant 0 : index
    %53 = vector.load %arg3[%c2_60, %c2_61, %c0_62, %c0_63] : memref<3x3x128x64xbf16, #tpu.memory_space<vmem>>, vector<1x1x128x64xbf16>
    %54 = vector.shape_cast %53 : vector<1x1x128x64xbf16> to vector<128x64xbf16>
    %cst_64 = arith.constant dense<0.000000e+00> : vector<64x64xf32>
    %55 = tpu.matmul %52, %54, %cst_64 {dimension_numbers = #tpu.dot_dimension_numbers<[1], [0], [0], [1], [0, 0, 1, 1], [], []>} : vector<64x128xbf16>, vector<128x64xbf16>, vector<64x64xf32> -> vector<64x64xf32>
    %56 = arith.addf %38, %55 : vector<64x64xf32>
    %c0_65 = arith.constant 0 : index
    %c0_66 = arith.constant 0 : index
    %c0_67 = arith.constant 0 : index
    %57 = vector.load %arg2[%c0_65, %c0_66, %c0_67] : memref<1x82x66xbf16, #tpu.memory_space<vmem>>, vector<1x64x66xbf16>
    %58 = vector.shape_cast %57 : vector<1x64x66xbf16> to vector<64x66xbf16>
    %c0_68 = arith.constant 0 : index
    %c0_69 = arith.constant 0 : index
    %c0_70 = arith.constant 0 : index
    %c0_71 = arith.constant 0 : index
    %59 = vector.load %arg4[%c0_68, %c0_69, %c0_70, %c0_71] : memref<3x3x66x64xbf16, #tpu.memory_space<vmem>>, vector<1x1x66x64xbf16>
    %60 = vector.shape_cast %59 : vector<1x1x66x64xbf16> to vector<66x64xbf16>
    %cst_72 = arith.constant dense<0.000000e+00> : vector<64x64xf32>
    %61 = tpu.matmul %58, %60, %cst_72 {dimension_numbers = #tpu.dot_dimension_numbers<[1], [0], [0], [1], [0, 0, 1, 1], [], []>} : vector<64x66xbf16>, vector<66x64xbf16>, vector<64x64xf32> -> vector<64x64xf32>
    %62 = arith.addf %44, %61 : vector<64x64xf32>
    %c0_73 = arith.constant 0 : index
    %c1_74 = arith.constant 1 : index
    %c0_75 = arith.constant 0 : index
    %63 = vector.load %arg2[%c0_73, %c1_74, %c0_75] : memref<1x82x66xbf16, #tpu.memory_space<vmem>>, vector<1x64x66xbf16>
    %64 = vector.shape_cast %63 : vector<1x64x66xbf16> to vector<64x66xbf16>
    %c0_76 = arith.constant 0 : index
    %c1_77 = arith.constant 1 : index
    %c0_78 = arith.constant 0 : index
    %c0_79 = arith.constant 0 : index
    %65 = vector.load %arg4[%c0_76, %c1_77, %c0_78, %c0_79] : memref<3x3x66x64xbf16, #tpu.memory_space<vmem>>, vector<1x1x66x64xbf16>
    %66 = vector.shape_cast %65 : vector<1x1x66x64xbf16> to vector<66x64xbf16>
    %cst_80 = arith.constant dense<0.000000e+00> : vector<64x64xf32>
    %67 = tpu.matmul %64, %66, %cst_80 {dimension_numbers = #tpu.dot_dimension_numbers<[1], [0], [0], [1], [0, 0, 1, 1], [], []>} : vector<64x66xbf16>, vector<66x64xbf16>, vector<64x64xf32> -> vector<64x64xf32>
    %68 = arith.addf %50, %67 : vector<64x64xf32>
    %c0_81 = arith.constant 0 : index
    %c2_82 = arith.constant 2 : index
    %c0_83 = arith.constant 0 : index
    %69 = vector.load %arg2[%c0_81, %c2_82, %c0_83] : memref<1x82x66xbf16, #tpu.memory_space<vmem>>, vector<1x64x66xbf16>
    %70 = vector.shape_cast %69 : vector<1x64x66xbf16> to vector<64x66xbf16>
    %c0_84 = arith.constant 0 : index
    %c2_85 = arith.constant 2 : index
    %c0_86 = arith.constant 0 : index
    %c0_87 = arith.constant 0 : index
    %71 = vector.load %arg4[%c0_84, %c2_85, %c0_86, %c0_87] : memref<3x3x66x64xbf16, #tpu.memory_space<vmem>>, vector<1x1x66x64xbf16>
    %72 = vector.shape_cast %71 : vector<1x1x66x64xbf16> to vector<66x64xbf16>
    %cst_88 = arith.constant dense<0.000000e+00> : vector<64x64xf32>
    %73 = tpu.matmul %70, %72, %cst_88 {dimension_numbers = #tpu.dot_dimension_numbers<[1], [0], [0], [1], [0, 0, 1, 1], [], []>} : vector<64x66xbf16>, vector<66x64xbf16>, vector<64x64xf32> -> vector<64x64xf32>
    %74 = arith.addf %56, %73 : vector<64x64xf32>
    %c0_89 = arith.constant 0 : index
    %c8_90 = arith.constant 8 : index
    %c0_91 = arith.constant 0 : index
    %75 = vector.load %arg2[%c0_89, %c8_90, %c0_91] : memref<1x82x66xbf16, #tpu.memory_space<vmem>>, vector<1x64x66xbf16>
    %76 = vector.shape_cast %75 : vector<1x64x66xbf16> to vector<64x66xbf16>
    %c1_92 = arith.constant 1 : index
    %c0_93 = arith.constant 0 : index
    %c0_94 = arith.constant 0 : index
    %c0_95 = arith.constant 0 : index
    %77 = vector.load %arg4[%c1_92, %c0_93, %c0_94, %c0_95] : memref<3x3x66x64xbf16, #tpu.memory_space<vmem>>, vector<1x1x66x64xbf16>
    %78 = vector.shape_cast %77 : vector<1x1x66x64xbf16> to vector<66x64xbf16>
    %cst_96 = arith.constant dense<0.000000e+00> : vector<64x64xf32>
    %79 = tpu.matmul %76, %78, %cst_96 {dimension_numbers = #tpu.dot_dimension_numbers<[1], [0], [0], [1], [0, 0, 1, 1], [], []>} : vector<64x66xbf16>, vector<66x64xbf16>, vector<64x64xf32> -> vector<64x64xf32>
    %80 = arith.addf %62, %79 : vector<64x64xf32>
    %c0_97 = arith.constant 0 : index
    %c9_98 = arith.constant 9 : index
    %c0_99 = arith.constant 0 : index
    %81 = vector.load %arg2[%c0_97, %c9_98, %c0_99] : memref<1x82x66xbf16, #tpu.memory_space<vmem>>, vector<1x64x66xbf16>
    %82 = vector.shape_cast %81 : vector<1x64x66xbf16> to vector<64x66xbf16>
    %c1_100 = arith.constant 1 : index
    %c1_101 = arith.constant 1 : index
    %c0_102 = arith.constant 0 : index
    %c0_103 = arith.constant 0 : index
    %83 = vector.load %arg4[%c1_100, %c1_101, %c0_102, %c0_103] : memref<3x3x66x64xbf16, #tpu.memory_space<vmem>>, vector<1x1x66x64xbf16>
    %84 = vector.shape_cast %83 : vector<1x1x66x64xbf16> to vector<66x64xbf16>
    %cst_104 = arith.constant dense<0.000000e+00> : vector<64x64xf32>
    %85 = tpu.matmul %82, %84, %cst_104 {dimension_numbers = #tpu.dot_dimension_numbers<[1], [0], [0], [1], [0, 0, 1, 1], [], []>} : vector<64x66xbf16>, vector<66x64xbf16>, vector<64x64xf32> -> vector<64x64xf32>
    %86 = arith.addf %68, %85 : vector<64x64xf32>
    %c0_105 = arith.constant 0 : index
    %c10_106 = arith.constant 10 : index
    %c0_107 = arith.constant 0 : index
    %87 = vector.load %arg2[%c0_105, %c10_106, %c0_107] : memref<1x82x66xbf16, #tpu.memory_space<vmem>>, vector<1x64x66xbf16>
    %88 = vector.shape_cast %87 : vector<1x64x66xbf16> to vector<64x66xbf16>
    %c1_108 = arith.constant 1 : index
    %c2_109 = arith.constant 2 : index
    %c0_110 = arith.constant 0 : index
    %c0_111 = arith.constant 0 : index
    %89 = vector.load %arg4[%c1_108, %c2_109, %c0_110, %c0_111] : memref<3x3x66x64xbf16, #tpu.memory_space<vmem>>, vector<1x1x66x64xbf16>
    %90 = vector.shape_cast %89 : vector<1x1x66x64xbf16> to vector<66x64xbf16>
    %cst_112 = arith.constant dense<0.000000e+00> : vector<64x64xf32>
    %91 = tpu.matmul %88, %90, %cst_112 {dimension_numbers = #tpu.dot_dimension_numbers<[1], [0], [0], [1], [0, 0, 1, 1], [], []>} : vector<64x66xbf16>, vector<66x64xbf16>, vector<64x64xf32> -> vector<64x64xf32>
    %92 = arith.addf %74, %91 : vector<64x64xf32>
    %c0_113 = arith.constant 0 : index
    %c16_114 = arith.constant 16 : index
    %c0_115 = arith.constant 0 : index
    %93 = vector.load %arg2[%c0_113, %c16_114, %c0_115] : memref<1x82x66xbf16, #tpu.memory_space<vmem>>, vector<1x64x66xbf16>
    %94 = vector.shape_cast %93 : vector<1x64x66xbf16> to vector<64x66xbf16>
    %c2_116 = arith.constant 2 : index
    %c0_117 = arith.constant 0 : index
    %c0_118 = arith.constant 0 : index
    %c0_119 = arith.constant 0 : index
    %95 = vector.load %arg4[%c2_116, %c0_117, %c0_118, %c0_119] : memref<3x3x66x64xbf16, #tpu.memory_space<vmem>>, vector<1x1x66x64xbf16>
    %96 = vector.shape_cast %95 : vector<1x1x66x64xbf16> to vector<66x64xbf16>
    %cst_120 = arith.constant dense<0.000000e+00> : vector<64x64xf32>
    %97 = tpu.matmul %94, %96, %cst_120 {dimension_numbers = #tpu.dot_dimension_numbers<[1], [0], [0], [1], [0, 0, 1, 1], [], []>} : vector<64x66xbf16>, vector<66x64xbf16>, vector<64x64xf32> -> vector<64x64xf32>
    %98 = arith.addf %80, %97 : vector<64x64xf32>
    %c0_121 = arith.constant 0 : index
    %c17_122 = arith.constant 17 : index
    %c0_123 = arith.constant 0 : index
    %99 = vector.load %arg2[%c0_121, %c17_122, %c0_123] : memref<1x82x66xbf16, #tpu.memory_space<vmem>>, vector<1x64x66xbf16>
    %100 = vector.shape_cast %99 : vector<1x64x66xbf16> to vector<64x66xbf16>
    %c2_124 = arith.constant 2 : index
    %c1_125 = arith.constant 1 : index
    %c0_126 = arith.constant 0 : index
    %c0_127 = arith.constant 0 : index
    %101 = vector.load %arg4[%c2_124, %c1_125, %c0_126, %c0_127] : memref<3x3x66x64xbf16, #tpu.memory_space<vmem>>, vector<1x1x66x64xbf16>
    %102 = vector.shape_cast %101 : vector<1x1x66x64xbf16> to vector<66x64xbf16>
    %cst_128 = arith.constant dense<0.000000e+00> : vector<64x64xf32>
    %103 = tpu.matmul %100, %102, %cst_128 {dimension_numbers = #tpu.dot_dimension_numbers<[1], [0], [0], [1], [0, 0, 1, 1], [], []>} : vector<64x66xbf16>, vector<66x64xbf16>, vector<64x64xf32> -> vector<64x64xf32>
    %104 = arith.addf %86, %103 : vector<64x64xf32>
    %c0_129 = arith.constant 0 : index
    %c18_130 = arith.constant 18 : index
    %c0_131 = arith.constant 0 : index
    %105 = vector.load %arg2[%c0_129, %c18_130, %c0_131] : memref<1x82x66xbf16, #tpu.memory_space<vmem>>, vector<1x64x66xbf16>
    %106 = vector.shape_cast %105 : vector<1x64x66xbf16> to vector<64x66xbf16>
    %c2_132 = arith.constant 2 : index
    %c2_133 = arith.constant 2 : index
    %c0_134 = arith.constant 0 : index
    %c0_135 = arith.constant 0 : index
    %107 = vector.load %arg4[%c2_132, %c2_133, %c0_134, %c0_135] : memref<3x3x66x64xbf16, #tpu.memory_space<vmem>>, vector<1x1x66x64xbf16>
    %108 = vector.shape_cast %107 : vector<1x1x66x64xbf16> to vector<66x64xbf16>
    %cst_136 = arith.constant dense<0.000000e+00> : vector<64x64xf32>
    %109 = tpu.matmul %106, %108, %cst_136 {dimension_numbers = #tpu.dot_dimension_numbers<[1], [0], [0], [1], [0, 0, 1, 1], [], []>} : vector<64x66xbf16>, vector<66x64xbf16>, vector<64x64xf32> -> vector<64x64xf32>
    %110 = arith.addf %92, %109 : vector<64x64xf32>
    %111 = tpu.iota {dimensions = array<i32: 0>} : vector<64x1xi32>
    %c8_i32 = arith.constant 8 : i32
    %c0_i32 = arith.constant 0 : i32
    %112 = arith.cmpi eq, %c8_i32, %c0_i32 : i32
    %c1_i32 = arith.constant 1 : i32
    %113 = arith.select %112, %c1_i32, %c8_i32 : i32
    %114 = vector.broadcast %113 : i32 to vector<64x1xi32>
    %115 = arith.remsi %111, %114 : vector<64x1xi32>
    %c0_i32_137 = arith.constant 0 : i32
    %116 = vector.broadcast %c0_i32_137 : i32 to vector<64x1xi32>
    %117 = arith.cmpi ne, %115, %116 : vector<64x1xi32>
    %c0_i32_138 = arith.constant 0 : i32
    %118 = vector.broadcast %c0_i32_138 : i32 to vector<64x1xi32>
    %119 = arith.cmpi slt, %115, %118 : vector<64x1xi32>
    %c0_i32_139 = arith.constant 0 : i32
    %120 = arith.cmpi slt, %113, %c0_i32_139 : i32
    %121 = vector.broadcast %120 : i1 to vector<64x1xi1>
    %122 = vector.broadcast %121 : vector<64x1xi1> to vector<64x1xi1>
    %123 = arith.xori %119, %122 : vector<64x1xi1>
    %124 = arith.andi %123, %117 : vector<64x1xi1>
    %125 = vector.broadcast %113 : i32 to vector<64x1xi32>
    %126 = arith.addi %115, %125 : vector<64x1xi32>
    %127 = arith.select %124, %126, %115 : vector<64x1xi1>, vector<64x1xi32>
    %c0_i32_140 = arith.constant 0 : i32
    %128 = vector.broadcast %c0_i32_140 : i32 to vector<64x1xi32>
    %129 = arith.cmpi eq, %127, %128 : vector<64x1xi32>
    %cst_141 = arith.constant 0.000000e+00 : f32
    %130 = vector.shape_cast %129 : vector<64x1xi1> to vector<64x1xi1>
    %131 = vector.broadcast %130 : vector<64x1xi1> to vector<64x64xi1>
    %132 = vector.broadcast %cst_141 : f32 to vector<64x64xf32>
    %133 = arith.select %131, %132, %98 : vector<64x64xi1>, vector<64x64xf32>
    %134 = arith.addf %133, %104 : vector<64x64xf32>
    %c7_i32 = arith.constant 7 : i32
    %135 = vector.broadcast %c7_i32 : i32 to vector<64x1xi32>
    %136 = arith.cmpi eq, %127, %135 : vector<64x1xi32>
    %cst_142 = arith.constant 0.000000e+00 : f32
    %137 = vector.shape_cast %136 : vector<64x1xi1> to vector<64x1xi1>
    %138 = vector.broadcast %137 : vector<64x1xi1> to vector<64x64xi1>
    %139 = vector.broadcast %cst_142 : f32 to vector<64x64xf32>
    %140 = arith.select %138, %139, %110 : vector<64x64xi1>, vector<64x64xf32>
    %141 = arith.addf %134, %140 : vector<64x64xf32>
    %c0_143 = arith.constant 0 : index
    %c0_144 = arith.constant 0 : index
    %142 = vector.load %arg5[%c0_143, %c0_144] : memref<1x64xf32, #tpu.memory_space<vmem>>, vector<1x64xf32>
    %143 = vector.broadcast %142 : vector<1x64xf32> to vector<64x64xf32>
    %144 = arith.addf %141, %143 : vector<64x64xf32>
    %cst_145 = arith.constant 0.000000e+00 : f32
    %145 = vector.broadcast %cst_145 : f32 to vector<64x64xf32>
    %146 = arith.maximumf %144, %145 : vector<64x64xf32>
    %147 = arith.truncf %146 : vector<64x64xf32> to vector<64x64xbf16>
    %c0_146 = arith.constant 0 : index
    %c0_147 = arith.constant 0 : index
    %c0_148 = arith.constant 0 : index
    %148 = vector.load %arg6[%c0_146, %c0_147, %c0_148] : memref<1x64x64xbf16, #tpu.memory_space<vmem>>, vector<1x64x64xbf16>
    %149 = vector.shape_cast %148 : vector<1x64x64xbf16> to vector<64x64xbf16>
    %150 = vector.shape_cast %147 : vector<64x64xbf16> to vector<1x64x64xbf16>
    tpu.vector_store %arg6[%c0_146, %c0_147, %c0_148], %150 {strides = array<i32>} : memref<1x64x64xbf16, #tpu.memory_space<vmem>>, vector<1x64x64xbf16>,
    return
  }
  func.func @transform_0(%arg0: i32) -> (i32, i32, i32) {
    %c0_i32 = arith.constant 0 : i32
    %c0_i32_0 = arith.constant 0 : i32
    %c0_i32_1 = arith.constant 0 : i32
    return %arg0, %c0_i32, %c0_i32_0 : i32, i32, i32
  }
  func.func @transform_1(%arg0: i32) -> (i32, i32, i32) {
    %c0_i32 = arith.constant 0 : i32
    %c0_i32_0 = arith.constant 0 : i32
    %c0_i32_1 = arith.constant 0 : i32
    return %arg0, %c0_i32, %c0_i32_0 : i32, i32, i32
  }
  func.func @transform_2(%arg0: i32) -> (i32, i32, i32, i32) {
    %c0_i32 = arith.constant 0 : i32
    %c0_i32_0 = arith.constant 0 : i32
    %c0_i32_1 = arith.constant 0 : i32
    %c0_i32_2 = arith.constant 0 : i32
    %c0_i32_3 = arith.constant 0 : i32
    return %c0_i32, %c0_i32_0, %c0_i32_1, %c0_i32_2 : i32, i32, i32, i32
  }
  func.func @transform_3(%arg0: i32) -> (i32, i32, i32, i32) {
    %c0_i32 = arith.constant 0 : i32
    %c0_i32_0 = arith.constant 0 : i32
    %c0_i32_1 = arith.constant 0 : i32
    %c0_i32_2 = arith.constant 0 : i32
    %c0_i32_3 = arith.constant 0 : i32
    return %c0_i32, %c0_i32_0, %c0_i32_1, %c0_i32_2 : i32, i32, i32, i32
  }
  func.func @transform_4(%arg0: i32) -> (i32, i32) {
    %c0_i32 = arith.constant 0 : i32
    %c0_i32_0 = arith.constant 0 : i32
    %c0_i32_1 = arith.constant 0 : i32
    return %c0_i32, %c0_i32_0 : i32, i32
  }
  func.func @transform_5(%arg0: i32) -> (i32, i32, i32) {
    %c0_i32 = arith.constant 0 : i32
    %c0_i32_0 = arith.constant 0 : i32
    %c0_i32_1 = arith.constant 0 : i32
    return %arg0, %c0_i32, %c0_i32_0 : i32, i32, i32
  }
}

module attributes {stable_mosaic.version = 11 : i64} {
  func.func @_conv3x3_direct_kernel(%arg0: i32, %arg1: memref<1x82x64xbf16, #tpu.memory_space<vmem>>, %arg2: memref<3x3x64x64xbf16, #tpu.memory_space<vmem>>, %arg3: memref<1x64xf32, #tpu.memory_space<vmem>>, %arg4: memref<1x64x64xbf16, #tpu.memory_space<vmem>>) attributes {dimension_semantics = [#tpu.dimension_semantics<parallel>], iteration_bounds = array<i64: 2>, scalar_prefetch = 0 : i64, scratch_operands = 0 : i64, tpu.core_type = #tpu.core_type<tc>, window_params = [{transform_indices = @transform_0, window_bounds = array<i64: 1, 82, 64>}, {pipeline_mode = #tpu.pipeline_mode<synchronous>, transform_indices = @transform_1, window_bounds = array<i64: 3, 3, 64, 64>}, {pipeline_mode = #tpu.pipeline_mode<synchronous>, transform_indices = @transform_2, window_bounds = array<i64: 1, 64>}, {transform_indices = @transform_3, window_bounds = array<i64: 1, 64, 64>}]} {
    %cst = arith.constant 0.000000e+00 : f32
    %0 = vector.broadcast %cst : f32 to vector<64x64xf32>
    %cst_0 = arith.constant 0.000000e+00 : f32
    %1 = vector.broadcast %cst_0 : f32 to vector<64x64xf32>
    %cst_1 = arith.constant 0.000000e+00 : f32
    %2 = vector.broadcast %cst_1 : f32 to vector<64x64xf32>
    %c0 = arith.constant 0 : index
    %c0_2 = arith.constant 0 : index
    %c0_3 = arith.constant 0 : index
    %3 = vector.load %arg1[%c0, %c0_2, %c0_3] : memref<1x82x64xbf16, #tpu.memory_space<vmem>>, vector<1x64x64xbf16>
    %4 = vector.shape_cast %3 : vector<1x64x64xbf16> to vector<64x64xbf16>
    %c0_4 = arith.constant 0 : index
    %c0_5 = arith.constant 0 : index
    %c0_6 = arith.constant 0 : index
    %c0_7 = arith.constant 0 : index
    %5 = vector.load %arg2[%c0_4, %c0_5, %c0_6, %c0_7] : memref<3x3x64x64xbf16, #tpu.memory_space<vmem>>, vector<1x1x64x64xbf16>
    %6 = vector.shape_cast %5 : vector<1x1x64x64xbf16> to vector<64x64xbf16>
    %cst_8 = arith.constant dense<0.000000e+00> : vector<64x64xf32>
    %7 = tpu.matmul %4, %6, %cst_8 {dimension_numbers = #tpu.dot_dimension_numbers<[1], [0], [0], [1], [0, 0, 1, 1], [], []>} : vector<64x64xbf16>, vector<64x64xbf16>, vector<64x64xf32> -> vector<64x64xf32>
    %8 = arith.addf %0, %7 : vector<64x64xf32>
    %c0_9 = arith.constant 0 : index
    %c1 = arith.constant 1 : index
    %c0_10 = arith.constant 0 : index
    %9 = vector.load %arg1[%c0_9, %c1, %c0_10] : memref<1x82x64xbf16, #tpu.memory_space<vmem>>, vector<1x64x64xbf16>
    %10 = vector.shape_cast %9 : vector<1x64x64xbf16> to vector<64x64xbf16>
    %c0_11 = arith.constant 0 : index
    %c1_12 = arith.constant 1 : index
    %c0_13 = arith.constant 0 : index
    %c0_14 = arith.constant 0 : index
    %11 = vector.load %arg2[%c0_11, %c1_12, %c0_13, %c0_14] : memref<3x3x64x64xbf16, #tpu.memory_space<vmem>>, vector<1x1x64x64xbf16>
    %12 = vector.shape_cast %11 : vector<1x1x64x64xbf16> to vector<64x64xbf16>
    %cst_15 = arith.constant dense<0.000000e+00> : vector<64x64xf32>
    %13 = tpu.matmul %10, %12, %cst_15 {dimension_numbers = #tpu.dot_dimension_numbers<[1], [0], [0], [1], [0, 0, 1, 1], [], []>} : vector<64x64xbf16>, vector<64x64xbf16>, vector<64x64xf32> -> vector<64x64xf32>
    %14 = arith.addf %1, %13 : vector<64x64xf32>
    %c0_16 = arith.constant 0 : index
    %c2 = arith.constant 2 : index
    %c0_17 = arith.constant 0 : index
    %15 = vector.load %arg1[%c0_16, %c2, %c0_17] : memref<1x82x64xbf16, #tpu.memory_space<vmem>>, vector<1x64x64xbf16>
    %16 = vector.shape_cast %15 : vector<1x64x64xbf16> to vector<64x64xbf16>
    %c0_18 = arith.constant 0 : index
    %c2_19 = arith.constant 2 : index
    %c0_20 = arith.constant 0 : index
    %c0_21 = arith.constant 0 : index
    %17 = vector.load %arg2[%c0_18, %c2_19, %c0_20, %c0_21] : memref<3x3x64x64xbf16, #tpu.memory_space<vmem>>, vector<1x1x64x64xbf16>
    %18 = vector.shape_cast %17 : vector<1x1x64x64xbf16> to vector<64x64xbf16>
    %cst_22 = arith.constant dense<0.000000e+00> : vector<64x64xf32>
    %19 = tpu.matmul %16, %18, %cst_22 {dimension_numbers = #tpu.dot_dimension_numbers<[1], [0], [0], [1], [0, 0, 1, 1], [], []>} : vector<64x64xbf16>, vector<64x64xbf16>, vector<64x64xf32> -> vector<64x64xf32>
    %20 = arith.addf %2, %19 : vector<64x64xf32>
    %c0_23 = arith.constant 0 : index
    %c8 = arith.constant 8 : index
    %c0_24 = arith.constant 0 : index
    %21 = vector.load %arg1[%c0_23, %c8, %c0_24] : memref<1x82x64xbf16, #tpu.memory_space<vmem>>, vector<1x64x64xbf16>
    %22 = vector.shape_cast %21 : vector<1x64x64xbf16> to vector<64x64xbf16>
    %c1_25 = arith.constant 1 : index
    %c0_26 = arith.constant 0 : index
    %c0_27 = arith.constant 0 : index
    %c0_28 = arith.constant 0 : index
    %23 = vector.load %arg2[%c1_25, %c0_26, %c0_27, %c0_28] : memref<3x3x64x64xbf16, #tpu.memory_space<vmem>>, vector<1x1x64x64xbf16>
    %24 = vector.shape_cast %23 : vector<1x1x64x64xbf16> to vector<64x64xbf16>
    %cst_29 = arith.constant dense<0.000000e+00> : vector<64x64xf32>
    %25 = tpu.matmul %22, %24, %cst_29 {dimension_numbers = #tpu.dot_dimension_numbers<[1], [0], [0], [1], [0, 0, 1, 1], [], []>} : vector<64x64xbf16>, vector<64x64xbf16>, vector<64x64xf32> -> vector<64x64xf32>
    %26 = arith.addf %8, %25 : vector<64x64xf32>
    %c0_30 = arith.constant 0 : index
    %c9 = arith.constant 9 : index
    %c0_31 = arith.constant 0 : index
    %27 = vector.load %arg1[%c0_30, %c9, %c0_31] : memref<1x82x64xbf16, #tpu.memory_space<vmem>>, vector<1x64x64xbf16>
    %28 = vector.shape_cast %27 : vector<1x64x64xbf16> to vector<64x64xbf16>
    %c1_32 = arith.constant 1 : index
    %c1_33 = arith.constant 1 : index
    %c0_34 = arith.constant 0 : index
    %c0_35 = arith.constant 0 : index
    %29 = vector.load %arg2[%c1_32, %c1_33, %c0_34, %c0_35] : memref<3x3x64x64xbf16, #tpu.memory_space<vmem>>, vector<1x1x64x64xbf16>
    %30 = vector.shape_cast %29 : vector<1x1x64x64xbf16> to vector<64x64xbf16>
    %cst_36 = arith.constant dense<0.000000e+00> : vector<64x64xf32>
    %31 = tpu.matmul %28, %30, %cst_36 {dimension_numbers = #tpu.dot_dimension_numbers<[1], [0], [0], [1], [0, 0, 1, 1], [], []>} : vector<64x64xbf16>, vector<64x64xbf16>, vector<64x64xf32> -> vector<64x64xf32>
    %32 = arith.addf %14, %31 : vector<64x64xf32>
    %c0_37 = arith.constant 0 : index
    %c10 = arith.constant 10 : index
    %c0_38 = arith.constant 0 : index
    %33 = vector.load %arg1[%c0_37, %c10, %c0_38] : memref<1x82x64xbf16, #tpu.memory_space<vmem>>, vector<1x64x64xbf16>
    %34 = vector.shape_cast %33 : vector<1x64x64xbf16> to vector<64x64xbf16>
    %c1_39 = arith.constant 1 : index
    %c2_40 = arith.constant 2 : index
    %c0_41 = arith.constant 0 : index
    %c0_42 = arith.constant 0 : index
    %35 = vector.load %arg2[%c1_39, %c2_40, %c0_41, %c0_42] : memref<3x3x64x64xbf16, #tpu.memory_space<vmem>>, vector<1x1x64x64xbf16>
    %36 = vector.shape_cast %35 : vector<1x1x64x64xbf16> to vector<64x64xbf16>
    %cst_43 = arith.constant dense<0.000000e+00> : vector<64x64xf32>
    %37 = tpu.matmul %34, %36, %cst_43 {dimension_numbers = #tpu.dot_dimension_numbers<[1], [0], [0], [1], [0, 0, 1, 1], [], []>} : vector<64x64xbf16>, vector<64x64xbf16>, vector<64x64xf32> -> vector<64x64xf32>
    %38 = arith.addf %20, %37 : vector<64x64xf32>
    %c0_44 = arith.constant 0 : index
    %c16 = arith.constant 16 : index
    %c0_45 = arith.constant 0 : index
    %39 = vector.load %arg1[%c0_44, %c16, %c0_45] : memref<1x82x64xbf16, #tpu.memory_space<vmem>>, vector<1x64x64xbf16>
    %40 = vector.shape_cast %39 : vector<1x64x64xbf16> to vector<64x64xbf16>
    %c2_46 = arith.constant 2 : index
    %c0_47 = arith.constant 0 : index
    %c0_48 = arith.constant 0 : index
    %c0_49 = arith.constant 0 : index
    %41 = vector.load %arg2[%c2_46, %c0_47, %c0_48, %c0_49] : memref<3x3x64x64xbf16, #tpu.memory_space<vmem>>, vector<1x1x64x64xbf16>
    %42 = vector.shape_cast %41 : vector<1x1x64x64xbf16> to vector<64x64xbf16>
    %cst_50 = arith.constant dense<0.000000e+00> : vector<64x64xf32>
    %43 = tpu.matmul %40, %42, %cst_50 {dimension_numbers = #tpu.dot_dimension_numbers<[1], [0], [0], [1], [0, 0, 1, 1], [], []>} : vector<64x64xbf16>, vector<64x64xbf16>, vector<64x64xf32> -> vector<64x64xf32>
    %44 = arith.addf %26, %43 : vector<64x64xf32>
    %c0_51 = arith.constant 0 : index
    %c17 = arith.constant 17 : index
    %c0_52 = arith.constant 0 : index
    %45 = vector.load %arg1[%c0_51, %c17, %c0_52] : memref<1x82x64xbf16, #tpu.memory_space<vmem>>, vector<1x64x64xbf16>
    %46 = vector.shape_cast %45 : vector<1x64x64xbf16> to vector<64x64xbf16>
    %c2_53 = arith.constant 2 : index
    %c1_54 = arith.constant 1 : index
    %c0_55 = arith.constant 0 : index
    %c0_56 = arith.constant 0 : index
    %47 = vector.load %arg2[%c2_53, %c1_54, %c0_55, %c0_56] : memref<3x3x64x64xbf16, #tpu.memory_space<vmem>>, vector<1x1x64x64xbf16>
    %48 = vector.shape_cast %47 : vector<1x1x64x64xbf16> to vector<64x64xbf16>
    %cst_57 = arith.constant dense<0.000000e+00> : vector<64x64xf32>
    %49 = tpu.matmul %46, %48, %cst_57 {dimension_numbers = #tpu.dot_dimension_numbers<[1], [0], [0], [1], [0, 0, 1, 1], [], []>} : vector<64x64xbf16>, vector<64x64xbf16>, vector<64x64xf32> -> vector<64x64xf32>
    %50 = arith.addf %32, %49 : vector<64x64xf32>
    %c0_58 = arith.constant 0 : index
    %c18 = arith.constant 18 : index
    %c0_59 = arith.constant 0 : index
    %51 = vector.load %arg1[%c0_58, %c18, %c0_59] : memref<1x82x64xbf16, #tpu.memory_space<vmem>>, vector<1x64x64xbf16>
    %52 = vector.shape_cast %51 : vector<1x64x64xbf16> to vector<64x64xbf16>
    %c2_60 = arith.constant 2 : index
    %c2_61 = arith.constant 2 : index
    %c0_62 = arith.constant 0 : index
    %c0_63 = arith.constant 0 : index
    %53 = vector.load %arg2[%c2_60, %c2_61, %c0_62, %c0_63] : memref<3x3x64x64xbf16, #tpu.memory_space<vmem>>, vector<1x1x64x64xbf16>
    %54 = vector.shape_cast %53 : vector<1x1x64x64xbf16> to vector<64x64xbf16>
    %cst_64 = arith.constant dense<0.000000e+00> : vector<64x64xf32>
    %55 = tpu.matmul %52, %54, %cst_64 {dimension_numbers = #tpu.dot_dimension_numbers<[1], [0], [0], [1], [0, 0, 1, 1], [], []>} : vector<64x64xbf16>, vector<64x64xbf16>, vector<64x64xf32> -> vector<64x64xf32>
    %56 = arith.addf %38, %55 : vector<64x64xf32>
    %57 = tpu.iota {dimensions = array<i32: 0>} : vector<64x1xi32>
    %c8_i32 = arith.constant 8 : i32
    %c0_i32 = arith.constant 0 : i32
    %58 = arith.cmpi eq, %c8_i32, %c0_i32 : i32
    %c1_i32 = arith.constant 1 : i32
    %59 = arith.select %58, %c1_i32, %c8_i32 : i32
    %60 = vector.broadcast %59 : i32 to vector<64x1xi32>
    %61 = arith.remsi %57, %60 : vector<64x1xi32>
    %c0_i32_65 = arith.constant 0 : i32
    %62 = vector.broadcast %c0_i32_65 : i32 to vector<64x1xi32>
    %63 = arith.cmpi ne, %61, %62 : vector<64x1xi32>
    %c0_i32_66 = arith.constant 0 : i32
    %64 = vector.broadcast %c0_i32_66 : i32 to vector<64x1xi32>
    %65 = arith.cmpi slt, %61, %64 : vector<64x1xi32>
    %c0_i32_67 = arith.constant 0 : i32
    %66 = arith.cmpi slt, %59, %c0_i32_67 : i32
    %67 = vector.broadcast %66 : i1 to vector<64x1xi1>
    %68 = vector.broadcast %67 : vector<64x1xi1> to vector<64x1xi1>
    %69 = arith.xori %65, %68 : vector<64x1xi1>
    %70 = arith.andi %69, %63 : vector<64x1xi1>
    %71 = vector.broadcast %59 : i32 to vector<64x1xi32>
    %72 = arith.addi %61, %71 : vector<64x1xi32>
    %73 = arith.select %70, %72, %61 : vector<64x1xi1>, vector<64x1xi32>
    %c0_i32_68 = arith.constant 0 : i32
    %74 = vector.broadcast %c0_i32_68 : i32 to vector<64x1xi32>
    %75 = arith.cmpi eq, %73, %74 : vector<64x1xi32>
    %cst_69 = arith.constant 0.000000e+00 : f32
    %76 = vector.shape_cast %75 : vector<64x1xi1> to vector<64x1xi1>
    %77 = vector.broadcast %76 : vector<64x1xi1> to vector<64x64xi1>
    %78 = vector.broadcast %cst_69 : f32 to vector<64x64xf32>
    %79 = arith.select %77, %78, %44 : vector<64x64xi1>, vector<64x64xf32>
    %80 = arith.addf %79, %50 : vector<64x64xf32>
    %c7_i32 = arith.constant 7 : i32
    %81 = vector.broadcast %c7_i32 : i32 to vector<64x1xi32>
    %82 = arith.cmpi eq, %73, %81 : vector<64x1xi32>
    %cst_70 = arith.constant 0.000000e+00 : f32
    %83 = vector.shape_cast %82 : vector<64x1xi1> to vector<64x1xi1>
    %84 = vector.broadcast %83 : vector<64x1xi1> to vector<64x64xi1>
    %85 = vector.broadcast %cst_70 : f32 to vector<64x64xf32>
    %86 = arith.select %84, %85, %56 : vector<64x64xi1>, vector<64x64xf32>
    %87 = arith.addf %80, %86 : vector<64x64xf32>
    %c0_71 = arith.constant 0 : index
    %c0_72 = arith.constant 0 : index
    %88 = vector.load %arg3[%c0_71, %c0_72] : memref<1x64xf32, #tpu.memory_space<vmem>>, vector<1x64xf32>
    %89 = vector.broadcast %88 : vector<1x64xf32> to vector<64x64xf32>
    %90 = arith.addf %87, %89 : vector<64x64xf32>
    %cst_73 = arith.constant 0.000000e+00 : f32
    %91 = vector.broadcast %cst_73 : f32 to vector<64x64xf32>
    %92 = arith.maximumf %90, %91 : vector<64x64xf32>
    %93 = arith.truncf %92 : vector<64x64xf32> to vector<64x64xbf16>
    %c0_74 = arith.constant 0 : index
    %c0_75 = arith.constant 0 : index
    %c0_76 = arith.constant 0 : index
    %94 = vector.load %arg4[%c0_74, %c0_75, %c0_76] : memref<1x64x64xbf16, #tpu.memory_space<vmem>>, vector<1x64x64xbf16>
    %95 = vector.shape_cast %94 : vector<1x64x64xbf16> to vector<64x64xbf16>
    %96 = vector.shape_cast %93 : vector<64x64xbf16> to vector<1x64x64xbf16>
    tpu.vector_store %arg4[%c0_74, %c0_75, %c0_76], %96 {strides = array<i32>} : memref<1x64x64xbf16, #tpu.memory_space<vmem>>, vector<1x64x64xbf16>,
    return
  }
  func.func @transform_0(%arg0: i32) -> (i32, i32, i32) {
    %c0_i32 = arith.constant 0 : i32
    %c0_i32_0 = arith.constant 0 : i32
    %c0_i32_1 = arith.constant 0 : i32
    return %arg0, %c0_i32, %c0_i32_0 : i32, i32, i32
  }
  func.func @transform_1(%arg0: i32) -> (i32, i32, i32, i32) {
    %c0_i32 = arith.constant 0 : i32
    %c0_i32_0 = arith.constant 0 : i32
    %c0_i32_1 = arith.constant 0 : i32
    %c0_i32_2 = arith.constant 0 : i32
    %c0_i32_3 = arith.constant 0 : i32
    return %c0_i32, %c0_i32_0, %c0_i32_1, %c0_i32_2 : i32, i32, i32, i32
  }
  func.func @transform_2(%arg0: i32) -> (i32, i32) {
    %c0_i32 = arith.constant 0 : i32
    %c0_i32_0 = arith.constant 0 : i32
    %c0_i32_1 = arith.constant 0 : i32
    return %c0_i32, %c0_i32_0 : i32, i32
  }
  func.func @transform_3(%arg0: i32) -> (i32, i32, i32) {
    %c0_i32 = arith.constant 0 : i32
    %c0_i32_0 = arith.constant 0 : i32
    %c0_i32_1 = arith.constant 0 : i32
    return %arg0, %c0_i32, %c0_i32_0 : i32, i32, i32
  }
}

module attributes {stable_mosaic.version = 11 : i64} {
  func.func @_matmul_bias_act_kernel(%arg0: i32, %arg1: memref<256x128xbf16, #tpu.memory_space<vmem>>, %arg2: memref<128x128xbf16, #tpu.memory_space<vmem>>, %arg3: memref<1x128xf32, #tpu.memory_space<vmem>>, %arg4: memref<256x128xf32, #tpu.memory_space<vmem>>) attributes {dimension_semantics = [#tpu.dimension_semantics<parallel>], iteration_bounds = array<i64: 2>, scalar_prefetch = 0 : i64, scratch_operands = 0 : i64, tpu.core_type = #tpu.core_type<tc>, window_params = [{transform_indices = @transform_0, window_bounds = array<i64: 256, 128>}, {pipeline_mode = #tpu.pipeline_mode<synchronous>, transform_indices = @transform_1, window_bounds = array<i64: 128, 128>}, {pipeline_mode = #tpu.pipeline_mode<synchronous>, transform_indices = @transform_2, window_bounds = array<i64: 1, 128>}, {transform_indices = @transform_3, window_bounds = array<i64: 256, 128>}]} {
    %c0 = arith.constant 0 : index
    %c0_0 = arith.constant 0 : index
    %0 = vector.load %arg1[%c0, %c0_0] : memref<256x128xbf16, #tpu.memory_space<vmem>>, vector<256x128xbf16>
    %c0_1 = arith.constant 0 : index
    %c0_2 = arith.constant 0 : index
    %1 = vector.load %arg2[%c0_1, %c0_2] : memref<128x128xbf16, #tpu.memory_space<vmem>>, vector<128x128xbf16>
    %cst = arith.constant dense<0.000000e+00> : vector<256x128xf32>
    %2 = tpu.matmul %0, %1, %cst {dimension_numbers = #tpu.dot_dimension_numbers<[1], [0], [0], [1], [0, 0, 1, 1], [], []>} : vector<256x128xbf16>, vector<128x128xbf16>, vector<256x128xf32> -> vector<256x128xf32>
    %c0_3 = arith.constant 0 : index
    %c0_4 = arith.constant 0 : index
    %3 = vector.load %arg3[%c0_3, %c0_4] : memref<1x128xf32, #tpu.memory_space<vmem>>, vector<1x128xf32>
    %4 = vector.broadcast %3 : vector<1x128xf32> to vector<256x128xf32>
    %5 = arith.addf %2, %4 : vector<256x128xf32>
    %c0_5 = arith.constant 0 : index
    %c0_6 = arith.constant 0 : index
    %6 = vector.load %arg4[%c0_5, %c0_6] : memref<256x128xf32, #tpu.memory_space<vmem>>, vector<256x128xf32>
    tpu.vector_store %arg4[%c0_5, %c0_6], %5 {strides = array<i32>} : memref<256x128xf32, #tpu.memory_space<vmem>>, vector<256x128xf32>,
    return
  }
  func.func @transform_0(%arg0: i32) -> (i32, i32) {
    %c0_i32 = arith.constant 0 : i32
    %c0_i32_0 = arith.constant 0 : i32
    return %arg0, %c0_i32 : i32, i32
  }
  func.func @transform_1(%arg0: i32) -> (i32, i32) {
    %c0_i32 = arith.constant 0 : i32
    %c0_i32_0 = arith.constant 0 : i32
    %c0_i32_1 = arith.constant 0 : i32
    return %c0_i32, %c0_i32_0 : i32, i32
  }
  func.func @transform_2(%arg0: i32) -> (i32, i32) {
    %c0_i32 = arith.constant 0 : i32
    %c0_i32_0 = arith.constant 0 : i32
    %c0_i32_1 = arith.constant 0 : i32
    return %c0_i32, %c0_i32_0 : i32, i32
  }
  func.func @transform_3(%arg0: i32) -> (i32, i32) {
    %c0_i32 = arith.constant 0 : i32
    %c0_i32_0 = arith.constant 0 : i32
    return %arg0, %c0_i32 : i32, i32
  }
}

</mosaic_0001>

<llo_original>
// kernel: unet_scattering_dynamic_forward.6
$region0: #{unet_scattering_dynamic_forward.6}
  #allocation0 [shape = 'u32[]', space=smem, size = 0x4, offset = 0x4, fixed_abs, tag = 'smem constant byte address 0x4 - core index']
  #allocation1 [shape = 'u32[72,128]{1,0:T(1,128)}', space=vmem, size = 0x9000, scoped, tag = 'internal scratch']
  %s0 = inlined_call_operand.vmem [shape: bf16[2,26,128], index: 0, kind: input, shape index: {}]
  %s1 = inlined_call_operand.vmem [shape: bf16[3,3,128,128], index: 1, kind: input, shape index: {}]
  %s2 = inlined_call_operand.vmem [shape: f32[1,128], index: 2, kind: input, shape index: {}]
  %s3 = inlined_call_operand.vmem [shape: bf16[2,16,128], index: 3, kind: output, shape index: {}]
  %s4 = sld [smem:[#allocation0]]
  $region45: #{unet_scattering_dynamic_forward.6} parent=0
    _
  %s6 = ssub.s32 1, %s4
  %s7 = scalar_select 0, %s6, %s4
  loop: start=0, step=1, limit=4
  $region2: #{unet_scattering_dynamic_forward.6} parent=0 // loop_pre_header
    _
  $region3: #{unet_scattering_dynamic_forward.6} parent=0 // loop_header
    %s9 = sphi 0, %s13
    %p10 = scmp.ge.s32.totalorder %s9, 4
    %s19 = sphi 0, %s21
    %s22 = sphi 0, %s19
    %s23 = sphi 0, %s22
    %s39 = sphi 0, %s23
    %s43 = sphi 0, %s43
    %s45 = sphi 0, %s43
    %s46 = sphi 0, %s45
    %s60 = sphi 0, %s46
    %s64 = sphi 0, %s64
    %s66 = sphi 0, %s64
    %s67 = sphi 0, %s66
    %s81 = sphi 0, %s67
    %s87 = sphi 0, %s89
    %s90 = sphi 0, %s87
    %s91 = sphi 0, %s90
    %s107 = sphi 0, %s91
  $region4: #{unet_scattering_dynamic_forward.6} parent=0 // loop_header_branch
    %12 = sbr.rel (%p10) target = $region8
  $region5: #{unet_scattering_dynamic_forward.6} parent=0 // loop_body
    %s14 = ssub.s32 %s9, 1
    %s15 = ssub.s32 %s9, 2
    %s16 = sadd.s32 %s9, 1
    %s17 = ssub.s32 %s9, %s16
    %p18 = scmp.eq.s32.totalorder %s17, 0
    %s20 = sadd.s32 %s19, 1
    %s21 = scalar_select %p18, %s19, %s20
    %p24 = pneg %p18
    %p25 = scmp.eq.s32.totalorder %s9, 1
    %p26 = por %p24, %p25
    %p27 = scmp.ne.s32.totalorder %s19, %s22
    %p28 = scmp.eq.s32.totalorder %s9, 0
    %p29 = por %p27, %p28
    %p30 = scmp.ne.s32.totalorder %s19, %s22
    %p31 = scmp.eq.s32.totalorder %s14, 1
    %p32 = por %p30, %p31
    %p33 = scmp.ne.s32.totalorder %s22, %s23
    %p34 = scmp.eq.s32.totalorder %s14, 0
    %p35 = por %p33, %p34
    %p36 = scmp.ne.s32.totalorder %s22, %s23
    %p37 = scmp.eq.s32.totalorder %s15, 1
    %p38 = por %p36, %p37
    %p40 = scmp.ne.s32.totalorder %s23, %s39
    %p41 = scmp.eq.s32.totalorder %s15, 0
    %p42 = por %p40, %p41
    %s44 = sadd.s32 %s43, 1
    %p47 = scmp.eq.s32.totalorder %s9, 1
    %p48 = scmp.ne.s32.totalorder %s43, %s45
    %p49 = scmp.eq.s32.totalorder %s9, 0
    %p50 = por %p48, %p49
    %p51 = scmp.ne.s32.totalorder %s43, %s45
    %p52 = scmp.eq.s32.totalorder %s14, 1
    %p53 = por %p51, %p52
    %p54 = scmp.ne.s32.totalorder %s45, %s46
    %p55 = scmp.eq.s32.totalorder %s14, 0
    %p56 = por %p54, %p55
    %p57 = scmp.ne.s32.totalorder %s45, %s46
    %p58 = scmp.eq.s32.totalorder %s15, 1
    %p59 = por %p57, %p58
    %p61 = scmp.ne.s32.totalorder %s46, %s60
    %p62 = scmp.eq.s32.totalorder %s15, 0
    %p63 = por %p61, %p62
    %s65 = sadd.s32 %s64, 1
    %p68 = scmp.eq.s32.totalorder %s9, 1
    %p69 = scmp.ne.s32.totalorder %s64, %s66
    %p70 = scmp.eq.s32.totalorder %s9, 0
    %p71 = por %p69, %p70
    %p72 = scmp.ne.s32.totalorder %s64, %s66
    %p73 = scmp.eq.s32.totalorder %s14, 1
    %p74 = por %p72, %p73
    %p75 = scmp.ne.s32.totalorder %s66, %s67
    %p76 = scmp.eq.s32.totalorder %s14, 0
    %p77 = por %p75, %p76
    %p78 = scmp.ne.s32.totalorder %s66, %s67
    %p79 = scmp.eq.s32.totalorder %s15, 1
    %p80 = por %p78, %p79
    %p82 = scmp.ne.s32.totalorder %s67, %s81
    %p83 = scmp.eq.s32.totalorder %s15, 0
    %p84 = por %p82, %p83
    %s85 = ssub.s32 %s9, %s16
    %p86 = scmp.eq.s32.totalorder %s85, 0
    %s88 = sadd.s32 %s87, 1
    %s89 = scalar_select %p86, %s87, %s88
    %p92 = pneg %p86
    %p93 = scmp.eq.s32.totalorder %s9, 1
    %p94 = por %p92, %p93
    %p95 = scmp.ne.s32.totalorder %s87, %s90
    %p96 = scmp.eq.s32.totalorder %s9, 0
    %p97 = por %p95, %p96
    %p98 = scmp.ne.s32.totalorder %s87, %s90
    %p99 = scmp.eq.s32.totalorder %s14, 1
    %p100 = por %p98, %p99
    %p101 = scmp.ne.s32.totalorder %s90, %s91
    %p102 = scmp.eq.s32.totalorder %s14, 0
    %p103 = por %p101, %p102
    %p104 = scmp.ne.s32.totalorder %s90, %s91
    %p105 = scmp.eq.s32.totalorder %s15, 1
    %p106 = por %p104, %p105
    %p108 = scmp.ne.s32.totalorder %s91, %s107
    %p109 = scmp.eq.s32.totalorder %s15, 0
    %p110 = por %p108, %p109
    %p111 = scmp.le.s32.totalorder 1, %s9
    %p112 = scmp.lt.s32.totalorder %s9, 3
    %p113 = pnand %p111, %p112
    %p114 = pneg %p113
    // Predicated region
    $region9: #{unet_scattering_dynamic_forward.6} parent=5 // pred_check
      _
    $region10: #{unet_scattering_dynamic_forward.6} parent=5 // pred_check_branch
      %116 = sbr.rel (%p113) target = $region12
    $region11: #{unet_scattering_dynamic_forward.6} parent=5 // pred_region
      %s117 = ssub.s32 %s9, 1
      // Predicated region
      $region13: #{unet_scattering_dynamic_forward.6} parent=11 // pred_check
        %p118 = pneg %p56
      $region14: #{unet_scattering_dynamic_forward.6} parent=11 // pred_check_branch
        %120 = sbr.rel (%p118) target = $region16
      $region15: #{unet_scattering_dynamic_forward.6} parent=11 // pred_region
        _
      $region16: #{unet_scattering_dynamic_forward.6} parent=11 // pred_fallthru
        _
      // Predicated region
      $region17: #{unet_scattering_dynamic_forward.6} parent=11 // pred_check
        %p121 = pneg %p77
      $region18: #{unet_scattering_dynamic_forward.6} parent=11 // pred_check_branch
        %123 = sbr.rel (%p121) target = $region20
      $region19: #{unet_scattering_dynamic_forward.6} parent=11 // pred_region
        _
      $region20: #{unet_scattering_dynamic_forward.6} parent=11 // pred_fallthru
        _
    $region12: #{unet_scattering_dynamic_forward.6} parent=5 // pred_fallthru
      _
    %p124 = scmp.lt.s32.totalorder %s9, 2
    // Predicated region
    $region21: #{unet_scattering_dynamic_forward.6} parent=5 // pred_check
      %p125 = pneg %p124
    $region22: #{unet_scattering_dynamic_forward.6} parent=5 // pred_check_branch
      %127 = sbr.rel (%p125) target = $region24
    $region23: #{unet_scattering_dynamic_forward.6} parent=5 // pred_region
      // Predicated region
      $region25: #{unet_scattering_dynamic_forward.6} parent=23 // pred_check
        %p128 = pneg %p29
      $region26: #{unet_scattering_dynamic_forward.6} parent=23 // pred_check_branch
        %130 = sbr.rel (%p128) target = $region28
      $region27: #{unet_scattering_dynamic_forward.6} parent=23 // pred_region
        %p131 = scmp.lt.s32.totalorder %s9, 1
        %s132 = scalar_select %p131, %s9, 1
        %s133 = smul.addr %s132, 4
        %s134 = smul.addr %s133, 4
        %s135 = scalar_lea.vmem %s0, %s134
      $region28: #{unet_scattering_dynamic_forward.6} parent=23 // pred_fallthru
        _
    $region24: #{unet_scattering_dynamic_forward.6} parent=5 // pred_fallthru
      _
    %p136 = scmp.le.s32.totalorder 1, %s9
    %p137 = scmp.lt.s32.totalorder %s9, 3
    %p138 = pnand %p136, %p137
    %p139 = pneg %p138
    // Predicated region
    $region29: #{unet_scattering_dynamic_forward.6} parent=5 // pred_check
      _
    $region30: #{unet_scattering_dynamic_forward.6} parent=5 // pred_check_branch
      %141 = sbr.rel (%p138) target = $region32
    $region31: #{unet_scattering_dynamic_forward.6} parent=5 // pred_region
      %s142 = ssub.s32 %s9, 1
      %p143 = scmp.lt.s32.totalorder %s14, 1
      %s144 = scalar_select %p143, %s14, 1
      %s145 = smul.addr %s144, 4
      %s146 = smul.addr %s145, 4
      %s147 = scalar_lea.vmem %s0, %s146
      %p148 = pneg %p35
      %p149 = pneg %p32
      %p150 = pneg %p56
      %p151 = pneg %p53
      %p152 = pneg %p77
      %p153 = pneg %p74
      %p154 = pneg %p103
      %p155 = pneg %p100
      %p156 = scmp.lt.s32.totalorder %s14, 1
      %s157 = scalar_select %p156, %s14, 1
      %s158 = smul.addr %s157, 2
      %s159 = smul.addr %s158, 4
      %s160 = scalar_lea.vmem %s3, %s159
      %p161 = scmp.lt.s32.totalorder %s14, 1
      %s162 = scalar_select %p161, %s14, 1
      %s163 = smul.addr %s162, 4
      %s164 = smul.addr %s163, 4
      %s165 = scalar_lea.vmem %s0, %s164
      %p166 = scmp.lt.s32.totalorder %s14, 1
      %s167 = scalar_select %p166, %s14, 1
      %s168 = smul.addr %s167, 2
      %s169 = smul.addr %s168, 4
      %s170 = scalar_lea.vmem %s3, %s169
      %v171 = vld [vmem:[%s165] sm:$0xf]
      %v172 = vld [vmem:[%s165 + $0x4] sm:$0xf]
      %v173 = vld [vmem:[%s1] sm:$0xf]
      %v174 = vld [vmem:[%s1 + $0x4] sm:$0xf]
      %v175 = vld [vmem:[%s1 + $0x8] sm:$0xf]
      %v176 = vld [vmem:[%s1 + $0xc] sm:$0xf]
      %v177 = vld [vmem:[%s1 + $0x10] sm:$0xf]
      %v178 = vld [vmem:[%s1 + $0x14] sm:$0xf]
      %v179 = vld [vmem:[%s1 + $0x18] sm:$0xf]
      %v180 = vld [vmem:[%s1 + $0x1c] sm:$0xf]
      %v181 = vld [vmem:[%s1 + $0x20] sm:$0xf]
      %v182 = vld [vmem:[%s1 + $0x24] sm:$0xf]
      %v183 = vld [vmem:[%s1 + $0x28] sm:$0xf]
      %v184 = vld [vmem:[%s1 + $0x2c] sm:$0xf]
      %v185 = vld [vmem:[%s1 + $0x30] sm:$0xf]
      %v186 = vld [vmem:[%s1 + $0x34] sm:$0xf]
      %v187 = vld [vmem:[%s1 + $0x38] sm:$0xf]
      %v188 = vld [vmem:[%s1 + $0x3c] sm:$0xf]
      %v189 = vld [vmem:[%s165 + $0x8] sm:$0x1]
      %s190 = scalar_lea.vmem %s1, 64
      %v191 = vld [vmem:[%s190] sm:$0xf]
      %v192 = vld [vmem:[%s190 + $0x4] sm:$0xf]
      %v193 = vld [vmem:[%s190 + $0x8] sm:$0xf]
      %v194 = vld [vmem:[%s190 + $0xc] sm:$0xf]
      %v195 = vld [vmem:[%s190 + $0x10] sm:$0xf]
      %v196 = vld [vmem:[%s190 + $0x14] sm:$0xf]
      %v197 = vld [vmem:[%s190 + $0x18] sm:$0xf]
      %v198 = vld [vmem:[%s190 + $0x1c] sm:$0xf]
      %v199 = vld [vmem:[%s190 + $0x20] sm:$0xf]
      %v200 = vld [vmem:[%s190 + $0x24] sm:$0xf]
      %v201 = vld [vmem:[%s190 + $0x28] sm:$0xf]
      %v202 = vld [vmem:[%s190 + $0x2c] sm:$0xf]
      %v203 = vld [vmem:[%s190 + $0x30] sm:$0xf]
      %v204 = vld [vmem:[%s190 + $0x34] sm:$0xf]
      %v205 = vld [vmem:[%s190 + $0x38] sm:$0xf]
      %v206 = vld [vmem:[%s190 + $0x3c] sm:$0xf]
      %v207 = vld [vmem:[%s165] sm:$0xe]
      %s208 = scalar_lea.vmem %s1, 128
      %v209 = vld [vmem:[%s208] sm:$0xf]
      %v210 = vld [vmem:[%s208 + $0x4] sm:$0xf]
      %v211 = vld [vmem:[%s208 + $0x8] sm:$0xf]
      %v212 = vld [vmem:[%s208 + $0xc] sm:$0xf]
      %v213 = vld [vmem:[%s208 + $0x10] sm:$0xf]
      %v214 = vld [vmem:[%s208 + $0x14] sm:$0xf]
      %v215 = vld [vmem:[%s208 + $0x18] sm:$0xf]
      %v216 = vld [vmem:[%s208 + $0x1c] sm:$0xf]
      %v217 = vld [vmem:[%s208 + $0x20] sm:$0xf]
      %v218 = vld [vmem:[%s208 + $0x24] sm:$0xf]
      %v219 = vld [vmem:[%s208 + $0x28] sm:$0xf]
      %v220 = vld [vmem:[%s208 + $0x2c] sm:$0xf]
      %v221 = vld [vmem:[%s208 + $0x30] sm:$0xf]
      %v222 = vld [vmem:[%s208 + $0x34] sm:$0xf]
      %v223 = vld [vmem:[%s208 + $0x38] sm:$0xf]
      %v224 = vld [vmem:[%s208 + $0x3c] sm:$0xf]
      %v225 = vld [vmem:[%s165] sm:$0xc]
      %v226 = vld [vmem:[%s165 + $0x8] sm:$0x3]
      %s227 = scalar_lea.vmem %s1, 192
      %v228 = vld [vmem:[%s227] sm:$0xf]
      %v229 = vld [vmem:[%s227 + $0x4] sm:$0xf]
      %v230 = vld [vmem:[%s227 + $0x8] sm:$0xf]
      %v231 = vld [vmem:[%s227 + $0xc] sm:$0xf]
      %v232 = vld [vmem:[%s227 + $0x10] sm:$0xf]
      %v233 = vld [vmem:[%s227 + $0x14] sm:$0xf]
      %v234 = vld [vmem:[%s227 + $0x18] sm:$0xf]
      %v235 = vld [vmem:[%s227 + $0x1c] sm:$0xf]
      %v236 = vld [vmem:[%s227 + $0x20] sm:$0xf]
      %v237 = vld [vmem:[%s227 + $0x24] sm:$0xf]
      %v238 = vld [vmem:[%s227 + $0x28] sm:$0xf]
      %v239 = vld [vmem:[%s227 + $0x2c] sm:$0xf]
      %v240 = vld [vmem:[%s227 + $0x30] sm:$0xf]
      %v241 = vld [vmem:[%s227 + $0x34] sm:$0xf]
      %v242 = vld [vmem:[%s227 + $0x38] sm:$0xf]
      %v243 = vld [vmem:[%s227 + $0x3c] sm:$0xf]
      %v247 = vunpack.c.l.b16 %v225
      %v248 = vunpack.c.l.b16 %v172
      %v249 = vunpack.c.l.b16 %v226
      %v250 = vpack.c.b16 %v248, %v247
      %v251 = vpack.c.b16 %v249, %v249
      %vm252 = vcmask 1045504
      %v253 = vrot.slane %v250, 2
      %v254 = vrot.slane %v251, 2
      %v255 = vsel %vm252, %v253, %v254
      %v273 = vunpack.c.l.b16 %v228
      %v274 = vunpack.c.l.b16 %v229
      %v275 = vunpack.c.l.b16 %v230
      %v276 = vunpack.c.l.b16 %v231
      %v277 = vunpack.c.l.b16 %v232
      %v278 = vunpack.c.l.b16 %v233
      %v279 = vunpack.c.l.b16 %v234
      %v280 = vunpack.c.l.b16 %v235
      %v281 = vunpack.c.l.b16 %v236
      %v282 = vunpack.c.l.b16 %v237
      %v283 = vunpack.c.l.b16 %v238
      %v284 = vunpack.c.l.b16 %v239
      %v285 = vunpack.c.l.b16 %v240
      %v286 = vunpack.c.l.b16 %v241
      %v287 = vunpack.c.l.b16 %v242
      %v288 = vunpack.c.l.b16 %v243
      %v289 = vpack.c.b16 %v274, %v273
      %v290 = vpack.c.b16 %v276, %v275
      %v291 = vpack.c.b16 %v278, %v277
      %v292 = vpack.c.b16 %v280, %v279
      %v293 = vpack.c.b16 %v282, %v281
      %v294 = vpack.c.b16 %v284, %v283
      %v295 = vpack.c.b16 %v286, %v285
      %v296 = vpack.c.b16 %v288, %v287
      %305 = vmatpush.bf16.msra.mxu0 %v296
      %306 = vmatpush.bf16.msra.mxu0 %v295
      %307 = vmatpush.bf16.msra.mxu0 %v294
      %308 = vmatpush.bf16.msra.mxu0 %v293
      %309 = vmatpush.bf16.msra.mxu0 %v292
      %310 = vmatpush.bf16.msra.mxu0 %v291
      %311 = vmatpush.bf16.msra.mxu0 %v290
      %312 = vmatpush.bf16.msra.mxu0 %v289
      %313 = vmatmul.bf16.gmra.mxu0 %v255
      %v314 = vpop.f32.mrf.mxu0
      %v315 = vadd.f32 0.0, %v314
      %v316 = vpop.f32.mrf.mxu0
      %v317 = vadd.f32 0.0, %v316
      %318 = vdwg.mxu0
      %v320 = vunpack.c.l.b16 %v171
      %v321 = vpack.c.b16 %v248, %v320
      %v339 = vunpack.c.l.b16 %v173
      %v340 = vunpack.c.l.b16 %v174
      %v341 = vunpack.c.l.b16 %v175
      %v342 = vunpack.c.l.b16 %v176
      %v343 = vunpack.c.l.b16 %v177
      %v344 = vunpack.c.l.b16 %v178
      %v345 = vunpack.c.l.b16 %v179
      %v346 = vunpack.c.l.b16 %v180
      %v347 = vunpack.c.l.b16 %v181
      %v348 = vunpack.c.l.b16 %v182
      %v349 = vunpack.c.l.b16 %v183
      %v350 = vunpack.c.l.b16 %v184
      %v351 = vunpack.c.l.b16 %v185
      %v352 = vunpack.c.l.b16 %v186
      %v353 = vunpack.c.l.b16 %v187
      %v354 = vunpack.c.l.b16 %v188
      %v355 = vpack.c.b16 %v340, %v339
      %v356 = vpack.c.b16 %v342, %v341
      %v357 = vpack.c.b16 %v344, %v343
      %v358 = vpack.c.b16 %v346, %v345
      %v359 = vpack.c.b16 %v348, %v347
      %v360 = vpack.c.b16 %v350, %v349
      %v361 = vpack.c.b16 %v352, %v351
      %v362 = vpack.c.b16 %v354, %v353
      %371 = vmatpush.bf16.msra.mxu0 %v362
      %372 = vmatpush.bf16.msra.mxu0 %v361
      %373 = vmatpush.bf16.msra.mxu0 %v360
      %374 = vmatpush.bf16.msra.mxu0 %v359
      %375 = vmatpush.bf16.msra.mxu0 %v358
      %376 = vmatpush.bf16.msra.mxu0 %v357
      %377 = vmatpush.bf16.msra.mxu0 %v356
      %378 = vmatpush.bf16.msra.mxu0 %v355
      %379 = vmatmul.bf16.gmra.mxu0 %v321
      %v380 = vpop.f32.mrf.mxu0
      %v381 = vadd.f32 %v315, %v380
      %v382 = vpop.f32.mrf.mxu0
      %v383 = vadd.f32 %v317, %v382
      %384 = vdwg.mxu0
      %v385 = vld [vmem:[%s165 + $0x8] sm:$0x7]
      %s386 = scalar_lea.vmem %s1, 256
      %v387 = vld [vmem:[%s386] sm:$0xf]
      %v388 = vld [vmem:[%s386 + $0x4] sm:$0xf]
      %v389 = vld [vmem:[%s386 + $0x8] sm:$0xf]
      %v390 = vld [vmem:[%s386 + $0xc] sm:$0xf]
      %v391 = vld [vmem:[%s386 + $0x10] sm:$0xf]
      %v392 = vld [vmem:[%s386 + $0x14] sm:$0xf]
      %v393 = vld [vmem:[%s386 + $0x18] sm:$0xf]
      %v394 = vld [vmem:[%s386 + $0x1c] sm:$0xf]
      %v395 = vld [vmem:[%s386 + $0x20] sm:$0xf]
      %v396 = vld [vmem:[%s386 + $0x24] sm:$0xf]
      %v397 = vld [vmem:[%s386 + $0x28] sm:$0xf]
      %v398 = vld [vmem:[%s386 + $0x2c] sm:$0xf]
      %v399 = vld [vmem:[%s386 + $0x30] sm:$0xf]
      %v400 = vld [vmem:[%s386 + $0x34] sm:$0xf]
      %v401 = vld [vmem:[%s386 + $0x38] sm:$0xf]
      %v402 = vld [vmem:[%s386 + $0x3c] sm:$0xf]
      %v404 = vunpack.c.l.b16 %v385
      %v405 = vpack.c.b16 %v404, %v404
      %vm406 = vsmask.f32 5376
      %v408 = vshrl.u32 %v250, 16
      %v410 = vrot.slane %v408, 2
      %v411 = vshll.u32 %v250, 16
      %v413 = vrot.slane %v411, 3
      %v414 = vor.u32 %v410, %v413
      %v416 = vshrl.u32 %v405, 16
      %v418 = vrot.slane %v416, 2
      %v419 = vshll.u32 %v405, 16
      %v421 = vrot.slane %v419, 3
      %v422 = vor.u32 %v418, %v421
      %v423 = vsel %vm406, %v414, %v422
      %v441 = vunpack.c.l.b16 %v387
      %v442 = vunpack.c.l.b16 %v388
      %v443 = vunpack.c.l.b16 %v389
      %v444 = vunpack.c.l.b16 %v390
      %v445 = vunpack.c.l.b16 %v391
      %v446 = vunpack.c.l.b16 %v392
      %v447 = vunpack.c.l.b16 %v393
      %v448 = vunpack.c.l.b16 %v394
      %v449 = vunpack.c.l.b16 %v395
      %v450 = vunpack.c.l.b16 %v396
      %v451 = vunpack.c.l.b16 %v397
      %v452 = vunpack.c.l.b16 %v398
      %v453 = vunpack.c.l.b16 %v399
      %v454 = vunpack.c.l.b16 %v400
      %v455 = vunpack.c.l.b16 %v401
      %v456 = vunpack.c.l.b16 %v402
      %v457 = vpack.c.b16 %v442, %v441
      %v458 = vpack.c.b16 %v444, %v443
      %v459 = vpack.c.b16 %v446, %v445
      %v460 = vpack.c.b16 %v448, %v447
      %v461 = vpack.c.b16 %v450, %v449
      %v462 = vpack.c.b16 %v452, %v451
      %v463 = vpack.c.b16 %v454, %v453
      %v464 = vpack.c.b16 %v456, %v455
      %473 = vmatpush.bf16.msra.mxu0 %v464
      %474 = vmatpush.bf16.msra.mxu0 %v463
      %475 = vmatpush.bf16.msra.mxu0 %v462
      %476 = vmatpush.bf16.msra.mxu0 %v461
      %477 = vmatpush.bf16.msra.mxu0 %v460
      %478 = vmatpush.bf16.msra.mxu0 %v459
      %479 = vmatpush.bf16.msra.mxu0 %v458
      %480 = vmatpush.bf16.msra.mxu0 %v457
      %481 = vmatmul.bf16.gmra.mxu0 %v423
      %v482 = vpop.f32.mrf.mxu0
      %v483 = vadd.f32 0.0, %v482
      %v484 = vpop.f32.mrf.mxu0
      %v485 = vadd.f32 0.0, %v484
      %486 = vdwg.mxu0
      %v488 = vunpack.c.l.b16 %v189
      %v489 = vpack.c.b16 %v488, %v488
      %vm490 = vsmask.f32 7424
      %v492 = vshrl.u32 %v321, 16
      %v494 = vshll.u32 %v321, 16
      %v496 = vrot.slane %v494, 1
      %v497 = vor.u32 %v492, %v496
      %v499 = vshll.u32 %v489, 16
      %v501 = vrot.slane %v499, 1
      %v502 = vsel %vm490, %v497, %v501
      %v520 = vunpack.c.l.b16 %v191
      %v521 = vunpack.c.l.b16 %v192
      %v522 = vunpack.c.l.b16 %v193
      %v523 = vunpack.c.l.b16 %v194
      %v524 = vunpack.c.l.b16 %v195
      %v525 = vunpack.c.l.b16 %v196
      %v526 = vunpack.c.l.b16 %v197
      %v527 = vunpack.c.l.b16 %v198
      %v528 = vunpack.c.l.b16 %v199
      %v529 = vunpack.c.l.b16 %v200
      %v530 = vunpack.c.l.b16 %v201
      %v531 = vunpack.c.l.b16 %v202
      %v532 = vunpack.c.l.b16 %v203
      %v533 = vunpack.c.l.b16 %v204
      %v534 = vunpack.c.l.b16 %v205
      %v535 = vunpack.c.l.b16 %v206
      %v536 = vpack.c.b16 %v521, %v520
      %v537 = vpack.c.b16 %v523, %v522
      %v538 = vpack.c.b16 %v525, %v524
      %v539 = vpack.c.b16 %v527, %v526
      %v540 = vpack.c.b16 %v529, %v528
      %v541 = vpack.c.b16 %v531, %v530
      %v542 = vpack.c.b16 %v533, %v532
      %v543 = vpack.c.b16 %v535, %v534
      %552 = vmatpush.bf16.msra.mxu0 %v543
      %553 = vmatpush.bf16.msra.mxu0 %v542
      %554 = vmatpush.bf16.msra.mxu0 %v541
      %555 = vmatpush.bf16.msra.mxu0 %v540
      %556 = vmatpush.bf16.msra.mxu0 %v539
      %557 = vmatpush.bf16.msra.mxu0 %v538
      %558 = vmatpush.bf16.msra.mxu0 %v537
      %559 = vmatpush.bf16.msra.mxu0 %v536
      %560 = vmatmul.bf16.gmra.mxu0 %v502
      %v561 = vpop.f32.mrf.mxu0
      %v562 = vadd.f32 %v483, %v561
      %v563 = vpop.f32.mrf.mxu0
      %v564 = vadd.f32 %v485, %v563
      %565 = vdwg.mxu0
      %v566 = vld [vmem:[%s165] sm:$0x8]
      %s567 = scalar_lea.vmem %s1, 320
      %v568 = vld [vmem:[%s567] sm:$0xf]
      %v569 = vld [vmem:[%s567 + $0x4] sm:$0xf]
      %v570 = vld [vmem:[%s567 + $0x8] sm:$0xf]
      %v571 = vld [vmem:[%s567 + $0xc] sm:$0xf]
      %v572 = vld [vmem:[%s567 + $0x10] sm:$0xf]
      %v573 = vld [vmem:[%s567 + $0x14] sm:$0xf]
      %v574 = vld [vmem:[%s567 + $0x18] sm:$0xf]
      %v575 = vld [vmem:[%s567 + $0x1c] sm:$0xf]
      %v576 = vld [vmem:[%s567 + $0x20] sm:$0xf]
      %v577 = vld [vmem:[%s567 + $0x24] sm:$0xf]
      %v578 = vld [vmem:[%s567 + $0x28] sm:$0xf]
      %v579 = vld [vmem:[%s567 + $0x2c] sm:$0xf]
      %v580 = vld [vmem:[%s567 + $0x30] sm:$0xf]
      %v581 = vld [vmem:[%s567 + $0x34] sm:$0xf]
      %v582 = vld [vmem:[%s567 + $0x38] sm:$0xf]
      %v583 = vld [vmem:[%s567 + $0x3c] sm:$0xf]
      %v585 = vunpack.c.l.b16 %v566
      %v586 = vpack.c.b16 %v248, %v585
      %vm587 = vcmask 1044480
      %v588 = vrot.slane %v586, 3
      %v589 = vrot.slane %v405, 3
      %v590 = vsel %vm587, %v588, %v589
      %v608 = vunpack.c.l.b16 %v568
      %v609 = vunpack.c.l.b16 %v569
      %v610 = vunpack.c.l.b16 %v570
      %v611 = vunpack.c.l.b16 %v571
      %v612 = vunpack.c.l.b16 %v572
      %v613 = vunpack.c.l.b16 %v573
      %v614 = vunpack.c.l.b16 %v574
      %v615 = vunpack.c.l.b16 %v575
      %v616 = vunpack.c.l.b16 %v576
      %v617 = vunpack.c.l.b16 %v577
      %v618 = vunpack.c.l.b16 %v578
      %v619 = vunpack.c.l.b16 %v579
      %v620 = vunpack.c.l.b16 %v580
      %v621 = vunpack.c.l.b16 %v581
      %v622 = vunpack.c.l.b16 %v582
      %v623 = vunpack.c.l.b16 %v583
      %v624 = vpack.c.b16 %v609, %v608
      %v625 = vpack.c.b16 %v611, %v610
      %v626 = vpack.c.b16 %v613, %v612
      %v627 = vpack.c.b16 %v615, %v614
      %v628 = vpack.c.b16 %v617, %v616
      %v629 = vpack.c.b16 %v619, %v618
      %v630 = vpack.c.b16 %v621, %v620
      %v631 = vpack.c.b16 %v623, %v622
      %640 = vmatpush.bf16.msra.mxu0 %v631
      %641 = vmatpush.bf16.msra.mxu0 %v630
      %642 = vmatpush.bf16.msra.mxu0 %v629
      %643 = vmatpush.bf16.msra.mxu0 %v628
      %644 = vmatpush.bf16.msra.mxu0 %v627
      %645 = vmatpush.bf16.msra.mxu0 %v626
      %646 = vmatpush.bf16.msra.mxu0 %v625
      %647 = vmatpush.bf16.msra.mxu0 %v624
      %648 = vmatmul.bf16.gmra.mxu0 %v590
      %v649 = vpop.f32.mrf.mxu0
      %v650 = vadd.f32 0.0, %v649
      %v651 = vpop.f32.mrf.mxu0
      %v652 = vadd.f32 0.0, %v651
      %653 = vdwg.mxu0
      %v655 = vunpack.c.l.b16 %v207
      %v656 = vpack.c.b16 %v248, %v655
      %vm657 = vcmask 1046528
      %v658 = vrot.slane %v656, 1
      %v659 = vrot.slane %v489, 1
      %v660 = vsel %vm657, %v658, %v659
      %v678 = vunpack.c.l.b16 %v209
      %v679 = vunpack.c.l.b16 %v210
      %v680 = vunpack.c.l.b16 %v211
      %v681 = vunpack.c.l.b16 %v212
      %v682 = vunpack.c.l.b16 %v213
      %v683 = vunpack.c.l.b16 %v214
      %v684 = vunpack.c.l.b16 %v215
      %v685 = vunpack.c.l.b16 %v216
      %v686 = vunpack.c.l.b16 %v217
      %v687 = vunpack.c.l.b16 %v218
      %v688 = vunpack.c.l.b16 %v219
      %v689 = vunpack.c.l.b16 %v220
      %v690 = vunpack.c.l.b16 %v221
      %v691 = vunpack.c.l.b16 %v222
      %v692 = vunpack.c.l.b16 %v223
      %v693 = vunpack.c.l.b16 %v224
      %v694 = vpack.c.b16 %v679, %v678
      %v695 = vpack.c.b16 %v681, %v680
      %v696 = vpack.c.b16 %v683, %v682
      %v697 = vpack.c.b16 %v685, %v684
      %v698 = vpack.c.b16 %v687, %v686
      %v699 = vpack.c.b16 %v689, %v688
      %v700 = vpack.c.b16 %v691, %v690
      %v701 = vpack.c.b16 %v693, %v692
      %710 = vmatpush.bf16.msra.mxu0 %v701
      %711 = vmatpush.bf16.msra.mxu0 %v700
      %712 = vmatpush.bf16.msra.mxu0 %v699
      %713 = vmatpush.bf16.msra.mxu0 %v698
      %714 = vmatpush.bf16.msra.mxu0 %v697
      %715 = vmatpush.bf16.msra.mxu0 %v696
      %716 = vmatpush.bf16.msra.mxu0 %v695
      %717 = vmatpush.bf16.msra.mxu0 %v694
      %718 = vmatmul.bf16.gmra.mxu0 %v660
      %v719 = vpop.f32.mrf.mxu0
      %v720 = vadd.f32 %v650, %v719
      %v721 = vpop.f32.mrf.mxu0
      %v722 = vadd.f32 %v652, %v721
      %723 = vdwg.mxu0
      %v724 = vld [vmem:[%s165 + $0x8] sm:$0xf]
      %s725 = scalar_lea.vmem %s1, 384
      %v726 = vld [vmem:[%s725] sm:$0xf]
      %v727 = vld [vmem:[%s725 + $0x4] sm:$0xf]
      %v728 = vld [vmem:[%s725 + $0x8] sm:$0xf]
      %v729 = vld [vmem:[%s725 + $0xc] sm:$0xf]
      %v730 = vld [vmem:[%s725 + $0x10] sm:$0xf]
      %v731 = vld [vmem:[%s725 + $0x14] sm:$0xf]
      %v732 = vld [vmem:[%s725 + $0x18] sm:$0xf]
      %v733 = vld [vmem:[%s725 + $0x1c] sm:$0xf]
      %v734 = vld [vmem:[%s725 + $0x20] sm:$0xf]
      %v735 = vld [vmem:[%s725 + $0x24] sm:$0xf]
      %v736 = vld [vmem:[%s725 + $0x28] sm:$0xf]
      %v737 = vld [vmem:[%s725 + $0x2c] sm:$0xf]
      %v738 = vld [vmem:[%s725 + $0x30] sm:$0xf]
      %v739 = vld [vmem:[%s725 + $0x34] sm:$0xf]
      %v740 = vld [vmem:[%s725 + $0x38] sm:$0xf]
      %v741 = vld [vmem:[%s725 + $0x3c] sm:$0xf]
      %v743 = vunpack.c.l.b16 %v724
      %v744 = vpack.c.b16 %v743, %v248
      %v762 = vunpack.c.l.b16 %v726
      %v763 = vunpack.c.l.b16 %v727
      %v764 = vunpack.c.l.b16 %v728
      %v765 = vunpack.c.l.b16 %v729
      %v766 = vunpack.c.l.b16 %v730
      %v767 = vunpack.c.l.b16 %v731
      %v768 = vunpack.c.l.b16 %v732
      %v769 = vunpack.c.l.b16 %v733
      %v770 = vunpack.c.l.b16 %v734
      %v771 = vunpack.c.l.b16 %v735
      %v772 = vunpack.c.l.b16 %v736
      %v773 = vunpack.c.l.b16 %v737
      %v774 = vunpack.c.l.b16 %v738
      %v775 = vunpack.c.l.b16 %v739
      %v776 = vunpack.c.l.b16 %v740
      %v777 = vunpack.c.l.b16 %v741
      %v778 = vpack.c.b16 %v763, %v762
      %v779 = vpack.c.b16 %v765, %v764
      %v780 = vpack.c.b16 %v767, %v766
      %v781 = vpack.c.b16 %v769, %v768
      %v782 = vpack.c.b16 %v771, %v770
      %v783 = vpack.c.b16 %v773, %v772
      %v784 = vpack.c.b16 %v775, %v774
      %v785 = vpack.c.b16 %v777, %v776
      %794 = vmatpush.bf16.msra.mxu0 %v785
      %795 = vmatpush.bf16.msra.mxu0 %v784
      %796 = vmatpush.bf16.msra.mxu0 %v783
      %797 = vmatpush.bf16.msra.mxu0 %v782
      %798 = vmatpush.bf16.msra.mxu0 %v781
      %799 = vmatpush.bf16.msra.mxu0 %v780
      %800 = vmatpush.bf16.msra.mxu0 %v779
      %801 = vmatpush.bf16.msra.mxu0 %v778
      %802 = vmatmul.bf16.gmra.mxu0 %v744
      %v803 = vpop.f32.mrf.mxu0
      %v804 = vadd.f32 0.0, %v803
      %v805 = vpop.f32.mrf.mxu0
      %v806 = vadd.f32 0.0, %v805
      %807 = vdwg.mxu0
      %v808 = vadd.f32 %v381, %v804
      %v809 = vadd.f32 %v383, %v806
      %v810 = vld [vmem:[%s165 + $0x4] sm:$0xf]
      %v811 = vld [vmem:[%s165 + $0x8] sm:$0xf]
      %v812 = vld [vmem:[%s165 + $0xc] sm:$0x1]
      %s813 = scalar_lea.vmem %s1, 448
      %v814 = vld [vmem:[%s813] sm:$0xf]
      %v815 = vld [vmem:[%s813 + $0x4] sm:$0xf]
      %v816 = vld [vmem:[%s813 + $0x8] sm:$0xf]
      %v817 = vld [vmem:[%s813 + $0xc] sm:$0xf]
      %v818 = vld [vmem:[%s813 + $0x10] sm:$0xf]
      %v819 = vld [vmem:[%s813 + $0x14] sm:$0xf]
      %v820 = vld [vmem:[%s813 + $0x18] sm:$0xf]
      %v821 = vld [vmem:[%s813 + $0x1c] sm:$0xf]
      %v822 = vld [vmem:[%s813 + $0x20] sm:$0xf]
      %v823 = vld [vmem:[%s813 + $0x24] sm:$0xf]
      %v824 = vld [vmem:[%s813 + $0x28] sm:$0xf]
      %v825 = vld [vmem:[%s813 + $0x2c] sm:$0xf]
      %v826 = vld [vmem:[%s813 + $0x30] sm:$0xf]
      %v827 = vld [vmem:[%s813 + $0x34] sm:$0xf]
      %v828 = vld [vmem:[%s813 + $0x38] sm:$0xf]
      %v829 = vld [vmem:[%s813 + $0x3c] sm:$0xf]
      %v833 = vunpack.c.l.b16 %v810
      %v834 = vunpack.c.l.b16 %v811
      %v835 = vunpack.c.l.b16 %v812
      %v836 = vpack.c.b16 %v834, %v833
      %v837 = vpack.c.b16 %v835, %v835
      %v839 = vshrl.u32 %v836, 16
      %v841 = vshll.u32 %v836, 16
      %v843 = vrot.slane %v841, 1
      %v844 = vor.u32 %v839, %v843
      %v846 = vshll.u32 %v837, 16
      %v848 = vrot.slane %v846, 1
      %v849 = vsel %vm490, %v844, %v848
      %v867 = vunpack.c.l.b16 %v814
      %v868 = vunpack.c.l.b16 %v815
      %v869 = vunpack.c.l.b16 %v816
      %v870 = vunpack.c.l.b16 %v817
      %v871 = vunpack.c.l.b16 %v818
      %v872 = vunpack.c.l.b16 %v819
      %v873 = vunpack.c.l.b16 %v820
      %v874 = vunpack.c.l.b16 %v821
      %v875 = vunpack.c.l.b16 %v822
      %v876 = vunpack.c.l.b16 %v823
      %v877 = vunpack.c.l.b16 %v824
      %v878 = vunpack.c.l.b16 %v825
      %v879 = vunpack.c.l.b16 %v826
      %v880 = vunpack.c.l.b16 %v827
      %v881 = vunpack.c.l.b16 %v828
      %v882 = vunpack.c.l.b16 %v829
      %v883 = vpack.c.b16 %v868, %v867
      %v884 = vpack.c.b16 %v870, %v869
      %v885 = vpack.c.b16 %v872, %v871
      %v886 = vpack.c.b16 %v874, %v873
      %v887 = vpack.c.b16 %v876, %v875
      %v888 = vpack.c.b16 %v878, %v877
      %v889 = vpack.c.b16 %v880, %v879
      %v890 = vpack.c.b16 %v882, %v881
      %899 = vmatpush.bf16.msra.mxu0 %v890
      %900 = vmatpush.bf16.msra.mxu0 %v889
      %901 = vmatpush.bf16.msra.mxu0 %v888
      %902 = vmatpush.bf16.msra.mxu0 %v887
      %903 = vmatpush.bf16.msra.mxu0 %v886
      %904 = vmatpush.bf16.msra.mxu0 %v885
      %905 = vmatpush.bf16.msra.mxu0 %v884
      %906 = vmatpush.bf16.msra.mxu0 %v883
      %907 = vmatmul.bf16.gmra.mxu0 %v849
      %v908 = vpop.f32.mrf.mxu0
      %v909 = vadd.f32 0.0, %v908
      %v910 = vpop.f32.mrf.mxu0
      %v911 = vadd.f32 0.0, %v910
      %912 = vdwg.mxu0
      %v913 = vadd.f32 %v562, %v909
      %v914 = vadd.f32 %v564, %v911
      %v915 = vld [vmem:[%s165 + $0x4] sm:$0xe]
      %s916 = scalar_lea.vmem %s1, 512
      %v917 = vld [vmem:[%s916] sm:$0xf]
      %v918 = vld [vmem:[%s916 + $0x4] sm:$0xf]
      %v919 = vld [vmem:[%s916 + $0x8] sm:$0xf]
      %v920 = vld [vmem:[%s916 + $0xc] sm:$0xf]
      %v921 = vld [vmem:[%s916 + $0x10] sm:$0xf]
      %v922 = vld [vmem:[%s916 + $0x14] sm:$0xf]
      %v923 = vld [vmem:[%s916 + $0x18] sm:$0xf]
      %v924 = vld [vmem:[%s916 + $0x1c] sm:$0xf]
      %v925 = vld [vmem:[%s916 + $0x20] sm:$0xf]
      %v926 = vld [vmem:[%s916 + $0x24] sm:$0xf]
      %v927 = vld [vmem:[%s916 + $0x28] sm:$0xf]
      %v928 = vld [vmem:[%s916 + $0x2c] sm:$0xf]
      %v929 = vld [vmem:[%s916 + $0x30] sm:$0xf]
      %v930 = vld [vmem:[%s916 + $0x34] sm:$0xf]
      %v931 = vld [vmem:[%s916 + $0x38] sm:$0xf]
      %v932 = vld [vmem:[%s916 + $0x3c] sm:$0xf]
      %v934 = vunpack.c.l.b16 %v915
      %v935 = vpack.c.b16 %v834, %v934
      %v936 = vrot.slane %v935, 1
      %v937 = vrot.slane %v837, 1
      %v938 = vsel %vm657, %v936, %v937
      %v956 = vunpack.c.l.b16 %v917
      %v957 = vunpack.c.l.b16 %v918
      %v958 = vunpack.c.l.b16 %v919
      %v959 = vunpack.c.l.b16 %v920
      %v960 = vunpack.c.l.b16 %v921
      %v961 = vunpack.c.l.b16 %v922
      %v962 = vunpack.c.l.b16 %v923
      %v963 = vunpack.c.l.b16 %v924
      %v964 = vunpack.c.l.b16 %v925
      %v965 = vunpack.c.l.b16 %v926
      %v966 = vunpack.c.l.b16 %v927
      %v967 = vunpack.c.l.b16 %v928
      %v968 = vunpack.c.l.b16 %v929
      %v969 = vunpack.c.l.b16 %v930
      %v970 = vunpack.c.l.b16 %v931
      %v971 = vunpack.c.l.b16 %v932
      %v972 = vpack.c.b16 %v957, %v956
      %v973 = vpack.c.b16 %v959, %v958
      %v974 = vpack.c.b16 %v961, %v960
      %v975 = vpack.c.b16 %v963, %v962
      %v976 = vpack.c.b16 %v965, %v964
      %v977 = vpack.c.b16 %v967, %v966
      %v978 = vpack.c.b16 %v969, %v968
      %v979 = vpack.c.b16 %v971, %v970
      %988 = vmatpush.bf16.msra.mxu0 %v979
      %989 = vmatpush.bf16.msra.mxu0 %v978
      %990 = vmatpush.bf16.msra.mxu0 %v977
      %991 = vmatpush.bf16.msra.mxu0 %v976
      %992 = vmatpush.bf16.msra.mxu0 %v975
      %993 = vmatpush.bf16.msra.mxu0 %v974
      %994 = vmatpush.bf16.msra.mxu0 %v973
      %995 = vmatpush.bf16.msra.mxu0 %v972
      %996 = vmatmul.bf16.gmra.mxu0 %v938
      %v997 = vpop.f32.mrf.mxu0
      %v998 = vadd.f32 0.0, %v997
      %v999 = vpop.f32.mrf.mxu0
      %v1000 = vadd.f32 0.0, %v999
      %1001 = vdwg.mxu0
      %v1002 = vadd.f32 %v720, %v998
      %v1003 = vadd.f32 %v722, %v1000
      %v1004 = vlaneseq
      %v1005 = vshrl.u32 %v1004, 7
      %v1006 = vadd.s32 %v1005, 8
      %vm1007 = vcmp.lt.s32.totalorder %v1005, 0
      %v1008 = vsub.s32 0, %v1005
      %v1009 = vsel %vm1007, %v1008, %v1005
      %v1010 = vshrl.u32 %v1009, 2
      %v1011 = vand.u32 %v1009, 3
      %v1012 = vsub.s32 0, %v1011
      %v1013 = vsel %vm1007, %v1012, %v1011
      %vm1014 = vcmp.lt.s32.totalorder %v1006, 0
      %v1015 = vsub.s32 0, %v1006
      %v1016 = vsel %vm1014, %v1015, %v1006
      %v1017 = vshrl.u32 %v1016, 2
      %v1018 = vand.u32 %v1016, 3
      %v1019 = vsub.s32 0, %v1018
      %v1020 = vsel %vm1014, %v1019, %v1018
      %vm1021 = vcmp.ne.s32.totalorder %v1013, 0
      %vm1022 = vcmp.ne.s32.totalorder %v1020, 0
      %vm1023 = vcmp.lt.s32.totalorder %v1013, 0
      %vm1024 = vcmp.lt.s32.totalorder %v1020, 0
      %vm1025 = vmand %vm1023, %vm1021
      %vm1026 = vmand %vm1024, %vm1022
      %v1027 = vadd.s32 %v1013, 4
      %v1028 = vadd.s32 %v1020, 4
      %v1029 = vsel %vm1025, %v1027, %v1013
      %v1030 = vsel %vm1026, %v1028, %v1020
      %vm1031 = vcmp.eq.s32.totalorder %v1029, 0
      %vm1032 = vcmp.eq.s32.totalorder %v1030, 0
      %v1033 = vsel %vm1031, 1, 0
      %v1034 = vsel %vm1032, 1, 0
      %vm1035 = vcmp.eq.s32.totalorder %v1033, 1
      %vm1036 = vcmp.eq.s32.totalorder %v1034, 1
      %v1037 = vsel %vm1035, 0.0, %v808
      %v1038 = vsel %vm1036, 0.0, %v809
      %v1039 = vadd.f32 %v1037, %v913
      %v1040 = vadd.f32 %v1038, %v914
      %vm1041 = vcmp.eq.s32.totalorder %v1029, 3
      %vm1042 = vcmp.eq.s32.totalorder %v1030, 3
      %v1043 = vsel %vm1041, 1, 0
      %v1044 = vsel %vm1042, 1, 0
      %vm1045 = vcmp.eq.s32.totalorder %v1043, 1
      %vm1046 = vcmp.eq.s32.totalorder %v1044, 1
      %v1047 = vsel %vm1045, 0.0, %v1002
      %v1048 = vsel %vm1046, 0.0, %v1003
      %v1049 = vadd.f32 %v1039, %v1047
      %v1050 = vadd.f32 %v1040, %v1048
      %v1051 = vld [vmem:[%s2] sm:$0x1]
      %v1053 = vperm.slane %v1051, 0
      %v1055 = vadd.f32 %v1049, %v1053
      %v1056 = vadd.f32 %v1050, %v1053
      %v1057 = vmax.f32 %v1055, 0.0
      %v1058 = vmax.f32 %v1056, 0.0
      %v1059 = vpack.c.bf16 %v1057, %v1057
      %v1060 = vpack.c.bf16 %v1058, %v1058
      %1061 = vst [vmem:[%s170] sm:$0xf] %v1059
      %1062 = vst [vmem:[%s170 + $0x4] sm:$0xf] %v1060
      %p1063 = scmp.lt.s32.totalorder %s14, 1
      %s1064 = scalar_select %p1063, %s14, 1
      %s1065 = smul.addr %s1064, 2
      %s1066 = smul.addr %s1065, 4
      %s1067 = scalar_lea.vmem %s3, %s1066
      // Predicated region
      $region33: #{unet_scattering_dynamic_forward.6} parent=31 // pred_check
        %p1068 = pneg %p100
      $region34: #{unet_scattering_dynamic_forward.6} parent=31 // pred_check_branch
        %1070 = sbr.rel (%p1068) target = $region36
      $region35: #{unet_scattering_dynamic_forward.6} parent=31 // pred_region
        _
      $region36: #{unet_scattering_dynamic_forward.6} parent=31 // pred_fallthru
        _
    $region32: #{unet_scattering_dynamic_forward.6} parent=5 // pred_fallthru
      _
    %p1071 = scmp.le.s32.totalorder 2, %s9
    // Predicated region
    $region37: #{unet_scattering_dynamic_forward.6} parent=5 // pred_check
      %p1072 = pneg %p1071
    $region38: #{unet_scattering_dynamic_forward.6} parent=5 // pred_check_branch
      %1074 = sbr.rel (%p1072) target = $region40
    $region39: #{unet_scattering_dynamic_forward.6} parent=5 // pred_region
      %s1075 = ssub.s32 %s9, 2
      // Predicated region
      $region41: #{unet_scattering_dynamic_forward.6} parent=39 // pred_check
        %p1076 = pneg %p106
      $region42: #{unet_scattering_dynamic_forward.6} parent=39 // pred_check_branch
        %1078 = sbr.rel (%p1076) target = $region44
      $region43: #{unet_scattering_dynamic_forward.6} parent=39 // pred_region
        %p1079 = scmp.lt.s32.totalorder %s15, 1
        %s1080 = scalar_select %p1079, %s15, 1
        %s1081 = smul.addr %s1080, 2
        %s1082 = smul.addr %s1081, 4
        %s1083 = scalar_lea.vmem %s3, %s1082
      $region44: #{unet_scattering_dynamic_forward.6} parent=39 // pred_fallthru
        _
    $region40: #{unet_scattering_dynamic_forward.6} parent=5 // pred_fallthru
      _
  $region6: #{unet_scattering_dynamic_forward.6} parent=0 // loop_footer
    %s13 = sadd.s32 1, %s9
  $region7: #{unet_scattering_dynamic_forward.6} parent=0 // loop_footer_branch
    %8 = sbr.rel target = $region3
  $region8: #{unet_scattering_dynamic_forward.6} parent=0 // loop_exit
    _

// kernel: unet_scattering_dynamic_forward.5
$region0: #{unet_scattering_dynamic_forward.5}
  #allocation0 [shape = 'u32[]', space=smem, size = 0x4, offset = 0x4, fixed_abs, tag = 'smem constant byte address 0x4 - core index']
  #allocation1 [shape = 'u32[72,128]{1,0:T(1,128)}', space=vmem, size = 0x9000, scoped, tag = 'internal scratch']
  %s0 = inlined_call_operand.vmem [shape: bf16[2,26,194], index: 0, kind: input, shape index: {}]
  %s1 = inlined_call_operand.vmem [shape: bf16[2,26,130], index: 1, kind: input, shape index: {}]
  %s2 = inlined_call_operand.vmem [shape: bf16[3,3,194,128], index: 2, kind: input, shape index: {}]
  %s3 = inlined_call_operand.vmem [shape: bf16[3,3,130,128], index: 3, kind: input, shape index: {}]
  %s4 = inlined_call_operand.vmem [shape: f32[1,128], index: 4, kind: input, shape index: {}]
  %s5 = inlined_call_operand.vmem [shape: bf16[2,16,128], index: 5, kind: output, shape index: {}]
  %s6 = sld [smem:[#allocation0]]
  $region53: #{unet_scattering_dynamic_forward.5} parent=0
    _
  %s8 = ssub.s32 1, %s6
  %s9 = scalar_select 0, %s8, %s6
  loop: start=0, step=1, limit=4
  $region2: #{unet_scattering_dynamic_forward.5} parent=0 // loop_pre_header
    _
  $region3: #{unet_scattering_dynamic_forward.5} parent=0 // loop_header
    %s11 = sphi 0, %s15
    %p12 = scmp.ge.s32.totalorder %s11, 4
    %s21 = sphi 0, %s23
    %s24 = sphi 0, %s21
    %s25 = sphi 0, %s24
    %s41 = sphi 0, %s25
    %s47 = sphi 0, %s49
    %s50 = sphi 0, %s47
    %s51 = sphi 0, %s50
    %s67 = sphi 0, %s51
    %s71 = sphi 0, %s71
    %s73 = sphi 0, %s71
    %s74 = sphi 0, %s73
    %s88 = sphi 0, %s74
    %s92 = sphi 0, %s92
    %s94 = sphi 0, %s92
    %s95 = sphi 0, %s94
    %s109 = sphi 0, %s95
    %s113 = sphi 0, %s113
    %s115 = sphi 0, %s113
    %s116 = sphi 0, %s115
    %s130 = sphi 0, %s116
    %s136 = sphi 0, %s138
    %s139 = sphi 0, %s136
    %s140 = sphi 0, %s139
    %s156 = sphi 0, %s140
  $region4: #{unet_scattering_dynamic_forward.5} parent=0 // loop_header_branch
    %14 = sbr.rel (%p12) target = $region8
  $region5: #{unet_scattering_dynamic_forward.5} parent=0 // loop_body
    %s16 = ssub.s32 %s11, 1
    %s17 = ssub.s32 %s11, 2
    %s18 = sadd.s32 %s11, 1
    %s19 = ssub.s32 %s11, %s18
    %p20 = scmp.eq.s32.totalorder %s19, 0
    %s22 = sadd.s32 %s21, 1
    %s23 = scalar_select %p20, %s21, %s22
    %p26 = pneg %p20
    %p27 = scmp.eq.s32.totalorder %s11, 1
    %p28 = por %p26, %p27
    %p29 = scmp.ne.s32.totalorder %s21, %s24
    %p30 = scmp.eq.s32.totalorder %s11, 0
    %p31 = por %p29, %p30
    %p32 = scmp.ne.s32.totalorder %s21, %s24
    %p33 = scmp.eq.s32.totalorder %s16, 1
    %p34 = por %p32, %p33
    %p35 = scmp.ne.s32.totalorder %s24, %s25
    %p36 = scmp.eq.s32.totalorder %s16, 0
    %p37 = por %p35, %p36
    %p38 = scmp.ne.s32.totalorder %s24, %s25
    %p39 = scmp.eq.s32.totalorder %s17, 1
    %p40 = por %p38, %p39
    %p42 = scmp.ne.s32.totalorder %s25, %s41
    %p43 = scmp.eq.s32.totalorder %s17, 0
    %p44 = por %p42, %p43
    %s45 = ssub.s32 %s11, %s18
    %p46 = scmp.eq.s32.totalorder %s45, 0
    %s48 = sadd.s32 %s47, 1
    %s49 = scalar_select %p46, %s47, %s48
    %p52 = pneg %p46
    %p53 = scmp.eq.s32.totalorder %s11, 1
    %p54 = por %p52, %p53
    %p55 = scmp.ne.s32.totalorder %s47, %s50
    %p56 = scmp.eq.s32.totalorder %s11, 0
    %p57 = por %p55, %p56
    %p58 = scmp.ne.s32.totalorder %s47, %s50
    %p59 = scmp.eq.s32.totalorder %s16, 1
    %p60 = por %p58, %p59
    %p61 = scmp.ne.s32.totalorder %s50, %s51
    %p62 = scmp.eq.s32.totalorder %s16, 0
    %p63 = por %p61, %p62
    %p64 = scmp.ne.s32.totalorder %s50, %s51
    %p65 = scmp.eq.s32.totalorder %s17, 1
    %p66 = por %p64, %p65
    %p68 = scmp.ne.s32.totalorder %s51, %s67
    %p69 = scmp.eq.s32.totalorder %s17, 0
    %p70 = por %p68, %p69
    %s72 = sadd.s32 %s71, 1
    %p75 = scmp.eq.s32.totalorder %s11, 1
    %p76 = scmp.ne.s32.totalorder %s71, %s73
    %p77 = scmp.eq.s32.totalorder %s11, 0
    %p78 = por %p76, %p77
    %p79 = scmp.ne.s32.totalorder %s71, %s73
    %p80 = scmp.eq.s32.totalorder %s16, 1
    %p81 = por %p79, %p80
    %p82 = scmp.ne.s32.totalorder %s73, %s74
    %p83 = scmp.eq.s32.totalorder %s16, 0
    %p84 = por %p82, %p83
    %p85 = scmp.ne.s32.totalorder %s73, %s74
    %p86 = scmp.eq.s32.totalorder %s17, 1
    %p87 = por %p85, %p86
    %p89 = scmp.ne.s32.totalorder %s74, %s88
    %p90 = scmp.eq.s32.totalorder %s17, 0
    %p91 = por %p89, %p90
    %s93 = sadd.s32 %s92, 1
    %p96 = scmp.eq.s32.totalorder %s11, 1
    %p97 = scmp.ne.s32.totalorder %s92, %s94
    %p98 = scmp.eq.s32.totalorder %s11, 0
    %p99 = por %p97, %p98
    %p100 = scmp.ne.s32.totalorder %s92, %s94
    %p101 = scmp.eq.s32.totalorder %s16, 1
    %p102 = por %p100, %p101
    %p103 = scmp.ne.s32.totalorder %s94, %s95
    %p104 = scmp.eq.s32.totalorder %s16, 0
    %p105 = por %p103, %p104
    %p106 = scmp.ne.s32.totalorder %s94, %s95
    %p107 = scmp.eq.s32.totalorder %s17, 1
    %p108 = por %p106, %p107
    %p110 = scmp.ne.s32.totalorder %s95, %s109
    %p111 = scmp.eq.s32.totalorder %s17, 0
    %p112 = por %p110, %p111
    %s114 = sadd.s32 %s113, 1
    %p117 = scmp.eq.s32.totalorder %s11, 1
    %p118 = scmp.ne.s32.totalorder %s113, %s115
    %p119 = scmp.eq.s32.totalorder %s11, 0
    %p120 = por %p118, %p119
    %p121 = scmp.ne.s32.totalorder %s113, %s115
    %p122 = scmp.eq.s32.totalorder %s16, 1
    %p123 = por %p121, %p122
    %p124 = scmp.ne.s32.totalorder %s115, %s116
    %p125 = scmp.eq.s32.totalorder %s16, 0
    %p126 = por %p124, %p125
    %p127 = scmp.ne.s32.totalorder %s115, %s116
    %p128 = scmp.eq.s32.totalorder %s17, 1
    %p129 = por %p127, %p128
    %p131 = scmp.ne.s32.totalorder %s116, %s130
    %p132 = scmp.eq.s32.totalorder %s17, 0
    %p133 = por %p131, %p132
    %s134 = ssub.s32 %s11, %s18
    %p135 = scmp.eq.s32.totalorder %s134, 0
    %s137 = sadd.s32 %s136, 1
    %s138 = scalar_select %p135, %s136, %s137
    %p141 = pneg %p135
    %p142 = scmp.eq.s32.totalorder %s11, 1
    %p143 = por %p141, %p142
    %p144 = scmp.ne.s32.totalorder %s136, %s139
    %p145 = scmp.eq.s32.totalorder %s11, 0
    %p146 = por %p144, %p145
    %p147 = scmp.ne.s32.totalorder %s136, %s139
    %p148 = scmp.eq.s32.totalorder %s16, 1
    %p149 = por %p147, %p148
    %p150 = scmp.ne.s32.totalorder %s139, %s140
    %p151 = scmp.eq.s32.totalorder %s16, 0
    %p152 = por %p150, %p151
    %p153 = scmp.ne.s32.totalorder %s139, %s140
    %p154 = scmp.eq.s32.totalorder %s17, 1
    %p155 = por %p153, %p154
    %p157 = scmp.ne.s32.totalorder %s140, %s156
    %p158 = scmp.eq.s32.totalorder %s17, 0
    %p159 = por %p157, %p158
    %p160 = scmp.le.s32.totalorder 1, %s11
    %p161 = scmp.lt.s32.totalorder %s11, 3
    %p162 = pnand %p160, %p161
    %p163 = pneg %p162
    // Predicated region
    $region9: #{unet_scattering_dynamic_forward.5} parent=5 // pred_check
      _
    $region10: #{unet_scattering_dynamic_forward.5} parent=5 // pred_check_branch
      %165 = sbr.rel (%p162) target = $region12
    $region11: #{unet_scattering_dynamic_forward.5} parent=5 // pred_region
      %s166 = ssub.s32 %s11, 1
      // Predicated region
      $region13: #{unet_scattering_dynamic_forward.5} parent=11 // pred_check
        %p167 = pneg %p84
      $region14: #{unet_scattering_dynamic_forward.5} parent=11 // pred_check_branch
        %169 = sbr.rel (%p167) target = $region16
      $region15: #{unet_scattering_dynamic_forward.5} parent=11 // pred_region
        _
      $region16: #{unet_scattering_dynamic_forward.5} parent=11 // pred_fallthru
        _
      // Predicated region
      $region17: #{unet_scattering_dynamic_forward.5} parent=11 // pred_check
        %p170 = pneg %p105
      $region18: #{unet_scattering_dynamic_forward.5} parent=11 // pred_check_branch
        %172 = sbr.rel (%p170) target = $region20
      $region19: #{unet_scattering_dynamic_forward.5} parent=11 // pred_region
        _
      $region20: #{unet_scattering_dynamic_forward.5} parent=11 // pred_fallthru
        _
      // Predicated region
      $region21: #{unet_scattering_dynamic_forward.5} parent=11 // pred_check
        %p173 = pneg %p126
      $region22: #{unet_scattering_dynamic_forward.5} parent=11 // pred_check_branch
        %175 = sbr.rel (%p173) target = $region24
      $region23: #{unet_scattering_dynamic_forward.5} parent=11 // pred_region
        _
      $region24: #{unet_scattering_dynamic_forward.5} parent=11 // pred_fallthru
        _
    $region12: #{unet_scattering_dynamic_forward.5} parent=5 // pred_fallthru
      _
    %p176 = scmp.lt.s32.totalorder %s11, 2
    // Predicated region
    $region25: #{unet_scattering_dynamic_forward.5} parent=5 // pred_check
      %p177 = pneg %p176
    $region26: #{unet_scattering_dynamic_forward.5} parent=5 // pred_check_branch
      %179 = sbr.rel (%p177) target = $region28
    $region27: #{unet_scattering_dynamic_forward.5} parent=5 // pred_region
      // Predicated region
      $region29: #{unet_scattering_dynamic_forward.5} parent=27 // pred_check
        %p180 = pneg %p31
      $region30: #{unet_scattering_dynamic_forward.5} parent=27 // pred_check_branch
        %182 = sbr.rel (%p180) target = $region32
      $region31: #{unet_scattering_dynamic_forward.5} parent=27 // pred_region
        %p183 = scmp.lt.s32.totalorder %s11, 1
        %s184 = scalar_select %p183, %s11, 1
        %s185 = smul.addr %s184, 8
        %s186 = smul.addr %s185, 4
        %s187 = scalar_lea.vmem %s0, %s186
      $region32: #{unet_scattering_dynamic_forward.5} parent=27 // pred_fallthru
        _
      // Predicated region
      $region33: #{unet_scattering_dynamic_forward.5} parent=27 // pred_check
        %p188 = pneg %p57
      $region34: #{unet_scattering_dynamic_forward.5} parent=27 // pred_check_branch
        %190 = sbr.rel (%p188) target = $region36
      $region35: #{unet_scattering_dynamic_forward.5} parent=27 // pred_region
        %p191 = scmp.lt.s32.totalorder %s11, 1
        %s192 = scalar_select %p191, %s11, 1
        %s193 = smul.addr %s192, 8
        %s194 = smul.addr %s193, 4
        %s195 = scalar_lea.vmem %s1, %s194
      $region36: #{unet_scattering_dynamic_forward.5} parent=27 // pred_fallthru
        _
    $region28: #{unet_scattering_dynamic_forward.5} parent=5 // pred_fallthru
      _
    %p196 = scmp.le.s32.totalorder 1, %s11
    %p197 = scmp.lt.s32.totalorder %s11, 3
    %p198 = pnand %p196, %p197
    %p199 = pneg %p198
    // Predicated region
    $region37: #{unet_scattering_dynamic_forward.5} parent=5 // pred_check
      _
    $region38: #{unet_scattering_dynamic_forward.5} parent=5 // pred_check_branch
      %201 = sbr.rel (%p198) target = $region40
    $region39: #{unet_scattering_dynamic_forward.5} parent=5 // pred_region
      %s202 = ssub.s32 %s11, 1
      %p203 = scmp.lt.s32.totalorder %s16, 1
      %s204 = scalar_select %p203, %s16, 1
      %s205 = smul.addr %s204, 8
      %s206 = smul.addr %s205, 4
      %s207 = scalar_lea.vmem %s0, %s206
      %p208 = pneg %p37
      %p209 = pneg %p34
      %p210 = scmp.lt.s32.totalorder %s16, 1
      %s211 = scalar_select %p210, %s16, 1
      %s212 = smul.addr %s211, 8
      %s213 = smul.addr %s212, 4
      %s214 = scalar_lea.vmem %s1, %s213
      %p215 = pneg %p63
      %p216 = pneg %p60
      %p217 = pneg %p84
      %p218 = pneg %p81
      %p219 = pneg %p105
      %p220 = pneg %p102
      %p221 = pneg %p126
      %p222 = pneg %p123
      %p223 = pneg %p152
      %p224 = pneg %p149
      %p225 = scmp.lt.s32.totalorder %s16, 1
      %s226 = scalar_select %p225, %s16, 1
      %s227 = smul.addr %s226, 2
      %s228 = smul.addr %s227, 4
      %s229 = scalar_lea.vmem %s5, %s228
      %p230 = scmp.lt.s32.totalorder %s16, 1
      %s231 = scalar_select %p230, %s16, 1
      %s232 = smul.addr %s231, 8
      %s233 = smul.addr %s232, 4
      %s234 = scalar_lea.vmem %s0, %s233
      %p235 = scmp.lt.s32.totalorder %s16, 1
      %s236 = scalar_select %p235, %s16, 1
      %s237 = smul.addr %s236, 8
      %s238 = smul.addr %s237, 4
      %s239 = scalar_lea.vmem %s1, %s238
      %p240 = scmp.lt.s32.totalorder %s16, 1
      %s241 = scalar_select %p240, %s16, 1
      %s242 = smul.addr %s241, 2
      %s243 = smul.addr %s242, 4
      %s244 = scalar_lea.vmem %s5, %s243
      %v246 = vld [vmem:[%s234] sm:$0xff]
      %v247 = vld [vmem:[%s234 + $0x8] sm:$0xff]
      %v248 = vld [vmem:[%s2] sm:$0xf]
      %v249 = vld [vmem:[%s2 + $0x4] sm:$0xf]
      %v250 = vld [vmem:[%s2 + $0x8] sm:$0xf]
      %v251 = vld [vmem:[%s2 + $0xc] sm:$0xf]
      %v252 = vld [vmem:[%s2 + $0x10] sm:$0xf]
      %v253 = vld [vmem:[%s2 + $0x14] sm:$0xf]
      %v254 = vld [vmem:[%s2 + $0x18] sm:$0xf]
      %v255 = vld [vmem:[%s2 + $0x1c] sm:$0xf]
      %v256 = vld [vmem:[%s2 + $0x20] sm:$0xf]
      %v257 = vld [vmem:[%s2 + $0x24] sm:$0xf]
      %v258 = vld [vmem:[%s2 + $0x28] sm:$0xf]
      %v259 = vld [vmem:[%s2 + $0x2c] sm:$0xf]
      %v260 = vld [vmem:[%s2 + $0x30] sm:$0xf]
      %v261 = vld [vmem:[%s2 + $0x34] sm:$0xf]
      %v262 = vld [vmem:[%s2 + $0x38] sm:$0xf]
      %v263 = vld [vmem:[%s2 + $0x3c] sm:$0xf]
      %v264 = vld [vmem:[%s2 + $0x40] sm:$0xf]
      %v265 = vld [vmem:[%s2 + $0x44] sm:$0xf]
      %v266 = vld [vmem:[%s2 + $0x48] sm:$0xf]
      %v267 = vld [vmem:[%s2 + $0x4c] sm:$0xf]
      %v268 = vld [vmem:[%s2 + $0x50] sm:$0xf]
      %v269 = vld [vmem:[%s2 + $0x54] sm:$0xf]
      %v270 = vld [vmem:[%s2 + $0x58] sm:$0xf]
      %v271 = vld [vmem:[%s2 + $0x5c] sm:$0xf]
      %v272 = vld [vmem:[%s2 + $0x60] sm:$0x1]
      %v273 = vld [vmem:[%s234 + $0x10] sm:$0x11]
      %s274 = scalar_lea.vmem %s2, 100
      %v275 = vld [vmem:[%s274] sm:$0xf]
      %v276 = vld [vmem:[%s274 + $0x4] sm:$0xf]
      %v277 = vld [vmem:[%s274 + $0x8] sm:$0xf]
      %v278 = vld [vmem:[%s274 + $0xc] sm:$0xf]
      %v279 = vld [vmem:[%s274 + $0x10] sm:$0xf]
      %v280 = vld [vmem:[%s274 + $0x14] sm:$0xf]
      %v281 = vld [vmem:[%s274 + $0x18] sm:$0xf]
      %v282 = vld [vmem:[%s274 + $0x1c] sm:$0xf]
      %v283 = vld [vmem:[%s274 + $0x20] sm:$0xf]
      %v284 = vld [vmem:[%s274 + $0x24] sm:$0xf]
      %v285 = vld [vmem:[%s274 + $0x28] sm:$0xf]
      %v286 = vld [vmem:[%s274 + $0x2c] sm:$0xf]
      %v287 = vld [vmem:[%s274 + $0x30] sm:$0xf]
      %v288 = vld [vmem:[%s274 + $0x34] sm:$0xf]
      %v289 = vld [vmem:[%s274 + $0x38] sm:$0xf]
      %v290 = vld [vmem:[%s274 + $0x3c] sm:$0xf]
      %v291 = vld [vmem:[%s274 + $0x40] sm:$0xf]
      %v292 = vld [vmem:[%s274 + $0x44] sm:$0xf]
      %v293 = vld [vmem:[%s274 + $0x48] sm:$0xf]
      %v294 = vld [vmem:[%s274 + $0x4c] sm:$0xf]
      %v295 = vld [vmem:[%s274 + $0x50] sm:$0xf]
      %v296 = vld [vmem:[%s274 + $0x54] sm:$0xf]
      %v297 = vld [vmem:[%s274 + $0x58] sm:$0xf]
      %v298 = vld [vmem:[%s274 + $0x5c] sm:$0xf]
      %v299 = vld [vmem:[%s274 + $0x60] sm:$0x1]
      %v300 = vld [vmem:[%s234] sm:$0xee]
      %s301 = scalar_lea.vmem %s2, 200
      %v302 = vld [vmem:[%s301] sm:$0xf]
      %v303 = vld [vmem:[%s301 + $0x4] sm:$0xf]
      %v304 = vld [vmem:[%s301 + $0x8] sm:$0xf]
      %v305 = vld [vmem:[%s301 + $0xc] sm:$0xf]
      %v306 = vld [vmem:[%s301 + $0x10] sm:$0xf]
      %v307 = vld [vmem:[%s301 + $0x14] sm:$0xf]
      %v308 = vld [vmem:[%s301 + $0x18] sm:$0xf]
      %v309 = vld [vmem:[%s301 + $0x1c] sm:$0xf]
      %v310 = vld [vmem:[%s301 + $0x20] sm:$0xf]
      %v311 = vld [vmem:[%s301 + $0x24] sm:$0xf]
      %v312 = vld [vmem:[%s301 + $0x28] sm:$0xf]
      %v313 = vld [vmem:[%s301 + $0x2c] sm:$0xf]
      %v314 = vld [vmem:[%s301 + $0x30] sm:$0xf]
      %v315 = vld [vmem:[%s301 + $0x34] sm:$0xf]
      %v316 = vld [vmem:[%s301 + $0x38] sm:$0xf]
      %v317 = vld [vmem:[%s301 + $0x3c] sm:$0xf]
      %v318 = vld [vmem:[%s301 + $0x40] sm:$0xf]
      %v319 = vld [vmem:[%s301 + $0x44] sm:$0xf]
      %v320 = vld [vmem:[%s301 + $0x48] sm:$0xf]
      %v321 = vld [vmem:[%s301 + $0x4c] sm:$0xf]
      %v322 = vld [vmem:[%s301 + $0x50] sm:$0xf]
      %v323 = vld [vmem:[%s301 + $0x54] sm:$0xf]
      %v324 = vld [vmem:[%s301 + $0x58] sm:$0xf]
      %v325 = vld [vmem:[%s301 + $0x5c] sm:$0xf]
      %v326 = vld [vmem:[%s301 + $0x60] sm:$0x1]
      %v327 = vld [vmem:[%s234] sm:$0xcc]
      %v328 = vld [vmem:[%s234 + $0x10] sm:$0x33]
      %s329 = scalar_lea.vmem %s2, 300
      %v330 = vld [vmem:[%s329] sm:$0xf]
      %v331 = vld [vmem:[%s329 + $0x4] sm:$0xf]
      %v332 = vld [vmem:[%s329 + $0x8] sm:$0xf]
      %v333 = vld [vmem:[%s329 + $0xc] sm:$0xf]
      %v334 = vld [vmem:[%s329 + $0x10] sm:$0xf]
      %v335 = vld [vmem:[%s329 + $0x14] sm:$0xf]
      %v336 = vld [vmem:[%s329 + $0x18] sm:$0xf]
      %v337 = vld [vmem:[%s329 + $0x1c] sm:$0xf]
      %v338 = vld [vmem:[%s329 + $0x20] sm:$0xf]
      %v339 = vld [vmem:[%s329 + $0x24] sm:$0xf]
      %v340 = vld [vmem:[%s329 + $0x28] sm:$0xf]
      %v341 = vld [vmem:[%s329 + $0x2c] sm:$0xf]
      %v342 = vld [vmem:[%s329 + $0x30] sm:$0xf]
      %v343 = vld [vmem:[%s329 + $0x34] sm:$0xf]
      %v344 = vld [vmem:[%s329 + $0x38] sm:$0xf]
      %v345 = vld [vmem:[%s329 + $0x3c] sm:$0xf]
      %v346 = vld [vmem:[%s329 + $0x40] sm:$0xf]
      %v347 = vld [vmem:[%s329 + $0x44] sm:$0xf]
      %v348 = vld [vmem:[%s329 + $0x48] sm:$0xf]
      %v349 = vld [vmem:[%s329 + $0x4c] sm:$0xf]
      %v350 = vld [vmem:[%s329 + $0x50] sm:$0xf]
      %v351 = vld [vmem:[%s329 + $0x54] sm:$0xf]
      %v352 = vld [vmem:[%s329 + $0x58] sm:$0xf]
      %v353 = vld [vmem:[%s329 + $0x5c] sm:$0xf]
      %v354 = vld [vmem:[%s329 + $0x60] sm:$0x1]
      %v358 = vunpack.c.l.b16 %v327
      %v359 = vunpack.c.h.b16 %v327
      %v360 = vunpack.c.l.b16 %v247
      %v361 = vunpack.c.h.b16 %v247
      %v362 = vunpack.c.l.b16 %v328
      %v363 = vunpack.c.h.b16 %v328
      %v364 = vpack.c.b16 %v360, %v358
      %v365 = vpack.c.b16 %v361, %v359
      %v366 = vpack.c.b16 %v362, %v362
      %v367 = vpack.c.b16 %v363, %v363
      %vm368 = vcmask 1045504
      %v369 = vrot.slane %v364, 2
      %v370 = vrot.slane %v366, 2
      %v371 = vsel %vm368, %v369, %v370
      %v372 = vrot.slane %v365, 2
      %v373 = vrot.slane %v367, 2
      %v374 = vsel %vm368, %v372, %v373
      %v401 = vunpack.c.l.b16 %v330
      %v402 = vunpack.c.l.b16 %v331
      %v403 = vunpack.c.l.b16 %v332
      %v404 = vunpack.c.l.b16 %v333
      %v405 = vunpack.c.l.b16 %v334
      %v406 = vunpack.c.l.b16 %v335
      %v407 = vunpack.c.l.b16 %v336
      %v408 = vunpack.c.l.b16 %v337
      %v409 = vunpack.c.l.b16 %v338
      %v410 = vunpack.c.l.b16 %v339
      %v411 = vunpack.c.l.b16 %v340
      %v412 = vunpack.c.l.b16 %v341
      %v413 = vunpack.c.l.b16 %v342
      %v414 = vunpack.c.l.b16 %v343
      %v415 = vunpack.c.l.b16 %v344
      %v416 = vunpack.c.l.b16 %v345
      %v417 = vunpack.c.l.b16 %v346
      %v418 = vunpack.c.l.b16 %v347
      %v419 = vunpack.c.l.b16 %v348
      %v420 = vunpack.c.l.b16 %v349
      %v421 = vunpack.c.l.b16 %v350
      %v422 = vunpack.c.l.b16 %v351
      %v423 = vunpack.c.l.b16 %v352
      %v424 = vunpack.c.l.b16 %v353
      %v425 = vunpack.c.l.b16 %v354
      %v426 = vpack.c.b16 %v402, %v401
      %v427 = vpack.c.b16 %v404, %v403
      %v428 = vpack.c.b16 %v406, %v405
      %v429 = vpack.c.b16 %v408, %v407
      %v430 = vpack.c.b16 %v410, %v409
      %v431 = vpack.c.b16 %v412, %v411
      %v432 = vpack.c.b16 %v414, %v413
      %v433 = vpack.c.b16 %v416, %v415
      %v434 = vpack.c.b16 %v418, %v417
      %v435 = vpack.c.b16 %v420, %v419
      %v436 = vpack.c.b16 %v422, %v421
      %v437 = vpack.c.b16 %v424, %v423
      %v438 = vpack.c.b16 %v425, %v425
      %vm451 = vcmask 539648
      %v453 = vsel %vm451, %v374, 0
      %vm455 = vcmask 1040384
      %v457 = vsel %vm455, %v438, 0
      %459 = vmatpush.bf16.msra.mxu0 %v433
      %460 = vmatpush.bf16.msra.mxu0 %v432
      %461 = vmatpush.bf16.msra.mxu0 %v431
      %462 = vmatpush.bf16.msra.mxu0 %v430
      %463 = vmatpush.bf16.msra.mxu0 %v429
      %464 = vmatpush.bf16.msra.mxu0 %v428
      %465 = vmatpush.bf16.msra.mxu0 %v427
      %466 = vmatpush.bf16.msra.mxu0 %v426
      %467 = vmatmul.bf16.gmra.mxu0 %v371
      %v468 = vpop.f32.mrf.mxu0
      %v469 = vadd.f32 0.0, %v468
      %v470 = vpop.f32.mrf.mxu0
      %v471 = vadd.f32 0.0, %v470
      %472 = vdwg.mxu0
      %473 = vmatpush.bf16.msra.mxu0 0
      %474 = vmatpush.bf16.msra.mxu0 0
      %475 = vmatpush.bf16.msra.mxu0 0
      %476 = vmatpush.bf16.msra.mxu0 %v457
      %477 = vmatpush.bf16.msra.mxu0 %v437
      %478 = vmatpush.bf16.msra.mxu0 %v436
      %479 = vmatpush.bf16.msra.mxu0 %v435
      %480 = vmatpush.bf16.msra.mxu0 %v434
      %481 = vmatmul.bf16.gmra.mxu0 %v453
      %v482 = vpop.f32.mrf.mxu0
      %v483 = vadd.f32 %v469, %v482
      %v484 = vpop.f32.mrf.mxu0
      %v485 = vadd.f32 %v471, %v484
      %486 = vdwg.mxu0
      %v488 = vunpack.c.l.b16 %v246
      %v489 = vunpack.c.h.b16 %v246
      %v490 = vpack.c.b16 %v360, %v488
      %v491 = vpack.c.b16 %v361, %v489
      %v518 = vunpack.c.l.b16 %v248
      %v519 = vunpack.c.l.b16 %v249
      %v520 = vunpack.c.l.b16 %v250
      %v521 = vunpack.c.l.b16 %v251
      %v522 = vunpack.c.l.b16 %v252
      %v523 = vunpack.c.l.b16 %v253
      %v524 = vunpack.c.l.b16 %v254
      %v525 = vunpack.c.l.b16 %v255
      %v526 = vunpack.c.l.b16 %v256
      %v527 = vunpack.c.l.b16 %v257
      %v528 = vunpack.c.l.b16 %v258
      %v529 = vunpack.c.l.b16 %v259
      %v530 = vunpack.c.l.b16 %v260
      %v531 = vunpack.c.l.b16 %v261
      %v532 = vunpack.c.l.b16 %v262
      %v533 = vunpack.c.l.b16 %v263
      %v534 = vunpack.c.l.b16 %v264
      %v535 = vunpack.c.l.b16 %v265
      %v536 = vunpack.c.l.b16 %v266
      %v537 = vunpack.c.l.b16 %v267
      %v538 = vunpack.c.l.b16 %v268
      %v539 = vunpack.c.l.b16 %v269
      %v540 = vunpack.c.l.b16 %v270
      %v541 = vunpack.c.l.b16 %v271
      %v542 = vunpack.c.l.b16 %v272
      %v543 = vpack.c.b16 %v519, %v518
      %v544 = vpack.c.b16 %v521, %v520
      %v545 = vpack.c.b16 %v523, %v522
      %v546 = vpack.c.b16 %v525, %v524
      %v547 = vpack.c.b16 %v527, %v526
      %v548 = vpack.c.b16 %v529, %v528
      %v549 = vpack.c.b16 %v531, %v530
      %v550 = vpack.c.b16 %v533, %v532
      %v551 = vpack.c.b16 %v535, %v534
      %v552 = vpack.c.b16 %v537, %v536
      %v553 = vpack.c.b16 %v539, %v538
      %v554 = vpack.c.b16 %v541, %v540
      %v555 = vpack.c.b16 %v542, %v542
      %v569 = vsel %vm451, %v491, 0
      %v572 = vsel %vm455, %v555, 0
      %574 = vmatpush.bf16.msra.mxu0 %v550
      %575 = vmatpush.bf16.msra.mxu0 %v549
      %576 = vmatpush.bf16.msra.mxu0 %v548
      %577 = vmatpush.bf16.msra.mxu0 %v547
      %578 = vmatpush.bf16.msra.mxu0 %v546
      %579 = vmatpush.bf16.msra.mxu0 %v545
      %580 = vmatpush.bf16.msra.mxu0 %v544
      %581 = vmatpush.bf16.msra.mxu0 %v543
      %582 = vmatmul.bf16.gmra.mxu0 %v490
      %v583 = vpop.f32.mrf.mxu0
      %v584 = vadd.f32 %v483, %v583
      %v585 = vpop.f32.mrf.mxu0
      %v586 = vadd.f32 %v485, %v585
      %587 = vdwg.mxu0
      %588 = vmatpush.bf16.msra.mxu0 0
      %589 = vmatpush.bf16.msra.mxu0 0
      %590 = vmatpush.bf16.msra.mxu0 0
      %591 = vmatpush.bf16.msra.mxu0 %v572
      %592 = vmatpush.bf16.msra.mxu0 %v554
      %593 = vmatpush.bf16.msra.mxu0 %v553
      %594 = vmatpush.bf16.msra.mxu0 %v552
      %595 = vmatpush.bf16.msra.mxu0 %v551
      %596 = vmatmul.bf16.gmra.mxu0 %v569
      %v597 = vpop.f32.mrf.mxu0
      %v598 = vadd.f32 %v584, %v597
      %v599 = vpop.f32.mrf.mxu0
      %v600 = vadd.f32 %v586, %v599
      %601 = vdwg.mxu0
      %v602 = vld [vmem:[%s234 + $0x10] sm:$0x77]
      %s603 = scalar_lea.vmem %s2, 400
      %v604 = vld [vmem:[%s603] sm:$0xf]
      %v605 = vld [vmem:[%s603 + $0x4] sm:$0xf]
      %v606 = vld [vmem:[%s603 + $0x8] sm:$0xf]
      %v607 = vld [vmem:[%s603 + $0xc] sm:$0xf]
      %v608 = vld [vmem:[%s603 + $0x10] sm:$0xf]
      %v609 = vld [vmem:[%s603 + $0x14] sm:$0xf]
      %v610 = vld [vmem:[%s603 + $0x18] sm:$0xf]
      %v611 = vld [vmem:[%s603 + $0x1c] sm:$0xf]
      %v612 = vld [vmem:[%s603 + $0x20] sm:$0xf]
      %v613 = vld [vmem:[%s603 + $0x24] sm:$0xf]
      %v614 = vld [vmem:[%s603 + $0x28] sm:$0xf]
      %v615 = vld [vmem:[%s603 + $0x2c] sm:$0xf]
      %v616 = vld [vmem:[%s603 + $0x30] sm:$0xf]
      %v617 = vld [vmem:[%s603 + $0x34] sm:$0xf]
      %v618 = vld [vmem:[%s603 + $0x38] sm:$0xf]
      %v619 = vld [vmem:[%s603 + $0x3c] sm:$0xf]
      %v620 = vld [vmem:[%s603 + $0x40] sm:$0xf]
      %v621 = vld [vmem:[%s603 + $0x44] sm:$0xf]
      %v622 = vld [vmem:[%s603 + $0x48] sm:$0xf]
      %v623 = vld [vmem:[%s603 + $0x4c] sm:$0xf]
      %v624 = vld [vmem:[%s603 + $0x50] sm:$0xf]
      %v625 = vld [vmem:[%s603 + $0x54] sm:$0xf]
      %v626 = vld [vmem:[%s603 + $0x58] sm:$0xf]
      %v627 = vld [vmem:[%s603 + $0x5c] sm:$0xf]
      %v628 = vld [vmem:[%s603 + $0x60] sm:$0x1]
      %v630 = vunpack.c.l.b16 %v602
      %v631 = vunpack.c.h.b16 %v602
      %v632 = vpack.c.b16 %v630, %v630
      %v633 = vpack.c.b16 %v631, %v631
      %vm634 = vsmask.f32 5376
      %v636 = vshrl.u32 %v364, 16
      %v638 = vrot.slane %v636, 2
      %v639 = vshll.u32 %v364, 16
      %v641 = vrot.slane %v639, 3
      %v642 = vor.u32 %v638, %v641
      %v644 = vshrl.u32 %v632, 16
      %v646 = vrot.slane %v644, 2
      %v647 = vshll.u32 %v632, 16
      %v649 = vrot.slane %v647, 3
      %v650 = vor.u32 %v646, %v649
      %v651 = vsel %vm634, %v642, %v650
      %v653 = vshrl.u32 %v365, 16
      %v655 = vrot.slane %v653, 2
      %v656 = vshll.u32 %v365, 16
      %v658 = vrot.slane %v656, 3
      %v659 = vor.u32 %v655, %v658
      %v661 = vshrl.u32 %v633, 16
      %v663 = vrot.slane %v661, 2
      %v664 = vshll.u32 %v633, 16
      %v666 = vrot.slane %v664, 3
      %v667 = vor.u32 %v663, %v666
      %v668 = vsel %vm634, %v659, %v667
      %v695 = vunpack.c.l.b16 %v604
      %v696 = vunpack.c.l.b16 %v605
      %v697 = vunpack.c.l.b16 %v606
      %v698 = vunpack.c.l.b16 %v607
      %v699 = vunpack.c.l.b16 %v608
      %v700 = vunpack.c.l.b16 %v609
      %v701 = vunpack.c.l.b16 %v610
      %v702 = vunpack.c.l.b16 %v611
      %v703 = vunpack.c.l.b16 %v612
      %v704 = vunpack.c.l.b16 %v613
      %v705 = vunpack.c.l.b16 %v614
      %v706 = vunpack.c.l.b16 %v615
      %v707 = vunpack.c.l.b16 %v616
      %v708 = vunpack.c.l.b16 %v617
      %v709 = vunpack.c.l.b16 %v618
      %v710 = vunpack.c.l.b16 %v619
      %v711 = vunpack.c.l.b16 %v620
      %v712 = vunpack.c.l.b16 %v621
      %v713 = vunpack.c.l.b16 %v622
      %v714 = vunpack.c.l.b16 %v623
      %v715 = vunpack.c.l.b16 %v624
      %v716 = vunpack.c.l.b16 %v625
      %v717 = vunpack.c.l.b16 %v626
      %v718 = vunpack.c.l.b16 %v627
      %v719 = vunpack.c.l.b16 %v628
      %v720 = vpack.c.b16 %v696, %v695
      %v721 = vpack.c.b16 %v698, %v697
      %v722 = vpack.c.b16 %v700, %v699
      %v723 = vpack.c.b16 %v702, %v701
      %v724 = vpack.c.b16 %v704, %v703
      %v725 = vpack.c.b16 %v706, %v705
      %v726 = vpack.c.b16 %v708, %v707
      %v727 = vpack.c.b16 %v710, %v709
      %v728 = vpack.c.b16 %v712, %v711
      %v729 = vpack.c.b16 %v714, %v713
      %v730 = vpack.c.b16 %v716, %v715
      %v731 = vpack.c.b16 %v718, %v717
      %v732 = vpack.c.b16 %v719, %v719
      %v746 = vsel %vm451, %v668, 0
      %v749 = vsel %vm455, %v732, 0
      %751 = vmatpush.bf16.msra.mxu0 %v727
      %752 = vmatpush.bf16.msra.mxu0 %v726
      %753 = vmatpush.bf16.msra.mxu0 %v725
      %754 = vmatpush.bf16.msra.mxu0 %v724
      %755 = vmatpush.bf16.msra.mxu0 %v723
      %756 = vmatpush.bf16.msra.mxu0 %v722
      %757 = vmatpush.bf16.msra.mxu0 %v721
      %758 = vmatpush.bf16.msra.mxu0 %v720
      %759 = vmatmul.bf16.gmra.mxu0 %v651
      %v760 = vpop.f32.mrf.mxu0
      %v761 = vadd.f32 0.0, %v760
      %v762 = vpop.f32.mrf.mxu0
      %v763 = vadd.f32 0.0, %v762
      %764 = vdwg.mxu0
      %765 = vmatpush.bf16.msra.mxu0 0
      %766 = vmatpush.bf16.msra.mxu0 0
      %767 = vmatpush.bf16.msra.mxu0 0
      %768 = vmatpush.bf16.msra.mxu0 %v749
      %769 = vmatpush.bf16.msra.mxu0 %v731
      %770 = vmatpush.bf16.msra.mxu0 %v730
      %771 = vmatpush.bf16.msra.mxu0 %v729
      %772 = vmatpush.bf16.msra.mxu0 %v728
      %773 = vmatmul.bf16.gmra.mxu0 %v746
      %v774 = vpop.f32.mrf.mxu0
      %v775 = vadd.f32 %v761, %v774
      %v776 = vpop.f32.mrf.mxu0
      %v777 = vadd.f32 %v763, %v776
      %778 = vdwg.mxu0
      %v780 = vunpack.c.l.b16 %v273
      %v781 = vunpack.c.h.b16 %v273
      %v782 = vpack.c.b16 %v780, %v780
      %v783 = vpack.c.b16 %v781, %v781
      %vm784 = vsmask.f32 7424
      %v786 = vshrl.u32 %v490, 16
      %v788 = vshll.u32 %v490, 16
      %v790 = vrot.slane %v788, 1
      %v791 = vor.u32 %v786, %v790
      %v793 = vshll.u32 %v782, 16
      %v795 = vrot.slane %v793, 1
      %v796 = vsel %vm784, %v791, %v795
      %v797 = vshrl.u32 %v491, 16
      %v799 = vshll.u32 %v491, 16
      %v801 = vrot.slane %v799, 1
      %v802 = vor.u32 %v797, %v801
      %v804 = vshll.u32 %v783, 16
      %v806 = vrot.slane %v804, 1
      %v807 = vsel %vm784, %v802, %v806
      %v834 = vunpack.c.l.b16 %v275
      %v835 = vunpack.c.l.b16 %v276
      %v836 = vunpack.c.l.b16 %v277
      %v837 = vunpack.c.l.b16 %v278
      %v838 = vunpack.c.l.b16 %v279
      %v839 = vunpack.c.l.b16 %v280
      %v840 = vunpack.c.l.b16 %v281
      %v841 = vunpack.c.l.b16 %v282
      %v842 = vunpack.c.l.b16 %v283
      %v843 = vunpack.c.l.b16 %v284
      %v844 = vunpack.c.l.b16 %v285
      %v845 = vunpack.c.l.b16 %v286
      %v846 = vunpack.c.l.b16 %v287
      %v847 = vunpack.c.l.b16 %v288
      %v848 = vunpack.c.l.b16 %v289
      %v849 = vunpack.c.l.b16 %v290
      %v850 = vunpack.c.l.b16 %v291
      %v851 = vunpack.c.l.b16 %v292
      %v852 = vunpack.c.l.b16 %v293
      %v853 = vunpack.c.l.b16 %v294
      %v854 = vunpack.c.l.b16 %v295
      %v855 = vunpack.c.l.b16 %v296
      %v856 = vunpack.c.l.b16 %v297
      %v857 = vunpack.c.l.b16 %v298
      %v858 = vunpack.c.l.b16 %v299
      %v859 = vpack.c.b16 %v835, %v834
      %v860 = vpack.c.b16 %v837, %v836
      %v861 = vpack.c.b16 %v839, %v838
      %v862 = vpack.c.b16 %v841, %v840
      %v863 = vpack.c.b16 %v843, %v842
      %v864 = vpack.c.b16 %v845, %v844
      %v865 = vpack.c.b16 %v847, %v846
      %v866 = vpack.c.b16 %v849, %v848
      %v867 = vpack.c.b16 %v851, %v850
      %v868 = vpack.c.b16 %v853, %v852
      %v869 = vpack.c.b16 %v855, %v854
      %v870 = vpack.c.b16 %v857, %v856
      %v871 = vpack.c.b16 %v858, %v858
      %v885 = vsel %vm451, %v807, 0
      %v888 = vsel %vm455, %v871, 0
      %890 = vmatpush.bf16.msra.mxu0 %v866
      %891 = vmatpush.bf16.msra.mxu0 %v865
      %892 = vmatpush.bf16.msra.mxu0 %v864
      %893 = vmatpush.bf16.msra.mxu0 %v863
      %894 = vmatpush.bf16.msra.mxu0 %v862
      %895 = vmatpush.bf16.msra.mxu0 %v861
      %896 = vmatpush.bf16.msra.mxu0 %v860
      %897 = vmatpush.bf16.msra.mxu0 %v859
      %898 = vmatmul.bf16.gmra.mxu0 %v796
      %v899 = vpop.f32.mrf.mxu0
      %v900 = vadd.f32 %v775, %v899
      %v901 = vpop.f32.mrf.mxu0
      %v902 = vadd.f32 %v777, %v901
      %903 = vdwg.mxu0
      %904 = vmatpush.bf16.msra.mxu0 0
      %905 = vmatpush.bf16.msra.mxu0 0
      %906 = vmatpush.bf16.msra.mxu0 0
      %907 = vmatpush.bf16.msra.mxu0 %v888
      %908 = vmatpush.bf16.msra.mxu0 %v870
      %909 = vmatpush.bf16.msra.mxu0 %v869
      %910 = vmatpush.bf16.msra.mxu0 %v868
      %911 = vmatpush.bf16.msra.mxu0 %v867
      %912 = vmatmul.bf16.gmra.mxu0 %v885
      %v913 = vpop.f32.mrf.mxu0
      %v914 = vadd.f32 %v900, %v913
      %v915 = vpop.f32.mrf.mxu0
      %v916 = vadd.f32 %v902, %v915
      %917 = vdwg.mxu0
      %v918 = vld [vmem:[%s234] sm:$0x88]
      %s919 = scalar_lea.vmem %s2, 500
      %v920 = vld [vmem:[%s919] sm:$0xf]
      %v921 = vld [vmem:[%s919 + $0x4] sm:$0xf]
      %v922 = vld [vmem:[%s919 + $0x8] sm:$0xf]
      %v923 = vld [vmem:[%s919 + $0xc] sm:$0xf]
      %v924 = vld [vmem:[%s919 + $0x10] sm:$0xf]
      %v925 = vld [vmem:[%s919 + $0x14] sm:$0xf]
      %v926 = vld [vmem:[%s919 + $0x18] sm:$0xf]
      %v927 = vld [vmem:[%s919 + $0x1c] sm:$0xf]
      %v928 = vld [vmem:[%s919 + $0x20] sm:$0xf]
      %v929 = vld [vmem:[%s919 + $0x24] sm:$0xf]
      %v930 = vld [vmem:[%s919 + $0x28] sm:$0xf]
      %v931 = vld [vmem:[%s919 + $0x2c] sm:$0xf]
      %v932 = vld [vmem:[%s919 + $0x30] sm:$0xf]
      %v933 = vld [vmem:[%s919 + $0x34] sm:$0xf]
      %v934 = vld [vmem:[%s919 + $0x38] sm:$0xf]
      %v935 = vld [vmem:[%s919 + $0x3c] sm:$0xf]
      %v936 = vld [vmem:[%s919 + $0x40] sm:$0xf]
      %v937 = vld [vmem:[%s919 + $0x44] sm:$0xf]
      %v938 = vld [vmem:[%s919 + $0x48] sm:$0xf]
      %v939 = vld [vmem:[%s919 + $0x4c] sm:$0xf]
      %v940 = vld [vmem:[%s919 + $0x50] sm:$0xf]
      %v941 = vld [vmem:[%s919 + $0x54] sm:$0xf]
      %v942 = vld [vmem:[%s919 + $0x58] sm:$0xf]
      %v943 = vld [vmem:[%s919 + $0x5c] sm:$0xf]
      %v944 = vld [vmem:[%s919 + $0x60] sm:$0x1]
      %v946 = vunpack.c.l.b16 %v918
      %v947 = vunpack.c.h.b16 %v918
      %v948 = vpack.c.b16 %v360, %v946
      %v949 = vpack.c.b16 %v361, %v947
      %vm950 = vcmask 1044480
      %v951 = vrot.slane %v948, 3
      %v952 = vrot.slane %v632, 3
      %v953 = vsel %vm950, %v951, %v952
      %v954 = vrot.slane %v949, 3
      %v955 = vrot.slane %v633, 3
      %v956 = vsel %vm950, %v954, %v955
      %v983 = vunpack.c.l.b16 %v920
      %v984 = vunpack.c.l.b16 %v921
      %v985 = vunpack.c.l.b16 %v922
      %v986 = vunpack.c.l.b16 %v923
      %v987 = vunpack.c.l.b16 %v924
      %v988 = vunpack.c.l.b16 %v925
      %v989 = vunpack.c.l.b16 %v926
      %v990 = vunpack.c.l.b16 %v927
      %v991 = vunpack.c.l.b16 %v928
      %v992 = vunpack.c.l.b16 %v929
      %v993 = vunpack.c.l.b16 %v930
      %v994 = vunpack.c.l.b16 %v931
      %v995 = vunpack.c.l.b16 %v932
      %v996 = vunpack.c.l.b16 %v933
      %v997 = vunpack.c.l.b16 %v934
      %v998 = vunpack.c.l.b16 %v935
      %v999 = vunpack.c.l.b16 %v936
      %v1000 = vunpack.c.l.b16 %v937
      %v1001 = vunpack.c.l.b16 %v938
      %v1002 = vunpack.c.l.b16 %v939
      %v1003 = vunpack.c.l.b16 %v940
      %v1004 = vunpack.c.l.b16 %v941
      %v1005 = vunpack.c.l.b16 %v942
      %v1006 = vunpack.c.l.b16 %v943
      %v1007 = vunpack.c.l.b16 %v944
      %v1008 = vpack.c.b16 %v984, %v983
      %v1009 = vpack.c.b16 %v986, %v985
      %v1010 = vpack.c.b16 %v988, %v987
      %v1011 = vpack.c.b16 %v990, %v989
      %v1012 = vpack.c.b16 %v992, %v991
      %v1013 = vpack.c.b16 %v994, %v993
      %v1014 = vpack.c.b16 %v996, %v995
      %v1015 = vpack.c.b16 %v998, %v997
      %v1016 = vpack.c.b16 %v1000, %v999
      %v1017 = vpack.c.b16 %v1002, %v1001
      %v1018 = vpack.c.b16 %v1004, %v1003
      %v1019 = vpack.c.b16 %v1006, %v1005
      %v1020 = vpack.c.b16 %v1007, %v1007
      %v1034 = vsel %vm451, %v956, 0
      %v1037 = vsel %vm455, %v1020, 0
      %1039 = vmatpush.bf16.msra.mxu0 %v1015
      %1040 = vmatpush.bf16.msra.mxu0 %v1014
      %1041 = vmatpush.bf16.msra.mxu0 %v1013
      %1042 = vmatpush.bf16.msra.mxu0 %v1012
      %1043 = vmatpush.bf16.msra.mxu0 %v1011
      %1044 = vmatpush.bf16.msra.mxu0 %v1010
      %1045 = vmatpush.bf16.msra.mxu0 %v1009
      %1046 = vmatpush.bf16.msra.mxu0 %v1008
      %1047 = vmatmul.bf16.gmra.mxu0 %v953
      %v1048 = vpop.f32.mrf.mxu0
      %v1049 = vadd.f32 0.0, %v1048
      %v1050 = vpop.f32.mrf.mxu0
      %v1051 = vadd.f32 0.0, %v1050
      %1052 = vdwg.mxu0
      %1053 = vmatpush.bf16.msra.mxu0 0
      %1054 = vmatpush.bf16.msra.mxu0 0
      %1055 = vmatpush.bf16.msra.mxu0 0
      %1056 = vmatpush.bf16.msra.mxu0 %v1037
      %1057 = vmatpush.bf16.msra.mxu0 %v1019
      %1058 = vmatpush.bf16.msra.mxu0 %v1018
      %1059 = vmatpush.bf16.msra.mxu0 %v1017
      %1060 = vmatpush.bf16.msra.mxu0 %v1016
      %1061 = vmatmul.bf16.gmra.mxu0 %v1034
      %v1062 = vpop.f32.mrf.mxu0
      %v1063 = vadd.f32 %v1049, %v1062
      %v1064 = vpop.f32.mrf.mxu0
      %v1065 = vadd.f32 %v1051, %v1064
      %1066 = vdwg.mxu0
      %v1068 = vunpack.c.l.b16 %v300
      %v1069 = vunpack.c.h.b16 %v300
      %v1070 = vpack.c.b16 %v360, %v1068
      %v1071 = vpack.c.b16 %v361, %v1069
      %vm1072 = vcmask 1046528
      %v1073 = vrot.slane %v1070, 1
      %v1074 = vrot.slane %v782, 1
      %v1075 = vsel %vm1072, %v1073, %v1074
      %v1076 = vrot.slane %v1071, 1
      %v1077 = vrot.slane %v783, 1
      %v1078 = vsel %vm1072, %v1076, %v1077
      %v1105 = vunpack.c.l.b16 %v302
      %v1106 = vunpack.c.l.b16 %v303
      %v1107 = vunpack.c.l.b16 %v304
      %v1108 = vunpack.c.l.b16 %v305
      %v1109 = vunpack.c.l.b16 %v306
      %v1110 = vunpack.c.l.b16 %v307
      %v1111 = vunpack.c.l.b16 %v308
      %v1112 = vunpack.c.l.b16 %v309
      %v1113 = vunpack.c.l.b16 %v310
      %v1114 = vunpack.c.l.b16 %v311
      %v1115 = vunpack.c.l.b16 %v312
      %v1116 = vunpack.c.l.b16 %v313
      %v1117 = vunpack.c.l.b16 %v314
      %v1118 = vunpack.c.l.b16 %v315
      %v1119 = vunpack.c.l.b16 %v316
      %v1120 = vunpack.c.l.b16 %v317
      %v1121 = vunpack.c.l.b16 %v318
      %v1122 = vunpack.c.l.b16 %v319
      %v1123 = vunpack.c.l.b16 %v320
      %v1124 = vunpack.c.l.b16 %v321
      %v1125 = vunpack.c.l.b16 %v322
      %v1126 = vunpack.c.l.b16 %v323
      %v1127 = vunpack.c.l.b16 %v324
      %v1128 = vunpack.c.l.b16 %v325
      %v1129 = vunpack.c.l.b16 %v326
      %v1130 = vpack.c.b16 %v1106, %v1105
      %v1131 = vpack.c.b16 %v1108, %v1107
      %v1132 = vpack.c.b16 %v1110, %v1109
      %v1133 = vpack.c.b16 %v1112, %v1111
      %v1134 = vpack.c.b16 %v1114, %v1113
      %v1135 = vpack.c.b16 %v1116, %v1115
      %v1136 = vpack.c.b16 %v1118, %v1117
      %v1137 = vpack.c.b16 %v1120, %v1119
      %v1138 = vpack.c.b16 %v1122, %v1121
      %v1139 = vpack.c.b16 %v1124, %v1123
      %v1140 = vpack.c.b16 %v1126, %v1125
      %v1141 = vpack.c.b16 %v1128, %v1127
      %v1142 = vpack.c.b16 %v1129, %v1129
      %v1156 = vsel %vm451, %v1078, 0
      %v1159 = vsel %vm455, %v1142, 0
      %1161 = vmatpush.bf16.msra.mxu0 %v1137
      %1162 = vmatpush.bf16.msra.mxu0 %v1136
      %1163 = vmatpush.bf16.msra.mxu0 %v1135
      %1164 = vmatpush.bf16.msra.mxu0 %v1134
      %1165 = vmatpush.bf16.msra.mxu0 %v1133
      %1166 = vmatpush.bf16.msra.mxu0 %v1132
      %1167 = vmatpush.bf16.msra.mxu0 %v1131
      %1168 = vmatpush.bf16.msra.mxu0 %v1130
      %1169 = vmatmul.bf16.gmra.mxu0 %v1075
      %v1170 = vpop.f32.mrf.mxu0
      %v1171 = vadd.f32 %v1063, %v1170
      %v1172 = vpop.f32.mrf.mxu0
      %v1173 = vadd.f32 %v1065, %v1172
      %1174 = vdwg.mxu0
      %1175 = vmatpush.bf16.msra.mxu0 0
      %1176 = vmatpush.bf16.msra.mxu0 0
      %1177 = vmatpush.bf16.msra.mxu0 0
      %1178 = vmatpush.bf16.msra.mxu0 %v1159
      %1179 = vmatpush.bf16.msra.mxu0 %v1141
      %1180 = vmatpush.bf16.msra.mxu0 %v1140
      %1181 = vmatpush.bf16.msra.mxu0 %v1139
      %1182 = vmatpush.bf16.msra.mxu0 %v1138
      %1183 = vmatmul.bf16.gmra.mxu0 %v1156
      %v1184 = vpop.f32.mrf.mxu0
      %v1185 = vadd.f32 %v1171, %v1184
      %v1186 = vpop.f32.mrf.mxu0
      %v1187 = vadd.f32 %v1173, %v1186
      %1188 = vdwg.mxu0
      %v1189 = vld [vmem:[%s234 + $0x10] sm:$0xff]
      %s1190 = scalar_lea.vmem %s2, 600
      %v1191 = vld [vmem:[%s1190] sm:$0xf]
      %v1192 = vld [vmem:[%s1190 + $0x4] sm:$0xf]
      %v1193 = vld [vmem:[%s1190 + $0x8] sm:$0xf]
      %v1194 = vld [vmem:[%s1190 + $0xc] sm:$0xf]
      %v1195 = vld [vmem:[%s1190 + $0x10] sm:$0xf]
      %v1196 = vld [vmem:[%s1190 + $0x14] sm:$0xf]
      %v1197 = vld [vmem:[%s1190 + $0x18] sm:$0xf]
      %v1198 = vld [vmem:[%s1190 + $0x1c] sm:$0xf]
      %v1199 = vld [vmem:[%s1190 + $0x20] sm:$0xf]
      %v1200 = vld [vmem:[%s1190 + $0x24] sm:$0xf]
      %v1201 = vld [vmem:[%s1190 + $0x28] sm:$0xf]
      %v1202 = vld [vmem:[%s1190 + $0x2c] sm:$0xf]
      %v1203 = vld [vmem:[%s1190 + $0x30] sm:$0xf]
      %v1204 = vld [vmem:[%s1190 + $0x34] sm:$0xf]
      %v1205 = vld [vmem:[%s1190 + $0x38] sm:$0xf]
      %v1206 = vld [vmem:[%s1190 + $0x3c] sm:$0xf]
      %v1207 = vld [vmem:[%s1190 + $0x40] sm:$0xf]
      %v1208 = vld [vmem:[%s1190 + $0x44] sm:$0xf]
      %v1209 = vld [vmem:[%s1190 + $0x48] sm:$0xf]
      %v1210 = vld [vmem:[%s1190 + $0x4c] sm:$0xf]
      %v1211 = vld [vmem:[%s1190 + $0x50] sm:$0xf]
      %v1212 = vld [vmem:[%s1190 + $0x54] sm:$0xf]
      %v1213 = vld [vmem:[%s1190 + $0x58] sm:$0xf]
      %v1214 = vld [vmem:[%s1190 + $0x5c] sm:$0xf]
      %v1215 = vld [vmem:[%s1190 + $0x60] sm:$0x1]
      %v1217 = vunpack.c.l.b16 %v1189
      %v1218 = vunpack.c.h.b16 %v1189
      %v1219 = vpack.c.b16 %v1217, %v360
      %v1220 = vpack.c.b16 %v1218, %v361
      %v1247 = vunpack.c.l.b16 %v1191
      %v1248 = vunpack.c.l.b16 %v1192
      %v1249 = vunpack.c.l.b16 %v1193
      %v1250 = vunpack.c.l.b16 %v1194
      %v1251 = vunpack.c.l.b16 %v1195
      %v1252 = vunpack.c.l.b16 %v1196
      %v1253 = vunpack.c.l.b16 %v1197
      %v1254 = vunpack.c.l.b16 %v1198
      %v1255 = vunpack.c.l.b16 %v1199
      %v1256 = vunpack.c.l.b16 %v1200
      %v1257 = vunpack.c.l.b16 %v1201
      %v1258 = vunpack.c.l.b16 %v1202
      %v1259 = vunpack.c.l.b16 %v1203
      %v1260 = vunpack.c.l.b16 %v1204
      %v1261 = vunpack.c.l.b16 %v1205
      %v1262 = vunpack.c.l.b16 %v1206
      %v1263 = vunpack.c.l.b16 %v1207
      %v1264 = vunpack.c.l.b16 %v1208
      %v1265 = vunpack.c.l.b16 %v1209
      %v1266 = vunpack.c.l.b16 %v1210
      %v1267 = vunpack.c.l.b16 %v1211
      %v1268 = vunpack.c.l.b16 %v1212
      %v1269 = vunpack.c.l.b16 %v1213
      %v1270 = vunpack.c.l.b16 %v1214
      %v1271 = vunpack.c.l.b16 %v1215
      %v1272 = vpack.c.b16 %v1248, %v1247
      %v1273 = vpack.c.b16 %v1250, %v1249
      %v1274 = vpack.c.b16 %v1252, %v1251
      %v1275 = vpack.c.b16 %v1254, %v1253
      %v1276 = vpack.c.b16 %v1256, %v1255
      %v1277 = vpack.c.b16 %v1258, %v1257
      %v1278 = vpack.c.b16 %v1260, %v1259
      %v1279 = vpack.c.b16 %v1262, %v1261
      %v1280 = vpack.c.b16 %v1264, %v1263
      %v1281 = vpack.c.b16 %v1266, %v1265
      %v1282 = vpack.c.b16 %v1268, %v1267
      %v1283 = vpack.c.b16 %v1270, %v1269
      %v1284 = vpack.c.b16 %v1271, %v1271
      %v1298 = vsel %vm451, %v1220, 0
      %v1301 = vsel %vm455, %v1284, 0
      %1303 = vmatpush.bf16.msra.mxu0 %v1279
      %1304 = vmatpush.bf16.msra.mxu0 %v1278
      %1305 = vmatpush.bf16.msra.mxu0 %v1277
      %1306 = vmatpush.bf16.msra.mxu0 %v1276
      %1307 = vmatpush.bf16.msra.mxu0 %v1275
      %1308 = vmatpush.bf16.msra.mxu0 %v1274
      %1309 = vmatpush.bf16.msra.mxu0 %v1273
      %1310 = vmatpush.bf16.msra.mxu0 %v1272
      %1311 = vmatmul.bf16.gmra.mxu0 %v1219
      %v1312 = vpop.f32.mrf.mxu0
      %v1313 = vadd.f32 0.0, %v1312
      %v1314 = vpop.f32.mrf.mxu0
      %v1315 = vadd.f32 0.0, %v1314
      %1316 = vdwg.mxu0
      %1317 = vmatpush.bf16.msra.mxu0 0
      %1318 = vmatpush.bf16.msra.mxu0 0
      %1319 = vmatpush.bf16.msra.mxu0 0
      %1320 = vmatpush.bf16.msra.mxu0 %v1301
      %1321 = vmatpush.bf16.msra.mxu0 %v1283
      %1322 = vmatpush.bf16.msra.mxu0 %v1282
      %1323 = vmatpush.bf16.msra.mxu0 %v1281
      %1324 = vmatpush.bf16.msra.mxu0 %v1280
      %1325 = vmatmul.bf16.gmra.mxu0 %v1298
      %v1326 = vpop.f32.mrf.mxu0
      %v1327 = vadd.f32 %v1313, %v1326
      %v1328 = vpop.f32.mrf.mxu0
      %v1329 = vadd.f32 %v1315, %v1328
      %1330 = vdwg.mxu0
      %v1331 = vadd.f32 %v598, %v1327
      %v1332 = vadd.f32 %v600, %v1329
      %v1333 = vld [vmem:[%s234 + $0x8] sm:$0xff]
      %v1334 = vld [vmem:[%s234 + $0x10] sm:$0xff]
      %v1335 = vld [vmem:[%s234 + $0x18] sm:$0x11]
      %s1336 = scalar_lea.vmem %s2, 700
      %v1337 = vld [vmem:[%s1336] sm:$0xf]
      %v1338 = vld [vmem:[%s1336 + $0x4] sm:$0xf]
      %v1339 = vld [vmem:[%s1336 + $0x8] sm:$0xf]
      %v1340 = vld [vmem:[%s1336 + $0xc] sm:$0xf]
      %v1341 = vld [vmem:[%s1336 + $0x10] sm:$0xf]
      %v1342 = vld [vmem:[%s1336 + $0x14] sm:$0xf]
      %v1343 = vld [vmem:[%s1336 + $0x18] sm:$0xf]
      %v1344 = vld [vmem:[%s1336 + $0x1c] sm:$0xf]
      %v1345 = vld [vmem:[%s1336 + $0x20] sm:$0xf]
      %v1346 = vld [vmem:[%s1336 + $0x24] sm:$0xf]
      %v1347 = vld [vmem:[%s1336 + $0x28] sm:$0xf]
      %v1348 = vld [vmem:[%s1336 + $0x2c] sm:$0xf]
      %v1349 = vld [vmem:[%s1336 + $0x30] sm:$0xf]
      %v1350 = vld [vmem:[%s1336 + $0x34] sm:$0xf]
      %v1351 = vld [vmem:[%s1336 + $0x38] sm:$0xf]
      %v1352 = vld [vmem:[%s1336 + $0x3c] sm:$0xf]
      %v1353 = vld [vmem:[%s1336 + $0x40] sm:$0xf]
      %v1354 = vld [vmem:[%s1336 + $0x44] sm:$0xf]
      %v1355 = vld [vmem:[%s1336 + $0x48] sm:$0xf]
      %v1356 = vld [vmem:[%s1336 + $0x4c] sm:$0xf]
      %v1357 = vld [vmem:[%s1336 + $0x50] sm:$0xf]
      %v1358 = vld [vmem:[%s1336 + $0x54] sm:$0xf]
      %v1359 = vld [vmem:[%s1336 + $0x58] sm:$0xf]
      %v1360 = vld [vmem:[%s1336 + $0x5c] sm:$0xf]
      %v1361 = vld [vmem:[%s1336 + $0x60] sm:$0x1]
      %v1365 = vunpack.c.l.b16 %v1333
      %v1366 = vunpack.c.h.b16 %v1333
      %v1367 = vunpack.c.l.b16 %v1334
      %v1368 = vunpack.c.h.b16 %v1334
      %v1369 = vunpack.c.l.b16 %v1335
      %v1370 = vunpack.c.h.b16 %v1335
      %v1371 = vpack.c.b16 %v1367, %v1365
      %v1372 = vpack.c.b16 %v1368, %v1366
      %v1373 = vpack.c.b16 %v1369, %v1369
      %v1374 = vpack.c.b16 %v1370, %v1370
      %v1376 = vshrl.u32 %v1371, 16
      %v1378 = vshll.u32 %v1371, 16
      %v1380 = vrot.slane %v1378, 1
      %v1381 = vor.u32 %v1376, %v1380
      %v1383 = vshll.u32 %v1373, 16
      %v1385 = vrot.slane %v1383, 1
      %v1386 = vsel %vm784, %v1381, %v1385
      %v1388 = vshrl.u32 %v1372, 16
      %v1390 = vshll.u32 %v1372, 16
      %v1392 = vrot.slane %v1390, 1
      %v1393 = vor.u32 %v1388, %v1392
      %v1395 = vshll.u32 %v1374, 16
      %v1397 = vrot.slane %v1395, 1
      %v1398 = vsel %vm784, %v1393, %v1397
      %v1425 = vunpack.c.l.b16 %v1337
      %v1426 = vunpack.c.l.b16 %v1338
      %v1427 = vunpack.c.l.b16 %v1339
      %v1428 = vunpack.c.l.b16 %v1340
      %v1429 = vunpack.c.l.b16 %v1341
      %v1430 = vunpack.c.l.b16 %v1342
      %v1431 = vunpack.c.l.b16 %v1343
      %v1432 = vunpack.c.l.b16 %v1344
      %v1433 = vunpack.c.l.b16 %v1345
      %v1434 = vunpack.c.l.b16 %v1346
      %v1435 = vunpack.c.l.b16 %v1347
      %v1436 = vunpack.c.l.b16 %v1348
      %v1437 = vunpack.c.l.b16 %v1349
      %v1438 = vunpack.c.l.b16 %v1350
      %v1439 = vunpack.c.l.b16 %v1351
      %v1440 = vunpack.c.l.b16 %v1352
      %v1441 = vunpack.c.l.b16 %v1353
      %v1442 = vunpack.c.l.b16 %v1354
      %v1443 = vunpack.c.l.b16 %v1355
      %v1444 = vunpack.c.l.b16 %v1356
      %v1445 = vunpack.c.l.b16 %v1357
      %v1446 = vunpack.c.l.b16 %v1358
      %v1447 = vunpack.c.l.b16 %v1359
      %v1448 = vunpack.c.l.b16 %v1360
      %v1449 = vunpack.c.l.b16 %v1361
      %v1450 = vpack.c.b16 %v1426, %v1425
      %v1451 = vpack.c.b16 %v1428, %v1427
      %v1452 = vpack.c.b16 %v1430, %v1429
      %v1453 = vpack.c.b16 %v1432, %v1431
      %v1454 = vpack.c.b16 %v1434, %v1433
      %v1455 = vpack.c.b16 %v1436, %v1435
      %v1456 = vpack.c.b16 %v1438, %v1437
      %v1457 = vpack.c.b16 %v1440, %v1439
      %v1458 = vpack.c.b16 %v1442, %v1441
      %v1459 = vpack.c.b16 %v1444, %v1443
      %v1460 = vpack.c.b16 %v1446, %v1445
      %v1461 = vpack.c.b16 %v1448, %v1447
      %v1462 = vpack.c.b16 %v1449, %v1449
      %v1476 = vsel %vm451, %v1398, 0
      %v1479 = vsel %vm455, %v1462, 0
      %1481 = vmatpush.bf16.msra.mxu0 %v1457
      %1482 = vmatpush.bf16.msra.mxu0 %v1456
      %1483 = vmatpush.bf16.msra.mxu0 %v1455
      %1484 = vmatpush.bf16.msra.mxu0 %v1454
      %1485 = vmatpush.bf16.msra.mxu0 %v1453
      %1486 = vmatpush.bf16.msra.mxu0 %v1452
      %1487 = vmatpush.bf16.msra.mxu0 %v1451
      %1488 = vmatpush.bf16.msra.mxu0 %v1450
      %1489 = vmatmul.bf16.gmra.mxu0 %v1386
      %v1490 = vpop.f32.mrf.mxu0
      %v1491 = vadd.f32 0.0, %v1490
      %v1492 = vpop.f32.mrf.mxu0
      %v1493 = vadd.f32 0.0, %v1492
      %1494 = vdwg.mxu0
      %1495 = vmatpush.bf16.msra.mxu0 0
      %1496 = vmatpush.bf16.msra.mxu0 0
      %1497 = vmatpush.bf16.msra.mxu0 0
      %1498 = vmatpush.bf16.msra.mxu0 %v1479
      %1499 = vmatpush.bf16.msra.mxu0 %v1461
      %1500 = vmatpush.bf16.msra.mxu0 %v1460
      %1501 = vmatpush.bf16.msra.mxu0 %v1459
      %1502 = vmatpush.bf16.msra.mxu0 %v1458
      %1503 = vmatmul.bf16.gmra.mxu0 %v1476
      %v1504 = vpop.f32.mrf.mxu0
      %v1505 = vadd.f32 %v1491, %v1504
      %v1506 = vpop.f32.mrf.mxu0
      %v1507 = vadd.f32 %v1493, %v1506
      %1508 = vdwg.mxu0
      %v1509 = vadd.f32 %v914, %v1505
      %v1510 = vadd.f32 %v916, %v1507
      %v1511 = vld [vmem:[%s234 + $0x8] sm:$0xee]
      %s1512 = scalar_lea.vmem %s2, 800
      %v1513 = vld [vmem:[%s1512] sm:$0xf]
      %v1514 = vld [vmem:[%s1512 + $0x4] sm:$0xf]
      %v1515 = vld [vmem:[%s1512 + $0x8] sm:$0xf]
      %v1516 = vld [vmem:[%s1512 + $0xc] sm:$0xf]
      %v1517 = vld [vmem:[%s1512 + $0x10] sm:$0xf]
      %v1518 = vld [vmem:[%s1512 + $0x14] sm:$0xf]
      %v1519 = vld [vmem:[%s1512 + $0x18] sm:$0xf]
      %v1520 = vld [vmem:[%s1512 + $0x1c] sm:$0xf]
      %v1521 = vld [vmem:[%s1512 + $0x20] sm:$0xf]
      %v1522 = vld [vmem:[%s1512 + $0x24] sm:$0xf]
      %v1523 = vld [vmem:[%s1512 + $0x28] sm:$0xf]
      %v1524 = vld [vmem:[%s1512 + $0x2c] sm:$0xf]
      %v1525 = vld [vmem:[%s1512 + $0x30] sm:$0xf]
      %v1526 = vld [vmem:[%s1512 + $0x34] sm:$0xf]
      %v1527 = vld [vmem:[%s1512 + $0x38] sm:$0xf]
      %v1528 = vld [vmem:[%s1512 + $0x3c] sm:$0xf]
      %v1529 = vld [vmem:[%s1512 + $0x40] sm:$0xf]
      %v1530 = vld [vmem:[%s1512 + $0x44] sm:$0xf]
      %v1531 = vld [vmem:[%s1512 + $0x48] sm:$0xf]
      %v1532 = vld [vmem:[%s1512 + $0x4c] sm:$0xf]
      %v1533 = vld [vmem:[%s1512 + $0x50] sm:$0xf]
      %v1534 = vld [vmem:[%s1512 + $0x54] sm:$0xf]
      %v1535 = vld [vmem:[%s1512 + $0x58] sm:$0xf]
      %v1536 = vld [vmem:[%s1512 + $0x5c] sm:$0xf]
      %v1537 = vld [vmem:[%s1512 + $0x60] sm:$0x1]
      %v1539 = vunpack.c.l.b16 %v1511
      %v1540 = vunpack.c.h.b16 %v1511
      %v1541 = vpack.c.b16 %v1367, %v1539
      %v1542 = vpack.c.b16 %v1368, %v1540
      %v1543 = vrot.slane %v1541, 1
      %v1544 = vrot.slane %v1373, 1
      %v1545 = vsel %vm1072, %v1543, %v1544
      %v1546 = vrot.slane %v1542, 1
      %v1547 = vrot.slane %v1374, 1
      %v1548 = vsel %vm1072, %v1546, %v1547
      %v1575 = vunpack.c.l.b16 %v1513
      %v1576 = vunpack.c.l.b16 %v1514
      %v1577 = vunpack.c.l.b16 %v1515
      %v1578 = vunpack.c.l.b16 %v1516
      %v1579 = vunpack.c.l.b16 %v1517
      %v1580 = vunpack.c.l.b16 %v1518
      %v1581 = vunpack.c.l.b16 %v1519
      %v1582 = vunpack.c.l.b16 %v1520
      %v1583 = vunpack.c.l.b16 %v1521
      %v1584 = vunpack.c.l.b16 %v1522
      %v1585 = vunpack.c.l.b16 %v1523
      %v1586 = vunpack.c.l.b16 %v1524
      %v1587 = vunpack.c.l.b16 %v1525
      %v1588 = vunpack.c.l.b16 %v1526
      %v1589 = vunpack.c.l.b16 %v1527
      %v1590 = vunpack.c.l.b16 %v1528
      %v1591 = vunpack.c.l.b16 %v1529
      %v1592 = vunpack.c.l.b16 %v1530
      %v1593 = vunpack.c.l.b16 %v1531
      %v1594 = vunpack.c.l.b16 %v1532
      %v1595 = vunpack.c.l.b16 %v1533
      %v1596 = vunpack.c.l.b16 %v1534
      %v1597 = vunpack.c.l.b16 %v1535
      %v1598 = vunpack.c.l.b16 %v1536
      %v1599 = vunpack.c.l.b16 %v1537
      %v1600 = vpack.c.b16 %v1576, %v1575
      %v1601 = vpack.c.b16 %v1578, %v1577
      %v1602 = vpack.c.b16 %v1580, %v1579
      %v1603 = vpack.c.b16 %v1582, %v1581
      %v1604 = vpack.c.b16 %v1584, %v1583
      %v1605 = vpack.c.b16 %v1586, %v1585
      %v1606 = vpack.c.b16 %v1588, %v1587
      %v1607 = vpack.c.b16 %v1590, %v1589
      %v1608 = vpack.c.b16 %v1592, %v1591
      %v1609 = vpack.c.b16 %v1594, %v1593
      %v1610 = vpack.c.b16 %v1596, %v1595
      %v1611 = vpack.c.b16 %v1598, %v1597
      %v1612 = vpack.c.b16 %v1599, %v1599
      %v1626 = vsel %vm451, %v1548, 0
      %v1629 = vsel %vm455, %v1612, 0
      %1631 = vmatpush.bf16.msra.mxu0 %v1607
      %1632 = vmatpush.bf16.msra.mxu0 %v1606
      %1633 = vmatpush.bf16.msra.mxu0 %v1605
      %1634 = vmatpush.bf16.msra.mxu0 %v1604
      %1635 = vmatpush.bf16.msra.mxu0 %v1603
      %1636 = vmatpush.bf16.msra.mxu0 %v1602
      %1637 = vmatpush.bf16.msra.mxu0 %v1601
      %1638 = vmatpush.bf16.msra.mxu0 %v1600
      %1639 = vmatmul.bf16.gmra.mxu0 %v1545
      %v1640 = vpop.f32.mrf.mxu0
      %v1641 = vadd.f32 0.0, %v1640
      %v1642 = vpop.f32.mrf.mxu0
      %v1643 = vadd.f32 0.0, %v1642
      %1644 = vdwg.mxu0
      %1645 = vmatpush.bf16.msra.mxu0 0
      %1646 = vmatpush.bf16.msra.mxu0 0
      %1647 = vmatpush.bf16.msra.mxu0 0
      %1648 = vmatpush.bf16.msra.mxu0 %v1629
      %1649 = vmatpush.bf16.msra.mxu0 %v1611
      %1650 = vmatpush.bf16.msra.mxu0 %v1610
      %1651 = vmatpush.bf16.msra.mxu0 %v1609
      %1652 = vmatpush.bf16.msra.mxu0 %v1608
      %1653 = vmatmul.bf16.gmra.mxu0 %v1626
      %v1654 = vpop.f32.mrf.mxu0
      %v1655 = vadd.f32 %v1641, %v1654
      %v1656 = vpop.f32.mrf.mxu0
      %v1657 = vadd.f32 %v1643, %v1656
      %1658 = vdwg.mxu0
      %v1659 = vadd.f32 %v1185, %v1655
      %v1660 = vadd.f32 %v1187, %v1657
      %v1661 = vld [vmem:[%s239] sm:$0xff]
      %v1662 = vld [vmem:[%s239 + $0x8] sm:$0xff]
      %v1663 = vld [vmem:[%s3] sm:$0xf]
      %v1664 = vld [vmem:[%s3 + $0x4] sm:$0xf]
      %v1665 = vld [vmem:[%s3 + $0x8] sm:$0xf]
      %v1666 = vld [vmem:[%s3 + $0xc] sm:$0xf]
      %v1667 = vld [vmem:[%s3 + $0x10] sm:$0xf]
      %v1668 = vld [vmem:[%s3 + $0x14] sm:$0xf]
      %v1669 = vld [vmem:[%s3 + $0x18] sm:$0xf]
      %v1670 = vld [vmem:[%s3 + $0x1c] sm:$0xf]
      %v1671 = vld [vmem:[%s3 + $0x20] sm:$0xf]
      %v1672 = vld [vmem:[%s3 + $0x24] sm:$0xf]
      %v1673 = vld [vmem:[%s3 + $0x28] sm:$0xf]
      %v1674 = vld [vmem:[%s3 + $0x2c] sm:$0xf]
      %v1675 = vld [vmem:[%s3 + $0x30] sm:$0xf]
      %v1676 = vld [vmem:[%s3 + $0x34] sm:$0xf]
      %v1677 = vld [vmem:[%s3 + $0x38] sm:$0xf]
      %v1678 = vld [vmem:[%s3 + $0x3c] sm:$0xf]
      %v1679 = vld [vmem:[%s3 + $0x40] sm:$0x1]
      %v1682 = vunpack.c.l.b16 %v1661
      %v1683 = vunpack.c.h.b16 %v1661
      %v1684 = vunpack.c.l.b16 %v1662
      %v1685 = vunpack.c.h.b16 %v1662
      %v1686 = vpack.c.b16 %v1684, %v1682
      %v1687 = vpack.c.b16 %v1685, %v1683
      %v1706 = vunpack.c.l.b16 %v1663
      %v1707 = vunpack.c.l.b16 %v1664
      %v1708 = vunpack.c.l.b16 %v1665
      %v1709 = vunpack.c.l.b16 %v1666
      %v1710 = vunpack.c.l.b16 %v1667
      %v1711 = vunpack.c.l.b16 %v1668
      %v1712 = vunpack.c.l.b16 %v1669
      %v1713 = vunpack.c.l.b16 %v1670
      %v1714 = vunpack.c.l.b16 %v1671
      %v1715 = vunpack.c.l.b16 %v1672
      %v1716 = vunpack.c.l.b16 %v1673
      %v1717 = vunpack.c.l.b16 %v1674
      %v1718 = vunpack.c.l.b16 %v1675
      %v1719 = vunpack.c.l.b16 %v1676
      %v1720 = vunpack.c.l.b16 %v1677
      %v1721 = vunpack.c.l.b16 %v1678
      %v1722 = vunpack.c.l.b16 %v1679
      %v1723 = vpack.c.b16 %v1707, %v1706
      %v1724 = vpack.c.b16 %v1709, %v1708
      %v1725 = vpack.c.b16 %v1711, %v1710
      %v1726 = vpack.c.b16 %v1713, %v1712
      %v1727 = vpack.c.b16 %v1715, %v1714
      %v1728 = vpack.c.b16 %v1717, %v1716
      %v1729 = vpack.c.b16 %v1719, %v1718
      %v1730 = vpack.c.b16 %v1721, %v1720
      %v1731 = vpack.c.b16 %v1722, %v1722
      %vm1740 = vcmask 15360
      %v1742 = vsel %vm1740, %v1687, 0
      %v1745 = vsel %vm455, %v1731, 0
      %1747 = vmatpush.bf16.msra.mxu0 %v1730
      %1748 = vmatpush.bf16.msra.mxu0 %v1729
      %1749 = vmatpush.bf16.msra.mxu0 %v1728
      %1750 = vmatpush.bf16.msra.mxu0 %v1727
      %1751 = vmatpush.bf16.msra.mxu0 %v1726
      %1752 = vmatpush.bf16.msra.mxu0 %v1725
      %1753 = vmatpush.bf16.msra.mxu0 %v1724
      %1754 = vmatpush.bf16.msra.mxu0 %v1723
      %1755 = vmatmul.bf16.gmra.mxu0 %v1686
      %v1756 = vpop.f32.mrf.mxu0
      %v1757 = vadd.f32 0.0, %v1756
      %v1758 = vpop.f32.mrf.mxu0
      %v1759 = vadd.f32 0.0, %v1758
      %1760 = vdwg.mxu0
      %1761 = vmatpush.bf16.msra.mxu0 0
      %1762 = vmatpush.bf16.msra.mxu0 0
      %1763 = vmatpush.bf16.msra.mxu0 0
      %1764 = vmatpush.bf16.msra.mxu0 0
      %1765 = vmatpush.bf16.msra.mxu0 0
      %1766 = vmatpush.bf16.msra.mxu0 0
      %1767 = vmatpush.bf16.msra.mxu0 0
      %1768 = vmatpush.bf16.msra.mxu0 %v1745
      %1769 = vmatmul.bf16.gmra.mxu0 %v1742
      %v1770 = vpop.f32.mrf.mxu0
      %v1771 = vadd.f32 %v1757, %v1770
      %v1772 = vpop.f32.mrf.mxu0
      %v1773 = vadd.f32 %v1759, %v1772
      %1774 = vdwg.mxu0
      %v1775 = vadd.f32 %v1331, %v1771
      %v1776 = vadd.f32 %v1332, %v1773
      %v1777 = vld [vmem:[%s239] sm:$0xff]
      %v1778 = vld [vmem:[%s239 + $0x8] sm:$0xff]
      %v1779 = vld [vmem:[%s239 + $0x10] sm:$0x11]
      %s1780 = scalar_lea.vmem %s3, 68
      %v1781 = vld [vmem:[%s1780] sm:$0xf]
      %v1782 = vld [vmem:[%s1780 + $0x4] sm:$0xf]
      %v1783 = vld [vmem:[%s1780 + $0x8] sm:$0xf]
      %v1784 = vld [vmem:[%s1780 + $0xc] sm:$0xf]
      %v1785 = vld [vmem:[%s1780 + $0x10] sm:$0xf]
      %v1786 = vld [vmem:[%s1780 + $0x14] sm:$0xf]
      %v1787 = vld [vmem:[%s1780 + $0x18] sm:$0xf]
      %v1788 = vld [vmem:[%s1780 + $0x1c] sm:$0xf]
      %v1789 = vld [vmem:[%s1780 + $0x20] sm:$0xf]
      %v1790 = vld [vmem:[%s1780 + $0x24] sm:$0xf]
      %v1791 = vld [vmem:[%s1780 + $0x28] sm:$0xf]
      %v1792 = vld [vmem:[%s1780 + $0x2c] sm:$0xf]
      %v1793 = vld [vmem:[%s1780 + $0x30] sm:$0xf]
      %v1794 = vld [vmem:[%s1780 + $0x34] sm:$0xf]
      %v1795 = vld [vmem:[%s1780 + $0x38] sm:$0xf]
      %v1796 = vld [vmem:[%s1780 + $0x3c] sm:$0xf]
      %v1797 = vld [vmem:[%s1780 + $0x40] sm:$0x1]
      %v1801 = vunpack.c.l.b16 %v1777
      %v1802 = vunpack.c.h.b16 %v1777
      %v1803 = vunpack.c.l.b16 %v1778
      %v1804 = vunpack.c.h.b16 %v1778
      %v1805 = vunpack.c.l.b16 %v1779
      %v1806 = vunpack.c.h.b16 %v1779
      %v1807 = vpack.c.b16 %v1803, %v1801
      %v1808 = vpack.c.b16 %v1804, %v1802
      %v1809 = vpack.c.b16 %v1805, %v1805
      %v1810 = vpack.c.b16 %v1806, %v1806
      %v1812 = vshrl.u32 %v1807, 16
      %v1814 = vshll.u32 %v1807, 16
      %v1816 = vrot.slane %v1814, 1
      %v1817 = vor.u32 %v1812, %v1816
      %v1819 = vshll.u32 %v1809, 16
      %v1821 = vrot.slane %v1819, 1
      %v1822 = vsel %vm784, %v1817, %v1821
      %v1824 = vshrl.u32 %v1808, 16
      %v1826 = vshll.u32 %v1808, 16
      %v1828 = vrot.slane %v1826, 1
      %v1829 = vor.u32 %v1824, %v1828
      %v1831 = vshll.u32 %v1810, 16
      %v1833 = vrot.slane %v1831, 1
      %v1834 = vsel %vm784, %v1829, %v1833
      %v1853 = vunpack.c.l.b16 %v1781
      %v1854 = vunpack.c.l.b16 %v1782
      %v1855 = vunpack.c.l.b16 %v1783
      %v1856 = vunpack.c.l.b16 %v1784
      %v1857 = vunpack.c.l.b16 %v1785
      %v1858 = vunpack.c.l.b16 %v1786
      %v1859 = vunpack.c.l.b16 %v1787
      %v1860 = vunpack.c.l.b16 %v1788
      %v1861 = vunpack.c.l.b16 %v1789
      %v1862 = vunpack.c.l.b16 %v1790
      %v1863 = vunpack.c.l.b16 %v1791
      %v1864 = vunpack.c.l.b16 %v1792
      %v1865 = vunpack.c.l.b16 %v1793
      %v1866 = vunpack.c.l.b16 %v1794
      %v1867 = vunpack.c.l.b16 %v1795
      %v1868 = vunpack.c.l.b16 %v1796
      %v1869 = vunpack.c.l.b16 %v1797
      %v1870 = vpack.c.b16 %v1854, %v1853
      %v1871 = vpack.c.b16 %v1856, %v1855
      %v1872 = vpack.c.b16 %v1858, %v1857
      %v1873 = vpack.c.b16 %v1860, %v1859
      %v1874 = vpack.c.b16 %v1862, %v1861
      %v1875 = vpack.c.b16 %v1864, %v1863
      %v1876 = vpack.c.b16 %v1866, %v1865
      %v1877 = vpack.c.b16 %v1868, %v1867
      %v1878 = vpack.c.b16 %v1869, %v1869
      %v1888 = vsel %vm1740, %v1834, 0
      %v1891 = vsel %vm455, %v1878, 0
      %1893 = vmatpush.bf16.msra.mxu0 %v1877
      %1894 = vmatpush.bf16.msra.mxu0 %v1876
      %1895 = vmatpush.bf16.msra.mxu0 %v1875
      %1896 = vmatpush.bf16.msra.mxu0 %v1874
      %1897 = vmatpush.bf16.msra.mxu0 %v1873
      %1898 = vmatpush.bf16.msra.mxu0 %v1872
      %1899 = vmatpush.bf16.msra.mxu0 %v1871
      %1900 = vmatpush.bf16.msra.mxu0 %v1870
      %1901 = vmatmul.bf16.gmra.mxu0 %v1822
      %v1902 = vpop.f32.mrf.mxu0
      %v1903 = vadd.f32 0.0, %v1902
      %v1904 = vpop.f32.mrf.mxu0
      %v1905 = vadd.f32 0.0, %v1904
      %1906 = vdwg.mxu0
      %1907 = vmatpush.bf16.msra.mxu0 0
      %1908 = vmatpush.bf16.msra.mxu0 0
      %1909 = vmatpush.bf16.msra.mxu0 0
      %1910 = vmatpush.bf16.msra.mxu0 0
      %1911 = vmatpush.bf16.msra.mxu0 0
      %1912 = vmatpush.bf16.msra.mxu0 0
      %1913 = vmatpush.bf16.msra.mxu0 0
      %1914 = vmatpush.bf16.msra.mxu0 %v1891
      %1915 = vmatmul.bf16.gmra.mxu0 %v1888
      %v1916 = vpop.f32.mrf.mxu0
      %v1917 = vadd.f32 %v1903, %v1916
      %v1918 = vpop.f32.mrf.mxu0
      %v1919 = vadd.f32 %v1905, %v1918
      %1920 = vdwg.mxu0
      %v1921 = vadd.f32 %v1509, %v1917
      %v1922 = vadd.f32 %v1510, %v1919
      %v1923 = vld [vmem:[%s239] sm:$0xee]
      %s1924 = scalar_lea.vmem %s3, 136
      %v1925 = vld [vmem:[%s1924] sm:$0xf]
      %v1926 = vld [vmem:[%s1924 + $0x4] sm:$0xf]
      %v1927 = vld [vmem:[%s1924 + $0x8] sm:$0xf]
      %v1928 = vld [vmem:[%s1924 + $0xc] sm:$0xf]
      %v1929 = vld [vmem:[%s1924 + $0x10] sm:$0xf]
      %v1930 = vld [vmem:[%s1924 + $0x14] sm:$0xf]
      %v1931 = vld [vmem:[%s1924 + $0x18] sm:$0xf]
      %v1932 = vld [vmem:[%s1924 + $0x1c] sm:$0xf]
      %v1933 = vld [vmem:[%s1924 + $0x20] sm:$0xf]
      %v1934 = vld [vmem:[%s1924 + $0x24] sm:$0xf]
      %v1935 = vld [vmem:[%s1924 + $0x28] sm:$0xf]
      %v1936 = vld [vmem:[%s1924 + $0x2c] sm:$0xf]
      %v1937 = vld [vmem:[%s1924 + $0x30] sm:$0xf]
      %v1938 = vld [vmem:[%s1924 + $0x34] sm:$0xf]
      %v1939 = vld [vmem:[%s1924 + $0x38] sm:$0xf]
      %v1940 = vld [vmem:[%s1924 + $0x3c] sm:$0xf]
      %v1941 = vld [vmem:[%s1924 + $0x40] sm:$0x1]
      %v1943 = vunpack.c.l.b16 %v1923
      %v1944 = vunpack.c.h.b16 %v1923
      %v1945 = vpack.c.b16 %v1803, %v1943
      %v1946 = vpack.c.b16 %v1804, %v1944
      %v1947 = vrot.slane %v1945, 1
      %v1948 = vrot.slane %v1809, 1
      %v1949 = vsel %vm1072, %v1947, %v1948
      %v1950 = vrot.slane %v1946, 1
      %v1951 = vrot.slane %v1810, 1
      %v1952 = vsel %vm1072, %v1950, %v1951
      %v1971 = vunpack.c.l.b16 %v1925
      %v1972 = vunpack.c.l.b16 %v1926
      %v1973 = vunpack.c.l.b16 %v1927
      %v1974 = vunpack.c.l.b16 %v1928
      %v1975 = vunpack.c.l.b16 %v1929
      %v1976 = vunpack.c.l.b16 %v1930
      %v1977 = vunpack.c.l.b16 %v1931
      %v1978 = vunpack.c.l.b16 %v1932
      %v1979 = vunpack.c.l.b16 %v1933
      %v1980 = vunpack.c.l.b16 %v1934
      %v1981 = vunpack.c.l.b16 %v1935
      %v1982 = vunpack.c.l.b16 %v1936
      %v1983 = vunpack.c.l.b16 %v1937
      %v1984 = vunpack.c.l.b16 %v1938
      %v1985 = vunpack.c.l.b16 %v1939
      %v1986 = vunpack.c.l.b16 %v1940
      %v1987 = vunpack.c.l.b16 %v1941
      %v1988 = vpack.c.b16 %v1972, %v1971
      %v1989 = vpack.c.b16 %v1974, %v1973
      %v1990 = vpack.c.b16 %v1976, %v1975
      %v1991 = vpack.c.b16 %v1978, %v1977
      %v1992 = vpack.c.b16 %v1980, %v1979
      %v1993 = vpack.c.b16 %v1982, %v1981
      %v1994 = vpack.c.b16 %v1984, %v1983
      %v1995 = vpack.c.b16 %v1986, %v1985
      %v1996 = vpack.c.b16 %v1987, %v1987
      %v2006 = vsel %vm1740, %v1952, 0
      %v2009 = vsel %vm455, %v1996, 0
      %2011 = vmatpush.bf16.msra.mxu0 %v1995
      %2012 = vmatpush.bf16.msra.mxu0 %v1994
      %2013 = vmatpush.bf16.msra.mxu0 %v1993
      %2014 = vmatpush.bf16.msra.mxu0 %v1992
      %2015 = vmatpush.bf16.msra.mxu0 %v1991
      %2016 = vmatpush.bf16.msra.mxu0 %v1990
      %2017 = vmatpush.bf16.msra.mxu0 %v1989
      %2018 = vmatpush.bf16.msra.mxu0 %v1988
      %2019 = vmatmul.bf16.gmra.mxu0 %v1949
      %v2020 = vpop.f32.mrf.mxu0
      %v2021 = vadd.f32 0.0, %v2020
      %v2022 = vpop.f32.mrf.mxu0
      %v2023 = vadd.f32 0.0, %v2022
      %2024 = vdwg.mxu0
      %2025 = vmatpush.bf16.msra.mxu0 0
      %2026 = vmatpush.bf16.msra.mxu0 0
      %2027 = vmatpush.bf16.msra.mxu0 0
      %2028 = vmatpush.bf16.msra.mxu0 0
      %2029 = vmatpush.bf16.msra.mxu0 0
      %2030 = vmatpush.bf16.msra.mxu0 0
      %2031 = vmatpush.bf16.msra.mxu0 0
      %2032 = vmatpush.bf16.msra.mxu0 %v2009
      %2033 = vmatmul.bf16.gmra.mxu0 %v2006
      %v2034 = vpop.f32.mrf.mxu0
      %v2035 = vadd.f32 %v2021, %v2034
      %v2036 = vpop.f32.mrf.mxu0
      %v2037 = vadd.f32 %v2023, %v2036
      %2038 = vdwg.mxu0
      %v2039 = vadd.f32 %v1659, %v2035
      %v2040 = vadd.f32 %v1660, %v2037
      %v2041 = vld [vmem:[%s239] sm:$0xcc]
      %v2042 = vld [vmem:[%s239 + $0x10] sm:$0x33]
      %s2043 = scalar_lea.vmem %s3, 204
      %v2044 = vld [vmem:[%s2043] sm:$0xf]
      %v2045 = vld [vmem:[%s2043 + $0x4] sm:$0xf]
      %v2046 = vld [vmem:[%s2043 + $0x8] sm:$0xf]
      %v2047 = vld [vmem:[%s2043 + $0xc] sm:$0xf]
      %v2048 = vld [vmem:[%s2043 + $0x10] sm:$0xf]
      %v2049 = vld [vmem:[%s2043 + $0x14] sm:$0xf]
      %v2050 = vld [vmem:[%s2043 + $0x18] sm:$0xf]
      %v2051 = vld [vmem:[%s2043 + $0x1c] sm:$0xf]
      %v2052 = vld [vmem:[%s2043 + $0x20] sm:$0xf]
      %v2053 = vld [vmem:[%s2043 + $0x24] sm:$0xf]
      %v2054 = vld [vmem:[%s2043 + $0x28] sm:$0xf]
      %v2055 = vld [vmem:[%s2043 + $0x2c] sm:$0xf]
      %v2056 = vld [vmem:[%s2043 + $0x30] sm:$0xf]
      %v2057 = vld [vmem:[%s2043 + $0x34] sm:$0xf]
      %v2058 = vld [vmem:[%s2043 + $0x38] sm:$0xf]
      %v2059 = vld [vmem:[%s2043 + $0x3c] sm:$0xf]
      %v2060 = vld [vmem:[%s2043 + $0x40] sm:$0x1]
      %v2063 = vunpack.c.l.b16 %v2041
      %v2064 = vunpack.c.h.b16 %v2041
      %v2065 = vunpack.c.l.b16 %v2042
      %v2066 = vunpack.c.h.b16 %v2042
      %v2067 = vpack.c.b16 %v1803, %v2063
      %v2068 = vpack.c.b16 %v1804, %v2064
      %v2069 = vpack.c.b16 %v2065, %v2065
      %v2070 = vpack.c.b16 %v2066, %v2066
      %v2071 = vrot.slane %v2067, 2
      %v2072 = vrot.slane %v2069, 2
      %v2073 = vsel %vm368, %v2071, %v2072
      %v2074 = vrot.slane %v2068, 2
      %v2075 = vrot.slane %v2070, 2
      %v2076 = vsel %vm368, %v2074, %v2075
      %v2095 = vunpack.c.l.b16 %v2044
      %v2096 = vunpack.c.l.b16 %v2045
      %v2097 = vunpack.c.l.b16 %v2046
      %v2098 = vunpack.c.l.b16 %v2047
      %v2099 = vunpack.c.l.b16 %v2048
      %v2100 = vunpack.c.l.b16 %v2049
      %v2101 = vunpack.c.l.b16 %v2050
      %v2102 = vunpack.c.l.b16 %v2051
      %v2103 = vunpack.c.l.b16 %v2052
      %v2104 = vunpack.c.l.b16 %v2053
      %v2105 = vunpack.c.l.b16 %v2054
      %v2106 = vunpack.c.l.b16 %v2055
      %v2107 = vunpack.c.l.b16 %v2056
      %v2108 = vunpack.c.l.b16 %v2057
      %v2109 = vunpack.c.l.b16 %v2058
      %v2110 = vunpack.c.l.b16 %v2059
      %v2111 = vunpack.c.l.b16 %v2060
      %v2112 = vpack.c.b16 %v2096, %v2095
      %v2113 = vpack.c.b16 %v2098, %v2097
      %v2114 = vpack.c.b16 %v2100, %v2099
      %v2115 = vpack.c.b16 %v2102, %v2101
      %v2116 = vpack.c.b16 %v2104, %v2103
      %v2117 = vpack.c.b16 %v2106, %v2105
      %v2118 = vpack.c.b16 %v2108, %v2107
      %v2119 = vpack.c.b16 %v2110, %v2109
      %v2120 = vpack.c.b16 %v2111, %v2111
      %v2130 = vsel %vm1740, %v2076, 0
      %v2133 = vsel %vm455, %v2120, 0
      %2135 = vmatpush.bf16.msra.mxu0 %v2119
      %2136 = vmatpush.bf16.msra.mxu0 %v2118
      %2137 = vmatpush.bf16.msra.mxu0 %v2117
      %2138 = vmatpush.bf16.msra.mxu0 %v2116
      %2139 = vmatpush.bf16.msra.mxu0 %v2115
      %2140 = vmatpush.bf16.msra.mxu0 %v2114
      %2141 = vmatpush.bf16.msra.mxu0 %v2113
      %2142 = vmatpush.bf16.msra.mxu0 %v2112
      %2143 = vmatmul.bf16.gmra.mxu0 %v2073
      %v2144 = vpop.f32.mrf.mxu0
      %v2145 = vadd.f32 0.0, %v2144
      %v2146 = vpop.f32.mrf.mxu0
      %v2147 = vadd.f32 0.0, %v2146
      %2148 = vdwg.mxu0
      %2149 = vmatpush.bf16.msra.mxu0 0
      %2150 = vmatpush.bf16.msra.mxu0 0
      %2151 = vmatpush.bf16.msra.mxu0 0
      %2152 = vmatpush.bf16.msra.mxu0 0
      %2153 = vmatpush.bf16.msra.mxu0 0
      %2154 = vmatpush.bf16.msra.mxu0 0
      %2155 = vmatpush.bf16.msra.mxu0 0
      %2156 = vmatpush.bf16.msra.mxu0 %v2133
      %2157 = vmatmul.bf16.gmra.mxu0 %v2130
      %v2158 = vpop.f32.mrf.mxu0
      %v2159 = vadd.f32 %v2145, %v2158
      %v2160 = vpop.f32.mrf.mxu0
      %v2161 = vadd.f32 %v2147, %v2160
      %2162 = vdwg.mxu0
      %v2163 = vadd.f32 %v1775, %v2159
      %v2164 = vadd.f32 %v1776, %v2161
      %v2165 = vld [vmem:[%s239 + $0x10] sm:$0x77]
      %s2166 = scalar_lea.vmem %s3, 272
      %v2167 = vld [vmem:[%s2166] sm:$0xf]
      %v2168 = vld [vmem:[%s2166 + $0x4] sm:$0xf]
      %v2169 = vld [vmem:[%s2166 + $0x8] sm:$0xf]
      %v2170 = vld [vmem:[%s2166 + $0xc] sm:$0xf]
      %v2171 = vld [vmem:[%s2166 + $0x10] sm:$0xf]
      %v2172 = vld [vmem:[%s2166 + $0x14] sm:$0xf]
      %v2173 = vld [vmem:[%s2166 + $0x18] sm:$0xf]
      %v2174 = vld [vmem:[%s2166 + $0x1c] sm:$0xf]
      %v2175 = vld [vmem:[%s2166 + $0x20] sm:$0xf]
      %v2176 = vld [vmem:[%s2166 + $0x24] sm:$0xf]
      %v2177 = vld [vmem:[%s2166 + $0x28] sm:$0xf]
      %v2178 = vld [vmem:[%s2166 + $0x2c] sm:$0xf]
      %v2179 = vld [vmem:[%s2166 + $0x30] sm:$0xf]
      %v2180 = vld [vmem:[%s2166 + $0x34] sm:$0xf]
      %v2181 = vld [vmem:[%s2166 + $0x38] sm:$0xf]
      %v2182 = vld [vmem:[%s2166 + $0x3c] sm:$0xf]
      %v2183 = vld [vmem:[%s2166 + $0x40] sm:$0x1]
      %v2185 = vunpack.c.l.b16 %v2165
      %v2186 = vunpack.c.h.b16 %v2165
      %v2187 = vpack.c.b16 %v2185, %v2185
      %v2188 = vpack.c.b16 %v2186, %v2186
      %v2190 = vshrl.u32 %v2067, 16
      %v2192 = vrot.slane %v2190, 2
      %v2193 = vshll.u32 %v2067, 16
      %v2195 = vrot.slane %v2193, 3
      %v2196 = vor.u32 %v2192, %v2195
      %v2198 = vshrl.u32 %v2187, 16
      %v2200 = vrot.slane %v2198, 2
      %v2201 = vshll.u32 %v2187, 16
      %v2203 = vrot.slane %v2201, 3
      %v2204 = vor.u32 %v2200, %v2203
      %v2205 = vsel %vm634, %v2196, %v2204
      %v2207 = vshrl.u32 %v2068, 16
      %v2209 = vrot.slane %v2207, 2
      %v2210 = vshll.u32 %v2068, 16
      %v2212 = vrot.slane %v2210, 3
      %v2213 = vor.u32 %v2209, %v2212
      %v2215 = vshrl.u32 %v2188, 16
      %v2217 = vrot.slane %v2215, 2
      %v2218 = vshll.u32 %v2188, 16
      %v2220 = vrot.slane %v2218, 3
      %v2221 = vor.u32 %v2217, %v2220
      %v2222 = vsel %vm634, %v2213, %v2221
      %v2241 = vunpack.c.l.b16 %v2167
      %v2242 = vunpack.c.l.b16 %v2168
      %v2243 = vunpack.c.l.b16 %v2169
      %v2244 = vunpack.c.l.b16 %v2170
      %v2245 = vunpack.c.l.b16 %v2171
      %v2246 = vunpack.c.l.b16 %v2172
      %v2247 = vunpack.c.l.b16 %v2173
      %v2248 = vunpack.c.l.b16 %v2174
      %v2249 = vunpack.c.l.b16 %v2175
      %v2250 = vunpack.c.l.b16 %v2176
      %v2251 = vunpack.c.l.b16 %v2177
      %v2252 = vunpack.c.l.b16 %v2178
      %v2253 = vunpack.c.l.b16 %v2179
      %v2254 = vunpack.c.l.b16 %v2180
      %v2255 = vunpack.c.l.b16 %v2181
      %v2256 = vunpack.c.l.b16 %v2182
      %v2257 = vunpack.c.l.b16 %v2183
      %v2258 = vpack.c.b16 %v2242, %v2241
      %v2259 = vpack.c.b16 %v2244, %v2243
      %v2260 = vpack.c.b16 %v2246, %v2245
      %v2261 = vpack.c.b16 %v2248, %v2247
      %v2262 = vpack.c.b16 %v2250, %v2249
      %v2263 = vpack.c.b16 %v2252, %v2251
      %v2264 = vpack.c.b16 %v2254, %v2253
      %v2265 = vpack.c.b16 %v2256, %v2255
      %v2266 = vpack.c.b16 %v2257, %v2257
      %v2276 = vsel %vm1740, %v2222, 0
      %v2279 = vsel %vm455, %v2266, 0
      %2281 = vmatpush.bf16.msra.mxu0 %v2265
      %2282 = vmatpush.bf16.msra.mxu0 %v2264
      %2283 = vmatpush.bf16.msra.mxu0 %v2263
      %2284 = vmatpush.bf16.msra.mxu0 %v2262
      %2285 = vmatpush.bf16.msra.mxu0 %v2261
      %2286 = vmatpush.bf16.msra.mxu0 %v2260
      %2287 = vmatpush.bf16.msra.mxu0 %v2259
      %2288 = vmatpush.bf16.msra.mxu0 %v2258
      %2289 = vmatmul.bf16.gmra.mxu0 %v2205
      %v2290 = vpop.f32.mrf.mxu0
      %v2291 = vadd.f32 0.0, %v2290
      %v2292 = vpop.f32.mrf.mxu0
      %v2293 = vadd.f32 0.0, %v2292
      %2294 = vdwg.mxu0
      %2295 = vmatpush.bf16.msra.mxu0 0
      %2296 = vmatpush.bf16.msra.mxu0 0
      %2297 = vmatpush.bf16.msra.mxu0 0
      %2298 = vmatpush.bf16.msra.mxu0 0
      %2299 = vmatpush.bf16.msra.mxu0 0
      %2300 = vmatpush.bf16.msra.mxu0 0
      %2301 = vmatpush.bf16.msra.mxu0 0
      %2302 = vmatpush.bf16.msra.mxu0 %v2279
      %2303 = vmatmul.bf16.gmra.mxu0 %v2276
      %v2304 = vpop.f32.mrf.mxu0
      %v2305 = vadd.f32 %v2291, %v2304
      %v2306 = vpop.f32.mrf.mxu0
      %v2307 = vadd.f32 %v2293, %v2306
      %2308 = vdwg.mxu0
      %v2309 = vadd.f32 %v1921, %v2305
      %v2310 = vadd.f32 %v1922, %v2307
      %v2311 = vld [vmem:[%s239] sm:$0x88]
      %s2312 = scalar_lea.vmem %s3, 340
      %v2313 = vld [vmem:[%s2312] sm:$0xf]
      %v2314 = vld [vmem:[%s2312 + $0x4] sm:$0xf]
      %v2315 = vld [vmem:[%s2312 + $0x8] sm:$0xf]
      %v2316 = vld [vmem:[%s2312 + $0xc] sm:$0xf]
      %v2317 = vld [vmem:[%s2312 + $0x10] sm:$0xf]
      %v2318 = vld [vmem:[%s2312 + $0x14] sm:$0xf]
      %v2319 = vld [vmem:[%s2312 + $0x18] sm:$0xf]
      %v2320 = vld [vmem:[%s2312 + $0x1c] sm:$0xf]
      %v2321 = vld [vmem:[%s2312 + $0x20] sm:$0xf]
      %v2322 = vld [vmem:[%s2312 + $0x24] sm:$0xf]
      %v2323 = vld [vmem:[%s2312 + $0x28] sm:$0xf]
      %v2324 = vld [vmem:[%s2312 + $0x2c] sm:$0xf]
      %v2325 = vld [vmem:[%s2312 + $0x30] sm:$0xf]
      %v2326 = vld [vmem:[%s2312 + $0x34] sm:$0xf]
      %v2327 = vld [vmem:[%s2312 + $0x38] sm:$0xf]
      %v2328 = vld [vmem:[%s2312 + $0x3c] sm:$0xf]
      %v2329 = vld [vmem:[%s2312 + $0x40] sm:$0x1]
      %v2331 = vunpack.c.l.b16 %v2311
      %v2332 = vunpack.c.h.b16 %v2311
      %v2333 = vpack.c.b16 %v1803, %v2331
      %v2334 = vpack.c.b16 %v1804, %v2332
      %v2335 = vrot.slane %v2333, 3
      %v2336 = vrot.slane %v2187, 3
      %v2337 = vsel %vm950, %v2335, %v2336
      %v2338 = vrot.slane %v2334, 3
      %v2339 = vrot.slane %v2188, 3
      %v2340 = vsel %vm950, %v2338, %v2339
      %v2359 = vunpack.c.l.b16 %v2313
      %v2360 = vunpack.c.l.b16 %v2314
      %v2361 = vunpack.c.l.b16 %v2315
      %v2362 = vunpack.c.l.b16 %v2316
      %v2363 = vunpack.c.l.b16 %v2317
      %v2364 = vunpack.c.l.b16 %v2318
      %v2365 = vunpack.c.l.b16 %v2319
      %v2366 = vunpack.c.l.b16 %v2320
      %v2367 = vunpack.c.l.b16 %v2321
      %v2368 = vunpack.c.l.b16 %v2322
      %v2369 = vunpack.c.l.b16 %v2323
      %v2370 = vunpack.c.l.b16 %v2324
      %v2371 = vunpack.c.l.b16 %v2325
      %v2372 = vunpack.c.l.b16 %v2326
      %v2373 = vunpack.c.l.b16 %v2327
      %v2374 = vunpack.c.l.b16 %v2328
      %v2375 = vunpack.c.l.b16 %v2329
      %v2376 = vpack.c.b16 %v2360, %v2359
      %v2377 = vpack.c.b16 %v2362, %v2361
      %v2378 = vpack.c.b16 %v2364, %v2363
      %v2379 = vpack.c.b16 %v2366, %v2365
      %v2380 = vpack.c.b16 %v2368, %v2367
      %v2381 = vpack.c.b16 %v2370, %v2369
      %v2382 = vpack.c.b16 %v2372, %v2371
      %v2383 = vpack.c.b16 %v2374, %v2373
      %v2384 = vpack.c.b16 %v2375, %v2375
      %v2394 = vsel %vm1740, %v2340, 0
      %v2397 = vsel %vm455, %v2384, 0
      %2399 = vmatpush.bf16.msra.mxu0 %v2383
      %2400 = vmatpush.bf16.msra.mxu0 %v2382
      %2401 = vmatpush.bf16.msra.mxu0 %v2381
      %2402 = vmatpush.bf16.msra.mxu0 %v2380
      %2403 = vmatpush.bf16.msra.mxu0 %v2379
      %2404 = vmatpush.bf16.msra.mxu0 %v2378
      %2405 = vmatpush.bf16.msra.mxu0 %v2377
      %2406 = vmatpush.bf16.msra.mxu0 %v2376
      %2407 = vmatmul.bf16.gmra.mxu0 %v2337
      %v2408 = vpop.f32.mrf.mxu0
      %v2409 = vadd.f32 0.0, %v2408
      %v2410 = vpop.f32.mrf.mxu0
      %v2411 = vadd.f32 0.0, %v2410
      %2412 = vdwg.mxu0
      %2413 = vmatpush.bf16.msra.mxu0 0
      %2414 = vmatpush.bf16.msra.mxu0 0
      %2415 = vmatpush.bf16.msra.mxu0 0
      %2416 = vmatpush.bf16.msra.mxu0 0
      %2417 = vmatpush.bf16.msra.mxu0 0
      %2418 = vmatpush.bf16.msra.mxu0 0
      %2419 = vmatpush.bf16.msra.mxu0 0
      %2420 = vmatpush.bf16.msra.mxu0 %v2397
      %2421 = vmatmul.bf16.gmra.mxu0 %v2394
      %v2422 = vpop.f32.mrf.mxu0
      %v2423 = vadd.f32 %v2409, %v2422
      %v2424 = vpop.f32.mrf.mxu0
      %v2425 = vadd.f32 %v2411, %v2424
      %2426 = vdwg.mxu0
      %v2427 = vadd.f32 %v2039, %v2423
      %v2428 = vadd.f32 %v2040, %v2425
      %v2429 = vld [vmem:[%s239 + $0x10] sm:$0xff]
      %s2430 = scalar_lea.vmem %s3, 408
      %v2431 = vld [vmem:[%s2430] sm:$0xf]
      %v2432 = vld [vmem:[%s2430 + $0x4] sm:$0xf]
      %v2433 = vld [vmem:[%s2430 + $0x8] sm:$0xf]
      %v2434 = vld [vmem:[%s2430 + $0xc] sm:$0xf]
      %v2435 = vld [vmem:[%s2430 + $0x10] sm:$0xf]
      %v2436 = vld [vmem:[%s2430 + $0x14] sm:$0xf]
      %v2437 = vld [vmem:[%s2430 + $0x18] sm:$0xf]
      %v2438 = vld [vmem:[%s2430 + $0x1c] sm:$0xf]
      %v2439 = vld [vmem:[%s2430 + $0x20] sm:$0xf]
      %v2440 = vld [vmem:[%s2430 + $0x24] sm:$0xf]
      %v2441 = vld [vmem:[%s2430 + $0x28] sm:$0xf]
      %v2442 = vld [vmem:[%s2430 + $0x2c] sm:$0xf]
      %v2443 = vld [vmem:[%s2430 + $0x30] sm:$0xf]
      %v2444 = vld [vmem:[%s2430 + $0x34] sm:$0xf]
      %v2445 = vld [vmem:[%s2430 + $0x38] sm:$0xf]
      %v2446 = vld [vmem:[%s2430 + $0x3c] sm:$0xf]
      %v2447 = vld [vmem:[%s2430 + $0x40] sm:$0x1]
      %v2449 = vunpack.c.l.b16 %v2429
      %v2450 = vunpack.c.h.b16 %v2429
      %v2451 = vpack.c.b16 %v2449, %v1803
      %v2452 = vpack.c.b16 %v2450, %v1804
      %v2471 = vunpack.c.l.b16 %v2431
      %v2472 = vunpack.c.l.b16 %v2432
      %v2473 = vunpack.c.l.b16 %v2433
      %v2474 = vunpack.c.l.b16 %v2434
      %v2475 = vunpack.c.l.b16 %v2435
      %v2476 = vunpack.c.l.b16 %v2436
      %v2477 = vunpack.c.l.b16 %v2437
      %v2478 = vunpack.c.l.b16 %v2438
      %v2479 = vunpack.c.l.b16 %v2439
      %v2480 = vunpack.c.l.b16 %v2440
      %v2481 = vunpack.c.l.b16 %v2441
      %v2482 = vunpack.c.l.b16 %v2442
      %v2483 = vunpack.c.l.b16 %v2443
      %v2484 = vunpack.c.l.b16 %v2444
      %v2485 = vunpack.c.l.b16 %v2445
      %v2486 = vunpack.c.l.b16 %v2446
      %v2487 = vunpack.c.l.b16 %v2447
      %v2488 = vpack.c.b16 %v2472, %v2471
      %v2489 = vpack.c.b16 %v2474, %v2473
      %v2490 = vpack.c.b16 %v2476, %v2475
      %v2491 = vpack.c.b16 %v2478, %v2477
      %v2492 = vpack.c.b16 %v2480, %v2479
      %v2493 = vpack.c.b16 %v2482, %v2481
      %v2494 = vpack.c.b16 %v2484, %v2483
      %v2495 = vpack.c.b16 %v2486, %v2485
      %v2496 = vpack.c.b16 %v2487, %v2487
      %v2506 = vsel %vm1740, %v2452, 0
      %v2509 = vsel %vm455, %v2496, 0
      %2511 = vmatpush.bf16.msra.mxu0 %v2495
      %2512 = vmatpush.bf16.msra.mxu0 %v2494
      %2513 = vmatpush.bf16.msra.mxu0 %v2493
      %2514 = vmatpush.bf16.msra.mxu0 %v2492
      %2515 = vmatpush.bf16.msra.mxu0 %v2491
      %2516 = vmatpush.bf16.msra.mxu0 %v2490
      %2517 = vmatpush.bf16.msra.mxu0 %v2489
      %2518 = vmatpush.bf16.msra.mxu0 %v2488
      %2519 = vmatmul.bf16.gmra.mxu0 %v2451
      %v2520 = vpop.f32.mrf.mxu0
      %v2521 = vadd.f32 0.0, %v2520
      %v2522 = vpop.f32.mrf.mxu0
      %v2523 = vadd.f32 0.0, %v2522
      %2524 = vdwg.mxu0
      %2525 = vmatpush.bf16.msra.mxu0 0
      %2526 = vmatpush.bf16.msra.mxu0 0
      %2527 = vmatpush.bf16.msra.mxu0 0
      %2528 = vmatpush.bf16.msra.mxu0 0
      %2529 = vmatpush.bf16.msra.mxu0 0
      %2530 = vmatpush.bf16.msra.mxu0 0
      %2531 = vmatpush.bf16.msra.mxu0 0
      %2532 = vmatpush.bf16.msra.mxu0 %v2509
      %2533 = vmatmul.bf16.gmra.mxu0 %v2506
      %v2534 = vpop.f32.mrf.mxu0
      %v2535 = vadd.f32 %v2521, %v2534
      %v2536 = vpop.f32.mrf.mxu0
      %v2537 = vadd.f32 %v2523, %v2536
      %2538 = vdwg.mxu0
      %v2539 = vadd.f32 %v2163, %v2535
      %v2540 = vadd.f32 %v2164, %v2537
      %v2541 = vld [vmem:[%s239 + $0x8] sm:$0xff]
      %v2542 = vld [vmem:[%s239 + $0x10] sm:$0xff]
      %v2543 = vld [vmem:[%s239 + $0x18] sm:$0x11]
      %s2544 = scalar_lea.vmem %s3, 476
      %v2545 = vld [vmem:[%s2544] sm:$0xf]
      %v2546 = vld [vmem:[%s2544 + $0x4] sm:$0xf]
      %v2547 = vld [vmem:[%s2544 + $0x8] sm:$0xf]
      %v2548 = vld [vmem:[%s2544 + $0xc] sm:$0xf]
      %v2549 = vld [vmem:[%s2544 + $0x10] sm:$0xf]
      %v2550 = vld [vmem:[%s2544 + $0x14] sm:$0xf]
      %v2551 = vld [vmem:[%s2544 + $0x18] sm:$0xf]
      %v2552 = vld [vmem:[%s2544 + $0x1c] sm:$0xf]
      %v2553 = vld [vmem:[%s2544 + $0x20] sm:$0xf]
      %v2554 = vld [vmem:[%s2544 + $0x24] sm:$0xf]
      %v2555 = vld [vmem:[%s2544 + $0x28] sm:$0xf]
      %v2556 = vld [vmem:[%s2544 + $0x2c] sm:$0xf]
      %v2557 = vld [vmem:[%s2544 + $0x30] sm:$0xf]
      %v2558 = vld [vmem:[%s2544 + $0x34] sm:$0xf]
      %v2559 = vld [vmem:[%s2544 + $0x38] sm:$0xf]
      %v2560 = vld [vmem:[%s2544 + $0x3c] sm:$0xf]
      %v2561 = vld [vmem:[%s2544 + $0x40] sm:$0x1]
      %v2565 = vunpack.c.l.b16 %v2541
      %v2566 = vunpack.c.h.b16 %v2541
      %v2567 = vunpack.c.l.b16 %v2542
      %v2568 = vunpack.c.h.b16 %v2542
      %v2569 = vunpack.c.l.b16 %v2543
      %v2570 = vunpack.c.h.b16 %v2543
      %v2571 = vpack.c.b16 %v2567, %v2565
      %v2572 = vpack.c.b16 %v2568, %v2566
      %v2573 = vpack.c.b16 %v2569, %v2569
      %v2574 = vpack.c.b16 %v2570, %v2570
      %v2576 = vshrl.u32 %v2571, 16
      %v2578 = vshll.u32 %v2571, 16
      %v2580 = vrot.slane %v2578, 1
      %v2581 = vor.u32 %v2576, %v2580
      %v2583 = vshll.u32 %v2573, 16
      %v2585 = vrot.slane %v2583, 1
      %v2586 = vsel %vm784, %v2581, %v2585
      %v2588 = vshrl.u32 %v2572, 16
      %v2590 = vshll.u32 %v2572, 16
      %v2592 = vrot.slane %v2590, 1
      %v2593 = vor.u32 %v2588, %v2592
      %v2595 = vshll.u32 %v2574, 16
      %v2597 = vrot.slane %v2595, 1
      %v2598 = vsel %vm784, %v2593, %v2597
      %v2617 = vunpack.c.l.b16 %v2545
      %v2618 = vunpack.c.l.b16 %v2546
      %v2619 = vunpack.c.l.b16 %v2547
      %v2620 = vunpack.c.l.b16 %v2548
      %v2621 = vunpack.c.l.b16 %v2549
      %v2622 = vunpack.c.l.b16 %v2550
      %v2623 = vunpack.c.l.b16 %v2551
      %v2624 = vunpack.c.l.b16 %v2552
      %v2625 = vunpack.c.l.b16 %v2553
      %v2626 = vunpack.c.l.b16 %v2554
      %v2627 = vunpack.c.l.b16 %v2555
      %v2628 = vunpack.c.l.b16 %v2556
      %v2629 = vunpack.c.l.b16 %v2557
      %v2630 = vunpack.c.l.b16 %v2558
      %v2631 = vunpack.c.l.b16 %v2559
      %v2632 = vunpack.c.l.b16 %v2560
      %v2633 = vunpack.c.l.b16 %v2561
      %v2634 = vpack.c.b16 %v2618, %v2617
      %v2635 = vpack.c.b16 %v2620, %v2619
      %v2636 = vpack.c.b16 %v2622, %v2621
      %v2637 = vpack.c.b16 %v2624, %v2623
      %v2638 = vpack.c.b16 %v2626, %v2625
      %v2639 = vpack.c.b16 %v2628, %v2627
      %v2640 = vpack.c.b16 %v2630, %v2629
      %v2641 = vpack.c.b16 %v2632, %v2631
      %v2642 = vpack.c.b16 %v2633, %v2633
      %v2652 = vsel %vm1740, %v2598, 0
      %v2655 = vsel %vm455, %v2642, 0
      %2657 = vmatpush.bf16.msra.mxu0 %v2641
      %2658 = vmatpush.bf16.msra.mxu0 %v2640
      %2659 = vmatpush.bf16.msra.mxu0 %v2639
      %2660 = vmatpush.bf16.msra.mxu0 %v2638
      %2661 = vmatpush.bf16.msra.mxu0 %v2637
      %2662 = vmatpush.bf16.msra.mxu0 %v2636
      %2663 = vmatpush.bf16.msra.mxu0 %v2635
      %2664 = vmatpush.bf16.msra.mxu0 %v2634
      %2665 = vmatmul.bf16.gmra.mxu0 %v2586
      %v2666 = vpop.f32.mrf.mxu0
      %v2667 = vadd.f32 0.0, %v2666
      %v2668 = vpop.f32.mrf.mxu0
      %v2669 = vadd.f32 0.0, %v2668
      %2670 = vdwg.mxu0
      %2671 = vmatpush.bf16.msra.mxu0 0
      %2672 = vmatpush.bf16.msra.mxu0 0
      %2673 = vmatpush.bf16.msra.mxu0 0
      %2674 = vmatpush.bf16.msra.mxu0 0
      %2675 = vmatpush.bf16.msra.mxu0 0
      %2676 = vmatpush.bf16.msra.mxu0 0
      %2677 = vmatpush.bf16.msra.mxu0 0
      %2678 = vmatpush.bf16.msra.mxu0 %v2655
      %2679 = vmatmul.bf16.gmra.mxu0 %v2652
      %v2680 = vpop.f32.mrf.mxu0
      %v2681 = vadd.f32 %v2667, %v2680
      %v2682 = vpop.f32.mrf.mxu0
      %v2683 = vadd.f32 %v2669, %v2682
      %2684 = vdwg.mxu0
      %v2685 = vadd.f32 %v2309, %v2681
      %v2686 = vadd.f32 %v2310, %v2683
      %v2687 = vld [vmem:[%s239 + $0x8] sm:$0xee]
      %s2688 = scalar_lea.vmem %s3, 544
      %v2689 = vld [vmem:[%s2688] sm:$0xf]
      %v2690 = vld [vmem:[%s2688 + $0x4] sm:$0xf]
      %v2691 = vld [vmem:[%s2688 + $0x8] sm:$0xf]
      %v2692 = vld [vmem:[%s2688 + $0xc] sm:$0xf]
      %v2693 = vld [vmem:[%s2688 + $0x10] sm:$0xf]
      %v2694 = vld [vmem:[%s2688 + $0x14] sm:$0xf]
      %v2695 = vld [vmem:[%s2688 + $0x18] sm:$0xf]
      %v2696 = vld [vmem:[%s2688 + $0x1c] sm:$0xf]
      %v2697 = vld [vmem:[%s2688 + $0x20] sm:$0xf]
      %v2698 = vld [vmem:[%s2688 + $0x24] sm:$0xf]
      %v2699 = vld [vmem:[%s2688 + $0x28] sm:$0xf]
      %v2700 = vld [vmem:[%s2688 + $0x2c] sm:$0xf]
      %v2701 = vld [vmem:[%s2688 + $0x30] sm:$0xf]
      %v2702 = vld [vmem:[%s2688 + $0x34] sm:$0xf]
      %v2703 = vld [vmem:[%s2688 + $0x38] sm:$0xf]
      %v2704 = vld [vmem:[%s2688 + $0x3c] sm:$0xf]
      %v2705 = vld [vmem:[%s2688 + $0x40] sm:$0x1]
      %v2707 = vunpack.c.l.b16 %v2687
      %v2708 = vunpack.c.h.b16 %v2687
      %v2709 = vpack.c.b16 %v2567, %v2707
      %v2710 = vpack.c.b16 %v2568, %v2708
      %v2711 = vrot.slane %v2709, 1
      %v2712 = vrot.slane %v2573, 1
      %v2713 = vsel %vm1072, %v2711, %v2712
      %v2714 = vrot.slane %v2710, 1
      %v2715 = vrot.slane %v2574, 1
      %v2716 = vsel %vm1072, %v2714, %v2715
      %v2735 = vunpack.c.l.b16 %v2689
      %v2736 = vunpack.c.l.b16 %v2690
      %v2737 = vunpack.c.l.b16 %v2691
      %v2738 = vunpack.c.l.b16 %v2692
      %v2739 = vunpack.c.l.b16 %v2693
      %v2740 = vunpack.c.l.b16 %v2694
      %v2741 = vunpack.c.l.b16 %v2695
      %v2742 = vunpack.c.l.b16 %v2696
      %v2743 = vunpack.c.l.b16 %v2697
      %v2744 = vunpack.c.l.b16 %v2698
      %v2745 = vunpack.c.l.b16 %v2699
      %v2746 = vunpack.c.l.b16 %v2700
      %v2747 = vunpack.c.l.b16 %v2701
      %v2748 = vunpack.c.l.b16 %v2702
      %v2749 = vunpack.c.l.b16 %v2703
      %v2750 = vunpack.c.l.b16 %v2704
      %v2751 = vunpack.c.l.b16 %v2705
      %v2752 = vpack.c.b16 %v2736, %v2735
      %v2753 = vpack.c.b16 %v2738, %v2737
      %v2754 = vpack.c.b16 %v2740, %v2739
      %v2755 = vpack.c.b16 %v2742, %v2741
      %v2756 = vpack.c.b16 %v2744, %v2743
      %v2757 = vpack.c.b16 %v2746, %v2745
      %v2758 = vpack.c.b16 %v2748, %v2747
      %v2759 = vpack.c.b16 %v2750, %v2749
      %v2760 = vpack.c.b16 %v2751, %v2751
      %v2770 = vsel %vm1740, %v2716, 0
      %v2773 = vsel %vm455, %v2760, 0
      %2775 = vmatpush.bf16.msra.mxu0 %v2759
      %2776 = vmatpush.bf16.msra.mxu0 %v2758
      %2777 = vmatpush.bf16.msra.mxu0 %v2757
      %2778 = vmatpush.bf16.msra.mxu0 %v2756
      %2779 = vmatpush.bf16.msra.mxu0 %v2755
      %2780 = vmatpush.bf16.msra.mxu0 %v2754
      %2781 = vmatpush.bf16.msra.mxu0 %v2753
      %2782 = vmatpush.bf16.msra.mxu0 %v2752
      %2783 = vmatmul.bf16.gmra.mxu0 %v2713
      %v2784 = vpop.f32.mrf.mxu0
      %v2785 = vadd.f32 0.0, %v2784
      %v2786 = vpop.f32.mrf.mxu0
      %v2787 = vadd.f32 0.0, %v2786
      %2788 = vdwg.mxu0
      %2789 = vmatpush.bf16.msra.mxu0 0
      %2790 = vmatpush.bf16.msra.mxu0 0
      %2791 = vmatpush.bf16.msra.mxu0 0
      %2792 = vmatpush.bf16.msra.mxu0 0
      %2793 = vmatpush.bf16.msra.mxu0 0
      %2794 = vmatpush.bf16.msra.mxu0 0
      %2795 = vmatpush.bf16.msra.mxu0 0
      %2796 = vmatpush.bf16.msra.mxu0 %v2773
      %2797 = vmatmul.bf16.gmra.mxu0 %v2770
      %v2798 = vpop.f32.mrf.mxu0
      %v2799 = vadd.f32 %v2785, %v2798
      %v2800 = vpop.f32.mrf.mxu0
      %v2801 = vadd.f32 %v2787, %v2800
      %2802 = vdwg.mxu0
      %v2803 = vadd.f32 %v2427, %v2799
      %v2804 = vadd.f32 %v2428, %v2801
      %v2805 = vlaneseq
      %v2806 = vshrl.u32 %v2805, 7
      %v2807 = vadd.s32 %v2806, 8
      %vm2808 = vcmp.lt.s32.totalorder %v2806, 0
      %v2809 = vsub.s32 0, %v2806
      %v2810 = vsel %vm2808, %v2809, %v2806
      %v2811 = vshrl.u32 %v2810, 2
      %v2812 = vand.u32 %v2810, 3
      %v2813 = vsub.s32 0, %v2812
      %v2814 = vsel %vm2808, %v2813, %v2812
      %vm2815 = vcmp.lt.s32.totalorder %v2807, 0
      %v2816 = vsub.s32 0, %v2807
      %v2817 = vsel %vm2815, %v2816, %v2807
      %v2818 = vshrl.u32 %v2817, 2
      %v2819 = vand.u32 %v2817, 3
      %v2820 = vsub.s32 0, %v2819
      %v2821 = vsel %vm2815, %v2820, %v2819
      %vm2822 = vcmp.ne.s32.totalorder %v2814, 0
      %vm2823 = vcmp.ne.s32.totalorder %v2821, 0
      %vm2824 = vcmp.lt.s32.totalorder %v2814, 0
      %vm2825 = vcmp.lt.s32.totalorder %v2821, 0
      %vm2826 = vmand %vm2824, %vm2822
      %vm2827 = vmand %vm2825, %vm2823
      %v2828 = vadd.s32 %v2814, 4
      %v2829 = vadd.s32 %v2821, 4
      %v2830 = vsel %vm2826, %v2828, %v2814
      %v2831 = vsel %vm2827, %v2829, %v2821
      %vm2832 = vcmp.eq.s32.totalorder %v2830, 0
      %vm2833 = vcmp.eq.s32.totalorder %v2831, 0
      %v2834 = vsel %vm2832, 1, 0
      %v2835 = vsel %vm2833, 1, 0
      %vm2836 = vcmp.eq.s32.totalorder %v2834, 1
      %vm2837 = vcmp.eq.s32.totalorder %v2835, 1
      %v2838 = vsel %vm2836, 0.0, %v2539
      %v2839 = vsel %vm2837, 0.0, %v2540
      %v2840 = vadd.f32 %v2838, %v2685
      %v2841 = vadd.f32 %v2839, %v2686
      %vm2842 = vcmp.eq.s32.totalorder %v2830, 3
      %vm2843 = vcmp.eq.s32.totalorder %v2831, 3
      %v2844 = vsel %vm2842, 1, 0
      %v2845 = vsel %vm2843, 1, 0
      %vm2846 = vcmp.eq.s32.totalorder %v2844, 1
      %vm2847 = vcmp.eq.s32.totalorder %v2845, 1
      %v2848 = vsel %vm2846, 0.0, %v2803
      %v2849 = vsel %vm2847, 0.0, %v2804
      %v2850 = vadd.f32 %v2840, %v2848
      %v2851 = vadd.f32 %v2841, %v2849
      %v2852 = vld [vmem:[%s4] sm:$0x1]
      %v2854 = vperm.slane %v2852, 0
      %v2856 = vadd.f32 %v2850, %v2854
      %v2857 = vadd.f32 %v2851, %v2854
      %v2858 = vmax.f32 %v2856, 0.0
      %v2859 = vmax.f32 %v2857, 0.0
      %v2860 = vpack.c.bf16 %v2858, %v2858
      %v2861 = vpack.c.bf16 %v2859, %v2859
      %2862 = vst [vmem:[%s244] sm:$0xf] %v2860
      %2863 = vst [vmem:[%s244 + $0x4] sm:$0xf] %v2861
      %p2864 = scmp.lt.s32.totalorder %s16, 1
      %s2865 = scalar_select %p2864, %s16, 1
      %s2866 = smul.addr %s2865, 2
      %s2867 = smul.addr %s2866, 4
      %s2868 = scalar_lea.vmem %s5, %s2867
      // Predicated region
      $region41: #{unet_scattering_dynamic_forward.5} parent=39 // pred_check
        %p2869 = pneg %p149
      $region42: #{unet_scattering_dynamic_forward.5} parent=39 // pred_check_branch
        %2871 = sbr.rel (%p2869) target = $region44
      $region43: #{unet_scattering_dynamic_forward.5} parent=39 // pred_region
        _
      $region44: #{unet_scattering_dynamic_forward.5} parent=39 // pred_fallthru
        _
    $region40: #{unet_scattering_dynamic_forward.5} parent=5 // pred_fallthru
      _
    %p2872 = scmp.le.s32.totalorder 2, %s11
    // Predicated region
    $region45: #{unet_scattering_dynamic_forward.5} parent=5 // pred_check
      %p2873 = pneg %p2872
    $region46: #{unet_scattering_dynamic_forward.5} parent=5 // pred_check_branch
      %2875 = sbr.rel (%p2873) target = $region48
    $region47: #{unet_scattering_dynamic_forward.5} parent=5 // pred_region
      %s2876 = ssub.s32 %s11, 2
      // Predicated region
      $region49: #{unet_scattering_dynamic_forward.5} parent=47 // pred_check
        %p2877 = pneg %p155
      $region50: #{unet_scattering_dynamic_forward.5} parent=47 // pred_check_branch
        %2879 = sbr.rel (%p2877) target = $region52
      $region51: #{unet_scattering_dynamic_forward.5} parent=47 // pred_region
        %p2880 = scmp.lt.s32.totalorder %s17, 1
        %s2881 = scalar_select %p2880, %s17, 1
        %s2882 = smul.addr %s2881, 2
        %s2883 = smul.addr %s2882, 4
        %s2884 = scalar_lea.vmem %s5, %s2883
      $region52: #{unet_scattering_dynamic_forward.5} parent=47 // pred_fallthru
        _
    $region48: #{unet_scattering_dynamic_forward.5} parent=5 // pred_fallthru
      _
  $region6: #{unet_scattering_dynamic_forward.5} parent=0 // loop_footer
    %s15 = sadd.s32 1, %s11
  $region7: #{unet_scattering_dynamic_forward.5} parent=0 // loop_footer_branch
    %10 = sbr.rel target = $region3
  $region8: #{unet_scattering_dynamic_forward.5} parent=0 // loop_exit
    _

// kernel: unet_scattering_dynamic_forward.8
$region0: #{unet_scattering_dynamic_forward.8}
  #allocation0 [shape = 'u32[]', space=smem, size = 0x4, offset = 0x4, fixed_abs, tag = 'smem constant byte address 0x4 - core index']
  #allocation1 [shape = 'u32[72,128]{1,0:T(1,128)}', space=vmem, size = 0x9000, scoped, tag = 'internal scratch']
  %s0 = inlined_call_operand.vmem [shape: bf16[2,82,64], index: 0, kind: input, shape index: {}]
  %s1 = inlined_call_operand.vmem [shape: bf16[3,3,64,64], index: 1, kind: input, shape index: {}]
  %s2 = inlined_call_operand.vmem [shape: f32[1,64], index: 2, kind: input, shape index: {}]
  %s3 = inlined_call_operand.vmem [shape: bf16[2,64,64], index: 3, kind: output, shape index: {}]
  %s4 = sld [smem:[#allocation0]]
  $region45: #{unet_scattering_dynamic_forward.8} parent=0
    _
  %s6 = ssub.s32 1, %s4
  %s7 = scalar_select 0, %s6, %s4
  loop: start=0, step=1, limit=4
  $region2: #{unet_scattering_dynamic_forward.8} parent=0 // loop_pre_header
    _
  $region3: #{unet_scattering_dynamic_forward.8} parent=0 // loop_header
    %s9 = sphi 0, %s13
    %p10 = scmp.ge.s32.totalorder %s9, 4
    %s19 = sphi 0, %s21
    %s22 = sphi 0, %s19
    %s23 = sphi 0, %s22
    %s39 = sphi 0, %s23
    %s43 = sphi 0, %s43
    %s45 = sphi 0, %s43
    %s46 = sphi 0, %s45
    %s60 = sphi 0, %s46
    %s64 = sphi 0, %s64
    %s66 = sphi 0, %s64
    %s67 = sphi 0, %s66
    %s81 = sphi 0, %s67
    %s87 = sphi 0, %s89
    %s90 = sphi 0, %s87
    %s91 = sphi 0, %s90
    %s107 = sphi 0, %s91
  $region4: #{unet_scattering_dynamic_forward.8} parent=0 // loop_header_branch
    %12 = sbr.rel (%p10) target = $region8
  $region5: #{unet_scattering_dynamic_forward.8} parent=0 // loop_body
    %s14 = ssub.s32 %s9, 1
    %s15 = ssub.s32 %s9, 2
    %s16 = sadd.s32 %s9, 1
    %s17 = ssub.s32 %s9, %s16
    %p18 = scmp.eq.s32.totalorder %s17, 0
    %s20 = sadd.s32 %s19, 1
    %s21 = scalar_select %p18, %s19, %s20
    %p24 = pneg %p18
    %p25 = scmp.eq.s32.totalorder %s9, 1
    %p26 = por %p24, %p25
    %p27 = scmp.ne.s32.totalorder %s19, %s22
    %p28 = scmp.eq.s32.totalorder %s9, 0
    %p29 = por %p27, %p28
    %p30 = scmp.ne.s32.totalorder %s19, %s22
    %p31 = scmp.eq.s32.totalorder %s14, 1
    %p32 = por %p30, %p31
    %p33 = scmp.ne.s32.totalorder %s22, %s23
    %p34 = scmp.eq.s32.totalorder %s14, 0
    %p35 = por %p33, %p34
    %p36 = scmp.ne.s32.totalorder %s22, %s23
    %p37 = scmp.eq.s32.totalorder %s15, 1
    %p38 = por %p36, %p37
    %p40 = scmp.ne.s32.totalorder %s23, %s39
    %p41 = scmp.eq.s32.totalorder %s15, 0
    %p42 = por %p40, %p41
    %s44 = sadd.s32 %s43, 1
    %p47 = scmp.eq.s32.totalorder %s9, 1
    %p48 = scmp.ne.s32.totalorder %s43, %s45
    %p49 = scmp.eq.s32.totalorder %s9, 0
    %p50 = por %p48, %p49
    %p51 = scmp.ne.s32.totalorder %s43, %s45
    %p52 = scmp.eq.s32.totalorder %s14, 1
    %p53 = por %p51, %p52
    %p54 = scmp.ne.s32.totalorder %s45, %s46
    %p55 = scmp.eq.s32.totalorder %s14, 0
    %p56 = por %p54, %p55
    %p57 = scmp.ne.s32.totalorder %s45, %s46
    %p58 = scmp.eq.s32.totalorder %s15, 1
    %p59 = por %p57, %p58
    %p61 = scmp.ne.s32.totalorder %s46, %s60
    %p62 = scmp.eq.s32.totalorder %s15, 0
    %p63 = por %p61, %p62
    %s65 = sadd.s32 %s64, 1
    %p68 = scmp.eq.s32.totalorder %s9, 1
    %p69 = scmp.ne.s32.totalorder %s64, %s66
    %p70 = scmp.eq.s32.totalorder %s9, 0
    %p71 = por %p69, %p70
    %p72 = scmp.ne.s32.totalorder %s64, %s66
    %p73 = scmp.eq.s32.totalorder %s14, 1
    %p74 = por %p72, %p73
    %p75 = scmp.ne.s32.totalorder %s66, %s67
    %p76 = scmp.eq.s32.totalorder %s14, 0
    %p77 = por %p75, %p76
    %p78 = scmp.ne.s32.totalorder %s66, %s67
    %p79 = scmp.eq.s32.totalorder %s15, 1
    %p80 = por %p78, %p79
    %p82 = scmp.ne.s32.totalorder %s67, %s81
    %p83 = scmp.eq.s32.totalorder %s15, 0
    %p84 = por %p82, %p83
    %s85 = ssub.s32 %s9, %s16
    %p86 = scmp.eq.s32.totalorder %s85, 0
    %s88 = sadd.s32 %s87, 1
    %s89 = scalar_select %p86, %s87, %s88
    %p92 = pneg %p86
    %p93 = scmp.eq.s32.totalorder %s9, 1
    %p94 = por %p92, %p93
    %p95 = scmp.ne.s32.totalorder %s87, %s90
    %p96 = scmp.eq.s32.totalorder %s9, 0
    %p97 = por %p95, %p96
    %p98 = scmp.ne.s32.totalorder %s87, %s90
    %p99 = scmp.eq.s32.totalorder %s14, 1
    %p100 = por %p98, %p99
    %p101 = scmp.ne.s32.totalorder %s90, %s91
    %p102 = scmp.eq.s32.totalorder %s14, 0
    %p103 = por %p101, %p102
    %p104 = scmp.ne.s32.totalorder %s90, %s91
    %p105 = scmp.eq.s32.totalorder %s15, 1
    %p106 = por %p104, %p105
    %p108 = scmp.ne.s32.totalorder %s91, %s107
    %p109 = scmp.eq.s32.totalorder %s15, 0
    %p110 = por %p108, %p109
    %p111 = scmp.le.s32.totalorder 1, %s9
    %p112 = scmp.lt.s32.totalorder %s9, 3
    %p113 = pnand %p111, %p112
    %p114 = pneg %p113
    // Predicated region
    $region9: #{unet_scattering_dynamic_forward.8} parent=5 // pred_check
      _
    $region10: #{unet_scattering_dynamic_forward.8} parent=5 // pred_check_branch
      %116 = sbr.rel (%p113) target = $region12
    $region11: #{unet_scattering_dynamic_forward.8} parent=5 // pred_region
      %s117 = ssub.s32 %s9, 1
      // Predicated region
      $region13: #{unet_scattering_dynamic_forward.8} parent=11 // pred_check
        %p118 = pneg %p56
      $region14: #{unet_scattering_dynamic_forward.8} parent=11 // pred_check_branch
        %120 = sbr.rel (%p118) target = $region16
      $region15: #{unet_scattering_dynamic_forward.8} parent=11 // pred_region
        _
      $region16: #{unet_scattering_dynamic_forward.8} parent=11 // pred_fallthru
        _
      // Predicated region
      $region17: #{unet_scattering_dynamic_forward.8} parent=11 // pred_check
        %p121 = pneg %p77
      $region18: #{unet_scattering_dynamic_forward.8} parent=11 // pred_check_branch
        %123 = sbr.rel (%p121) target = $region20
      $region19: #{unet_scattering_dynamic_forward.8} parent=11 // pred_region
        _
      $region20: #{unet_scattering_dynamic_forward.8} parent=11 // pred_fallthru
        _
    $region12: #{unet_scattering_dynamic_forward.8} parent=5 // pred_fallthru
      _
    %p124 = scmp.lt.s32.totalorder %s9, 2
    // Predicated region
    $region21: #{unet_scattering_dynamic_forward.8} parent=5 // pred_check
      %p125 = pneg %p124
    $region22: #{unet_scattering_dynamic_forward.8} parent=5 // pred_check_branch
      %127 = sbr.rel (%p125) target = $region24
    $region23: #{unet_scattering_dynamic_forward.8} parent=5 // pred_region
      // Predicated region
      $region25: #{unet_scattering_dynamic_forward.8} parent=23 // pred_check
        %p128 = pneg %p29
      $region26: #{unet_scattering_dynamic_forward.8} parent=23 // pred_check_branch
        %130 = sbr.rel (%p128) target = $region28
      $region27: #{unet_scattering_dynamic_forward.8} parent=23 // pred_region
        %p131 = scmp.lt.s32.totalorder %s9, 1
        %s132 = scalar_select %p131, %s9, 1
        %s133 = smul.addr %s132, 11
        %s134 = smul.addr %s133, 4
        %s135 = scalar_lea.vmem %s0, %s134
      $region28: #{unet_scattering_dynamic_forward.8} parent=23 // pred_fallthru
        _
    $region24: #{unet_scattering_dynamic_forward.8} parent=5 // pred_fallthru
      _
    %p136 = scmp.le.s32.totalorder 1, %s9
    %p137 = scmp.lt.s32.totalorder %s9, 3
    %p138 = pnand %p136, %p137
    %p139 = pneg %p138
    // Predicated region
    $region29: #{unet_scattering_dynamic_forward.8} parent=5 // pred_check
      _
    $region30: #{unet_scattering_dynamic_forward.8} parent=5 // pred_check_branch
      %141 = sbr.rel (%p138) target = $region32
    $region31: #{unet_scattering_dynamic_forward.8} parent=5 // pred_region
      %s142 = ssub.s32 %s9, 1
      %p143 = scmp.lt.s32.totalorder %s14, 1
      %s144 = scalar_select %p143, %s14, 1
      %s145 = smul.addr %s144, 11
      %s146 = smul.addr %s145, 4
      %s147 = scalar_lea.vmem %s0, %s146
      %p148 = pneg %p35
      %p149 = pneg %p32
      %p150 = pneg %p56
      %p151 = pneg %p53
      %p152 = pneg %p77
      %p153 = pneg %p74
      %p154 = pneg %p103
      %p155 = pneg %p100
      %p156 = scmp.lt.s32.totalorder %s14, 1
      %s157 = scalar_select %p156, %s14, 1
      %s158 = smul.addr %s157, 8
      %s159 = smul.addr %s158, 4
      %s160 = scalar_lea.vmem %s3, %s159
      %p161 = scmp.lt.s32.totalorder %s14, 1
      %s162 = scalar_select %p161, %s14, 1
      %s163 = smul.addr %s162, 11
      %s164 = smul.addr %s163, 4
      %s165 = scalar_lea.vmem %s0, %s164
      %p166 = scmp.lt.s32.totalorder %s14, 1
      %s167 = scalar_select %p166, %s14, 1
      %s168 = smul.addr %s167, 8
      %s169 = smul.addr %s168, 4
      %s170 = scalar_lea.vmem %s3, %s169
      %v172 = vld [vmem:[%s165] sm:$0xf]
      %v173 = vld [vmem:[%s165 + $0x4] sm:$0xf]
      %v174 = vld [vmem:[%s165 + $0x8] sm:$0xf]
      %v175 = vld [vmem:[%s165 + $0xc] sm:$0xf]
      %v176 = vld [vmem:[%s165 + $0x10] sm:$0xf]
      %v177 = vld [vmem:[%s165 + $0x14] sm:$0xf]
      %v178 = vld [vmem:[%s165 + $0x18] sm:$0xf]
      %v179 = vld [vmem:[%s165 + $0x1c] sm:$0xf]
      %v180 = vld [vmem:[%s1] sm:$0xf]
      %v181 = vld [vmem:[%s1 + $0x4] sm:$0xf]
      %v182 = vld [vmem:[%s1 + $0x8] sm:$0xf]
      %v183 = vld [vmem:[%s1 + $0xc] sm:$0xf]
      %v184 = vld [vmem:[%s1 + $0x10] sm:$0xf]
      %v185 = vld [vmem:[%s1 + $0x14] sm:$0xf]
      %v186 = vld [vmem:[%s1 + $0x18] sm:$0xf]
      %v187 = vld [vmem:[%s1 + $0x1c] sm:$0xf]
      %v188 = vld [vmem:[%s165 + $0x20] sm:$0x1]
      %s189 = scalar_lea.vmem %s1, 32
      %v190 = vld [vmem:[%s189] sm:$0xf]
      %v191 = vld [vmem:[%s189 + $0x4] sm:$0xf]
      %v192 = vld [vmem:[%s189 + $0x8] sm:$0xf]
      %v193 = vld [vmem:[%s189 + $0xc] sm:$0xf]
      %v194 = vld [vmem:[%s189 + $0x10] sm:$0xf]
      %v195 = vld [vmem:[%s189 + $0x14] sm:$0xf]
      %v196 = vld [vmem:[%s189 + $0x18] sm:$0xf]
      %v197 = vld [vmem:[%s189 + $0x1c] sm:$0xf]
      %v198 = vld [vmem:[%s165] sm:$0xe]
      %s199 = scalar_lea.vmem %s1, 64
      %v200 = vld [vmem:[%s199] sm:$0xf]
      %v201 = vld [vmem:[%s199 + $0x4] sm:$0xf]
      %v202 = vld [vmem:[%s199 + $0x8] sm:$0xf]
      %v203 = vld [vmem:[%s199 + $0xc] sm:$0xf]
      %v204 = vld [vmem:[%s199 + $0x10] sm:$0xf]
      %v205 = vld [vmem:[%s199 + $0x14] sm:$0xf]
      %v206 = vld [vmem:[%s199 + $0x18] sm:$0xf]
      %v207 = vld [vmem:[%s199 + $0x1c] sm:$0xf]
      %v208 = vld [vmem:[%s165 + $0x20] sm:$0xf]
      %s209 = scalar_lea.vmem %s1, 96
      %v210 = vld [vmem:[%s209] sm:$0xf]
      %v211 = vld [vmem:[%s209 + $0x4] sm:$0xf]
      %v212 = vld [vmem:[%s209 + $0x8] sm:$0xf]
      %v213 = vld [vmem:[%s209 + $0xc] sm:$0xf]
      %v214 = vld [vmem:[%s209 + $0x10] sm:$0xf]
      %v215 = vld [vmem:[%s209 + $0x14] sm:$0xf]
      %v216 = vld [vmem:[%s209 + $0x18] sm:$0xf]
      %v217 = vld [vmem:[%s209 + $0x1c] sm:$0xf]
      %v226 = vunpack.c.l.b16 %v173
      %v227 = vunpack.c.l.b16 %v174
      %v228 = vunpack.c.l.b16 %v175
      %v229 = vunpack.c.l.b16 %v176
      %v230 = vunpack.c.l.b16 %v177
      %v231 = vunpack.c.l.b16 %v178
      %v232 = vunpack.c.l.b16 %v179
      %v233 = vunpack.c.l.b16 %v208
      %v234 = vpack.c.b16 %v227, %v226
      %v235 = vpack.c.b16 %v229, %v228
      %v236 = vpack.c.b16 %v231, %v230
      %v237 = vpack.c.b16 %v233, %v232
      %v246 = vunpack.c.l.b16 %v210
      %v247 = vunpack.c.l.b16 %v211
      %v248 = vunpack.c.l.b16 %v212
      %v249 = vunpack.c.l.b16 %v213
      %v250 = vunpack.c.l.b16 %v214
      %v251 = vunpack.c.l.b16 %v215
      %v252 = vunpack.c.l.b16 %v216
      %v253 = vunpack.c.l.b16 %v217
      %v254 = vpack.c.b16 %v247, %v246
      %v255 = vpack.c.b16 %v249, %v248
      %v256 = vpack.c.b16 %v251, %v250
      %v257 = vpack.c.b16 %v253, %v252
      %vm262 = vcmask 523264
      %v264 = vsel %vm262, %v234, 0
      %v267 = vsel %vm262, %v235, 0
      %v270 = vsel %vm262, %v236, 0
      %v273 = vsel %vm262, %v237, 0
      %275 = vmatpush.bf16.msra.mxu0 0
      %276 = vmatpush.bf16.msra.mxu0 0
      %277 = vmatpush.bf16.msra.mxu0 0
      %278 = vmatpush.bf16.msra.mxu0 0
      %279 = vmatpush.bf16.msra.mxu0 %v257
      %280 = vmatpush.bf16.msra.mxu0 %v256
      %281 = vmatpush.bf16.msra.mxu0 %v255
      %282 = vmatpush.bf16.msra.mxu0 %v254
      %283 = vmatmul.bf16.gmra.mxu0 %v264
      %v284 = vpop.f32.mrf.mxu0
      %v285 = vadd.f32 0.0, %v284
      %v286 = vpop.f32.mrf.mxu0
      %v287 = vadd.f32 0.0, %v286
      %288 = vmatmul.bf16.gmra.mxu0 %v267
      %v289 = vpop.f32.mrf.mxu0
      %v290 = vadd.f32 0.0, %v289
      %v291 = vpop.f32.mrf.mxu0
      %v292 = vadd.f32 0.0, %v291
      %293 = vmatmul.bf16.gmra.mxu0 %v270
      %v294 = vpop.f32.mrf.mxu0
      %v295 = vadd.f32 0.0, %v294
      %v296 = vpop.f32.mrf.mxu0
      %v297 = vadd.f32 0.0, %v296
      %298 = vmatmul.bf16.gmra.mxu0 %v273
      %v299 = vpop.f32.mrf.mxu0
      %v300 = vadd.f32 0.0, %v299
      %v301 = vpop.f32.mrf.mxu0
      %v302 = vadd.f32 0.0, %v301
      %303 = vdwg.mxu0
      %v305 = vunpack.c.l.b16 %v172
      %v306 = vpack.c.b16 %v226, %v305
      %v307 = vpack.c.b16 %v228, %v227
      %v308 = vpack.c.b16 %v230, %v229
      %v309 = vpack.c.b16 %v232, %v231
      %v318 = vunpack.c.l.b16 %v180
      %v319 = vunpack.c.l.b16 %v181
      %v320 = vunpack.c.l.b16 %v182
      %v321 = vunpack.c.l.b16 %v183
      %v322 = vunpack.c.l.b16 %v184
      %v323 = vunpack.c.l.b16 %v185
      %v324 = vunpack.c.l.b16 %v186
      %v325 = vunpack.c.l.b16 %v187
      %v326 = vpack.c.b16 %v319, %v318
      %v327 = vpack.c.b16 %v321, %v320
      %v328 = vpack.c.b16 %v323, %v322
      %v329 = vpack.c.b16 %v325, %v324
      %v335 = vsel %vm262, %v306, 0
      %v338 = vsel %vm262, %v307, 0
      %v341 = vsel %vm262, %v308, 0
      %v344 = vsel %vm262, %v309, 0
      %346 = vmatpush.bf16.msra.mxu0 0
      %347 = vmatpush.bf16.msra.mxu0 0
      %348 = vmatpush.bf16.msra.mxu0 0
      %349 = vmatpush.bf16.msra.mxu0 0
      %350 = vmatpush.bf16.msra.mxu0 %v329
      %351 = vmatpush.bf16.msra.mxu0 %v328
      %352 = vmatpush.bf16.msra.mxu0 %v327
      %353 = vmatpush.bf16.msra.mxu0 %v326
      %354 = vmatmul.bf16.gmra.mxu0 %v335
      %v355 = vpop.f32.mrf.mxu0
      %v356 = vadd.f32 %v285, %v355
      %v357 = vpop.f32.mrf.mxu0
      %v358 = vadd.f32 %v287, %v357
      %359 = vmatmul.bf16.gmra.mxu0 %v338
      %v360 = vpop.f32.mrf.mxu0
      %v361 = vadd.f32 %v290, %v360
      %v362 = vpop.f32.mrf.mxu0
      %v363 = vadd.f32 %v292, %v362
      %364 = vmatmul.bf16.gmra.mxu0 %v341
      %v365 = vpop.f32.mrf.mxu0
      %v366 = vadd.f32 %v295, %v365
      %v367 = vpop.f32.mrf.mxu0
      %v368 = vadd.f32 %v297, %v367
      %369 = vmatmul.bf16.gmra.mxu0 %v344
      %v370 = vpop.f32.mrf.mxu0
      %v371 = vadd.f32 %v300, %v370
      %v372 = vpop.f32.mrf.mxu0
      %v373 = vadd.f32 %v302, %v372
      %374 = vdwg.mxu0
      %v375 = vld [vmem:[%s165 + $0x4] sm:$0xf]
      %v376 = vld [vmem:[%s165 + $0x8] sm:$0xf]
      %v377 = vld [vmem:[%s165 + $0xc] sm:$0xf]
      %v378 = vld [vmem:[%s165 + $0x10] sm:$0xf]
      %v379 = vld [vmem:[%s165 + $0x14] sm:$0xf]
      %v380 = vld [vmem:[%s165 + $0x18] sm:$0xf]
      %v381 = vld [vmem:[%s165 + $0x1c] sm:$0xf]
      %v382 = vld [vmem:[%s165 + $0x20] sm:$0xf]
      %v383 = vld [vmem:[%s165 + $0x24] sm:$0x1]
      %s384 = scalar_lea.vmem %s1, 128
      %v385 = vld [vmem:[%s384] sm:$0xf]
      %v386 = vld [vmem:[%s384 + $0x4] sm:$0xf]
      %v387 = vld [vmem:[%s384 + $0x8] sm:$0xf]
      %v388 = vld [vmem:[%s384 + $0xc] sm:$0xf]
      %v389 = vld [vmem:[%s384 + $0x10] sm:$0xf]
      %v390 = vld [vmem:[%s384 + $0x14] sm:$0xf]
      %v391 = vld [vmem:[%s384 + $0x18] sm:$0xf]
      %v392 = vld [vmem:[%s384 + $0x1c] sm:$0xf]
      %v402 = vunpack.c.l.b16 %v375
      %v403 = vunpack.c.l.b16 %v376
      %v404 = vunpack.c.l.b16 %v377
      %v405 = vunpack.c.l.b16 %v378
      %v406 = vunpack.c.l.b16 %v379
      %v407 = vunpack.c.l.b16 %v380
      %v408 = vunpack.c.l.b16 %v381
      %v409 = vunpack.c.l.b16 %v382
      %v410 = vunpack.c.l.b16 %v383
      %v411 = vpack.c.b16 %v403, %v402
      %v412 = vpack.c.b16 %v405, %v404
      %v413 = vpack.c.b16 %v407, %v406
      %v414 = vpack.c.b16 %v409, %v408
      %v415 = vpack.c.b16 %v410, %v410
      %vm416 = vsmask.f32 7424
      %v418 = vshrl.u32 %v411, 16
      %v420 = vshll.u32 %v411, 16
      %v422 = vrot.slane %v420, 1
      %v423 = vor.u32 %v418, %v422
      %v425 = vshll.u32 %v412, 16
      %v427 = vrot.slane %v425, 1
      %v428 = vsel %vm416, %v423, %v427
      %v429 = vshrl.u32 %v412, 16
      %v431 = vor.u32 %v429, %v427
      %v433 = vshll.u32 %v413, 16
      %v435 = vrot.slane %v433, 1
      %v436 = vsel %vm416, %v431, %v435
      %v437 = vshrl.u32 %v413, 16
      %v439 = vor.u32 %v437, %v435
      %v441 = vshll.u32 %v414, 16
      %v443 = vrot.slane %v441, 1
      %v444 = vsel %vm416, %v439, %v443
      %v445 = vshrl.u32 %v414, 16
      %v447 = vor.u32 %v445, %v443
      %v449 = vshll.u32 %v415, 16
      %v451 = vrot.slane %v449, 1
      %v452 = vsel %vm416, %v447, %v451
      %v461 = vunpack.c.l.b16 %v385
      %v462 = vunpack.c.l.b16 %v386
      %v463 = vunpack.c.l.b16 %v387
      %v464 = vunpack.c.l.b16 %v388
      %v465 = vunpack.c.l.b16 %v389
      %v466 = vunpack.c.l.b16 %v390
      %v467 = vunpack.c.l.b16 %v391
      %v468 = vunpack.c.l.b16 %v392
      %v469 = vpack.c.b16 %v462, %v461
      %v470 = vpack.c.b16 %v464, %v463
      %v471 = vpack.c.b16 %v466, %v465
      %v472 = vpack.c.b16 %v468, %v467
      %v478 = vsel %vm262, %v428, 0
      %v481 = vsel %vm262, %v436, 0
      %v484 = vsel %vm262, %v444, 0
      %v487 = vsel %vm262, %v452, 0
      %489 = vmatpush.bf16.msra.mxu0 0
      %490 = vmatpush.bf16.msra.mxu0 0
      %491 = vmatpush.bf16.msra.mxu0 0
      %492 = vmatpush.bf16.msra.mxu0 0
      %493 = vmatpush.bf16.msra.mxu0 %v472
      %494 = vmatpush.bf16.msra.mxu0 %v471
      %495 = vmatpush.bf16.msra.mxu0 %v470
      %496 = vmatpush.bf16.msra.mxu0 %v469
      %497 = vmatmul.bf16.gmra.mxu0 %v478
      %v498 = vpop.f32.mrf.mxu0
      %v499 = vadd.f32 0.0, %v498
      %v500 = vpop.f32.mrf.mxu0
      %v501 = vadd.f32 0.0, %v500
      %502 = vmatmul.bf16.gmra.mxu0 %v481
      %v503 = vpop.f32.mrf.mxu0
      %v504 = vadd.f32 0.0, %v503
      %v505 = vpop.f32.mrf.mxu0
      %v506 = vadd.f32 0.0, %v505
      %507 = vmatmul.bf16.gmra.mxu0 %v484
      %v508 = vpop.f32.mrf.mxu0
      %v509 = vadd.f32 0.0, %v508
      %v510 = vpop.f32.mrf.mxu0
      %v511 = vadd.f32 0.0, %v510
      %512 = vmatmul.bf16.gmra.mxu0 %v487
      %v513 = vpop.f32.mrf.mxu0
      %v514 = vadd.f32 0.0, %v513
      %v515 = vpop.f32.mrf.mxu0
      %v516 = vadd.f32 0.0, %v515
      %517 = vdwg.mxu0
      %v519 = vunpack.c.l.b16 %v188
      %v520 = vpack.c.b16 %v519, %v519
      %v521 = vshrl.u32 %v306, 16
      %v523 = vshll.u32 %v306, 16
      %v525 = vrot.slane %v523, 1
      %v526 = vor.u32 %v521, %v525
      %v527 = vshll.u32 %v307, 16
      %v529 = vrot.slane %v527, 1
      %v530 = vsel %vm416, %v526, %v529
      %v531 = vshrl.u32 %v307, 16
      %v533 = vor.u32 %v531, %v529
      %v534 = vshll.u32 %v308, 16
      %v536 = vrot.slane %v534, 1
      %v537 = vsel %vm416, %v533, %v536
      %v538 = vshrl.u32 %v308, 16
      %v540 = vor.u32 %v538, %v536
      %v541 = vshll.u32 %v309, 16
      %v543 = vrot.slane %v541, 1
      %v544 = vsel %vm416, %v540, %v543
      %v545 = vshrl.u32 %v309, 16
      %v547 = vor.u32 %v545, %v543
      %v549 = vshll.u32 %v520, 16
      %v551 = vrot.slane %v549, 1
      %v552 = vsel %vm416, %v547, %v551
      %v561 = vunpack.c.l.b16 %v190
      %v562 = vunpack.c.l.b16 %v191
      %v563 = vunpack.c.l.b16 %v192
      %v564 = vunpack.c.l.b16 %v193
      %v565 = vunpack.c.l.b16 %v194
      %v566 = vunpack.c.l.b16 %v195
      %v567 = vunpack.c.l.b16 %v196
      %v568 = vunpack.c.l.b16 %v197
      %v569 = vpack.c.b16 %v562, %v561
      %v570 = vpack.c.b16 %v564, %v563
      %v571 = vpack.c.b16 %v566, %v565
      %v572 = vpack.c.b16 %v568, %v567
      %v578 = vsel %vm262, %v530, 0
      %v581 = vsel %vm262, %v537, 0
      %v584 = vsel %vm262, %v544, 0
      %v587 = vsel %vm262, %v552, 0
      %589 = vmatpush.bf16.msra.mxu0 0
      %590 = vmatpush.bf16.msra.mxu0 0
      %591 = vmatpush.bf16.msra.mxu0 0
      %592 = vmatpush.bf16.msra.mxu0 0
      %593 = vmatpush.bf16.msra.mxu0 %v572
      %594 = vmatpush.bf16.msra.mxu0 %v571
      %595 = vmatpush.bf16.msra.mxu0 %v570
      %596 = vmatpush.bf16.msra.mxu0 %v569
      %597 = vmatmul.bf16.gmra.mxu0 %v578
      %v598 = vpop.f32.mrf.mxu0
      %v599 = vadd.f32 %v499, %v598
      %v600 = vpop.f32.mrf.mxu0
      %v601 = vadd.f32 %v501, %v600
      %602 = vmatmul.bf16.gmra.mxu0 %v581
      %v603 = vpop.f32.mrf.mxu0
      %v604 = vadd.f32 %v504, %v603
      %v605 = vpop.f32.mrf.mxu0
      %v606 = vadd.f32 %v506, %v605
      %607 = vmatmul.bf16.gmra.mxu0 %v584
      %v608 = vpop.f32.mrf.mxu0
      %v609 = vadd.f32 %v509, %v608
      %v610 = vpop.f32.mrf.mxu0
      %v611 = vadd.f32 %v511, %v610
      %612 = vmatmul.bf16.gmra.mxu0 %v587
      %v613 = vpop.f32.mrf.mxu0
      %v614 = vadd.f32 %v514, %v613
      %v615 = vpop.f32.mrf.mxu0
      %v616 = vadd.f32 %v516, %v615
      %617 = vdwg.mxu0
      %v618 = vld [vmem:[%s165 + $0x4] sm:$0xe]
      %s619 = scalar_lea.vmem %s1, 160
      %v620 = vld [vmem:[%s619] sm:$0xf]
      %v621 = vld [vmem:[%s619 + $0x4] sm:$0xf]
      %v622 = vld [vmem:[%s619 + $0x8] sm:$0xf]
      %v623 = vld [vmem:[%s619 + $0xc] sm:$0xf]
      %v624 = vld [vmem:[%s619 + $0x10] sm:$0xf]
      %v625 = vld [vmem:[%s619 + $0x14] sm:$0xf]
      %v626 = vld [vmem:[%s619 + $0x18] sm:$0xf]
      %v627 = vld [vmem:[%s619 + $0x1c] sm:$0xf]
      %v629 = vunpack.c.l.b16 %v618
      %v630 = vpack.c.b16 %v403, %v629
      %vm631 = vcmask 1046528
      %v632 = vrot.slane %v630, 1
      %v633 = vrot.slane %v412, 1
      %v634 = vsel %vm631, %v632, %v633
      %v635 = vrot.slane %v413, 1
      %v636 = vsel %vm631, %v633, %v635
      %v637 = vrot.slane %v414, 1
      %v638 = vsel %vm631, %v635, %v637
      %v639 = vrot.slane %v415, 1
      %v640 = vsel %vm631, %v637, %v639
      %v649 = vunpack.c.l.b16 %v620
      %v650 = vunpack.c.l.b16 %v621
      %v651 = vunpack.c.l.b16 %v622
      %v652 = vunpack.c.l.b16 %v623
      %v653 = vunpack.c.l.b16 %v624
      %v654 = vunpack.c.l.b16 %v625
      %v655 = vunpack.c.l.b16 %v626
      %v656 = vunpack.c.l.b16 %v627
      %v657 = vpack.c.b16 %v650, %v649
      %v658 = vpack.c.b16 %v652, %v651
      %v659 = vpack.c.b16 %v654, %v653
      %v660 = vpack.c.b16 %v656, %v655
      %v666 = vsel %vm262, %v634, 0
      %v669 = vsel %vm262, %v636, 0
      %v672 = vsel %vm262, %v638, 0
      %v675 = vsel %vm262, %v640, 0
      %677 = vmatpush.bf16.msra.mxu0 0
      %678 = vmatpush.bf16.msra.mxu0 0
      %679 = vmatpush.bf16.msra.mxu0 0
      %680 = vmatpush.bf16.msra.mxu0 0
      %681 = vmatpush.bf16.msra.mxu0 %v660
      %682 = vmatpush.bf16.msra.mxu0 %v659
      %683 = vmatpush.bf16.msra.mxu0 %v658
      %684 = vmatpush.bf16.msra.mxu0 %v657
      %685 = vmatmul.bf16.gmra.mxu0 %v666
      %v686 = vpop.f32.mrf.mxu0
      %v687 = vadd.f32 0.0, %v686
      %v688 = vpop.f32.mrf.mxu0
      %v689 = vadd.f32 0.0, %v688
      %690 = vmatmul.bf16.gmra.mxu0 %v669
      %v691 = vpop.f32.mrf.mxu0
      %v692 = vadd.f32 0.0, %v691
      %v693 = vpop.f32.mrf.mxu0
      %v694 = vadd.f32 0.0, %v693
      %695 = vmatmul.bf16.gmra.mxu0 %v672
      %v696 = vpop.f32.mrf.mxu0
      %v697 = vadd.f32 0.0, %v696
      %v698 = vpop.f32.mrf.mxu0
      %v699 = vadd.f32 0.0, %v698
      %700 = vmatmul.bf16.gmra.mxu0 %v675
      %v701 = vpop.f32.mrf.mxu0
      %v702 = vadd.f32 0.0, %v701
      %v703 = vpop.f32.mrf.mxu0
      %v704 = vadd.f32 0.0, %v703
      %705 = vdwg.mxu0
      %v707 = vunpack.c.l.b16 %v198
      %v708 = vpack.c.b16 %v226, %v707
      %v709 = vrot.slane %v708, 1
      %v710 = vrot.slane %v307, 1
      %v711 = vsel %vm631, %v709, %v710
      %v712 = vrot.slane %v308, 1
      %v713 = vsel %vm631, %v710, %v712
      %v714 = vrot.slane %v309, 1
      %v715 = vsel %vm631, %v712, %v714
      %v716 = vrot.slane %v520, 1
      %v717 = vsel %vm631, %v714, %v716
      %v726 = vunpack.c.l.b16 %v200
      %v727 = vunpack.c.l.b16 %v201
      %v728 = vunpack.c.l.b16 %v202
      %v729 = vunpack.c.l.b16 %v203
      %v730 = vunpack.c.l.b16 %v204
      %v731 = vunpack.c.l.b16 %v205
      %v732 = vunpack.c.l.b16 %v206
      %v733 = vunpack.c.l.b16 %v207
      %v734 = vpack.c.b16 %v727, %v726
      %v735 = vpack.c.b16 %v729, %v728
      %v736 = vpack.c.b16 %v731, %v730
      %v737 = vpack.c.b16 %v733, %v732
      %v743 = vsel %vm262, %v711, 0
      %v746 = vsel %vm262, %v713, 0
      %v749 = vsel %vm262, %v715, 0
      %v752 = vsel %vm262, %v717, 0
      %754 = vmatpush.bf16.msra.mxu0 0
      %755 = vmatpush.bf16.msra.mxu0 0
      %756 = vmatpush.bf16.msra.mxu0 0
      %757 = vmatpush.bf16.msra.mxu0 0
      %758 = vmatpush.bf16.msra.mxu0 %v737
      %759 = vmatpush.bf16.msra.mxu0 %v736
      %760 = vmatpush.bf16.msra.mxu0 %v735
      %761 = vmatpush.bf16.msra.mxu0 %v734
      %762 = vmatmul.bf16.gmra.mxu0 %v743
      %v763 = vpop.f32.mrf.mxu0
      %v764 = vadd.f32 %v687, %v763
      %v765 = vpop.f32.mrf.mxu0
      %v766 = vadd.f32 %v689, %v765
      %767 = vmatmul.bf16.gmra.mxu0 %v746
      %v768 = vpop.f32.mrf.mxu0
      %v769 = vadd.f32 %v692, %v768
      %v770 = vpop.f32.mrf.mxu0
      %v771 = vadd.f32 %v694, %v770
      %772 = vmatmul.bf16.gmra.mxu0 %v749
      %v773 = vpop.f32.mrf.mxu0
      %v774 = vadd.f32 %v697, %v773
      %v775 = vpop.f32.mrf.mxu0
      %v776 = vadd.f32 %v699, %v775
      %777 = vmatmul.bf16.gmra.mxu0 %v752
      %v778 = vpop.f32.mrf.mxu0
      %v779 = vadd.f32 %v702, %v778
      %v780 = vpop.f32.mrf.mxu0
      %v781 = vadd.f32 %v704, %v780
      %782 = vdwg.mxu0
      %v783 = vld [vmem:[%s165 + $0x24] sm:$0xf]
      %s784 = scalar_lea.vmem %s1, 192
      %v785 = vld [vmem:[%s784] sm:$0xf]
      %v786 = vld [vmem:[%s784 + $0x4] sm:$0xf]
      %v787 = vld [vmem:[%s784 + $0x8] sm:$0xf]
      %v788 = vld [vmem:[%s784 + $0xc] sm:$0xf]
      %v789 = vld [vmem:[%s784 + $0x10] sm:$0xf]
      %v790 = vld [vmem:[%s784 + $0x14] sm:$0xf]
      %v791 = vld [vmem:[%s784 + $0x18] sm:$0xf]
      %v792 = vld [vmem:[%s784 + $0x1c] sm:$0xf]
      %v794 = vunpack.c.l.b16 %v783
      %v795 = vpack.c.b16 %v404, %v403
      %v796 = vpack.c.b16 %v406, %v405
      %v797 = vpack.c.b16 %v408, %v407
      %v798 = vpack.c.b16 %v794, %v409
      %v807 = vunpack.c.l.b16 %v785
      %v808 = vunpack.c.l.b16 %v786
      %v809 = vunpack.c.l.b16 %v787
      %v810 = vunpack.c.l.b16 %v788
      %v811 = vunpack.c.l.b16 %v789
      %v812 = vunpack.c.l.b16 %v790
      %v813 = vunpack.c.l.b16 %v791
      %v814 = vunpack.c.l.b16 %v792
      %v815 = vpack.c.b16 %v808, %v807
      %v816 = vpack.c.b16 %v810, %v809
      %v817 = vpack.c.b16 %v812, %v811
      %v818 = vpack.c.b16 %v814, %v813
      %v824 = vsel %vm262, %v795, 0
      %v827 = vsel %vm262, %v796, 0
      %v830 = vsel %vm262, %v797, 0
      %v833 = vsel %vm262, %v798, 0
      %835 = vmatpush.bf16.msra.mxu0 0
      %836 = vmatpush.bf16.msra.mxu0 0
      %837 = vmatpush.bf16.msra.mxu0 0
      %838 = vmatpush.bf16.msra.mxu0 0
      %839 = vmatpush.bf16.msra.mxu0 %v818
      %840 = vmatpush.bf16.msra.mxu0 %v817
      %841 = vmatpush.bf16.msra.mxu0 %v816
      %842 = vmatpush.bf16.msra.mxu0 %v815
      %843 = vmatmul.bf16.gmra.mxu0 %v824
      %v844 = vpop.f32.mrf.mxu0
      %v845 = vadd.f32 0.0, %v844
      %v846 = vpop.f32.mrf.mxu0
      %v847 = vadd.f32 0.0, %v846
      %848 = vmatmul.bf16.gmra.mxu0 %v827
      %v849 = vpop.f32.mrf.mxu0
      %v850 = vadd.f32 0.0, %v849
      %v851 = vpop.f32.mrf.mxu0
      %v852 = vadd.f32 0.0, %v851
      %853 = vmatmul.bf16.gmra.mxu0 %v830
      %v854 = vpop.f32.mrf.mxu0
      %v855 = vadd.f32 0.0, %v854
      %v856 = vpop.f32.mrf.mxu0
      %v857 = vadd.f32 0.0, %v856
      %858 = vmatmul.bf16.gmra.mxu0 %v833
      %v859 = vpop.f32.mrf.mxu0
      %v860 = vadd.f32 0.0, %v859
      %v861 = vpop.f32.mrf.mxu0
      %v862 = vadd.f32 0.0, %v861
      %863 = vdwg.mxu0
      %v864 = vadd.f32 %v356, %v845
      %v865 = vadd.f32 %v358, %v847
      %v866 = vadd.f32 %v361, %v850
      %v867 = vadd.f32 %v363, %v852
      %v868 = vadd.f32 %v366, %v855
      %v869 = vadd.f32 %v368, %v857
      %v870 = vadd.f32 %v371, %v860
      %v871 = vadd.f32 %v373, %v862
      %v872 = vld [vmem:[%s165 + $0x8] sm:$0xf]
      %v873 = vld [vmem:[%s165 + $0xc] sm:$0xf]
      %v874 = vld [vmem:[%s165 + $0x10] sm:$0xf]
      %v875 = vld [vmem:[%s165 + $0x14] sm:$0xf]
      %v876 = vld [vmem:[%s165 + $0x18] sm:$0xf]
      %v877 = vld [vmem:[%s165 + $0x1c] sm:$0xf]
      %v878 = vld [vmem:[%s165 + $0x20] sm:$0xf]
      %v879 = vld [vmem:[%s165 + $0x24] sm:$0xf]
      %v880 = vld [vmem:[%s165 + $0x28] sm:$0x1]
      %s881 = scalar_lea.vmem %s1, 224
      %v882 = vld [vmem:[%s881] sm:$0xf]
      %v883 = vld [vmem:[%s881 + $0x4] sm:$0xf]
      %v884 = vld [vmem:[%s881 + $0x8] sm:$0xf]
      %v885 = vld [vmem:[%s881 + $0xc] sm:$0xf]
      %v886 = vld [vmem:[%s881 + $0x10] sm:$0xf]
      %v887 = vld [vmem:[%s881 + $0x14] sm:$0xf]
      %v888 = vld [vmem:[%s881 + $0x18] sm:$0xf]
      %v889 = vld [vmem:[%s881 + $0x1c] sm:$0xf]
      %v899 = vunpack.c.l.b16 %v872
      %v900 = vunpack.c.l.b16 %v873
      %v901 = vunpack.c.l.b16 %v874
      %v902 = vunpack.c.l.b16 %v875
      %v903 = vunpack.c.l.b16 %v876
      %v904 = vunpack.c.l.b16 %v877
      %v905 = vunpack.c.l.b16 %v878
      %v906 = vunpack.c.l.b16 %v879
      %v907 = vunpack.c.l.b16 %v880
      %v908 = vpack.c.b16 %v900, %v899
      %v909 = vpack.c.b16 %v902, %v901
      %v910 = vpack.c.b16 %v904, %v903
      %v911 = vpack.c.b16 %v906, %v905
      %v912 = vpack.c.b16 %v907, %v907
      %v914 = vshrl.u32 %v908, 16
      %v916 = vshll.u32 %v908, 16
      %v918 = vrot.slane %v916, 1
      %v919 = vor.u32 %v914, %v918
      %v921 = vshll.u32 %v909, 16
      %v923 = vrot.slane %v921, 1
      %v924 = vsel %vm416, %v919, %v923
      %v925 = vshrl.u32 %v909, 16
      %v927 = vor.u32 %v925, %v923
      %v929 = vshll.u32 %v910, 16
      %v931 = vrot.slane %v929, 1
      %v932 = vsel %vm416, %v927, %v931
      %v933 = vshrl.u32 %v910, 16
      %v935 = vor.u32 %v933, %v931
      %v937 = vshll.u32 %v911, 16
      %v939 = vrot.slane %v937, 1
      %v940 = vsel %vm416, %v935, %v939
      %v941 = vshrl.u32 %v911, 16
      %v943 = vor.u32 %v941, %v939
      %v945 = vshll.u32 %v912, 16
      %v947 = vrot.slane %v945, 1
      %v948 = vsel %vm416, %v943, %v947
      %v957 = vunpack.c.l.b16 %v882
      %v958 = vunpack.c.l.b16 %v883
      %v959 = vunpack.c.l.b16 %v884
      %v960 = vunpack.c.l.b16 %v885
      %v961 = vunpack.c.l.b16 %v886
      %v962 = vunpack.c.l.b16 %v887
      %v963 = vunpack.c.l.b16 %v888
      %v964 = vunpack.c.l.b16 %v889
      %v965 = vpack.c.b16 %v958, %v957
      %v966 = vpack.c.b16 %v960, %v959
      %v967 = vpack.c.b16 %v962, %v961
      %v968 = vpack.c.b16 %v964, %v963
      %v974 = vsel %vm262, %v924, 0
      %v977 = vsel %vm262, %v932, 0
      %v980 = vsel %vm262, %v940, 0
      %v983 = vsel %vm262, %v948, 0
      %985 = vmatpush.bf16.msra.mxu0 0
      %986 = vmatpush.bf16.msra.mxu0 0
      %987 = vmatpush.bf16.msra.mxu0 0
      %988 = vmatpush.bf16.msra.mxu0 0
      %989 = vmatpush.bf16.msra.mxu0 %v968
      %990 = vmatpush.bf16.msra.mxu0 %v967
      %991 = vmatpush.bf16.msra.mxu0 %v966
      %992 = vmatpush.bf16.msra.mxu0 %v965
      %993 = vmatmul.bf16.gmra.mxu0 %v974
      %v994 = vpop.f32.mrf.mxu0
      %v995 = vadd.f32 0.0, %v994
      %v996 = vpop.f32.mrf.mxu0
      %v997 = vadd.f32 0.0, %v996
      %998 = vmatmul.bf16.gmra.mxu0 %v977
      %v999 = vpop.f32.mrf.mxu0
      %v1000 = vadd.f32 0.0, %v999
      %v1001 = vpop.f32.mrf.mxu0
      %v1002 = vadd.f32 0.0, %v1001
      %1003 = vmatmul.bf16.gmra.mxu0 %v980
      %v1004 = vpop.f32.mrf.mxu0
      %v1005 = vadd.f32 0.0, %v1004
      %v1006 = vpop.f32.mrf.mxu0
      %v1007 = vadd.f32 0.0, %v1006
      %1008 = vmatmul.bf16.gmra.mxu0 %v983
      %v1009 = vpop.f32.mrf.mxu0
      %v1010 = vadd.f32 0.0, %v1009
      %v1011 = vpop.f32.mrf.mxu0
      %v1012 = vadd.f32 0.0, %v1011
      %1013 = vdwg.mxu0
      %v1014 = vadd.f32 %v599, %v995
      %v1015 = vadd.f32 %v601, %v997
      %v1016 = vadd.f32 %v604, %v1000
      %v1017 = vadd.f32 %v606, %v1002
      %v1018 = vadd.f32 %v609, %v1005
      %v1019 = vadd.f32 %v611, %v1007
      %v1020 = vadd.f32 %v614, %v1010
      %v1021 = vadd.f32 %v616, %v1012
      %v1022 = vld [vmem:[%s165 + $0x8] sm:$0xe]
      %s1023 = scalar_lea.vmem %s1, 256
      %v1024 = vld [vmem:[%s1023] sm:$0xf]
      %v1025 = vld [vmem:[%s1023 + $0x4] sm:$0xf]
      %v1026 = vld [vmem:[%s1023 + $0x8] sm:$0xf]
      %v1027 = vld [vmem:[%s1023 + $0xc] sm:$0xf]
      %v1028 = vld [vmem:[%s1023 + $0x10] sm:$0xf]
      %v1029 = vld [vmem:[%s1023 + $0x14] sm:$0xf]
      %v1030 = vld [vmem:[%s1023 + $0x18] sm:$0xf]
      %v1031 = vld [vmem:[%s1023 + $0x1c] sm:$0xf]
      %v1033 = vunpack.c.l.b16 %v1022
      %v1034 = vpack.c.b16 %v900, %v1033
      %v1035 = vrot.slane %v1034, 1
      %v1036 = vrot.slane %v909, 1
      %v1037 = vsel %vm631, %v1035, %v1036
      %v1038 = vrot.slane %v910, 1
      %v1039 = vsel %vm631, %v1036, %v1038
      %v1040 = vrot.slane %v911, 1
      %v1041 = vsel %vm631, %v1038, %v1040
      %v1042 = vrot.slane %v912, 1
      %v1043 = vsel %vm631, %v1040, %v1042
      %v1052 = vunpack.c.l.b16 %v1024
      %v1053 = vunpack.c.l.b16 %v1025
      %v1054 = vunpack.c.l.b16 %v1026
      %v1055 = vunpack.c.l.b16 %v1027
      %v1056 = vunpack.c.l.b16 %v1028
      %v1057 = vunpack.c.l.b16 %v1029
      %v1058 = vunpack.c.l.b16 %v1030
      %v1059 = vunpack.c.l.b16 %v1031
      %v1060 = vpack.c.b16 %v1053, %v1052
      %v1061 = vpack.c.b16 %v1055, %v1054
      %v1062 = vpack.c.b16 %v1057, %v1056
      %v1063 = vpack.c.b16 %v1059, %v1058
      %v1069 = vsel %vm262, %v1037, 0
      %v1072 = vsel %vm262, %v1039, 0
      %v1075 = vsel %vm262, %v1041, 0
      %v1078 = vsel %vm262, %v1043, 0
      %1080 = vmatpush.bf16.msra.mxu0 0
      %1081 = vmatpush.bf16.msra.mxu0 0
      %1082 = vmatpush.bf16.msra.mxu0 0
      %1083 = vmatpush.bf16.msra.mxu0 0
      %1084 = vmatpush.bf16.msra.mxu0 %v1063
      %1085 = vmatpush.bf16.msra.mxu0 %v1062
      %1086 = vmatpush.bf16.msra.mxu0 %v1061
      %1087 = vmatpush.bf16.msra.mxu0 %v1060
      %1088 = vmatmul.bf16.gmra.mxu0 %v1069
      %v1089 = vpop.f32.mrf.mxu0
      %v1090 = vadd.f32 0.0, %v1089
      %v1091 = vpop.f32.mrf.mxu0
      %v1092 = vadd.f32 0.0, %v1091
      %1093 = vmatmul.bf16.gmra.mxu0 %v1072
      %v1094 = vpop.f32.mrf.mxu0
      %v1095 = vadd.f32 0.0, %v1094
      %v1096 = vpop.f32.mrf.mxu0
      %v1097 = vadd.f32 0.0, %v1096
      %1098 = vmatmul.bf16.gmra.mxu0 %v1075
      %v1099 = vpop.f32.mrf.mxu0
      %v1100 = vadd.f32 0.0, %v1099
      %v1101 = vpop.f32.mrf.mxu0
      %v1102 = vadd.f32 0.0, %v1101
      %1103 = vmatmul.bf16.gmra.mxu0 %v1078
      %v1104 = vpop.f32.mrf.mxu0
      %v1105 = vadd.f32 0.0, %v1104
      %v1106 = vpop.f32.mrf.mxu0
      %v1107 = vadd.f32 0.0, %v1106
      %1108 = vdwg.mxu0
      %v1109 = vadd.f32 %v764, %v1090
      %v1110 = vadd.f32 %v766, %v1092
      %v1111 = vadd.f32 %v769, %v1095
      %v1112 = vadd.f32 %v771, %v1097
      %v1113 = vadd.f32 %v774, %v1100
      %v1114 = vadd.f32 %v776, %v1102
      %v1115 = vadd.f32 %v779, %v1105
      %v1116 = vadd.f32 %v781, %v1107
      %v1117 = vlaneseq
      %v1118 = vshrl.u32 %v1117, 7
      %v1119 = vadd.s32 %v1118, 8
      %v1120 = vadd.s32 %v1118, 16
      %v1121 = vadd.s32 %v1118, 24
      %v1122 = vadd.s32 %v1118, 32
      %v1123 = vadd.s32 %v1118, 40
      %v1124 = vadd.s32 %v1118, 48
      %v1125 = vadd.s32 %v1118, 56
      %vm1126 = vcmp.lt.s32.totalorder %v1118, 0
      %v1127 = vsub.s32 0, %v1118
      %v1128 = vsel %vm1126, %v1127, %v1118
      %v1129 = vshrl.u32 %v1128, 3
      %v1130 = vand.u32 %v1128, 7
      %v1131 = vsub.s32 0, %v1130
      %v1132 = vsel %vm1126, %v1131, %v1130
      %vm1133 = vcmp.lt.s32.totalorder %v1119, 0
      %v1134 = vsub.s32 0, %v1119
      %v1135 = vsel %vm1133, %v1134, %v1119
      %v1136 = vshrl.u32 %v1135, 3
      %v1137 = vand.u32 %v1135, 7
      %v1138 = vsub.s32 0, %v1137
      %v1139 = vsel %vm1133, %v1138, %v1137
      %vm1140 = vcmp.lt.s32.totalorder %v1120, 0
      %v1141 = vsub.s32 0, %v1120
      %v1142 = vsel %vm1140, %v1141, %v1120
      %v1143 = vshrl.u32 %v1142, 3
      %v1144 = vand.u32 %v1142, 7
      %v1145 = vsub.s32 0, %v1144
      %v1146 = vsel %vm1140, %v1145, %v1144
      %vm1147 = vcmp.lt.s32.totalorder %v1121, 0
      %v1148 = vsub.s32 0, %v1121
      %v1149 = vsel %vm1147, %v1148, %v1121
      %v1150 = vshrl.u32 %v1149, 3
      %v1151 = vand.u32 %v1149, 7
      %v1152 = vsub.s32 0, %v1151
      %v1153 = vsel %vm1147, %v1152, %v1151
      %vm1154 = vcmp.lt.s32.totalorder %v1122, 0
      %v1155 = vsub.s32 0, %v1122
      %v1156 = vsel %vm1154, %v1155, %v1122
      %v1157 = vshrl.u32 %v1156, 3
      %v1158 = vand.u32 %v1156, 7
      %v1159 = vsub.s32 0, %v1158
      %v1160 = vsel %vm1154, %v1159, %v1158
      %vm1161 = vcmp.lt.s32.totalorder %v1123, 0
      %v1162 = vsub.s32 0, %v1123
      %v1163 = vsel %vm1161, %v1162, %v1123
      %v1164 = vshrl.u32 %v1163, 3
      %v1165 = vand.u32 %v1163, 7
      %v1166 = vsub.s32 0, %v1165
      %v1167 = vsel %vm1161, %v1166, %v1165
      %vm1168 = vcmp.lt.s32.totalorder %v1124, 0
      %v1169 = vsub.s32 0, %v1124
      %v1170 = vsel %vm1168, %v1169, %v1124
      %v1171 = vshrl.u32 %v1170, 3
      %v1172 = vand.u32 %v1170, 7
      %v1173 = vsub.s32 0, %v1172
      %v1174 = vsel %vm1168, %v1173, %v1172
      %vm1175 = vcmp.lt.s32.totalorder %v1125, 0
      %v1176 = vsub.s32 0, %v1125
      %v1177 = vsel %vm1175, %v1176, %v1125
      %v1178 = vshrl.u32 %v1177, 3
      %v1179 = vand.u32 %v1177, 7
      %v1180 = vsub.s32 0, %v1179
      %v1181 = vsel %vm1175, %v1180, %v1179
      %vm1182 = vcmp.ne.s32.totalorder %v1132, 0
      %vm1183 = vcmp.ne.s32.totalorder %v1139, 0
      %vm1184 = vcmp.ne.s32.totalorder %v1146, 0
      %vm1185 = vcmp.ne.s32.totalorder %v1153, 0
      %vm1186 = vcmp.ne.s32.totalorder %v1160, 0
      %vm1187 = vcmp.ne.s32.totalorder %v1167, 0
      %vm1188 = vcmp.ne.s32.totalorder %v1174, 0
      %vm1189 = vcmp.ne.s32.totalorder %v1181, 0
      %vm1190 = vcmp.lt.s32.totalorder %v1132, 0
      %vm1191 = vcmp.lt.s32.totalorder %v1139, 0
      %vm1192 = vcmp.lt.s32.totalorder %v1146, 0
      %vm1193 = vcmp.lt.s32.totalorder %v1153, 0
      %vm1194 = vcmp.lt.s32.totalorder %v1160, 0
      %vm1195 = vcmp.lt.s32.totalorder %v1167, 0
      %vm1196 = vcmp.lt.s32.totalorder %v1174, 0
      %vm1197 = vcmp.lt.s32.totalorder %v1181, 0
      %vm1198 = vmand %vm1190, %vm1182
      %vm1199 = vmand %vm1191, %vm1183
      %vm1200 = vmand %vm1192, %vm1184
      %vm1201 = vmand %vm1193, %vm1185
      %vm1202 = vmand %vm1194, %vm1186
      %vm1203 = vmand %vm1195, %vm1187
      %vm1204 = vmand %vm1196, %vm1188
      %vm1205 = vmand %vm1197, %vm1189
      %v1206 = vadd.s32 %v1132, 8
      %v1207 = vadd.s32 %v1139, 8
      %v1208 = vadd.s32 %v1146, 8
      %v1209 = vadd.s32 %v1153, 8
      %v1210 = vadd.s32 %v1160, 8
      %v1211 = vadd.s32 %v1167, 8
      %v1212 = vadd.s32 %v1174, 8
      %v1213 = vadd.s32 %v1181, 8
      %v1214 = vsel %vm1198, %v1206, %v1132
      %v1215 = vsel %vm1199, %v1207, %v1139
      %v1216 = vsel %vm1200, %v1208, %v1146
      %v1217 = vsel %vm1201, %v1209, %v1153
      %v1218 = vsel %vm1202, %v1210, %v1160
      %v1219 = vsel %vm1203, %v1211, %v1167
      %v1220 = vsel %vm1204, %v1212, %v1174
      %v1221 = vsel %vm1205, %v1213, %v1181
      %vm1222 = vcmp.eq.s32.totalorder %v1214, 0
      %vm1223 = vcmp.eq.s32.totalorder %v1215, 0
      %vm1224 = vcmp.eq.s32.totalorder %v1216, 0
      %vm1225 = vcmp.eq.s32.totalorder %v1217, 0
      %vm1226 = vcmp.eq.s32.totalorder %v1218, 0
      %vm1227 = vcmp.eq.s32.totalorder %v1219, 0
      %vm1228 = vcmp.eq.s32.totalorder %v1220, 0
      %vm1229 = vcmp.eq.s32.totalorder %v1221, 0
      %v1230 = vsel %vm1222, 1, 0
      %v1231 = vsel %vm1223, 1, 0
      %v1232 = vsel %vm1224, 1, 0
      %v1233 = vsel %vm1225, 1, 0
      %v1234 = vsel %vm1226, 1, 0
      %v1235 = vsel %vm1227, 1, 0
      %v1236 = vsel %vm1228, 1, 0
      %v1237 = vsel %vm1229, 1, 0
      %vm1238 = vcmp.eq.s32.totalorder %v1230, 1
      %vm1239 = vcmp.eq.s32.totalorder %v1231, 1
      %vm1240 = vcmp.eq.s32.totalorder %v1232, 1
      %vm1241 = vcmp.eq.s32.totalorder %v1233, 1
      %vm1242 = vcmp.eq.s32.totalorder %v1234, 1
      %vm1243 = vcmp.eq.s32.totalorder %v1235, 1
      %vm1244 = vcmp.eq.s32.totalorder %v1236, 1
      %vm1245 = vcmp.eq.s32.totalorder %v1237, 1
      %v1246 = vsel %vm1238, 0.0, %v864
      %v1247 = vsel %vm1239, 0.0, %v865
      %v1248 = vsel %vm1240, 0.0, %v866
      %v1249 = vsel %vm1241, 0.0, %v867
      %v1250 = vsel %vm1242, 0.0, %v868
      %v1251 = vsel %vm1243, 0.0, %v869
      %v1252 = vsel %vm1244, 0.0, %v870
      %v1253 = vsel %vm1245, 0.0, %v871
      %v1254 = vadd.f32 %v1246, %v1014
      %v1255 = vadd.f32 %v1247, %v1015
      %v1256 = vadd.f32 %v1248, %v1016
      %v1257 = vadd.f32 %v1249, %v1017
      %v1258 = vadd.f32 %v1250, %v1018
      %v1259 = vadd.f32 %v1251, %v1019
      %v1260 = vadd.f32 %v1252, %v1020
      %v1261 = vadd.f32 %v1253, %v1021
      %vm1262 = vcmp.eq.s32.totalorder %v1214, 7
      %vm1263 = vcmp.eq.s32.totalorder %v1215, 7
      %vm1264 = vcmp.eq.s32.totalorder %v1216, 7
      %vm1265 = vcmp.eq.s32.totalorder %v1217, 7
      %vm1266 = vcmp.eq.s32.totalorder %v1218, 7
      %vm1267 = vcmp.eq.s32.totalorder %v1219, 7
      %vm1268 = vcmp.eq.s32.totalorder %v1220, 7
      %vm1269 = vcmp.eq.s32.totalorder %v1221, 7
      %v1270 = vsel %vm1262, 1, 0
      %v1271 = vsel %vm1263, 1, 0
      %v1272 = vsel %vm1264, 1, 0
      %v1273 = vsel %vm1265, 1, 0
      %v1274 = vsel %vm1266, 1, 0
      %v1275 = vsel %vm1267, 1, 0
      %v1276 = vsel %vm1268, 1, 0
      %v1277 = vsel %vm1269, 1, 0
      %vm1278 = vcmp.eq.s32.totalorder %v1270, 1
      %vm1279 = vcmp.eq.s32.totalorder %v1271, 1
      %vm1280 = vcmp.eq.s32.totalorder %v1272, 1
      %vm1281 = vcmp.eq.s32.totalorder %v1273, 1
      %vm1282 = vcmp.eq.s32.totalorder %v1274, 1
      %vm1283 = vcmp.eq.s32.totalorder %v1275, 1
      %vm1284 = vcmp.eq.s32.totalorder %v1276, 1
      %vm1285 = vcmp.eq.s32.totalorder %v1277, 1
      %v1286 = vsel %vm1278, 0.0, %v1109
      %v1287 = vsel %vm1279, 0.0, %v1110
      %v1288 = vsel %vm1280, 0.0, %v1111
      %v1289 = vsel %vm1281, 0.0, %v1112
      %v1290 = vsel %vm1282, 0.0, %v1113
      %v1291 = vsel %vm1283, 0.0, %v1114
      %v1292 = vsel %vm1284, 0.0, %v1115
      %v1293 = vsel %vm1285, 0.0, %v1116
      %v1294 = vadd.f32 %v1254, %v1286
      %v1295 = vadd.f32 %v1255, %v1287
      %v1296 = vadd.f32 %v1256, %v1288
      %v1297 = vadd.f32 %v1257, %v1289
      %v1298 = vadd.f32 %v1258, %v1290
      %v1299 = vadd.f32 %v1259, %v1291
      %v1300 = vadd.f32 %v1260, %v1292
      %v1301 = vadd.f32 %v1261, %v1293
      %v1302 = vld [vmem:[%s2] sm:$0x1]
      %v1304 = vperm.slane %v1302, 0
      %v1306 = vadd.f32 %v1294, %v1304
      %v1307 = vadd.f32 %v1295, %v1304
      %v1308 = vadd.f32 %v1296, %v1304
      %v1309 = vadd.f32 %v1297, %v1304
      %v1310 = vadd.f32 %v1298, %v1304
      %v1311 = vadd.f32 %v1299, %v1304
      %v1312 = vadd.f32 %v1300, %v1304
      %v1313 = vadd.f32 %v1301, %v1304
      %v1314 = vmax.f32 %v1306, 0.0
      %v1315 = vmax.f32 %v1307, 0.0
      %v1316 = vmax.f32 %v1308, 0.0
      %v1317 = vmax.f32 %v1309, 0.0
      %v1318 = vmax.f32 %v1310, 0.0
      %v1319 = vmax.f32 %v1311, 0.0
      %v1320 = vmax.f32 %v1312, 0.0
      %v1321 = vmax.f32 %v1313, 0.0
      %v1322 = vpack.c.bf16 %v1314, %v1314
      %v1323 = vpack.c.bf16 %v1315, %v1315
      %v1324 = vpack.c.bf16 %v1316, %v1316
      %v1325 = vpack.c.bf16 %v1317, %v1317
      %v1326 = vpack.c.bf16 %v1318, %v1318
      %v1327 = vpack.c.bf16 %v1319, %v1319
      %v1328 = vpack.c.bf16 %v1320, %v1320
      %v1329 = vpack.c.bf16 %v1321, %v1321
      %vm1330 = vcmask 519168
      %1331 = vst.msk [vmem:[%s170] sm:$0xf] %vm1330, %v1322
      %1332 = vst.msk [vmem:[%s170 + $0x4] sm:$0xf] %vm1330, %v1323
      %1333 = vst.msk [vmem:[%s170 + $0x8] sm:$0xf] %vm1330, %v1324
      %1334 = vst.msk [vmem:[%s170 + $0xc] sm:$0xf] %vm1330, %v1325
      %1335 = vst.msk [vmem:[%s170 + $0x10] sm:$0xf] %vm1330, %v1326
      %1336 = vst.msk [vmem:[%s170 + $0x14] sm:$0xf] %vm1330, %v1327
      %1337 = vst.msk [vmem:[%s170 + $0x18] sm:$0xf] %vm1330, %v1328
      %1338 = vst.msk [vmem:[%s170 + $0x1c] sm:$0xf] %vm1330, %v1329
      %p1339 = scmp.lt.s32.totalorder %s14, 1
      %s1340 = scalar_select %p1339, %s14, 1
      %s1341 = smul.addr %s1340, 8
      %s1342 = smul.addr %s1341, 4
      %s1343 = scalar_lea.vmem %s3, %s1342
      // Predicated region
      $region33: #{unet_scattering_dynamic_forward.8} parent=31 // pred_check
        %p1344 = pneg %p100
      $region34: #{unet_scattering_dynamic_forward.8} parent=31 // pred_check_branch
        %1346 = sbr.rel (%p1344) target = $region36
      $region35: #{unet_scattering_dynamic_forward.8} parent=31 // pred_region
        _
      $region36: #{unet_scattering_dynamic_forward.8} parent=31 // pred_fallthru
        _
    $region32: #{unet_scattering_dynamic_forward.8} parent=5 // pred_fallthru
      _
    %p1347 = scmp.le.s32.totalorder 2, %s9
    // Predicated region
    $region37: #{unet_scattering_dynamic_forward.8} parent=5 // pred_check
      %p1348 = pneg %p1347
    $region38: #{unet_scattering_dynamic_forward.8} parent=5 // pred_check_branch
      %1350 = sbr.rel (%p1348) target = $region40
    $region39: #{unet_scattering_dynamic_forward.8} parent=5 // pred_region
      %s1351 = ssub.s32 %s9, 2
      // Predicated region
      $region41: #{unet_scattering_dynamic_forward.8} parent=39 // pred_check
        %p1352 = pneg %p106
      $region42: #{unet_scattering_dynamic_forward.8} parent=39 // pred_check_branch
        %1354 = sbr.rel (%p1352) target = $region44
      $region43: #{unet_scattering_dynamic_forward.8} parent=39 // pred_region
        %p1355 = scmp.lt.s32.totalorder %s15, 1
        %s1356 = scalar_select %p1355, %s15, 1
        %s1357 = smul.addr %s1356, 8
        %s1358 = smul.addr %s1357, 4
        %s1359 = scalar_lea.vmem %s3, %s1358
      $region44: #{unet_scattering_dynamic_forward.8} parent=39 // pred_fallthru
        _
    $region40: #{unet_scattering_dynamic_forward.8} parent=5 // pred_fallthru
      _
  $region6: #{unet_scattering_dynamic_forward.8} parent=0 // loop_footer
    %s13 = sadd.s32 1, %s9
  $region7: #{unet_scattering_dynamic_forward.8} parent=0 // loop_footer_branch
    %8 = sbr.rel target = $region3
  $region8: #{unet_scattering_dynamic_forward.8} parent=0 // loop_exit
    _

// kernel: unet_scattering_dynamic_forward.9
$region0: #{unet_scattering_dynamic_forward.9}
  #allocation0 [shape = 'u32[]', space=smem, size = 0x4, offset = 0x4, fixed_abs, tag = 'smem constant byte address 0x4 - core index']
  #allocation1 [shape = 'u32[72,128]{1,0:T(1,128)}', space=vmem, size = 0x9000, scoped, tag = 'internal scratch']
  %s0 = inlined_call_operand.vmem [shape: bf16[512,128], index: 0, kind: input, shape index: {}]
  %s1 = inlined_call_operand.vmem [shape: bf16[128,128], index: 1, kind: input, shape index: {}]
  %s2 = inlined_call_operand.vmem [shape: f32[1,128], index: 2, kind: input, shape index: {}]
  %s3 = inlined_call_operand.vmem [shape: f32[512,128], index: 3, kind: output, shape index: {}]
  %s4 = sld [smem:[#allocation0]]
  $region45: #{unet_scattering_dynamic_forward.9} parent=0
    _
  %s6 = ssub.s32 1, %s4
  %s7 = scalar_select 0, %s6, %s4
  loop: start=0, step=1, limit=4
  $region2: #{unet_scattering_dynamic_forward.9} parent=0 // loop_pre_header
    _
  $region3: #{unet_scattering_dynamic_forward.9} parent=0 // loop_header
    %s9 = sphi 0, %s13
    %p10 = scmp.ge.s32.totalorder %s9, 4
    %s19 = sphi 0, %s21
    %s22 = sphi 0, %s19
    %s23 = sphi 0, %s22
    %s39 = sphi 0, %s23
    %s43 = sphi 0, %s43
    %s45 = sphi 0, %s43
    %s46 = sphi 0, %s45
    %s60 = sphi 0, %s46
    %s64 = sphi 0, %s64
    %s66 = sphi 0, %s64
    %s67 = sphi 0, %s66
    %s81 = sphi 0, %s67
    %s87 = sphi 0, %s89
    %s90 = sphi 0, %s87
    %s91 = sphi 0, %s90
    %s107 = sphi 0, %s91
  $region4: #{unet_scattering_dynamic_forward.9} parent=0 // loop_header_branch
    %12 = sbr.rel (%p10) target = $region8
  $region5: #{unet_scattering_dynamic_forward.9} parent=0 // loop_body
    %s14 = ssub.s32 %s9, 1
    %s15 = ssub.s32 %s9, 2
    %s16 = sadd.s32 %s9, 1
    %s17 = ssub.s32 %s9, %s16
    %p18 = scmp.eq.s32.totalorder %s17, 0
    %s20 = sadd.s32 %s19, 1
    %s21 = scalar_select %p18, %s19, %s20
    %p24 = pneg %p18
    %p25 = scmp.eq.s32.totalorder %s9, 1
    %p26 = por %p24, %p25
    %p27 = scmp.ne.s32.totalorder %s19, %s22
    %p28 = scmp.eq.s32.totalorder %s9, 0
    %p29 = por %p27, %p28
    %p30 = scmp.ne.s32.totalorder %s19, %s22
    %p31 = scmp.eq.s32.totalorder %s14, 1
    %p32 = por %p30, %p31
    %p33 = scmp.ne.s32.totalorder %s22, %s23
    %p34 = scmp.eq.s32.totalorder %s14, 0
    %p35 = por %p33, %p34
    %p36 = scmp.ne.s32.totalorder %s22, %s23
    %p37 = scmp.eq.s32.totalorder %s15, 1
    %p38 = por %p36, %p37
    %p40 = scmp.ne.s32.totalorder %s23, %s39
    %p41 = scmp.eq.s32.totalorder %s15, 0
    %p42 = por %p40, %p41
    %s44 = sadd.s32 %s43, 1
    %p47 = scmp.eq.s32.totalorder %s9, 1
    %p48 = scmp.ne.s32.totalorder %s43, %s45
    %p49 = scmp.eq.s32.totalorder %s9, 0
    %p50 = por %p48, %p49
    %p51 = scmp.ne.s32.totalorder %s43, %s45
    %p52 = scmp.eq.s32.totalorder %s14, 1
    %p53 = por %p51, %p52
    %p54 = scmp.ne.s32.totalorder %s45, %s46
    %p55 = scmp.eq.s32.totalorder %s14, 0
    %p56 = por %p54, %p55
    %p57 = scmp.ne.s32.totalorder %s45, %s46
    %p58 = scmp.eq.s32.totalorder %s15, 1
    %p59 = por %p57, %p58
    %p61 = scmp.ne.s32.totalorder %s46, %s60
    %p62 = scmp.eq.s32.totalorder %s15, 0
    %p63 = por %p61, %p62
    %s65 = sadd.s32 %s64, 1
    %p68 = scmp.eq.s32.totalorder %s9, 1
    %p69 = scmp.ne.s32.totalorder %s64, %s66
    %p70 = scmp.eq.s32.totalorder %s9, 0
    %p71 = por %p69, %p70
    %p72 = scmp.ne.s32.totalorder %s64, %s66
    %p73 = scmp.eq.s32.totalorder %s14, 1
    %p74 = por %p72, %p73
    %p75 = scmp.ne.s32.totalorder %s66, %s67
    %p76 = scmp.eq.s32.totalorder %s14, 0
    %p77 = por %p75, %p76
    %p78 = scmp.ne.s32.totalorder %s66, %s67
    %p79 = scmp.eq.s32.totalorder %s15, 1
    %p80 = por %p78, %p79
    %p82 = scmp.ne.s32.totalorder %s67, %s81
    %p83 = scmp.eq.s32.totalorder %s15, 0
    %p84 = por %p82, %p83
    %s85 = ssub.s32 %s9, %s16
    %p86 = scmp.eq.s32.totalorder %s85, 0
    %s88 = sadd.s32 %s87, 1
    %s89 = scalar_select %p86, %s87, %s88
    %p92 = pneg %p86
    %p93 = scmp.eq.s32.totalorder %s9, 1
    %p94 = por %p92, %p93
    %p95 = scmp.ne.s32.totalorder %s87, %s90
    %p96 = scmp.eq.s32.totalorder %s9, 0
    %p97 = por %p95, %p96
    %p98 = scmp.ne.s32.totalorder %s87, %s90
    %p99 = scmp.eq.s32.totalorder %s14, 1
    %p100 = por %p98, %p99
    %p101 = scmp.ne.s32.totalorder %s90, %s91
    %p102 = scmp.eq.s32.totalorder %s14, 0
    %p103 = por %p101, %p102
    %p104 = scmp.ne.s32.totalorder %s90, %s91
    %p105 = scmp.eq.s32.totalorder %s15, 1
    %p106 = por %p104, %p105
    %p108 = scmp.ne.s32.totalorder %s91, %s107
    %p109 = scmp.eq.s32.totalorder %s15, 0
    %p110 = por %p108, %p109
    %p111 = scmp.le.s32.totalorder 1, %s9
    %p112 = scmp.lt.s32.totalorder %s9, 3
    %p113 = pnand %p111, %p112
    %p114 = pneg %p113
    // Predicated region
    $region9: #{unet_scattering_dynamic_forward.9} parent=5 // pred_check
      _
    $region10: #{unet_scattering_dynamic_forward.9} parent=5 // pred_check_branch
      %116 = sbr.rel (%p113) target = $region12
    $region11: #{unet_scattering_dynamic_forward.9} parent=5 // pred_region
      %s117 = ssub.s32 %s9, 1
      // Predicated region
      $region13: #{unet_scattering_dynamic_forward.9} parent=11 // pred_check
        %p118 = pneg %p56
      $region14: #{unet_scattering_dynamic_forward.9} parent=11 // pred_check_branch
        %120 = sbr.rel (%p118) target = $region16
      $region15: #{unet_scattering_dynamic_forward.9} parent=11 // pred_region
        _
      $region16: #{unet_scattering_dynamic_forward.9} parent=11 // pred_fallthru
        _
      // Predicated region
      $region17: #{unet_scattering_dynamic_forward.9} parent=11 // pred_check
        %p121 = pneg %p77
      $region18: #{unet_scattering_dynamic_forward.9} parent=11 // pred_check_branch
        %123 = sbr.rel (%p121) target = $region20
      $region19: #{unet_scattering_dynamic_forward.9} parent=11 // pred_region
        _
      $region20: #{unet_scattering_dynamic_forward.9} parent=11 // pred_fallthru
        _
    $region12: #{unet_scattering_dynamic_forward.9} parent=5 // pred_fallthru
      _
    %p124 = scmp.lt.s32.totalorder %s9, 2
    // Predicated region
    $region21: #{unet_scattering_dynamic_forward.9} parent=5 // pred_check
      %p125 = pneg %p124
    $region22: #{unet_scattering_dynamic_forward.9} parent=5 // pred_check_branch
      %127 = sbr.rel (%p125) target = $region24
    $region23: #{unet_scattering_dynamic_forward.9} parent=5 // pred_region
      // Predicated region
      $region25: #{unet_scattering_dynamic_forward.9} parent=23 // pred_check
        %p128 = pneg %p29
      $region26: #{unet_scattering_dynamic_forward.9} parent=23 // pred_check_branch
        %130 = sbr.rel (%p128) target = $region28
      $region27: #{unet_scattering_dynamic_forward.9} parent=23 // pred_region
        %s131 = smul.u32 32, %s9
        %p132 = scmp.lt.s32.totalorder %s131, 63
        %s133 = scalar_select %p132, %s131, 63
        %s134 = smul.addr %s133, 4
        %s135 = scalar_lea.vmem %s0, %s134
        %s136 = smul.u32 32, %s9
      $region28: #{unet_scattering_dynamic_forward.9} parent=23 // pred_fallthru
        _
    $region24: #{unet_scattering_dynamic_forward.9} parent=5 // pred_fallthru
      _
    %p137 = scmp.le.s32.totalorder 1, %s9
    %p138 = scmp.lt.s32.totalorder %s9, 3
    %p139 = pnand %p137, %p138
    %p140 = pneg %p139
    // Predicated region
    $region29: #{unet_scattering_dynamic_forward.9} parent=5 // pred_check
      _
    $region30: #{unet_scattering_dynamic_forward.9} parent=5 // pred_check_branch
      %142 = sbr.rel (%p139) target = $region32
    $region31: #{unet_scattering_dynamic_forward.9} parent=5 // pred_region
      %s143 = ssub.s32 %s9, 1
      %s144 = smul.u32 32, %s14
      %p145 = scmp.lt.s32.totalorder %s144, 63
      %s146 = scalar_select %p145, %s144, 63
      %s147 = smul.addr %s146, 4
      %s148 = scalar_lea.vmem %s0, %s147
      %p149 = pneg %p35
      %p150 = pneg %p32
      %p151 = pneg %p56
      %p152 = pneg %p53
      %p153 = pneg %p77
      %p154 = pneg %p74
      %p155 = pneg %p103
      %p156 = pneg %p100
      %s157 = smul.u32 32, %s14
      %p158 = scmp.lt.s32.totalorder %s157, 63
      %s159 = scalar_select %p158, %s157, 63
      %s160 = smul.addr %s159, 8
      %s161 = scalar_lea.vmem %s3, %s160
      %s162 = smul.u32 32, %s14
      %p163 = scmp.lt.s32.totalorder %s162, 63
      %s164 = scalar_select %p163, %s162, 63
      %s165 = smul.addr %s164, 4
      %s166 = scalar_lea.vmem %s0, %s165
      %s167 = smul.u32 32, %s14
      %s168 = smul.u32 32, %s14
      %p169 = scmp.lt.s32.totalorder %s168, 63
      %s170 = scalar_select %p169, %s168, 63
      %s171 = smul.addr %s170, 8
      %s172 = scalar_lea.vmem %s3, %s171
      %s173 = smul.u32 32, %s14
      %v174 = vld [vmem:[%s166] sm:$0xf]
      %v175 = vld [vmem:[%s166 + $0x4] sm:$0xf]
      %v176 = vld [vmem:[%s166 + $0x8] sm:$0xf]
      %v177 = vld [vmem:[%s166 + $0xc] sm:$0xf]
      %v178 = vld [vmem:[%s166 + $0x10] sm:$0xf]
      %v179 = vld [vmem:[%s166 + $0x14] sm:$0xf]
      %v180 = vld [vmem:[%s166 + $0x18] sm:$0xf]
      %v181 = vld [vmem:[%s166 + $0x1c] sm:$0xf]
      %v182 = vld [vmem:[%s166 + $0x20] sm:$0xf]
      %v183 = vld [vmem:[%s166 + $0x24] sm:$0xf]
      %v184 = vld [vmem:[%s166 + $0x28] sm:$0xf]
      %v185 = vld [vmem:[%s166 + $0x2c] sm:$0xf]
      %v186 = vld [vmem:[%s166 + $0x30] sm:$0xf]
      %v187 = vld [vmem:[%s166 + $0x34] sm:$0xf]
      %v188 = vld [vmem:[%s166 + $0x38] sm:$0xf]
      %v189 = vld [vmem:[%s166 + $0x3c] sm:$0xf]
      %v190 = vld [vmem:[%s166 + $0x40] sm:$0xf]
      %v191 = vld [vmem:[%s166 + $0x44] sm:$0xf]
      %v192 = vld [vmem:[%s166 + $0x48] sm:$0xf]
      %v193 = vld [vmem:[%s166 + $0x4c] sm:$0xf]
      %v194 = vld [vmem:[%s166 + $0x50] sm:$0xf]
      %v195 = vld [vmem:[%s166 + $0x54] sm:$0xf]
      %v196 = vld [vmem:[%s166 + $0x58] sm:$0xf]
      %v197 = vld [vmem:[%s166 + $0x5c] sm:$0xf]
      %v198 = vld [vmem:[%s166 + $0x60] sm:$0xf]
      %v199 = vld [vmem:[%s166 + $0x64] sm:$0xf]
      %v200 = vld [vmem:[%s166 + $0x68] sm:$0xf]
      %v201 = vld [vmem:[%s166 + $0x6c] sm:$0xf]
      %v202 = vld [vmem:[%s166 + $0x70] sm:$0xf]
      %v203 = vld [vmem:[%s166 + $0x74] sm:$0xf]
      %v204 = vld [vmem:[%s166 + $0x78] sm:$0xf]
      %v205 = vld [vmem:[%s166 + $0x7c] sm:$0xf]
      %v206 = vld [vmem:[%s1] sm:$0xf]
      %v207 = vld [vmem:[%s1 + $0x4] sm:$0xf]
      %v208 = vld [vmem:[%s1 + $0x8] sm:$0xf]
      %v209 = vld [vmem:[%s1 + $0xc] sm:$0xf]
      %v210 = vld [vmem:[%s1 + $0x10] sm:$0xf]
      %v211 = vld [vmem:[%s1 + $0x14] sm:$0xf]
      %v212 = vld [vmem:[%s1 + $0x18] sm:$0xf]
      %v213 = vld [vmem:[%s1 + $0x1c] sm:$0xf]
      %v214 = vld [vmem:[%s1 + $0x20] sm:$0xf]
      %v215 = vld [vmem:[%s1 + $0x24] sm:$0xf]
      %v216 = vld [vmem:[%s1 + $0x28] sm:$0xf]
      %v217 = vld [vmem:[%s1 + $0x2c] sm:$0xf]
      %v218 = vld [vmem:[%s1 + $0x30] sm:$0xf]
      %v219 = vld [vmem:[%s1 + $0x34] sm:$0xf]
      %v220 = vld [vmem:[%s1 + $0x38] sm:$0xf]
      %v221 = vld [vmem:[%s1 + $0x3c] sm:$0xf]
      %v222 = vld [vmem:[%s2] sm:$0x1]
      %v224 = vperm.slane %v222, 0
      %v258 = vunpack.c.l.b16 %v174
      %v259 = vunpack.c.l.b16 %v175
      %v260 = vunpack.c.l.b16 %v176
      %v261 = vunpack.c.l.b16 %v177
      %v262 = vunpack.c.l.b16 %v178
      %v263 = vunpack.c.l.b16 %v179
      %v264 = vunpack.c.l.b16 %v180
      %v265 = vunpack.c.l.b16 %v181
      %v266 = vunpack.c.l.b16 %v182
      %v267 = vunpack.c.l.b16 %v183
      %v268 = vunpack.c.l.b16 %v184
      %v269 = vunpack.c.l.b16 %v185
      %v270 = vunpack.c.l.b16 %v186
      %v271 = vunpack.c.l.b16 %v187
      %v272 = vunpack.c.l.b16 %v188
      %v273 = vunpack.c.l.b16 %v189
      %v274 = vunpack.c.l.b16 %v190
      %v275 = vunpack.c.l.b16 %v191
      %v276 = vunpack.c.l.b16 %v192
      %v277 = vunpack.c.l.b16 %v193
      %v278 = vunpack.c.l.b16 %v194
      %v279 = vunpack.c.l.b16 %v195
      %v280 = vunpack.c.l.b16 %v196
      %v281 = vunpack.c.l.b16 %v197
      %v282 = vunpack.c.l.b16 %v198
      %v283 = vunpack.c.l.b16 %v199
      %v284 = vunpack.c.l.b16 %v200
      %v285 = vunpack.c.l.b16 %v201
      %v286 = vunpack.c.l.b16 %v202
      %v287 = vunpack.c.l.b16 %v203
      %v288 = vunpack.c.l.b16 %v204
      %v289 = vunpack.c.l.b16 %v205
      %v290 = vpack.c.b16 %v259, %v258
      %v291 = vpack.c.b16 %v261, %v260
      %v292 = vpack.c.b16 %v263, %v262
      %v293 = vpack.c.b16 %v265, %v264
      %v294 = vpack.c.b16 %v267, %v266
      %v295 = vpack.c.b16 %v269, %v268
      %v296 = vpack.c.b16 %v271, %v270
      %v297 = vpack.c.b16 %v273, %v272
      %v298 = vpack.c.b16 %v275, %v274
      %v299 = vpack.c.b16 %v277, %v276
      %v300 = vpack.c.b16 %v279, %v278
      %v301 = vpack.c.b16 %v281, %v280
      %v302 = vpack.c.b16 %v283, %v282
      %v303 = vpack.c.b16 %v285, %v284
      %v304 = vpack.c.b16 %v287, %v286
      %v305 = vpack.c.b16 %v289, %v288
      %v338 = vunpack.c.l.b16 %v206
      %v339 = vunpack.c.l.b16 %v207
      %v340 = vunpack.c.l.b16 %v208
      %v341 = vunpack.c.l.b16 %v209
      %v342 = vunpack.c.l.b16 %v210
      %v343 = vunpack.c.l.b16 %v211
      %v344 = vunpack.c.l.b16 %v212
      %v345 = vunpack.c.l.b16 %v213
      %v346 = vunpack.c.l.b16 %v214
      %v347 = vunpack.c.l.b16 %v215
      %v348 = vunpack.c.l.b16 %v216
      %v349 = vunpack.c.l.b16 %v217
      %v350 = vunpack.c.l.b16 %v218
      %v351 = vunpack.c.l.b16 %v219
      %v352 = vunpack.c.l.b16 %v220
      %v353 = vunpack.c.l.b16 %v221
      %v354 = vpack.c.b16 %v339, %v338
      %v355 = vpack.c.b16 %v341, %v340
      %v356 = vpack.c.b16 %v343, %v342
      %v357 = vpack.c.b16 %v345, %v344
      %v358 = vpack.c.b16 %v347, %v346
      %v359 = vpack.c.b16 %v349, %v348
      %v360 = vpack.c.b16 %v351, %v350
      %v361 = vpack.c.b16 %v353, %v352
      %370 = vmatpush.bf16.msra.mxu0 %v361
      %371 = vmatpush.bf16.msra.mxu0 %v360
      %372 = vmatpush.bf16.msra.mxu0 %v359
      %373 = vmatpush.bf16.msra.mxu0 %v358
      %374 = vmatpush.bf16.msra.mxu0 %v357
      %375 = vmatpush.bf16.msra.mxu0 %v356
      %376 = vmatpush.bf16.msra.mxu0 %v355
      %377 = vmatpush.bf16.msra.mxu0 %v354
      %378 = vmatmul.bf16.gmra.mxu0 %v290
      %v379 = vpop.f32.mrf.mxu0
      %v380 = vadd.f32 %v224, %v379
      %v381 = vpop.f32.mrf.mxu0
      %v382 = vadd.f32 %v224, %v381
      %383 = vmatmul.bf16.gmra.mxu0 %v291
      %v384 = vpop.f32.mrf.mxu0
      %v385 = vadd.f32 %v224, %v384
      %v386 = vpop.f32.mrf.mxu0
      %v387 = vadd.f32 %v224, %v386
      %388 = vmatmul.bf16.gmra.mxu0 %v292
      %v389 = vpop.f32.mrf.mxu0
      %v390 = vadd.f32 %v224, %v389
      %v391 = vpop.f32.mrf.mxu0
      %v392 = vadd.f32 %v224, %v391
      %393 = vmatmul.bf16.gmra.mxu0 %v293
      %v394 = vpop.f32.mrf.mxu0
      %v395 = vadd.f32 %v224, %v394
      %v396 = vpop.f32.mrf.mxu0
      %v397 = vadd.f32 %v224, %v396
      %398 = vmatmul.bf16.gmra.mxu0 %v294
      %v399 = vpop.f32.mrf.mxu0
      %v400 = vadd.f32 %v224, %v399
      %v401 = vpop.f32.mrf.mxu0
      %v402 = vadd.f32 %v224, %v401
      %403 = vmatmul.bf16.gmra.mxu0 %v295
      %v404 = vpop.f32.mrf.mxu0
      %v405 = vadd.f32 %v224, %v404
      %v406 = vpop.f32.mrf.mxu0
      %v407 = vadd.f32 %v224, %v406
      %408 = vmatmul.bf16.gmra.mxu0 %v296
      %v409 = vpop.f32.mrf.mxu0
      %v410 = vadd.f32 %v224, %v409
      %v411 = vpop.f32.mrf.mxu0
      %v412 = vadd.f32 %v224, %v411
      %413 = vmatmul.bf16.gmra.mxu0 %v297
      %v414 = vpop.f32.mrf.mxu0
      %v415 = vadd.f32 %v224, %v414
      %v416 = vpop.f32.mrf.mxu0
      %v417 = vadd.f32 %v224, %v416
      %418 = vmatmul.bf16.gmra.mxu0 %v298
      %v419 = vpop.f32.mrf.mxu0
      %v420 = vadd.f32 %v224, %v419
      %v421 = vpop.f32.mrf.mxu0
      %v422 = vadd.f32 %v224, %v421
      %423 = vmatmul.bf16.gmra.mxu0 %v299
      %v424 = vpop.f32.mrf.mxu0
      %v425 = vadd.f32 %v224, %v424
      %v426 = vpop.f32.mrf.mxu0
      %v427 = vadd.f32 %v224, %v426
      %428 = vmatmul.bf16.gmra.mxu0 %v300
      %v429 = vpop.f32.mrf.mxu0
      %v430 = vadd.f32 %v224, %v429
      %v431 = vpop.f32.mrf.mxu0
      %v432 = vadd.f32 %v224, %v431
      %433 = vmatmul.bf16.gmra.mxu0 %v301
      %v434 = vpop.f32.mrf.mxu0
      %v435 = vadd.f32 %v224, %v434
      %v436 = vpop.f32.mrf.mxu0
      %v437 = vadd.f32 %v224, %v436
      %438 = vmatmul.bf16.gmra.mxu0 %v302
      %v439 = vpop.f32.mrf.mxu0
      %v440 = vadd.f32 %v224, %v439
      %v441 = vpop.f32.mrf.mxu0
      %v442 = vadd.f32 %v224, %v441
      %443 = vmatmul.bf16.gmra.mxu0 %v303
      %v444 = vpop.f32.mrf.mxu0
      %v445 = vadd.f32 %v224, %v444
      %v446 = vpop.f32.mrf.mxu0
      %v447 = vadd.f32 %v224, %v446
      %448 = vmatmul.bf16.gmra.mxu0 %v304
      %v449 = vpop.f32.mrf.mxu0
      %v450 = vadd.f32 %v224, %v449
      %v451 = vpop.f32.mrf.mxu0
      %v452 = vadd.f32 %v224, %v451
      %453 = vmatmul.bf16.gmra.mxu0 %v305
      %v454 = vpop.f32.mrf.mxu0
      %v455 = vadd.f32 %v224, %v454
      %v456 = vpop.f32.mrf.mxu0
      %v457 = vadd.f32 %v224, %v456
      %458 = vdwg.mxu0
      %459 = vst [vmem:[%s172] sm:$0xff] %v380
      %460 = vst [vmem:[%s172 + $0x8] sm:$0xff] %v382
      %461 = vst [vmem:[%s172 + $0x10] sm:$0xff] %v385
      %462 = vst [vmem:[%s172 + $0x18] sm:$0xff] %v387
      %463 = vst [vmem:[%s172 + $0x20] sm:$0xff] %v390
      %464 = vst [vmem:[%s172 + $0x28] sm:$0xff] %v392
      %465 = vst [vmem:[%s172 + $0x30] sm:$0xff] %v395
      %466 = vst [vmem:[%s172 + $0x38] sm:$0xff] %v397
      %467 = vst [vmem:[%s172 + $0x40] sm:$0xff] %v400
      %468 = vst [vmem:[%s172 + $0x48] sm:$0xff] %v402
      %469 = vst [vmem:[%s172 + $0x50] sm:$0xff] %v405
      %470 = vst [vmem:[%s172 + $0x58] sm:$0xff] %v407
      %471 = vst [vmem:[%s172 + $0x60] sm:$0xff] %v410
      %472 = vst [vmem:[%s172 + $0x68] sm:$0xff] %v412
      %473 = vst [vmem:[%s172 + $0x70] sm:$0xff] %v415
      %474 = vst [vmem:[%s172 + $0x78] sm:$0xff] %v417
      %475 = vst [vmem:[%s172 + $0x80] sm:$0xff] %v420
      %476 = vst [vmem:[%s172 + $0x88] sm:$0xff] %v422
      %477 = vst [vmem:[%s172 + $0x90] sm:$0xff] %v425
      %478 = vst [vmem:[%s172 + $0x98] sm:$0xff] %v427
      %479 = vst [vmem:[%s172 + $0xa0] sm:$0xff] %v430
      %480 = vst [vmem:[%s172 + $0xa8] sm:$0xff] %v432
      %481 = vst [vmem:[%s172 + $0xb0] sm:$0xff] %v435
      %482 = vst [vmem:[%s172 + $0xb8] sm:$0xff] %v437
      %483 = vst [vmem:[%s172 + $0xc0] sm:$0xff] %v440
      %484 = vst [vmem:[%s172 + $0xc8] sm:$0xff] %v442
      %485 = vst [vmem:[%s172 + $0xd0] sm:$0xff] %v445
      %486 = vst [vmem:[%s172 + $0xd8] sm:$0xff] %v447
      %487 = vst [vmem:[%s172 + $0xe0] sm:$0xff] %v450
      %488 = vst [vmem:[%s172 + $0xe8] sm:$0xff] %v452
      %489 = vst [vmem:[%s172 + $0xf0] sm:$0xff] %v455
      %490 = vst [vmem:[%s172 + $0xf8] sm:$0xff] %v457
      %s491 = smul.u32 32, %s14
      %p492 = scmp.lt.s32.totalorder %s491, 63
      %s493 = scalar_select %p492, %s491, 63
      %s494 = smul.addr %s493, 8
      %s495 = scalar_lea.vmem %s3, %s494
      // Predicated region
      $region33: #{unet_scattering_dynamic_forward.9} parent=31 // pred_check
        %p496 = pneg %p100
      $region34: #{unet_scattering_dynamic_forward.9} parent=31 // pred_check_branch
        %498 = sbr.rel (%p496) target = $region36
      $region35: #{unet_scattering_dynamic_forward.9} parent=31 // pred_region
        %s499 = smul.u32 32, %s14
      $region36: #{unet_scattering_dynamic_forward.9} parent=31 // pred_fallthru
        _
    $region32: #{unet_scattering_dynamic_forward.9} parent=5 // pred_fallthru
      _
    %p500 = scmp.le.s32.totalorder 2, %s9
    // Predicated region
    $region37: #{unet_scattering_dynamic_forward.9} parent=5 // pred_check
      %p501 = pneg %p500
    $region38: #{unet_scattering_dynamic_forward.9} parent=5 // pred_check_branch
      %503 = sbr.rel (%p501) target = $region40
    $region39: #{unet_scattering_dynamic_forward.9} parent=5 // pred_region
      %s504 = ssub.s32 %s9, 2
      // Predicated region
      $region41: #{unet_scattering_dynamic_forward.9} parent=39 // pred_check
        %p505 = pneg %p106
      $region42: #{unet_scattering_dynamic_forward.9} parent=39 // pred_check_branch
        %507 = sbr.rel (%p505) target = $region44
      $region43: #{unet_scattering_dynamic_forward.9} parent=39 // pred_region
        %s508 = smul.u32 32, %s15
        %p509 = scmp.lt.s32.totalorder %s508, 63
        %s510 = scalar_select %p509, %s508, 63
        %s511 = smul.addr %s510, 8
        %s512 = scalar_lea.vmem %s3, %s511
      $region44: #{unet_scattering_dynamic_forward.9} parent=39 // pred_fallthru
        _
    $region40: #{unet_scattering_dynamic_forward.9} parent=5 // pred_fallthru
      _
  $region6: #{unet_scattering_dynamic_forward.9} parent=0 // loop_footer
    %s13 = sadd.s32 1, %s9
  $region7: #{unet_scattering_dynamic_forward.9} parent=0 // loop_footer_branch
    %8 = sbr.rel target = $region3
  $region8: #{unet_scattering_dynamic_forward.9} parent=0 // loop_exit
    _

// kernel: unet_scattering_dynamic_forward.7
$region0: #{unet_scattering_dynamic_forward.7}
  #allocation0 [shape = 'u32[]', space=smem, size = 0x4, offset = 0x4, fixed_abs, tag = 'smem constant byte address 0x4 - core index']
  #allocation1 [shape = 'u32[72,128]{1,0:T(1,128)}', space=vmem, size = 0x9000, scoped, tag = 'internal scratch']
  %s0 = inlined_call_operand.vmem [shape: bf16[2,82,128], index: 0, kind: input, shape index: {}]
  %s1 = inlined_call_operand.vmem [shape: bf16[2,82,66], index: 1, kind: input, shape index: {}]
  %s2 = inlined_call_operand.vmem [shape: bf16[3,3,128,64], index: 2, kind: input, shape index: {}]
  %s3 = inlined_call_operand.vmem [shape: bf16[3,3,66,64], index: 3, kind: input, shape index: {}]
  %s4 = inlined_call_operand.vmem [shape: f32[1,64], index: 4, kind: input, shape index: {}]
  %s5 = inlined_call_operand.vmem [shape: bf16[2,64,64], index: 5, kind: output, shape index: {}]
  %s6 = sld [smem:[#allocation0]]
  $region53: #{unet_scattering_dynamic_forward.7} parent=0
    _
  %s8 = ssub.s32 1, %s6
  %s9 = scalar_select 0, %s8, %s6
  loop: start=0, step=1, limit=4
  $region2: #{unet_scattering_dynamic_forward.7} parent=0 // loop_pre_header
    _
  $region3: #{unet_scattering_dynamic_forward.7} parent=0 // loop_header
    %s11 = sphi 0, %s15
    %p12 = scmp.ge.s32.totalorder %s11, 4
    %s21 = sphi 0, %s23
    %s24 = sphi 0, %s21
    %s25 = sphi 0, %s24
    %s41 = sphi 0, %s25
    %s47 = sphi 0, %s49
    %s50 = sphi 0, %s47
    %s51 = sphi 0, %s50
    %s67 = sphi 0, %s51
    %s71 = sphi 0, %s71
    %s73 = sphi 0, %s71
    %s74 = sphi 0, %s73
    %s88 = sphi 0, %s74
    %s92 = sphi 0, %s92
    %s94 = sphi 0, %s92
    %s95 = sphi 0, %s94
    %s109 = sphi 0, %s95
    %s113 = sphi 0, %s113
    %s115 = sphi 0, %s113
    %s116 = sphi 0, %s115
    %s130 = sphi 0, %s116
    %s136 = sphi 0, %s138
    %s139 = sphi 0, %s136
    %s140 = sphi 0, %s139
    %s156 = sphi 0, %s140
  $region4: #{unet_scattering_dynamic_forward.7} parent=0 // loop_header_branch
    %14 = sbr.rel (%p12) target = $region8
  $region5: #{unet_scattering_dynamic_forward.7} parent=0 // loop_body
    %s16 = ssub.s32 %s11, 1
    %s17 = ssub.s32 %s11, 2
    %s18 = sadd.s32 %s11, 1
    %s19 = ssub.s32 %s11, %s18
    %p20 = scmp.eq.s32.totalorder %s19, 0
    %s22 = sadd.s32 %s21, 1
    %s23 = scalar_select %p20, %s21, %s22
    %p26 = pneg %p20
    %p27 = scmp.eq.s32.totalorder %s11, 1
    %p28 = por %p26, %p27
    %p29 = scmp.ne.s32.totalorder %s21, %s24
    %p30 = scmp.eq.s32.totalorder %s11, 0
    %p31 = por %p29, %p30
    %p32 = scmp.ne.s32.totalorder %s21, %s24
    %p33 = scmp.eq.s32.totalorder %s16, 1
    %p34 = por %p32, %p33
    %p35 = scmp.ne.s32.totalorder %s24, %s25
    %p36 = scmp.eq.s32.totalorder %s16, 0
    %p37 = por %p35, %p36
    %p38 = scmp.ne.s32.totalorder %s24, %s25
    %p39 = scmp.eq.s32.totalorder %s17, 1
    %p40 = por %p38, %p39
    %p42 = scmp.ne.s32.totalorder %s25, %s41
    %p43 = scmp.eq.s32.totalorder %s17, 0
    %p44 = por %p42, %p43
    %s45 = ssub.s32 %s11, %s18
    %p46 = scmp.eq.s32.totalorder %s45, 0
    %s48 = sadd.s32 %s47, 1
    %s49 = scalar_select %p46, %s47, %s48
    %p52 = pneg %p46
    %p53 = scmp.eq.s32.totalorder %s11, 1
    %p54 = por %p52, %p53
    %p55 = scmp.ne.s32.totalorder %s47, %s50
    %p56 = scmp.eq.s32.totalorder %s11, 0
    %p57 = por %p55, %p56
    %p58 = scmp.ne.s32.totalorder %s47, %s50
    %p59 = scmp.eq.s32.totalorder %s16, 1
    %p60 = por %p58, %p59
    %p61 = scmp.ne.s32.totalorder %s50, %s51
    %p62 = scmp.eq.s32.totalorder %s16, 0
    %p63 = por %p61, %p62
    %p64 = scmp.ne.s32.totalorder %s50, %s51
    %p65 = scmp.eq.s32.totalorder %s17, 1
    %p66 = por %p64, %p65
    %p68 = scmp.ne.s32.totalorder %s51, %s67
    %p69 = scmp.eq.s32.totalorder %s17, 0
    %p70 = por %p68, %p69
    %s72 = sadd.s32 %s71, 1
    %p75 = scmp.eq.s32.totalorder %s11, 1
    %p76 = scmp.ne.s32.totalorder %s71, %s73
    %p77 = scmp.eq.s32.totalorder %s11, 0
    %p78 = por %p76, %p77
    %p79 = scmp.ne.s32.totalorder %s71, %s73
    %p80 = scmp.eq.s32.totalorder %s16, 1
    %p81 = por %p79, %p80
    %p82 = scmp.ne.s32.totalorder %s73, %s74
    %p83 = scmp.eq.s32.totalorder %s16, 0
    %p84 = por %p82, %p83
    %p85 = scmp.ne.s32.totalorder %s73, %s74
    %p86 = scmp.eq.s32.totalorder %s17, 1
    %p87 = por %p85, %p86
    %p89 = scmp.ne.s32.totalorder %s74, %s88
    %p90 = scmp.eq.s32.totalorder %s17, 0
    %p91 = por %p89, %p90
    %s93 = sadd.s32 %s92, 1
    %p96 = scmp.eq.s32.totalorder %s11, 1
    %p97 = scmp.ne.s32.totalorder %s92, %s94
    %p98 = scmp.eq.s32.totalorder %s11, 0
    %p99 = por %p97, %p98
    %p100 = scmp.ne.s32.totalorder %s92, %s94
    %p101 = scmp.eq.s32.totalorder %s16, 1
    %p102 = por %p100, %p101
    %p103 = scmp.ne.s32.totalorder %s94, %s95
    %p104 = scmp.eq.s32.totalorder %s16, 0
    %p105 = por %p103, %p104
    %p106 = scmp.ne.s32.totalorder %s94, %s95
    %p107 = scmp.eq.s32.totalorder %s17, 1
    %p108 = por %p106, %p107
    %p110 = scmp.ne.s32.totalorder %s95, %s109
    %p111 = scmp.eq.s32.totalorder %s17, 0
    %p112 = por %p110, %p111
    %s114 = sadd.s32 %s113, 1
    %p117 = scmp.eq.s32.totalorder %s11, 1
    %p118 = scmp.ne.s32.totalorder %s113, %s115
    %p119 = scmp.eq.s32.totalorder %s11, 0
    %p120 = por %p118, %p119
    %p121 = scmp.ne.s32.totalorder %s113, %s115
    %p122 = scmp.eq.s32.totalorder %s16, 1
    %p123 = por %p121, %p122
    %p124 = scmp.ne.s32.totalorder %s115, %s116
    %p125 = scmp.eq.s32.totalorder %s16, 0
    %p126 = por %p124, %p125
    %p127 = scmp.ne.s32.totalorder %s115, %s116
    %p128 = scmp.eq.s32.totalorder %s17, 1
    %p129 = por %p127, %p128
    %p131 = scmp.ne.s32.totalorder %s116, %s130
    %p132 = scmp.eq.s32.totalorder %s17, 0
    %p133 = por %p131, %p132
    %s134 = ssub.s32 %s11, %s18
    %p135 = scmp.eq.s32.totalorder %s134, 0
    %s137 = sadd.s32 %s136, 1
    %s138 = scalar_select %p135, %s136, %s137
    %p141 = pneg %p135
    %p142 = scmp.eq.s32.totalorder %s11, 1
    %p143 = por %p141, %p142
    %p144 = scmp.ne.s32.totalorder %s136, %s139
    %p145 = scmp.eq.s32.totalorder %s11, 0
    %p146 = por %p144, %p145
    %p147 = scmp.ne.s32.totalorder %s136, %s139
    %p148 = scmp.eq.s32.totalorder %s16, 1
    %p149 = por %p147, %p148
    %p150 = scmp.ne.s32.totalorder %s139, %s140
    %p151 = scmp.eq.s32.totalorder %s16, 0
    %p152 = por %p150, %p151
    %p153 = scmp.ne.s32.totalorder %s139, %s140
    %p154 = scmp.eq.s32.totalorder %s17, 1
    %p155 = por %p153, %p154
    %p157 = scmp.ne.s32.totalorder %s140, %s156
    %p158 = scmp.eq.s32.totalorder %s17, 0
    %p159 = por %p157, %p158
    %p160 = scmp.le.s32.totalorder 1, %s11
    %p161 = scmp.lt.s32.totalorder %s11, 3
    %p162 = pnand %p160, %p161
    %p163 = pneg %p162
    // Predicated region
    $region9: #{unet_scattering_dynamic_forward.7} parent=5 // pred_check
      _
    $region10: #{unet_scattering_dynamic_forward.7} parent=5 // pred_check_branch
      %165 = sbr.rel (%p162) target = $region12
    $region11: #{unet_scattering_dynamic_forward.7} parent=5 // pred_region
      %s166 = ssub.s32 %s11, 1
      // Predicated region
      $region13: #{unet_scattering_dynamic_forward.7} parent=11 // pred_check
        %p167 = pneg %p84
      $region14: #{unet_scattering_dynamic_forward.7} parent=11 // pred_check_branch
        %169 = sbr.rel (%p167) target = $region16
      $region15: #{unet_scattering_dynamic_forward.7} parent=11 // pred_region
        _
      $region16: #{unet_scattering_dynamic_forward.7} parent=11 // pred_fallthru
        _
      // Predicated region
      $region17: #{unet_scattering_dynamic_forward.7} parent=11 // pred_check
        %p170 = pneg %p105
      $region18: #{unet_scattering_dynamic_forward.7} parent=11 // pred_check_branch
        %172 = sbr.rel (%p170) target = $region20
      $region19: #{unet_scattering_dynamic_forward.7} parent=11 // pred_region
        _
      $region20: #{unet_scattering_dynamic_forward.7} parent=11 // pred_fallthru
        _
      // Predicated region
      $region21: #{unet_scattering_dynamic_forward.7} parent=11 // pred_check
        %p173 = pneg %p126
      $region22: #{unet_scattering_dynamic_forward.7} parent=11 // pred_check_branch
        %175 = sbr.rel (%p173) target = $region24
      $region23: #{unet_scattering_dynamic_forward.7} parent=11 // pred_region
        _
      $region24: #{unet_scattering_dynamic_forward.7} parent=11 // pred_fallthru
        _
    $region12: #{unet_scattering_dynamic_forward.7} parent=5 // pred_fallthru
      _
    %p176 = scmp.lt.s32.totalorder %s11, 2
    // Predicated region
    $region25: #{unet_scattering_dynamic_forward.7} parent=5 // pred_check
      %p177 = pneg %p176
    $region26: #{unet_scattering_dynamic_forward.7} parent=5 // pred_check_branch
      %179 = sbr.rel (%p177) target = $region28
    $region27: #{unet_scattering_dynamic_forward.7} parent=5 // pred_region
      // Predicated region
      $region29: #{unet_scattering_dynamic_forward.7} parent=27 // pred_check
        %p180 = pneg %p31
      $region30: #{unet_scattering_dynamic_forward.7} parent=27 // pred_check_branch
        %182 = sbr.rel (%p180) target = $region32
      $region31: #{unet_scattering_dynamic_forward.7} parent=27 // pred_region
        %p183 = scmp.lt.s32.totalorder %s11, 1
        %s184 = scalar_select %p183, %s11, 1
        %s185 = smul.addr %s184, 11
        %s186 = smul.addr %s185, 4
        %s187 = scalar_lea.vmem %s0, %s186
      $region32: #{unet_scattering_dynamic_forward.7} parent=27 // pred_fallthru
        _
      // Predicated region
      $region33: #{unet_scattering_dynamic_forward.7} parent=27 // pred_check
        %p188 = pneg %p57
      $region34: #{unet_scattering_dynamic_forward.7} parent=27 // pred_check_branch
        %190 = sbr.rel (%p188) target = $region36
      $region35: #{unet_scattering_dynamic_forward.7} parent=27 // pred_region
        %p191 = scmp.lt.s32.totalorder %s11, 1
        %s192 = scalar_select %p191, %s11, 1
        %s193 = smul.addr %s192, 11
        %s194 = smul.addr %s193, 4
        %s195 = scalar_lea.vmem %s1, %s194
      $region36: #{unet_scattering_dynamic_forward.7} parent=27 // pred_fallthru
        _
    $region28: #{unet_scattering_dynamic_forward.7} parent=5 // pred_fallthru
      _
    %p196 = scmp.le.s32.totalorder 1, %s11
    %p197 = scmp.lt.s32.totalorder %s11, 3
    %p198 = pnand %p196, %p197
    %p199 = pneg %p198
    // Predicated region
    $region37: #{unet_scattering_dynamic_forward.7} parent=5 // pred_check
      _
    $region38: #{unet_scattering_dynamic_forward.7} parent=5 // pred_check_branch
      %201 = sbr.rel (%p198) target = $region40
    $region39: #{unet_scattering_dynamic_forward.7} parent=5 // pred_region
      %s202 = ssub.s32 %s11, 1
      %p203 = scmp.lt.s32.totalorder %s16, 1
      %s204 = scalar_select %p203, %s16, 1
      %s205 = smul.addr %s204, 11
      %s206 = smul.addr %s205, 4
      %s207 = scalar_lea.vmem %s0, %s206
      %p208 = pneg %p37
      %p209 = pneg %p34
      %p210 = scmp.lt.s32.totalorder %s16, 1
      %s211 = scalar_select %p210, %s16, 1
      %s212 = smul.addr %s211, 11
      %s213 = smul.addr %s212, 4
      %s214 = scalar_lea.vmem %s1, %s213
      %p215 = pneg %p63
      %p216 = pneg %p60
      %p217 = pneg %p84
      %p218 = pneg %p81
      %p219 = pneg %p105
      %p220 = pneg %p102
      %p221 = pneg %p126
      %p222 = pneg %p123
      %p223 = pneg %p152
      %p224 = pneg %p149
      %p225 = scmp.lt.s32.totalorder %s16, 1
      %s226 = scalar_select %p225, %s16, 1
      %s227 = smul.addr %s226, 8
      %s228 = smul.addr %s227, 4
      %s229 = scalar_lea.vmem %s5, %s228
      %p230 = scmp.lt.s32.totalorder %s16, 1
      %s231 = scalar_select %p230, %s16, 1
      %s232 = smul.addr %s231, 11
      %s233 = smul.addr %s232, 4
      %s234 = scalar_lea.vmem %s0, %s233
      %p235 = scmp.lt.s32.totalorder %s16, 1
      %s236 = scalar_select %p235, %s16, 1
      %s237 = smul.addr %s236, 11
      %s238 = smul.addr %s237, 4
      %s239 = scalar_lea.vmem %s1, %s238
      %p240 = scmp.lt.s32.totalorder %s16, 1
      %s241 = scalar_select %p240, %s16, 1
      %s242 = smul.addr %s241, 8
      %s243 = smul.addr %s242, 4
      %s244 = scalar_lea.vmem %s5, %s243
      %v246 = vld [vmem:[%s234] sm:$0xf]
      %v247 = vld [vmem:[%s234 + $0x4] sm:$0xf]
      %v248 = vld [vmem:[%s234 + $0x8] sm:$0xf]
      %v249 = vld [vmem:[%s234 + $0xc] sm:$0xf]
      %v250 = vld [vmem:[%s234 + $0x10] sm:$0xf]
      %v251 = vld [vmem:[%s234 + $0x14] sm:$0xf]
      %v252 = vld [vmem:[%s234 + $0x18] sm:$0xf]
      %v253 = vld [vmem:[%s234 + $0x1c] sm:$0xf]
      %v254 = vld [vmem:[%s2] sm:$0xf]
      %v255 = vld [vmem:[%s2 + $0x4] sm:$0xf]
      %v256 = vld [vmem:[%s2 + $0x8] sm:$0xf]
      %v257 = vld [vmem:[%s2 + $0xc] sm:$0xf]
      %v258 = vld [vmem:[%s2 + $0x10] sm:$0xf]
      %v259 = vld [vmem:[%s2 + $0x14] sm:$0xf]
      %v260 = vld [vmem:[%s2 + $0x18] sm:$0xf]
      %v261 = vld [vmem:[%s2 + $0x1c] sm:$0xf]
      %v262 = vld [vmem:[%s2 + $0x20] sm:$0xf]
      %v263 = vld [vmem:[%s2 + $0x24] sm:$0xf]
      %v264 = vld [vmem:[%s2 + $0x28] sm:$0xf]
      %v265 = vld [vmem:[%s2 + $0x2c] sm:$0xf]
      %v266 = vld [vmem:[%s2 + $0x30] sm:$0xf]
      %v267 = vld [vmem:[%s2 + $0x34] sm:$0xf]
      %v268 = vld [vmem:[%s2 + $0x38] sm:$0xf]
      %v269 = vld [vmem:[%s2 + $0x3c] sm:$0xf]
      %v270 = vld [vmem:[%s234 + $0x20] sm:$0x1]
      %s271 = scalar_lea.vmem %s2, 64
      %v272 = vld [vmem:[%s271] sm:$0xf]
      %v273 = vld [vmem:[%s271 + $0x4] sm:$0xf]
      %v274 = vld [vmem:[%s271 + $0x8] sm:$0xf]
      %v275 = vld [vmem:[%s271 + $0xc] sm:$0xf]
      %v276 = vld [vmem:[%s271 + $0x10] sm:$0xf]
      %v277 = vld [vmem:[%s271 + $0x14] sm:$0xf]
      %v278 = vld [vmem:[%s271 + $0x18] sm:$0xf]
      %v279 = vld [vmem:[%s271 + $0x1c] sm:$0xf]
      %v280 = vld [vmem:[%s271 + $0x20] sm:$0xf]
      %v281 = vld [vmem:[%s271 + $0x24] sm:$0xf]
      %v282 = vld [vmem:[%s271 + $0x28] sm:$0xf]
      %v283 = vld [vmem:[%s271 + $0x2c] sm:$0xf]
      %v284 = vld [vmem:[%s271 + $0x30] sm:$0xf]
      %v285 = vld [vmem:[%s271 + $0x34] sm:$0xf]
      %v286 = vld [vmem:[%s271 + $0x38] sm:$0xf]
      %v287 = vld [vmem:[%s271 + $0x3c] sm:$0xf]
      %v288 = vld [vmem:[%s234] sm:$0xe]
      %s289 = scalar_lea.vmem %s2, 128
      %v290 = vld [vmem:[%s289] sm:$0xf]
      %v291 = vld [vmem:[%s289 + $0x4] sm:$0xf]
      %v292 = vld [vmem:[%s289 + $0x8] sm:$0xf]
      %v293 = vld [vmem:[%s289 + $0xc] sm:$0xf]
      %v294 = vld [vmem:[%s289 + $0x10] sm:$0xf]
      %v295 = vld [vmem:[%s289 + $0x14] sm:$0xf]
      %v296 = vld [vmem:[%s289 + $0x18] sm:$0xf]
      %v297 = vld [vmem:[%s289 + $0x1c] sm:$0xf]
      %v298 = vld [vmem:[%s289 + $0x20] sm:$0xf]
      %v299 = vld [vmem:[%s289 + $0x24] sm:$0xf]
      %v300 = vld [vmem:[%s289 + $0x28] sm:$0xf]
      %v301 = vld [vmem:[%s289 + $0x2c] sm:$0xf]
      %v302 = vld [vmem:[%s289 + $0x30] sm:$0xf]
      %v303 = vld [vmem:[%s289 + $0x34] sm:$0xf]
      %v304 = vld [vmem:[%s289 + $0x38] sm:$0xf]
      %v305 = vld [vmem:[%s289 + $0x3c] sm:$0xf]
      %v306 = vld [vmem:[%s234 + $0x20] sm:$0xf]
      %s307 = scalar_lea.vmem %s2, 192
      %v308 = vld [vmem:[%s307] sm:$0xf]
      %v309 = vld [vmem:[%s307 + $0x4] sm:$0xf]
      %v310 = vld [vmem:[%s307 + $0x8] sm:$0xf]
      %v311 = vld [vmem:[%s307 + $0xc] sm:$0xf]
      %v312 = vld [vmem:[%s307 + $0x10] sm:$0xf]
      %v313 = vld [vmem:[%s307 + $0x14] sm:$0xf]
      %v314 = vld [vmem:[%s307 + $0x18] sm:$0xf]
      %v315 = vld [vmem:[%s307 + $0x1c] sm:$0xf]
      %v316 = vld [vmem:[%s307 + $0x20] sm:$0xf]
      %v317 = vld [vmem:[%s307 + $0x24] sm:$0xf]
      %v318 = vld [vmem:[%s307 + $0x28] sm:$0xf]
      %v319 = vld [vmem:[%s307 + $0x2c] sm:$0xf]
      %v320 = vld [vmem:[%s307 + $0x30] sm:$0xf]
      %v321 = vld [vmem:[%s307 + $0x34] sm:$0xf]
      %v322 = vld [vmem:[%s307 + $0x38] sm:$0xf]
      %v323 = vld [vmem:[%s307 + $0x3c] sm:$0xf]
      %v332 = vunpack.c.l.b16 %v247
      %v333 = vunpack.c.l.b16 %v248
      %v334 = vunpack.c.l.b16 %v249
      %v335 = vunpack.c.l.b16 %v250
      %v336 = vunpack.c.l.b16 %v251
      %v337 = vunpack.c.l.b16 %v252
      %v338 = vunpack.c.l.b16 %v253
      %v339 = vunpack.c.l.b16 %v306
      %v340 = vpack.c.b16 %v333, %v332
      %v341 = vpack.c.b16 %v335, %v334
      %v342 = vpack.c.b16 %v337, %v336
      %v343 = vpack.c.b16 %v339, %v338
      %v364 = vunpack.c.l.b16 %v308
      %v365 = vunpack.c.l.b16 %v309
      %v366 = vunpack.c.l.b16 %v310
      %v367 = vunpack.c.l.b16 %v311
      %v368 = vunpack.c.l.b16 %v312
      %v369 = vunpack.c.l.b16 %v313
      %v370 = vunpack.c.l.b16 %v314
      %v371 = vunpack.c.l.b16 %v315
      %v372 = vunpack.c.l.b16 %v316
      %v373 = vunpack.c.l.b16 %v317
      %v374 = vunpack.c.l.b16 %v318
      %v375 = vunpack.c.l.b16 %v319
      %v376 = vunpack.c.l.b16 %v320
      %v377 = vunpack.c.l.b16 %v321
      %v378 = vunpack.c.l.b16 %v322
      %v379 = vunpack.c.l.b16 %v323
      %v380 = vpack.c.b16 %v365, %v364
      %v381 = vpack.c.b16 %v367, %v366
      %v382 = vpack.c.b16 %v369, %v368
      %v383 = vpack.c.b16 %v371, %v370
      %v384 = vpack.c.b16 %v373, %v372
      %v385 = vpack.c.b16 %v375, %v374
      %v386 = vpack.c.b16 %v377, %v376
      %v387 = vpack.c.b16 %v379, %v378
      %396 = vmatpush.bf16.msra.mxu0 %v387
      %397 = vmatpush.bf16.msra.mxu0 %v386
      %398 = vmatpush.bf16.msra.mxu0 %v385
      %399 = vmatpush.bf16.msra.mxu0 %v384
      %400 = vmatpush.bf16.msra.mxu0 %v383
      %401 = vmatpush.bf16.msra.mxu0 %v382
      %402 = vmatpush.bf16.msra.mxu0 %v381
      %403 = vmatpush.bf16.msra.mxu0 %v380
      %404 = vmatmul.bf16.gmra.mxu0 %v340
      %v405 = vpop.f32.mrf.mxu0
      %v406 = vadd.f32 0.0, %v405
      %v407 = vpop.f32.mrf.mxu0
      %v408 = vadd.f32 0.0, %v407
      %409 = vmatmul.bf16.gmra.mxu0 %v341
      %v410 = vpop.f32.mrf.mxu0
      %v411 = vadd.f32 0.0, %v410
      %v412 = vpop.f32.mrf.mxu0
      %v413 = vadd.f32 0.0, %v412
      %414 = vmatmul.bf16.gmra.mxu0 %v342
      %v415 = vpop.f32.mrf.mxu0
      %v416 = vadd.f32 0.0, %v415
      %v417 = vpop.f32.mrf.mxu0
      %v418 = vadd.f32 0.0, %v417
      %419 = vmatmul.bf16.gmra.mxu0 %v343
      %v420 = vpop.f32.mrf.mxu0
      %v421 = vadd.f32 0.0, %v420
      %v422 = vpop.f32.mrf.mxu0
      %v423 = vadd.f32 0.0, %v422
      %424 = vdwg.mxu0
      %v426 = vunpack.c.l.b16 %v246
      %v427 = vpack.c.b16 %v332, %v426
      %v428 = vpack.c.b16 %v334, %v333
      %v429 = vpack.c.b16 %v336, %v335
      %v430 = vpack.c.b16 %v338, %v337
      %v451 = vunpack.c.l.b16 %v254
      %v452 = vunpack.c.l.b16 %v255
      %v453 = vunpack.c.l.b16 %v256
      %v454 = vunpack.c.l.b16 %v257
      %v455 = vunpack.c.l.b16 %v258
      %v456 = vunpack.c.l.b16 %v259
      %v457 = vunpack.c.l.b16 %v260
      %v458 = vunpack.c.l.b16 %v261
      %v459 = vunpack.c.l.b16 %v262
      %v460 = vunpack.c.l.b16 %v263
      %v461 = vunpack.c.l.b16 %v264
      %v462 = vunpack.c.l.b16 %v265
      %v463 = vunpack.c.l.b16 %v266
      %v464 = vunpack.c.l.b16 %v267
      %v465 = vunpack.c.l.b16 %v268
      %v466 = vunpack.c.l.b16 %v269
      %v467 = vpack.c.b16 %v452, %v451
      %v468 = vpack.c.b16 %v454, %v453
      %v469 = vpack.c.b16 %v456, %v455
      %v470 = vpack.c.b16 %v458, %v457
      %v471 = vpack.c.b16 %v460, %v459
      %v472 = vpack.c.b16 %v462, %v461
      %v473 = vpack.c.b16 %v464, %v463
      %v474 = vpack.c.b16 %v466, %v465
      %483 = vmatpush.bf16.msra.mxu0 %v474
      %484 = vmatpush.bf16.msra.mxu0 %v473
      %485 = vmatpush.bf16.msra.mxu0 %v472
      %486 = vmatpush.bf16.msra.mxu0 %v471
      %487 = vmatpush.bf16.msra.mxu0 %v470
      %488 = vmatpush.bf16.msra.mxu0 %v469
      %489 = vmatpush.bf16.msra.mxu0 %v468
      %490 = vmatpush.bf16.msra.mxu0 %v467
      %491 = vmatmul.bf16.gmra.mxu0 %v427
      %v492 = vpop.f32.mrf.mxu0
      %v493 = vadd.f32 %v406, %v492
      %v494 = vpop.f32.mrf.mxu0
      %v495 = vadd.f32 %v408, %v494
      %496 = vmatmul.bf16.gmra.mxu0 %v428
      %v497 = vpop.f32.mrf.mxu0
      %v498 = vadd.f32 %v411, %v497
      %v499 = vpop.f32.mrf.mxu0
      %v500 = vadd.f32 %v413, %v499
      %501 = vmatmul.bf16.gmra.mxu0 %v429
      %v502 = vpop.f32.mrf.mxu0
      %v503 = vadd.f32 %v416, %v502
      %v504 = vpop.f32.mrf.mxu0
      %v505 = vadd.f32 %v418, %v504
      %506 = vmatmul.bf16.gmra.mxu0 %v430
      %v507 = vpop.f32.mrf.mxu0
      %v508 = vadd.f32 %v421, %v507
      %v509 = vpop.f32.mrf.mxu0
      %v510 = vadd.f32 %v423, %v509
      %511 = vdwg.mxu0
      %v512 = vld [vmem:[%s234 + $0x4] sm:$0xf]
      %v513 = vld [vmem:[%s234 + $0x8] sm:$0xf]
      %v514 = vld [vmem:[%s234 + $0xc] sm:$0xf]
      %v515 = vld [vmem:[%s234 + $0x10] sm:$0xf]
      %v516 = vld [vmem:[%s234 + $0x14] sm:$0xf]
      %v517 = vld [vmem:[%s234 + $0x18] sm:$0xf]
      %v518 = vld [vmem:[%s234 + $0x1c] sm:$0xf]
      %v519 = vld [vmem:[%s234 + $0x20] sm:$0xf]
      %v520 = vld [vmem:[%s234 + $0x24] sm:$0x1]
      %s521 = scalar_lea.vmem %s2, 256
      %v522 = vld [vmem:[%s521] sm:$0xf]
      %v523 = vld [vmem:[%s521 + $0x4] sm:$0xf]
      %v524 = vld [vmem:[%s521 + $0x8] sm:$0xf]
      %v525 = vld [vmem:[%s521 + $0xc] sm:$0xf]
      %v526 = vld [vmem:[%s521 + $0x10] sm:$0xf]
      %v527 = vld [vmem:[%s521 + $0x14] sm:$0xf]
      %v528 = vld [vmem:[%s521 + $0x18] sm:$0xf]
      %v529 = vld [vmem:[%s521 + $0x1c] sm:$0xf]
      %v530 = vld [vmem:[%s521 + $0x20] sm:$0xf]
      %v531 = vld [vmem:[%s521 + $0x24] sm:$0xf]
      %v532 = vld [vmem:[%s521 + $0x28] sm:$0xf]
      %v533 = vld [vmem:[%s521 + $0x2c] sm:$0xf]
      %v534 = vld [vmem:[%s521 + $0x30] sm:$0xf]
      %v535 = vld [vmem:[%s521 + $0x34] sm:$0xf]
      %v536 = vld [vmem:[%s521 + $0x38] sm:$0xf]
      %v537 = vld [vmem:[%s521 + $0x3c] sm:$0xf]
      %v547 = vunpack.c.l.b16 %v512
      %v548 = vunpack.c.l.b16 %v513
      %v549 = vunpack.c.l.b16 %v514
      %v550 = vunpack.c.l.b16 %v515
      %v551 = vunpack.c.l.b16 %v516
      %v552 = vunpack.c.l.b16 %v517
      %v553 = vunpack.c.l.b16 %v518
      %v554 = vunpack.c.l.b16 %v519
      %v555 = vunpack.c.l.b16 %v520
      %v556 = vpack.c.b16 %v548, %v547
      %v557 = vpack.c.b16 %v550, %v549
      %v558 = vpack.c.b16 %v552, %v551
      %v559 = vpack.c.b16 %v554, %v553
      %v560 = vpack.c.b16 %v555, %v555
      %vm561 = vsmask.f32 7424
      %v563 = vshrl.u32 %v556, 16
      %v565 = vshll.u32 %v556, 16
      %v567 = vrot.slane %v565, 1
      %v568 = vor.u32 %v563, %v567
      %v570 = vshll.u32 %v557, 16
      %v572 = vrot.slane %v570, 1
      %v573 = vsel %vm561, %v568, %v572
      %v574 = vshrl.u32 %v557, 16
      %v576 = vor.u32 %v574, %v572
      %v578 = vshll.u32 %v558, 16
      %v580 = vrot.slane %v578, 1
      %v581 = vsel %vm561, %v576, %v580
      %v582 = vshrl.u32 %v558, 16
      %v584 = vor.u32 %v582, %v580
      %v586 = vshll.u32 %v559, 16
      %v588 = vrot.slane %v586, 1
      %v589 = vsel %vm561, %v584, %v588
      %v590 = vshrl.u32 %v559, 16
      %v592 = vor.u32 %v590, %v588
      %v594 = vshll.u32 %v560, 16
      %v596 = vrot.slane %v594, 1
      %v597 = vsel %vm561, %v592, %v596
      %v618 = vunpack.c.l.b16 %v522
      %v619 = vunpack.c.l.b16 %v523
      %v620 = vunpack.c.l.b16 %v524
      %v621 = vunpack.c.l.b16 %v525
      %v622 = vunpack.c.l.b16 %v526
      %v623 = vunpack.c.l.b16 %v527
      %v624 = vunpack.c.l.b16 %v528
      %v625 = vunpack.c.l.b16 %v529
      %v626 = vunpack.c.l.b16 %v530
      %v627 = vunpack.c.l.b16 %v531
      %v628 = vunpack.c.l.b16 %v532
      %v629 = vunpack.c.l.b16 %v533
      %v630 = vunpack.c.l.b16 %v534
      %v631 = vunpack.c.l.b16 %v535
      %v632 = vunpack.c.l.b16 %v536
      %v633 = vunpack.c.l.b16 %v537
      %v634 = vpack.c.b16 %v619, %v618
      %v635 = vpack.c.b16 %v621, %v620
      %v636 = vpack.c.b16 %v623, %v622
      %v637 = vpack.c.b16 %v625, %v624
      %v638 = vpack.c.b16 %v627, %v626
      %v639 = vpack.c.b16 %v629, %v628
      %v640 = vpack.c.b16 %v631, %v630
      %v641 = vpack.c.b16 %v633, %v632
      %650 = vmatpush.bf16.msra.mxu0 %v641
      %651 = vmatpush.bf16.msra.mxu0 %v640
      %652 = vmatpush.bf16.msra.mxu0 %v639
      %653 = vmatpush.bf16.msra.mxu0 %v638
      %654 = vmatpush.bf16.msra.mxu0 %v637
      %655 = vmatpush.bf16.msra.mxu0 %v636
      %656 = vmatpush.bf16.msra.mxu0 %v635
      %657 = vmatpush.bf16.msra.mxu0 %v634
      %658 = vmatmul.bf16.gmra.mxu0 %v573
      %v659 = vpop.f32.mrf.mxu0
      %v660 = vadd.f32 0.0, %v659
      %v661 = vpop.f32.mrf.mxu0
      %v662 = vadd.f32 0.0, %v661
      %663 = vmatmul.bf16.gmra.mxu0 %v581
      %v664 = vpop.f32.mrf.mxu0
      %v665 = vadd.f32 0.0, %v664
      %v666 = vpop.f32.mrf.mxu0
      %v667 = vadd.f32 0.0, %v666
      %668 = vmatmul.bf16.gmra.mxu0 %v589
      %v669 = vpop.f32.mrf.mxu0
      %v670 = vadd.f32 0.0, %v669
      %v671 = vpop.f32.mrf.mxu0
      %v672 = vadd.f32 0.0, %v671
      %673 = vmatmul.bf16.gmra.mxu0 %v597
      %v674 = vpop.f32.mrf.mxu0
      %v675 = vadd.f32 0.0, %v674
      %v676 = vpop.f32.mrf.mxu0
      %v677 = vadd.f32 0.0, %v676
      %678 = vdwg.mxu0
      %v680 = vunpack.c.l.b16 %v270
      %v681 = vpack.c.b16 %v680, %v680
      %v683 = vshrl.u32 %v427, 16
      %v685 = vshll.u32 %v427, 16
      %v687 = vrot.slane %v685, 1
      %v688 = vor.u32 %v683, %v687
      %v690 = vshll.u32 %v428, 16
      %v692 = vrot.slane %v690, 1
      %v693 = vsel %vm561, %v688, %v692
      %v694 = vshrl.u32 %v428, 16
      %v696 = vor.u32 %v694, %v692
      %v698 = vshll.u32 %v429, 16
      %v700 = vrot.slane %v698, 1
      %v701 = vsel %vm561, %v696, %v700
      %v702 = vshrl.u32 %v429, 16
      %v704 = vor.u32 %v702, %v700
      %v706 = vshll.u32 %v430, 16
      %v708 = vrot.slane %v706, 1
      %v709 = vsel %vm561, %v704, %v708
      %v710 = vshrl.u32 %v430, 16
      %v712 = vor.u32 %v710, %v708
      %v714 = vshll.u32 %v681, 16
      %v716 = vrot.slane %v714, 1
      %v717 = vsel %vm561, %v712, %v716
      %v738 = vunpack.c.l.b16 %v272
      %v739 = vunpack.c.l.b16 %v273
      %v740 = vunpack.c.l.b16 %v274
      %v741 = vunpack.c.l.b16 %v275
      %v742 = vunpack.c.l.b16 %v276
      %v743 = vunpack.c.l.b16 %v277
      %v744 = vunpack.c.l.b16 %v278
      %v745 = vunpack.c.l.b16 %v279
      %v746 = vunpack.c.l.b16 %v280
      %v747 = vunpack.c.l.b16 %v281
      %v748 = vunpack.c.l.b16 %v282
      %v749 = vunpack.c.l.b16 %v283
      %v750 = vunpack.c.l.b16 %v284
      %v751 = vunpack.c.l.b16 %v285
      %v752 = vunpack.c.l.b16 %v286
      %v753 = vunpack.c.l.b16 %v287
      %v754 = vpack.c.b16 %v739, %v738
      %v755 = vpack.c.b16 %v741, %v740
      %v756 = vpack.c.b16 %v743, %v742
      %v757 = vpack.c.b16 %v745, %v744
      %v758 = vpack.c.b16 %v747, %v746
      %v759 = vpack.c.b16 %v749, %v748
      %v760 = vpack.c.b16 %v751, %v750
      %v761 = vpack.c.b16 %v753, %v752
      %770 = vmatpush.bf16.msra.mxu0 %v761
      %771 = vmatpush.bf16.msra.mxu0 %v760
      %772 = vmatpush.bf16.msra.mxu0 %v759
      %773 = vmatpush.bf16.msra.mxu0 %v758
      %774 = vmatpush.bf16.msra.mxu0 %v757
      %775 = vmatpush.bf16.msra.mxu0 %v756
      %776 = vmatpush.bf16.msra.mxu0 %v755
      %777 = vmatpush.bf16.msra.mxu0 %v754
      %778 = vmatmul.bf16.gmra.mxu0 %v693
      %v779 = vpop.f32.mrf.mxu0
      %v780 = vadd.f32 %v660, %v779
      %v781 = vpop.f32.mrf.mxu0
      %v782 = vadd.f32 %v662, %v781
      %783 = vmatmul.bf16.gmra.mxu0 %v701
      %v784 = vpop.f32.mrf.mxu0
      %v785 = vadd.f32 %v665, %v784
      %v786 = vpop.f32.mrf.mxu0
      %v787 = vadd.f32 %v667, %v786
      %788 = vmatmul.bf16.gmra.mxu0 %v709
      %v789 = vpop.f32.mrf.mxu0
      %v790 = vadd.f32 %v670, %v789
      %v791 = vpop.f32.mrf.mxu0
      %v792 = vadd.f32 %v672, %v791
      %793 = vmatmul.bf16.gmra.mxu0 %v717
      %v794 = vpop.f32.mrf.mxu0
      %v795 = vadd.f32 %v675, %v794
      %v796 = vpop.f32.mrf.mxu0
      %v797 = vadd.f32 %v677, %v796
      %798 = vdwg.mxu0
      %v799 = vld [vmem:[%s234 + $0x4] sm:$0xe]
      %s800 = scalar_lea.vmem %s2, 320
      %v801 = vld [vmem:[%s800] sm:$0xf]
      %v802 = vld [vmem:[%s800 + $0x4] sm:$0xf]
      %v803 = vld [vmem:[%s800 + $0x8] sm:$0xf]
      %v804 = vld [vmem:[%s800 + $0xc] sm:$0xf]
      %v805 = vld [vmem:[%s800 + $0x10] sm:$0xf]
      %v806 = vld [vmem:[%s800 + $0x14] sm:$0xf]
      %v807 = vld [vmem:[%s800 + $0x18] sm:$0xf]
      %v808 = vld [vmem:[%s800 + $0x1c] sm:$0xf]
      %v809 = vld [vmem:[%s800 + $0x20] sm:$0xf]
      %v810 = vld [vmem:[%s800 + $0x24] sm:$0xf]
      %v811 = vld [vmem:[%s800 + $0x28] sm:$0xf]
      %v812 = vld [vmem:[%s800 + $0x2c] sm:$0xf]
      %v813 = vld [vmem:[%s800 + $0x30] sm:$0xf]
      %v814 = vld [vmem:[%s800 + $0x34] sm:$0xf]
      %v815 = vld [vmem:[%s800 + $0x38] sm:$0xf]
      %v816 = vld [vmem:[%s800 + $0x3c] sm:$0xf]
      %v818 = vunpack.c.l.b16 %v799
      %v819 = vpack.c.b16 %v548, %v818
      %vm820 = vcmask 1046528
      %v821 = vrot.slane %v819, 1
      %v822 = vrot.slane %v557, 1
      %v823 = vsel %vm820, %v821, %v822
      %v824 = vrot.slane %v558, 1
      %v825 = vsel %vm820, %v822, %v824
      %v826 = vrot.slane %v559, 1
      %v827 = vsel %vm820, %v824, %v826
      %v828 = vrot.slane %v560, 1
      %v829 = vsel %vm820, %v826, %v828
      %v850 = vunpack.c.l.b16 %v801
      %v851 = vunpack.c.l.b16 %v802
      %v852 = vunpack.c.l.b16 %v803
      %v853 = vunpack.c.l.b16 %v804
      %v854 = vunpack.c.l.b16 %v805
      %v855 = vunpack.c.l.b16 %v806
      %v856 = vunpack.c.l.b16 %v807
      %v857 = vunpack.c.l.b16 %v808
      %v858 = vunpack.c.l.b16 %v809
      %v859 = vunpack.c.l.b16 %v810
      %v860 = vunpack.c.l.b16 %v811
      %v861 = vunpack.c.l.b16 %v812
      %v862 = vunpack.c.l.b16 %v813
      %v863 = vunpack.c.l.b16 %v814
      %v864 = vunpack.c.l.b16 %v815
      %v865 = vunpack.c.l.b16 %v816
      %v866 = vpack.c.b16 %v851, %v850
      %v867 = vpack.c.b16 %v853, %v852
      %v868 = vpack.c.b16 %v855, %v854
      %v869 = vpack.c.b16 %v857, %v856
      %v870 = vpack.c.b16 %v859, %v858
      %v871 = vpack.c.b16 %v861, %v860
      %v872 = vpack.c.b16 %v863, %v862
      %v873 = vpack.c.b16 %v865, %v864
      %882 = vmatpush.bf16.msra.mxu0 %v873
      %883 = vmatpush.bf16.msra.mxu0 %v872
      %884 = vmatpush.bf16.msra.mxu0 %v871
      %885 = vmatpush.bf16.msra.mxu0 %v870
      %886 = vmatpush.bf16.msra.mxu0 %v869
      %887 = vmatpush.bf16.msra.mxu0 %v868
      %888 = vmatpush.bf16.msra.mxu0 %v867
      %889 = vmatpush.bf16.msra.mxu0 %v866
      %890 = vmatmul.bf16.gmra.mxu0 %v823
      %v891 = vpop.f32.mrf.mxu0
      %v892 = vadd.f32 0.0, %v891
      %v893 = vpop.f32.mrf.mxu0
      %v894 = vadd.f32 0.0, %v893
      %895 = vmatmul.bf16.gmra.mxu0 %v825
      %v896 = vpop.f32.mrf.mxu0
      %v897 = vadd.f32 0.0, %v896
      %v898 = vpop.f32.mrf.mxu0
      %v899 = vadd.f32 0.0, %v898
      %900 = vmatmul.bf16.gmra.mxu0 %v827
      %v901 = vpop.f32.mrf.mxu0
      %v902 = vadd.f32 0.0, %v901
      %v903 = vpop.f32.mrf.mxu0
      %v904 = vadd.f32 0.0, %v903
      %905 = vmatmul.bf16.gmra.mxu0 %v829
      %v906 = vpop.f32.mrf.mxu0
      %v907 = vadd.f32 0.0, %v906
      %v908 = vpop.f32.mrf.mxu0
      %v909 = vadd.f32 0.0, %v908
      %910 = vdwg.mxu0
      %v912 = vunpack.c.l.b16 %v288
      %v913 = vpack.c.b16 %v332, %v912
      %v914 = vrot.slane %v913, 1
      %v915 = vrot.slane %v428, 1
      %v916 = vsel %vm820, %v914, %v915
      %v917 = vrot.slane %v429, 1
      %v918 = vsel %vm820, %v915, %v917
      %v919 = vrot.slane %v430, 1
      %v920 = vsel %vm820, %v917, %v919
      %v921 = vrot.slane %v681, 1
      %v922 = vsel %vm820, %v919, %v921
      %v943 = vunpack.c.l.b16 %v290
      %v944 = vunpack.c.l.b16 %v291
      %v945 = vunpack.c.l.b16 %v292
      %v946 = vunpack.c.l.b16 %v293
      %v947 = vunpack.c.l.b16 %v294
      %v948 = vunpack.c.l.b16 %v295
      %v949 = vunpack.c.l.b16 %v296
      %v950 = vunpack.c.l.b16 %v297
      %v951 = vunpack.c.l.b16 %v298
      %v952 = vunpack.c.l.b16 %v299
      %v953 = vunpack.c.l.b16 %v300
      %v954 = vunpack.c.l.b16 %v301
      %v955 = vunpack.c.l.b16 %v302
      %v956 = vunpack.c.l.b16 %v303
      %v957 = vunpack.c.l.b16 %v304
      %v958 = vunpack.c.l.b16 %v305
      %v959 = vpack.c.b16 %v944, %v943
      %v960 = vpack.c.b16 %v946, %v945
      %v961 = vpack.c.b16 %v948, %v947
      %v962 = vpack.c.b16 %v950, %v949
      %v963 = vpack.c.b16 %v952, %v951
      %v964 = vpack.c.b16 %v954, %v953
      %v965 = vpack.c.b16 %v956, %v955
      %v966 = vpack.c.b16 %v958, %v957
      %975 = vmatpush.bf16.msra.mxu0 %v966
      %976 = vmatpush.bf16.msra.mxu0 %v965
      %977 = vmatpush.bf16.msra.mxu0 %v964
      %978 = vmatpush.bf16.msra.mxu0 %v963
      %979 = vmatpush.bf16.msra.mxu0 %v962
      %980 = vmatpush.bf16.msra.mxu0 %v961
      %981 = vmatpush.bf16.msra.mxu0 %v960
      %982 = vmatpush.bf16.msra.mxu0 %v959
      %983 = vmatmul.bf16.gmra.mxu0 %v916
      %v984 = vpop.f32.mrf.mxu0
      %v985 = vadd.f32 %v892, %v984
      %v986 = vpop.f32.mrf.mxu0
      %v987 = vadd.f32 %v894, %v986
      %988 = vmatmul.bf16.gmra.mxu0 %v918
      %v989 = vpop.f32.mrf.mxu0
      %v990 = vadd.f32 %v897, %v989
      %v991 = vpop.f32.mrf.mxu0
      %v992 = vadd.f32 %v899, %v991
      %993 = vmatmul.bf16.gmra.mxu0 %v920
      %v994 = vpop.f32.mrf.mxu0
      %v995 = vadd.f32 %v902, %v994
      %v996 = vpop.f32.mrf.mxu0
      %v997 = vadd.f32 %v904, %v996
      %998 = vmatmul.bf16.gmra.mxu0 %v922
      %v999 = vpop.f32.mrf.mxu0
      %v1000 = vadd.f32 %v907, %v999
      %v1001 = vpop.f32.mrf.mxu0
      %v1002 = vadd.f32 %v909, %v1001
      %1003 = vdwg.mxu0
      %v1004 = vld [vmem:[%s234 + $0x24] sm:$0xf]
      %s1005 = scalar_lea.vmem %s2, 384
      %v1006 = vld [vmem:[%s1005] sm:$0xf]
      %v1007 = vld [vmem:[%s1005 + $0x4] sm:$0xf]
      %v1008 = vld [vmem:[%s1005 + $0x8] sm:$0xf]
      %v1009 = vld [vmem:[%s1005 + $0xc] sm:$0xf]
      %v1010 = vld [vmem:[%s1005 + $0x10] sm:$0xf]
      %v1011 = vld [vmem:[%s1005 + $0x14] sm:$0xf]
      %v1012 = vld [vmem:[%s1005 + $0x18] sm:$0xf]
      %v1013 = vld [vmem:[%s1005 + $0x1c] sm:$0xf]
      %v1014 = vld [vmem:[%s1005 + $0x20] sm:$0xf]
      %v1015 = vld [vmem:[%s1005 + $0x24] sm:$0xf]
      %v1016 = vld [vmem:[%s1005 + $0x28] sm:$0xf]
      %v1017 = vld [vmem:[%s1005 + $0x2c] sm:$0xf]
      %v1018 = vld [vmem:[%s1005 + $0x30] sm:$0xf]
      %v1019 = vld [vmem:[%s1005 + $0x34] sm:$0xf]
      %v1020 = vld [vmem:[%s1005 + $0x38] sm:$0xf]
      %v1021 = vld [vmem:[%s1005 + $0x3c] sm:$0xf]
      %v1023 = vunpack.c.l.b16 %v1004
      %v1024 = vpack.c.b16 %v549, %v548
      %v1025 = vpack.c.b16 %v551, %v550
      %v1026 = vpack.c.b16 %v553, %v552
      %v1027 = vpack.c.b16 %v1023, %v554
      %v1048 = vunpack.c.l.b16 %v1006
      %v1049 = vunpack.c.l.b16 %v1007
      %v1050 = vunpack.c.l.b16 %v1008
      %v1051 = vunpack.c.l.b16 %v1009
      %v1052 = vunpack.c.l.b16 %v1010
      %v1053 = vunpack.c.l.b16 %v1011
      %v1054 = vunpack.c.l.b16 %v1012
      %v1055 = vunpack.c.l.b16 %v1013
      %v1056 = vunpack.c.l.b16 %v1014
      %v1057 = vunpack.c.l.b16 %v1015
      %v1058 = vunpack.c.l.b16 %v1016
      %v1059 = vunpack.c.l.b16 %v1017
      %v1060 = vunpack.c.l.b16 %v1018
      %v1061 = vunpack.c.l.b16 %v1019
      %v1062 = vunpack.c.l.b16 %v1020
      %v1063 = vunpack.c.l.b16 %v1021
      %v1064 = vpack.c.b16 %v1049, %v1048
      %v1065 = vpack.c.b16 %v1051, %v1050
      %v1066 = vpack.c.b16 %v1053, %v1052
      %v1067 = vpack.c.b16 %v1055, %v1054
      %v1068 = vpack.c.b16 %v1057, %v1056
      %v1069 = vpack.c.b16 %v1059, %v1058
      %v1070 = vpack.c.b16 %v1061, %v1060
      %v1071 = vpack.c.b16 %v1063, %v1062
      %1080 = vmatpush.bf16.msra.mxu0 %v1071
      %1081 = vmatpush.bf16.msra.mxu0 %v1070
      %1082 = vmatpush.bf16.msra.mxu0 %v1069
      %1083 = vmatpush.bf16.msra.mxu0 %v1068
      %1084 = vmatpush.bf16.msra.mxu0 %v1067
      %1085 = vmatpush.bf16.msra.mxu0 %v1066
      %1086 = vmatpush.bf16.msra.mxu0 %v1065
      %1087 = vmatpush.bf16.msra.mxu0 %v1064
      %1088 = vmatmul.bf16.gmra.mxu0 %v1024
      %v1089 = vpop.f32.mrf.mxu0
      %v1090 = vadd.f32 0.0, %v1089
      %v1091 = vpop.f32.mrf.mxu0
      %v1092 = vadd.f32 0.0, %v1091
      %1093 = vmatmul.bf16.gmra.mxu0 %v1025
      %v1094 = vpop.f32.mrf.mxu0
      %v1095 = vadd.f32 0.0, %v1094
      %v1096 = vpop.f32.mrf.mxu0
      %v1097 = vadd.f32 0.0, %v1096
      %1098 = vmatmul.bf16.gmra.mxu0 %v1026
      %v1099 = vpop.f32.mrf.mxu0
      %v1100 = vadd.f32 0.0, %v1099
      %v1101 = vpop.f32.mrf.mxu0
      %v1102 = vadd.f32 0.0, %v1101
      %1103 = vmatmul.bf16.gmra.mxu0 %v1027
      %v1104 = vpop.f32.mrf.mxu0
      %v1105 = vadd.f32 0.0, %v1104
      %v1106 = vpop.f32.mrf.mxu0
      %v1107 = vadd.f32 0.0, %v1106
      %1108 = vdwg.mxu0
      %v1109 = vadd.f32 %v493, %v1090
      %v1110 = vadd.f32 %v495, %v1092
      %v1111 = vadd.f32 %v498, %v1095
      %v1112 = vadd.f32 %v500, %v1097
      %v1113 = vadd.f32 %v503, %v1100
      %v1114 = vadd.f32 %v505, %v1102
      %v1115 = vadd.f32 %v508, %v1105
      %v1116 = vadd.f32 %v510, %v1107
      %v1117 = vld [vmem:[%s234 + $0x8] sm:$0xf]
      %v1118 = vld [vmem:[%s234 + $0xc] sm:$0xf]
      %v1119 = vld [vmem:[%s234 + $0x10] sm:$0xf]
      %v1120 = vld [vmem:[%s234 + $0x14] sm:$0xf]
      %v1121 = vld [vmem:[%s234 + $0x18] sm:$0xf]
      %v1122 = vld [vmem:[%s234 + $0x1c] sm:$0xf]
      %v1123 = vld [vmem:[%s234 + $0x20] sm:$0xf]
      %v1124 = vld [vmem:[%s234 + $0x24] sm:$0xf]
      %v1125 = vld [vmem:[%s234 + $0x28] sm:$0x1]
      %s1126 = scalar_lea.vmem %s2, 448
      %v1127 = vld [vmem:[%s1126] sm:$0xf]
      %v1128 = vld [vmem:[%s1126 + $0x4] sm:$0xf]
      %v1129 = vld [vmem:[%s1126 + $0x8] sm:$0xf]
      %v1130 = vld [vmem:[%s1126 + $0xc] sm:$0xf]
      %v1131 = vld [vmem:[%s1126 + $0x10] sm:$0xf]
      %v1132 = vld [vmem:[%s1126 + $0x14] sm:$0xf]
      %v1133 = vld [vmem:[%s1126 + $0x18] sm:$0xf]
      %v1134 = vld [vmem:[%s1126 + $0x1c] sm:$0xf]
      %v1135 = vld [vmem:[%s1126 + $0x20] sm:$0xf]
      %v1136 = vld [vmem:[%s1126 + $0x24] sm:$0xf]
      %v1137 = vld [vmem:[%s1126 + $0x28] sm:$0xf]
      %v1138 = vld [vmem:[%s1126 + $0x2c] sm:$0xf]
      %v1139 = vld [vmem:[%s1126 + $0x30] sm:$0xf]
      %v1140 = vld [vmem:[%s1126 + $0x34] sm:$0xf]
      %v1141 = vld [vmem:[%s1126 + $0x38] sm:$0xf]
      %v1142 = vld [vmem:[%s1126 + $0x3c] sm:$0xf]
      %v1152 = vunpack.c.l.b16 %v1117
      %v1153 = vunpack.c.l.b16 %v1118
      %v1154 = vunpack.c.l.b16 %v1119
      %v1155 = vunpack.c.l.b16 %v1120
      %v1156 = vunpack.c.l.b16 %v1121
      %v1157 = vunpack.c.l.b16 %v1122
      %v1158 = vunpack.c.l.b16 %v1123
      %v1159 = vunpack.c.l.b16 %v1124
      %v1160 = vunpack.c.l.b16 %v1125
      %v1161 = vpack.c.b16 %v1153, %v1152
      %v1162 = vpack.c.b16 %v1155, %v1154
      %v1163 = vpack.c.b16 %v1157, %v1156
      %v1164 = vpack.c.b16 %v1159, %v1158
      %v1165 = vpack.c.b16 %v1160, %v1160
      %v1167 = vshrl.u32 %v1161, 16
      %v1169 = vshll.u32 %v1161, 16
      %v1171 = vrot.slane %v1169, 1
      %v1172 = vor.u32 %v1167, %v1171
      %v1174 = vshll.u32 %v1162, 16
      %v1176 = vrot.slane %v1174, 1
      %v1177 = vsel %vm561, %v1172, %v1176
      %v1178 = vshrl.u32 %v1162, 16
      %v1180 = vor.u32 %v1178, %v1176
      %v1182 = vshll.u32 %v1163, 16
      %v1184 = vrot.slane %v1182, 1
      %v1185 = vsel %vm561, %v1180, %v1184
      %v1186 = vshrl.u32 %v1163, 16
      %v1188 = vor.u32 %v1186, %v1184
      %v1190 = vshll.u32 %v1164, 16
      %v1192 = vrot.slane %v1190, 1
      %v1193 = vsel %vm561, %v1188, %v1192
      %v1194 = vshrl.u32 %v1164, 16
      %v1196 = vor.u32 %v1194, %v1192
      %v1198 = vshll.u32 %v1165, 16
      %v1200 = vrot.slane %v1198, 1
      %v1201 = vsel %vm561, %v1196, %v1200
      %v1222 = vunpack.c.l.b16 %v1127
      %v1223 = vunpack.c.l.b16 %v1128
      %v1224 = vunpack.c.l.b16 %v1129
      %v1225 = vunpack.c.l.b16 %v1130
      %v1226 = vunpack.c.l.b16 %v1131
      %v1227 = vunpack.c.l.b16 %v1132
      %v1228 = vunpack.c.l.b16 %v1133
      %v1229 = vunpack.c.l.b16 %v1134
      %v1230 = vunpack.c.l.b16 %v1135
      %v1231 = vunpack.c.l.b16 %v1136
      %v1232 = vunpack.c.l.b16 %v1137
      %v1233 = vunpack.c.l.b16 %v1138
      %v1234 = vunpack.c.l.b16 %v1139
      %v1235 = vunpack.c.l.b16 %v1140
      %v1236 = vunpack.c.l.b16 %v1141
      %v1237 = vunpack.c.l.b16 %v1142
      %v1238 = vpack.c.b16 %v1223, %v1222
      %v1239 = vpack.c.b16 %v1225, %v1224
      %v1240 = vpack.c.b16 %v1227, %v1226
      %v1241 = vpack.c.b16 %v1229, %v1228
      %v1242 = vpack.c.b16 %v1231, %v1230
      %v1243 = vpack.c.b16 %v1233, %v1232
      %v1244 = vpack.c.b16 %v1235, %v1234
      %v1245 = vpack.c.b16 %v1237, %v1236
      %1254 = vmatpush.bf16.msra.mxu0 %v1245
      %1255 = vmatpush.bf16.msra.mxu0 %v1244
      %1256 = vmatpush.bf16.msra.mxu0 %v1243
      %1257 = vmatpush.bf16.msra.mxu0 %v1242
      %1258 = vmatpush.bf16.msra.mxu0 %v1241
      %1259 = vmatpush.bf16.msra.mxu0 %v1240
      %1260 = vmatpush.bf16.msra.mxu0 %v1239
      %1261 = vmatpush.bf16.msra.mxu0 %v1238
      %1262 = vmatmul.bf16.gmra.mxu0 %v1177
      %v1263 = vpop.f32.mrf.mxu0
      %v1264 = vadd.f32 0.0, %v1263
      %v1265 = vpop.f32.mrf.mxu0
      %v1266 = vadd.f32 0.0, %v1265
      %1267 = vmatmul.bf16.gmra.mxu0 %v1185
      %v1268 = vpop.f32.mrf.mxu0
      %v1269 = vadd.f32 0.0, %v1268
      %v1270 = vpop.f32.mrf.mxu0
      %v1271 = vadd.f32 0.0, %v1270
      %1272 = vmatmul.bf16.gmra.mxu0 %v1193
      %v1273 = vpop.f32.mrf.mxu0
      %v1274 = vadd.f32 0.0, %v1273
      %v1275 = vpop.f32.mrf.mxu0
      %v1276 = vadd.f32 0.0, %v1275
      %1277 = vmatmul.bf16.gmra.mxu0 %v1201
      %v1278 = vpop.f32.mrf.mxu0
      %v1279 = vadd.f32 0.0, %v1278
      %v1280 = vpop.f32.mrf.mxu0
      %v1281 = vadd.f32 0.0, %v1280
      %1282 = vdwg.mxu0
      %v1283 = vadd.f32 %v780, %v1264
      %v1284 = vadd.f32 %v782, %v1266
      %v1285 = vadd.f32 %v785, %v1269
      %v1286 = vadd.f32 %v787, %v1271
      %v1287 = vadd.f32 %v790, %v1274
      %v1288 = vadd.f32 %v792, %v1276
      %v1289 = vadd.f32 %v795, %v1279
      %v1290 = vadd.f32 %v797, %v1281
      %v1291 = vld [vmem:[%s234 + $0x8] sm:$0xe]
      %s1292 = scalar_lea.vmem %s2, 512
      %v1293 = vld [vmem:[%s1292] sm:$0xf]
      %v1294 = vld [vmem:[%s1292 + $0x4] sm:$0xf]
      %v1295 = vld [vmem:[%s1292 + $0x8] sm:$0xf]
      %v1296 = vld [vmem:[%s1292 + $0xc] sm:$0xf]
      %v1297 = vld [vmem:[%s1292 + $0x10] sm:$0xf]
      %v1298 = vld [vmem:[%s1292 + $0x14] sm:$0xf]
      %v1299 = vld [vmem:[%s1292 + $0x18] sm:$0xf]
      %v1300 = vld [vmem:[%s1292 + $0x1c] sm:$0xf]
      %v1301 = vld [vmem:[%s1292 + $0x20] sm:$0xf]
      %v1302 = vld [vmem:[%s1292 + $0x24] sm:$0xf]
      %v1303 = vld [vmem:[%s1292 + $0x28] sm:$0xf]
      %v1304 = vld [vmem:[%s1292 + $0x2c] sm:$0xf]
      %v1305 = vld [vmem:[%s1292 + $0x30] sm:$0xf]
      %v1306 = vld [vmem:[%s1292 + $0x34] sm:$0xf]
      %v1307 = vld [vmem:[%s1292 + $0x38] sm:$0xf]
      %v1308 = vld [vmem:[%s1292 + $0x3c] sm:$0xf]
      %v1310 = vunpack.c.l.b16 %v1291
      %v1311 = vpack.c.b16 %v1153, %v1310
      %v1312 = vrot.slane %v1311, 1
      %v1313 = vrot.slane %v1162, 1
      %v1314 = vsel %vm820, %v1312, %v1313
      %v1315 = vrot.slane %v1163, 1
      %v1316 = vsel %vm820, %v1313, %v1315
      %v1317 = vrot.slane %v1164, 1
      %v1318 = vsel %vm820, %v1315, %v1317
      %v1319 = vrot.slane %v1165, 1
      %v1320 = vsel %vm820, %v1317, %v1319
      %v1341 = vunpack.c.l.b16 %v1293
      %v1342 = vunpack.c.l.b16 %v1294
      %v1343 = vunpack.c.l.b16 %v1295
      %v1344 = vunpack.c.l.b16 %v1296
      %v1345 = vunpack.c.l.b16 %v1297
      %v1346 = vunpack.c.l.b16 %v1298
      %v1347 = vunpack.c.l.b16 %v1299
      %v1348 = vunpack.c.l.b16 %v1300
      %v1349 = vunpack.c.l.b16 %v1301
      %v1350 = vunpack.c.l.b16 %v1302
      %v1351 = vunpack.c.l.b16 %v1303
      %v1352 = vunpack.c.l.b16 %v1304
      %v1353 = vunpack.c.l.b16 %v1305
      %v1354 = vunpack.c.l.b16 %v1306
      %v1355 = vunpack.c.l.b16 %v1307
      %v1356 = vunpack.c.l.b16 %v1308
      %v1357 = vpack.c.b16 %v1342, %v1341
      %v1358 = vpack.c.b16 %v1344, %v1343
      %v1359 = vpack.c.b16 %v1346, %v1345
      %v1360 = vpack.c.b16 %v1348, %v1347
      %v1361 = vpack.c.b16 %v1350, %v1349
      %v1362 = vpack.c.b16 %v1352, %v1351
      %v1363 = vpack.c.b16 %v1354, %v1353
      %v1364 = vpack.c.b16 %v1356, %v1355
      %1373 = vmatpush.bf16.msra.mxu0 %v1364
      %1374 = vmatpush.bf16.msra.mxu0 %v1363
      %1375 = vmatpush.bf16.msra.mxu0 %v1362
      %1376 = vmatpush.bf16.msra.mxu0 %v1361
      %1377 = vmatpush.bf16.msra.mxu0 %v1360
      %1378 = vmatpush.bf16.msra.mxu0 %v1359
      %1379 = vmatpush.bf16.msra.mxu0 %v1358
      %1380 = vmatpush.bf16.msra.mxu0 %v1357
      %1381 = vmatmul.bf16.gmra.mxu0 %v1314
      %v1382 = vpop.f32.mrf.mxu0
      %v1383 = vadd.f32 0.0, %v1382
      %v1384 = vpop.f32.mrf.mxu0
      %v1385 = vadd.f32 0.0, %v1384
      %1386 = vmatmul.bf16.gmra.mxu0 %v1316
      %v1387 = vpop.f32.mrf.mxu0
      %v1388 = vadd.f32 0.0, %v1387
      %v1389 = vpop.f32.mrf.mxu0
      %v1390 = vadd.f32 0.0, %v1389
      %1391 = vmatmul.bf16.gmra.mxu0 %v1318
      %v1392 = vpop.f32.mrf.mxu0
      %v1393 = vadd.f32 0.0, %v1392
      %v1394 = vpop.f32.mrf.mxu0
      %v1395 = vadd.f32 0.0, %v1394
      %1396 = vmatmul.bf16.gmra.mxu0 %v1320
      %v1397 = vpop.f32.mrf.mxu0
      %v1398 = vadd.f32 0.0, %v1397
      %v1399 = vpop.f32.mrf.mxu0
      %v1400 = vadd.f32 0.0, %v1399
      %1401 = vdwg.mxu0
      %v1402 = vadd.f32 %v985, %v1383
      %v1403 = vadd.f32 %v987, %v1385
      %v1404 = vadd.f32 %v990, %v1388
      %v1405 = vadd.f32 %v992, %v1390
      %v1406 = vadd.f32 %v995, %v1393
      %v1407 = vadd.f32 %v997, %v1395
      %v1408 = vadd.f32 %v1000, %v1398
      %v1409 = vadd.f32 %v1002, %v1400
      %v1410 = vld [vmem:[%s239] sm:$0xf]
      %v1411 = vld [vmem:[%s239 + $0x4] sm:$0xf]
      %v1412 = vld [vmem:[%s239 + $0x8] sm:$0xf]
      %v1413 = vld [vmem:[%s239 + $0xc] sm:$0xf]
      %v1414 = vld [vmem:[%s239 + $0x10] sm:$0xf]
      %v1415 = vld [vmem:[%s239 + $0x14] sm:$0xf]
      %v1416 = vld [vmem:[%s239 + $0x18] sm:$0xf]
      %v1417 = vld [vmem:[%s239 + $0x1c] sm:$0xf]
      %v1418 = vld [vmem:[%s3] sm:$0xf]
      %v1419 = vld [vmem:[%s3 + $0x4] sm:$0xf]
      %v1420 = vld [vmem:[%s3 + $0x8] sm:$0xf]
      %v1421 = vld [vmem:[%s3 + $0xc] sm:$0xf]
      %v1422 = vld [vmem:[%s3 + $0x10] sm:$0xf]
      %v1423 = vld [vmem:[%s3 + $0x14] sm:$0xf]
      %v1424 = vld [vmem:[%s3 + $0x18] sm:$0xf]
      %v1425 = vld [vmem:[%s3 + $0x1c] sm:$0xf]
      %v1426 = vld [vmem:[%s3 + $0x20] sm:$0x1]
      %v1435 = vunpack.c.l.b16 %v1410
      %v1436 = vunpack.c.l.b16 %v1411
      %v1437 = vunpack.c.l.b16 %v1412
      %v1438 = vunpack.c.l.b16 %v1413
      %v1439 = vunpack.c.l.b16 %v1414
      %v1440 = vunpack.c.l.b16 %v1415
      %v1441 = vunpack.c.l.b16 %v1416
      %v1442 = vunpack.c.l.b16 %v1417
      %v1443 = vpack.c.b16 %v1436, %v1435
      %v1444 = vpack.c.b16 %v1438, %v1437
      %v1445 = vpack.c.b16 %v1440, %v1439
      %v1446 = vpack.c.b16 %v1442, %v1441
      %v1456 = vunpack.c.l.b16 %v1418
      %v1457 = vunpack.c.l.b16 %v1419
      %v1458 = vunpack.c.l.b16 %v1420
      %v1459 = vunpack.c.l.b16 %v1421
      %v1460 = vunpack.c.l.b16 %v1422
      %v1461 = vunpack.c.l.b16 %v1423
      %v1462 = vunpack.c.l.b16 %v1424
      %v1463 = vunpack.c.l.b16 %v1425
      %v1464 = vunpack.c.l.b16 %v1426
      %v1465 = vpack.c.b16 %v1457, %v1456
      %v1466 = vpack.c.b16 %v1459, %v1458
      %v1467 = vpack.c.b16 %v1461, %v1460
      %v1468 = vpack.c.b16 %v1463, %v1462
      %v1469 = vpack.c.b16 %v1464, %v1464
      %vm1474 = vcmask 539648
      %v1476 = vsel %vm1474, %v1443, 0
      %v1479 = vsel %vm1474, %v1444, 0
      %v1482 = vsel %vm1474, %v1445, 0
      %v1485 = vsel %vm1474, %v1446, 0
      %vm1487 = vcmask 1040384
      %v1489 = vsel %vm1487, %v1469, 0
      %1491 = vmatpush.bf16.msra.mxu0 0
      %1492 = vmatpush.bf16.msra.mxu0 0
      %1493 = vmatpush.bf16.msra.mxu0 0
      %1494 = vmatpush.bf16.msra.mxu0 %v1489
      %1495 = vmatpush.bf16.msra.mxu0 %v1468
      %1496 = vmatpush.bf16.msra.mxu0 %v1467
      %1497 = vmatpush.bf16.msra.mxu0 %v1466
      %1498 = vmatpush.bf16.msra.mxu0 %v1465
      %1499 = vmatmul.bf16.gmra.mxu0 %v1476
      %v1500 = vpop.f32.mrf.mxu0
      %v1501 = vadd.f32 0.0, %v1500
      %v1502 = vpop.f32.mrf.mxu0
      %v1503 = vadd.f32 0.0, %v1502
      %1504 = vmatmul.bf16.gmra.mxu0 %v1479
      %v1505 = vpop.f32.mrf.mxu0
      %v1506 = vadd.f32 0.0, %v1505
      %v1507 = vpop.f32.mrf.mxu0
      %v1508 = vadd.f32 0.0, %v1507
      %1509 = vmatmul.bf16.gmra.mxu0 %v1482
      %v1510 = vpop.f32.mrf.mxu0
      %v1511 = vadd.f32 0.0, %v1510
      %v1512 = vpop.f32.mrf.mxu0
      %v1513 = vadd.f32 0.0, %v1512
      %1514 = vmatmul.bf16.gmra.mxu0 %v1485
      %v1515 = vpop.f32.mrf.mxu0
      %v1516 = vadd.f32 0.0, %v1515
      %v1517 = vpop.f32.mrf.mxu0
      %v1518 = vadd.f32 0.0, %v1517
      %1519 = vdwg.mxu0
      %v1520 = vadd.f32 %v1109, %v1501
      %v1521 = vadd.f32 %v1110, %v1503
      %v1522 = vadd.f32 %v1111, %v1506
      %v1523 = vadd.f32 %v1112, %v1508
      %v1524 = vadd.f32 %v1113, %v1511
      %v1525 = vadd.f32 %v1114, %v1513
      %v1526 = vadd.f32 %v1115, %v1516
      %v1527 = vadd.f32 %v1116, %v1518
      %v1528 = vld [vmem:[%s239] sm:$0xf]
      %v1529 = vld [vmem:[%s239 + $0x4] sm:$0xf]
      %v1530 = vld [vmem:[%s239 + $0x8] sm:$0xf]
      %v1531 = vld [vmem:[%s239 + $0xc] sm:$0xf]
      %v1532 = vld [vmem:[%s239 + $0x10] sm:$0xf]
      %v1533 = vld [vmem:[%s239 + $0x14] sm:$0xf]
      %v1534 = vld [vmem:[%s239 + $0x18] sm:$0xf]
      %v1535 = vld [vmem:[%s239 + $0x1c] sm:$0xf]
      %v1536 = vld [vmem:[%s239 + $0x20] sm:$0x1]
      %s1537 = scalar_lea.vmem %s3, 36
      %v1538 = vld [vmem:[%s1537] sm:$0xf]
      %v1539 = vld [vmem:[%s1537 + $0x4] sm:$0xf]
      %v1540 = vld [vmem:[%s1537 + $0x8] sm:$0xf]
      %v1541 = vld [vmem:[%s1537 + $0xc] sm:$0xf]
      %v1542 = vld [vmem:[%s1537 + $0x10] sm:$0xf]
      %v1543 = vld [vmem:[%s1537 + $0x14] sm:$0xf]
      %v1544 = vld [vmem:[%s1537 + $0x18] sm:$0xf]
      %v1545 = vld [vmem:[%s1537 + $0x1c] sm:$0xf]
      %v1546 = vld [vmem:[%s1537 + $0x20] sm:$0x1]
      %v1556 = vunpack.c.l.b16 %v1528
      %v1557 = vunpack.c.l.b16 %v1529
      %v1558 = vunpack.c.l.b16 %v1530
      %v1559 = vunpack.c.l.b16 %v1531
      %v1560 = vunpack.c.l.b16 %v1532
      %v1561 = vunpack.c.l.b16 %v1533
      %v1562 = vunpack.c.l.b16 %v1534
      %v1563 = vunpack.c.l.b16 %v1535
      %v1564 = vunpack.c.l.b16 %v1536
      %v1565 = vpack.c.b16 %v1557, %v1556
      %v1566 = vpack.c.b16 %v1559, %v1558
      %v1567 = vpack.c.b16 %v1561, %v1560
      %v1568 = vpack.c.b16 %v1563, %v1562
      %v1569 = vpack.c.b16 %v1564, %v1564
      %v1571 = vshrl.u32 %v1565, 16
      %v1573 = vshll.u32 %v1565, 16
      %v1575 = vrot.slane %v1573, 1
      %v1576 = vor.u32 %v1571, %v1575
      %v1578 = vshll.u32 %v1566, 16
      %v1580 = vrot.slane %v1578, 1
      %v1581 = vsel %vm561, %v1576, %v1580
      %v1582 = vshrl.u32 %v1566, 16
      %v1584 = vor.u32 %v1582, %v1580
      %v1586 = vshll.u32 %v1567, 16
      %v1588 = vrot.slane %v1586, 1
      %v1589 = vsel %vm561, %v1584, %v1588
      %v1590 = vshrl.u32 %v1567, 16
      %v1592 = vor.u32 %v1590, %v1588
      %v1594 = vshll.u32 %v1568, 16
      %v1596 = vrot.slane %v1594, 1
      %v1597 = vsel %vm561, %v1592, %v1596
      %v1598 = vshrl.u32 %v1568, 16
      %v1600 = vor.u32 %v1598, %v1596
      %v1602 = vshll.u32 %v1569, 16
      %v1604 = vrot.slane %v1602, 1
      %v1605 = vsel %vm561, %v1600, %v1604
      %v1615 = vunpack.c.l.b16 %v1538
      %v1616 = vunpack.c.l.b16 %v1539
      %v1617 = vunpack.c.l.b16 %v1540
      %v1618 = vunpack.c.l.b16 %v1541
      %v1619 = vunpack.c.l.b16 %v1542
      %v1620 = vunpack.c.l.b16 %v1543
      %v1621 = vunpack.c.l.b16 %v1544
      %v1622 = vunpack.c.l.b16 %v1545
      %v1623 = vunpack.c.l.b16 %v1546
      %v1624 = vpack.c.b16 %v1616, %v1615
      %v1625 = vpack.c.b16 %v1618, %v1617
      %v1626 = vpack.c.b16 %v1620, %v1619
      %v1627 = vpack.c.b16 %v1622, %v1621
      %v1628 = vpack.c.b16 %v1623, %v1623
      %v1634 = vsel %vm1474, %v1581, 0
      %v1637 = vsel %vm1474, %v1589, 0
      %v1640 = vsel %vm1474, %v1597, 0
      %v1643 = vsel %vm1474, %v1605, 0
      %v1646 = vsel %vm1487, %v1628, 0
      %1648 = vmatpush.bf16.msra.mxu0 0
      %1649 = vmatpush.bf16.msra.mxu0 0
      %1650 = vmatpush.bf16.msra.mxu0 0
      %1651 = vmatpush.bf16.msra.mxu0 %v1646
      %1652 = vmatpush.bf16.msra.mxu0 %v1627
      %1653 = vmatpush.bf16.msra.mxu0 %v1626
      %1654 = vmatpush.bf16.msra.mxu0 %v1625
      %1655 = vmatpush.bf16.msra.mxu0 %v1624
      %1656 = vmatmul.bf16.gmra.mxu0 %v1634
      %v1657 = vpop.f32.mrf.mxu0
      %v1658 = vadd.f32 0.0, %v1657
      %v1659 = vpop.f32.mrf.mxu0
      %v1660 = vadd.f32 0.0, %v1659
      %1661 = vmatmul.bf16.gmra.mxu0 %v1637
      %v1662 = vpop.f32.mrf.mxu0
      %v1663 = vadd.f32 0.0, %v1662
      %v1664 = vpop.f32.mrf.mxu0
      %v1665 = vadd.f32 0.0, %v1664
      %1666 = vmatmul.bf16.gmra.mxu0 %v1640
      %v1667 = vpop.f32.mrf.mxu0
      %v1668 = vadd.f32 0.0, %v1667
      %v1669 = vpop.f32.mrf.mxu0
      %v1670 = vadd.f32 0.0, %v1669
      %1671 = vmatmul.bf16.gmra.mxu0 %v1643
      %v1672 = vpop.f32.mrf.mxu0
      %v1673 = vadd.f32 0.0, %v1672
      %v1674 = vpop.f32.mrf.mxu0
      %v1675 = vadd.f32 0.0, %v1674
      %1676 = vdwg.mxu0
      %v1677 = vadd.f32 %v1283, %v1658
      %v1678 = vadd.f32 %v1284, %v1660
      %v1679 = vadd.f32 %v1285, %v1663
      %v1680 = vadd.f32 %v1286, %v1665
      %v1681 = vadd.f32 %v1287, %v1668
      %v1682 = vadd.f32 %v1288, %v1670
      %v1683 = vadd.f32 %v1289, %v1673
      %v1684 = vadd.f32 %v1290, %v1675
      %v1685 = vld [vmem:[%s239] sm:$0xe]
      %s1686 = scalar_lea.vmem %s3, 72
      %v1687 = vld [vmem:[%s1686] sm:$0xf]
      %v1688 = vld [vmem:[%s1686 + $0x4] sm:$0xf]
      %v1689 = vld [vmem:[%s1686 + $0x8] sm:$0xf]
      %v1690 = vld [vmem:[%s1686 + $0xc] sm:$0xf]
      %v1691 = vld [vmem:[%s1686 + $0x10] sm:$0xf]
      %v1692 = vld [vmem:[%s1686 + $0x14] sm:$0xf]
      %v1693 = vld [vmem:[%s1686 + $0x18] sm:$0xf]
      %v1694 = vld [vmem:[%s1686 + $0x1c] sm:$0xf]
      %v1695 = vld [vmem:[%s1686 + $0x20] sm:$0x1]
      %v1697 = vunpack.c.l.b16 %v1685
      %v1698 = vpack.c.b16 %v1557, %v1697
      %v1699 = vrot.slane %v1698, 1
      %v1700 = vrot.slane %v1566, 1
      %v1701 = vsel %vm820, %v1699, %v1700
      %v1702 = vrot.slane %v1567, 1
      %v1703 = vsel %vm820, %v1700, %v1702
      %v1704 = vrot.slane %v1568, 1
      %v1705 = vsel %vm820, %v1702, %v1704
      %v1706 = vrot.slane %v1569, 1
      %v1707 = vsel %vm820, %v1704, %v1706
      %v1717 = vunpack.c.l.b16 %v1687
      %v1718 = vunpack.c.l.b16 %v1688
      %v1719 = vunpack.c.l.b16 %v1689
      %v1720 = vunpack.c.l.b16 %v1690
      %v1721 = vunpack.c.l.b16 %v1691
      %v1722 = vunpack.c.l.b16 %v1692
      %v1723 = vunpack.c.l.b16 %v1693
      %v1724 = vunpack.c.l.b16 %v1694
      %v1725 = vunpack.c.l.b16 %v1695
      %v1726 = vpack.c.b16 %v1718, %v1717
      %v1727 = vpack.c.b16 %v1720, %v1719
      %v1728 = vpack.c.b16 %v1722, %v1721
      %v1729 = vpack.c.b16 %v1724, %v1723
      %v1730 = vpack.c.b16 %v1725, %v1725
      %v1736 = vsel %vm1474, %v1701, 0
      %v1739 = vsel %vm1474, %v1703, 0
      %v1742 = vsel %vm1474, %v1705, 0
      %v1745 = vsel %vm1474, %v1707, 0
      %v1748 = vsel %vm1487, %v1730, 0
      %1750 = vmatpush.bf16.msra.mxu0 0
      %1751 = vmatpush.bf16.msra.mxu0 0
      %1752 = vmatpush.bf16.msra.mxu0 0
      %1753 = vmatpush.bf16.msra.mxu0 %v1748
      %1754 = vmatpush.bf16.msra.mxu0 %v1729
      %1755 = vmatpush.bf16.msra.mxu0 %v1728
      %1756 = vmatpush.bf16.msra.mxu0 %v1727
      %1757 = vmatpush.bf16.msra.mxu0 %v1726
      %1758 = vmatmul.bf16.gmra.mxu0 %v1736
      %v1759 = vpop.f32.mrf.mxu0
      %v1760 = vadd.f32 0.0, %v1759
      %v1761 = vpop.f32.mrf.mxu0
      %v1762 = vadd.f32 0.0, %v1761
      %1763 = vmatmul.bf16.gmra.mxu0 %v1739
      %v1764 = vpop.f32.mrf.mxu0
      %v1765 = vadd.f32 0.0, %v1764
      %v1766 = vpop.f32.mrf.mxu0
      %v1767 = vadd.f32 0.0, %v1766
      %1768 = vmatmul.bf16.gmra.mxu0 %v1742
      %v1769 = vpop.f32.mrf.mxu0
      %v1770 = vadd.f32 0.0, %v1769
      %v1771 = vpop.f32.mrf.mxu0
      %v1772 = vadd.f32 0.0, %v1771
      %1773 = vmatmul.bf16.gmra.mxu0 %v1745
      %v1774 = vpop.f32.mrf.mxu0
      %v1775 = vadd.f32 0.0, %v1774
      %v1776 = vpop.f32.mrf.mxu0
      %v1777 = vadd.f32 0.0, %v1776
      %1778 = vdwg.mxu0
      %v1779 = vadd.f32 %v1402, %v1760
      %v1780 = vadd.f32 %v1403, %v1762
      %v1781 = vadd.f32 %v1404, %v1765
      %v1782 = vadd.f32 %v1405, %v1767
      %v1783 = vadd.f32 %v1406, %v1770
      %v1784 = vadd.f32 %v1407, %v1772
      %v1785 = vadd.f32 %v1408, %v1775
      %v1786 = vadd.f32 %v1409, %v1777
      %v1787 = vld [vmem:[%s239 + $0x20] sm:$0xf]
      %s1788 = scalar_lea.vmem %s3, 108
      %v1789 = vld [vmem:[%s1788] sm:$0xf]
      %v1790 = vld [vmem:[%s1788 + $0x4] sm:$0xf]
      %v1791 = vld [vmem:[%s1788 + $0x8] sm:$0xf]
      %v1792 = vld [vmem:[%s1788 + $0xc] sm:$0xf]
      %v1793 = vld [vmem:[%s1788 + $0x10] sm:$0xf]
      %v1794 = vld [vmem:[%s1788 + $0x14] sm:$0xf]
      %v1795 = vld [vmem:[%s1788 + $0x18] sm:$0xf]
      %v1796 = vld [vmem:[%s1788 + $0x1c] sm:$0xf]
      %v1797 = vld [vmem:[%s1788 + $0x20] sm:$0x1]
      %v1799 = vunpack.c.l.b16 %v1787
      %v1800 = vpack.c.b16 %v1558, %v1557
      %v1801 = vpack.c.b16 %v1560, %v1559
      %v1802 = vpack.c.b16 %v1562, %v1561
      %v1803 = vpack.c.b16 %v1799, %v1563
      %v1813 = vunpack.c.l.b16 %v1789
      %v1814 = vunpack.c.l.b16 %v1790
      %v1815 = vunpack.c.l.b16 %v1791
      %v1816 = vunpack.c.l.b16 %v1792
      %v1817 = vunpack.c.l.b16 %v1793
      %v1818 = vunpack.c.l.b16 %v1794
      %v1819 = vunpack.c.l.b16 %v1795
      %v1820 = vunpack.c.l.b16 %v1796
      %v1821 = vunpack.c.l.b16 %v1797
      %v1822 = vpack.c.b16 %v1814, %v1813
      %v1823 = vpack.c.b16 %v1816, %v1815
      %v1824 = vpack.c.b16 %v1818, %v1817
      %v1825 = vpack.c.b16 %v1820, %v1819
      %v1826 = vpack.c.b16 %v1821, %v1821
      %v1832 = vsel %vm1474, %v1800, 0
      %v1835 = vsel %vm1474, %v1801, 0
      %v1838 = vsel %vm1474, %v1802, 0
      %v1841 = vsel %vm1474, %v1803, 0
      %v1844 = vsel %vm1487, %v1826, 0
      %1846 = vmatpush.bf16.msra.mxu0 0
      %1847 = vmatpush.bf16.msra.mxu0 0
      %1848 = vmatpush.bf16.msra.mxu0 0
      %1849 = vmatpush.bf16.msra.mxu0 %v1844
      %1850 = vmatpush.bf16.msra.mxu0 %v1825
      %1851 = vmatpush.bf16.msra.mxu0 %v1824
      %1852 = vmatpush.bf16.msra.mxu0 %v1823
      %1853 = vmatpush.bf16.msra.mxu0 %v1822
      %1854 = vmatmul.bf16.gmra.mxu0 %v1832
      %v1855 = vpop.f32.mrf.mxu0
      %v1856 = vadd.f32 0.0, %v1855
      %v1857 = vpop.f32.mrf.mxu0
      %v1858 = vadd.f32 0.0, %v1857
      %1859 = vmatmul.bf16.gmra.mxu0 %v1835
      %v1860 = vpop.f32.mrf.mxu0
      %v1861 = vadd.f32 0.0, %v1860
      %v1862 = vpop.f32.mrf.mxu0
      %v1863 = vadd.f32 0.0, %v1862
      %1864 = vmatmul.bf16.gmra.mxu0 %v1838
      %v1865 = vpop.f32.mrf.mxu0
      %v1866 = vadd.f32 0.0, %v1865
      %v1867 = vpop.f32.mrf.mxu0
      %v1868 = vadd.f32 0.0, %v1867
      %1869 = vmatmul.bf16.gmra.mxu0 %v1841
      %v1870 = vpop.f32.mrf.mxu0
      %v1871 = vadd.f32 0.0, %v1870
      %v1872 = vpop.f32.mrf.mxu0
      %v1873 = vadd.f32 0.0, %v1872
      %1874 = vdwg.mxu0
      %v1875 = vadd.f32 %v1520, %v1856
      %v1876 = vadd.f32 %v1521, %v1858
      %v1877 = vadd.f32 %v1522, %v1861
      %v1878 = vadd.f32 %v1523, %v1863
      %v1879 = vadd.f32 %v1524, %v1866
      %v1880 = vadd.f32 %v1525, %v1868
      %v1881 = vadd.f32 %v1526, %v1871
      %v1882 = vadd.f32 %v1527, %v1873
      %v1883 = vld [vmem:[%s239 + $0x4] sm:$0xf]
      %v1884 = vld [vmem:[%s239 + $0x8] sm:$0xf]
      %v1885 = vld [vmem:[%s239 + $0xc] sm:$0xf]
      %v1886 = vld [vmem:[%s239 + $0x10] sm:$0xf]
      %v1887 = vld [vmem:[%s239 + $0x14] sm:$0xf]
      %v1888 = vld [vmem:[%s239 + $0x18] sm:$0xf]
      %v1889 = vld [vmem:[%s239 + $0x1c] sm:$0xf]
      %v1890 = vld [vmem:[%s239 + $0x20] sm:$0xf]
      %v1891 = vld [vmem:[%s239 + $0x24] sm:$0x1]
      %s1892 = scalar_lea.vmem %s3, 144
      %v1893 = vld [vmem:[%s1892] sm:$0xf]
      %v1894 = vld [vmem:[%s1892 + $0x4] sm:$0xf]
      %v1895 = vld [vmem:[%s1892 + $0x8] sm:$0xf]
      %v1896 = vld [vmem:[%s1892 + $0xc] sm:$0xf]
      %v1897 = vld [vmem:[%s1892 + $0x10] sm:$0xf]
      %v1898 = vld [vmem:[%s1892 + $0x14] sm:$0xf]
      %v1899 = vld [vmem:[%s1892 + $0x18] sm:$0xf]
      %v1900 = vld [vmem:[%s1892 + $0x1c] sm:$0xf]
      %v1901 = vld [vmem:[%s1892 + $0x20] sm:$0x1]
      %v1911 = vunpack.c.l.b16 %v1883
      %v1912 = vunpack.c.l.b16 %v1884
      %v1913 = vunpack.c.l.b16 %v1885
      %v1914 = vunpack.c.l.b16 %v1886
      %v1915 = vunpack.c.l.b16 %v1887
      %v1916 = vunpack.c.l.b16 %v1888
      %v1917 = vunpack.c.l.b16 %v1889
      %v1918 = vunpack.c.l.b16 %v1890
      %v1919 = vunpack.c.l.b16 %v1891
      %v1920 = vpack.c.b16 %v1912, %v1911
      %v1921 = vpack.c.b16 %v1914, %v1913
      %v1922 = vpack.c.b16 %v1916, %v1915
      %v1923 = vpack.c.b16 %v1918, %v1917
      %v1924 = vpack.c.b16 %v1919, %v1919
      %v1926 = vshrl.u32 %v1920, 16
      %v1928 = vshll.u32 %v1920, 16
      %v1930 = vrot.slane %v1928, 1
      %v1931 = vor.u32 %v1926, %v1930
      %v1933 = vshll.u32 %v1921, 16
      %v1935 = vrot.slane %v1933, 1
      %v1936 = vsel %vm561, %v1931, %v1935
      %v1937 = vshrl.u32 %v1921, 16
      %v1939 = vor.u32 %v1937, %v1935
      %v1941 = vshll.u32 %v1922, 16
      %v1943 = vrot.slane %v1941, 1
      %v1944 = vsel %vm561, %v1939, %v1943
      %v1945 = vshrl.u32 %v1922, 16
      %v1947 = vor.u32 %v1945, %v1943
      %v1949 = vshll.u32 %v1923, 16
      %v1951 = vrot.slane %v1949, 1
      %v1952 = vsel %vm561, %v1947, %v1951
      %v1953 = vshrl.u32 %v1923, 16
      %v1955 = vor.u32 %v1953, %v1951
      %v1957 = vshll.u32 %v1924, 16
      %v1959 = vrot.slane %v1957, 1
      %v1960 = vsel %vm561, %v1955, %v1959
      %v1970 = vunpack.c.l.b16 %v1893
      %v1971 = vunpack.c.l.b16 %v1894
      %v1972 = vunpack.c.l.b16 %v1895
      %v1973 = vunpack.c.l.b16 %v1896
      %v1974 = vunpack.c.l.b16 %v1897
      %v1975 = vunpack.c.l.b16 %v1898
      %v1976 = vunpack.c.l.b16 %v1899
      %v1977 = vunpack.c.l.b16 %v1900
      %v1978 = vunpack.c.l.b16 %v1901
      %v1979 = vpack.c.b16 %v1971, %v1970
      %v1980 = vpack.c.b16 %v1973, %v1972
      %v1981 = vpack.c.b16 %v1975, %v1974
      %v1982 = vpack.c.b16 %v1977, %v1976
      %v1983 = vpack.c.b16 %v1978, %v1978
      %v1989 = vsel %vm1474, %v1936, 0
      %v1992 = vsel %vm1474, %v1944, 0
      %v1995 = vsel %vm1474, %v1952, 0
      %v1998 = vsel %vm1474, %v1960, 0
      %v2001 = vsel %vm1487, %v1983, 0
      %2003 = vmatpush.bf16.msra.mxu0 0
      %2004 = vmatpush.bf16.msra.mxu0 0
      %2005 = vmatpush.bf16.msra.mxu0 0
      %2006 = vmatpush.bf16.msra.mxu0 %v2001
      %2007 = vmatpush.bf16.msra.mxu0 %v1982
      %2008 = vmatpush.bf16.msra.mxu0 %v1981
      %2009 = vmatpush.bf16.msra.mxu0 %v1980
      %2010 = vmatpush.bf16.msra.mxu0 %v1979
      %2011 = vmatmul.bf16.gmra.mxu0 %v1989
      %v2012 = vpop.f32.mrf.mxu0
      %v2013 = vadd.f32 0.0, %v2012
      %v2014 = vpop.f32.mrf.mxu0
      %v2015 = vadd.f32 0.0, %v2014
      %2016 = vmatmul.bf16.gmra.mxu0 %v1992
      %v2017 = vpop.f32.mrf.mxu0
      %v2018 = vadd.f32 0.0, %v2017
      %v2019 = vpop.f32.mrf.mxu0
      %v2020 = vadd.f32 0.0, %v2019
      %2021 = vmatmul.bf16.gmra.mxu0 %v1995
      %v2022 = vpop.f32.mrf.mxu0
      %v2023 = vadd.f32 0.0, %v2022
      %v2024 = vpop.f32.mrf.mxu0
      %v2025 = vadd.f32 0.0, %v2024
      %2026 = vmatmul.bf16.gmra.mxu0 %v1998
      %v2027 = vpop.f32.mrf.mxu0
      %v2028 = vadd.f32 0.0, %v2027
      %v2029 = vpop.f32.mrf.mxu0
      %v2030 = vadd.f32 0.0, %v2029
      %2031 = vdwg.mxu0
      %v2032 = vadd.f32 %v1677, %v2013
      %v2033 = vadd.f32 %v1678, %v2015
      %v2034 = vadd.f32 %v1679, %v2018
      %v2035 = vadd.f32 %v1680, %v2020
      %v2036 = vadd.f32 %v1681, %v2023
      %v2037 = vadd.f32 %v1682, %v2025
      %v2038 = vadd.f32 %v1683, %v2028
      %v2039 = vadd.f32 %v1684, %v2030
      %v2040 = vld [vmem:[%s239 + $0x4] sm:$0xe]
      %s2041 = scalar_lea.vmem %s3, 180
      %v2042 = vld [vmem:[%s2041] sm:$0xf]
      %v2043 = vld [vmem:[%s2041 + $0x4] sm:$0xf]
      %v2044 = vld [vmem:[%s2041 + $0x8] sm:$0xf]
      %v2045 = vld [vmem:[%s2041 + $0xc] sm:$0xf]
      %v2046 = vld [vmem:[%s2041 + $0x10] sm:$0xf]
      %v2047 = vld [vmem:[%s2041 + $0x14] sm:$0xf]
      %v2048 = vld [vmem:[%s2041 + $0x18] sm:$0xf]
      %v2049 = vld [vmem:[%s2041 + $0x1c] sm:$0xf]
      %v2050 = vld [vmem:[%s2041 + $0x20] sm:$0x1]
      %v2052 = vunpack.c.l.b16 %v2040
      %v2053 = vpack.c.b16 %v1912, %v2052
      %v2054 = vrot.slane %v2053, 1
      %v2055 = vrot.slane %v1921, 1
      %v2056 = vsel %vm820, %v2054, %v2055
      %v2057 = vrot.slane %v1922, 1
      %v2058 = vsel %vm820, %v2055, %v2057
      %v2059 = vrot.slane %v1923, 1
      %v2060 = vsel %vm820, %v2057, %v2059
      %v2061 = vrot.slane %v1924, 1
      %v2062 = vsel %vm820, %v2059, %v2061
      %v2072 = vunpack.c.l.b16 %v2042
      %v2073 = vunpack.c.l.b16 %v2043
      %v2074 = vunpack.c.l.b16 %v2044
      %v2075 = vunpack.c.l.b16 %v2045
      %v2076 = vunpack.c.l.b16 %v2046
      %v2077 = vunpack.c.l.b16 %v2047
      %v2078 = vunpack.c.l.b16 %v2048
      %v2079 = vunpack.c.l.b16 %v2049
      %v2080 = vunpack.c.l.b16 %v2050
      %v2081 = vpack.c.b16 %v2073, %v2072
      %v2082 = vpack.c.b16 %v2075, %v2074
      %v2083 = vpack.c.b16 %v2077, %v2076
      %v2084 = vpack.c.b16 %v2079, %v2078
      %v2085 = vpack.c.b16 %v2080, %v2080
      %v2091 = vsel %vm1474, %v2056, 0
      %v2094 = vsel %vm1474, %v2058, 0
      %v2097 = vsel %vm1474, %v2060, 0
      %v2100 = vsel %vm1474, %v2062, 0
      %v2103 = vsel %vm1487, %v2085, 0
      %2105 = vmatpush.bf16.msra.mxu0 0
      %2106 = vmatpush.bf16.msra.mxu0 0
      %2107 = vmatpush.bf16.msra.mxu0 0
      %2108 = vmatpush.bf16.msra.mxu0 %v2103
      %2109 = vmatpush.bf16.msra.mxu0 %v2084
      %2110 = vmatpush.bf16.msra.mxu0 %v2083
      %2111 = vmatpush.bf16.msra.mxu0 %v2082
      %2112 = vmatpush.bf16.msra.mxu0 %v2081
      %2113 = vmatmul.bf16.gmra.mxu0 %v2091
      %v2114 = vpop.f32.mrf.mxu0
      %v2115 = vadd.f32 0.0, %v2114
      %v2116 = vpop.f32.mrf.mxu0
      %v2117 = vadd.f32 0.0, %v2116
      %2118 = vmatmul.bf16.gmra.mxu0 %v2094
      %v2119 = vpop.f32.mrf.mxu0
      %v2120 = vadd.f32 0.0, %v2119
      %v2121 = vpop.f32.mrf.mxu0
      %v2122 = vadd.f32 0.0, %v2121
      %2123 = vmatmul.bf16.gmra.mxu0 %v2097
      %v2124 = vpop.f32.mrf.mxu0
      %v2125 = vadd.f32 0.0, %v2124
      %v2126 = vpop.f32.mrf.mxu0
      %v2127 = vadd.f32 0.0, %v2126
      %2128 = vmatmul.bf16.gmra.mxu0 %v2100
      %v2129 = vpop.f32.mrf.mxu0
      %v2130 = vadd.f32 0.0, %v2129
      %v2131 = vpop.f32.mrf.mxu0
      %v2132 = vadd.f32 0.0, %v2131
      %2133 = vdwg.mxu0
      %v2134 = vadd.f32 %v1779, %v2115
      %v2135 = vadd.f32 %v1780, %v2117
      %v2136 = vadd.f32 %v1781, %v2120
      %v2137 = vadd.f32 %v1782, %v2122
      %v2138 = vadd.f32 %v1783, %v2125
      %v2139 = vadd.f32 %v1784, %v2127
      %v2140 = vadd.f32 %v1785, %v2130
      %v2141 = vadd.f32 %v1786, %v2132
      %v2142 = vld [vmem:[%s239 + $0x24] sm:$0xf]
      %s2143 = scalar_lea.vmem %s3, 216
      %v2144 = vld [vmem:[%s2143] sm:$0xf]
      %v2145 = vld [vmem:[%s2143 + $0x4] sm:$0xf]
      %v2146 = vld [vmem:[%s2143 + $0x8] sm:$0xf]
      %v2147 = vld [vmem:[%s2143 + $0xc] sm:$0xf]
      %v2148 = vld [vmem:[%s2143 + $0x10] sm:$0xf]
      %v2149 = vld [vmem:[%s2143 + $0x14] sm:$0xf]
      %v2150 = vld [vmem:[%s2143 + $0x18] sm:$0xf]
      %v2151 = vld [vmem:[%s2143 + $0x1c] sm:$0xf]
      %v2152 = vld [vmem:[%s2143 + $0x20] sm:$0x1]
      %v2154 = vunpack.c.l.b16 %v2142
      %v2155 = vpack.c.b16 %v1913, %v1912
      %v2156 = vpack.c.b16 %v1915, %v1914
      %v2157 = vpack.c.b16 %v1917, %v1916
      %v2158 = vpack.c.b16 %v2154, %v1918
      %v2168 = vunpack.c.l.b16 %v2144
      %v2169 = vunpack.c.l.b16 %v2145
      %v2170 = vunpack.c.l.b16 %v2146
      %v2171 = vunpack.c.l.b16 %v2147
      %v2172 = vunpack.c.l.b16 %v2148
      %v2173 = vunpack.c.l.b16 %v2149
      %v2174 = vunpack.c.l.b16 %v2150
      %v2175 = vunpack.c.l.b16 %v2151
      %v2176 = vunpack.c.l.b16 %v2152
      %v2177 = vpack.c.b16 %v2169, %v2168
      %v2178 = vpack.c.b16 %v2171, %v2170
      %v2179 = vpack.c.b16 %v2173, %v2172
      %v2180 = vpack.c.b16 %v2175, %v2174
      %v2181 = vpack.c.b16 %v2176, %v2176
      %v2187 = vsel %vm1474, %v2155, 0
      %v2190 = vsel %vm1474, %v2156, 0
      %v2193 = vsel %vm1474, %v2157, 0
      %v2196 = vsel %vm1474, %v2158, 0
      %v2199 = vsel %vm1487, %v2181, 0
      %2201 = vmatpush.bf16.msra.mxu0 0
      %2202 = vmatpush.bf16.msra.mxu0 0
      %2203 = vmatpush.bf16.msra.mxu0 0
      %2204 = vmatpush.bf16.msra.mxu0 %v2199
      %2205 = vmatpush.bf16.msra.mxu0 %v2180
      %2206 = vmatpush.bf16.msra.mxu0 %v2179
      %2207 = vmatpush.bf16.msra.mxu0 %v2178
      %2208 = vmatpush.bf16.msra.mxu0 %v2177
      %2209 = vmatmul.bf16.gmra.mxu0 %v2187
      %v2210 = vpop.f32.mrf.mxu0
      %v2211 = vadd.f32 0.0, %v2210
      %v2212 = vpop.f32.mrf.mxu0
      %v2213 = vadd.f32 0.0, %v2212
      %2214 = vmatmul.bf16.gmra.mxu0 %v2190
      %v2215 = vpop.f32.mrf.mxu0
      %v2216 = vadd.f32 0.0, %v2215
      %v2217 = vpop.f32.mrf.mxu0
      %v2218 = vadd.f32 0.0, %v2217
      %2219 = vmatmul.bf16.gmra.mxu0 %v2193
      %v2220 = vpop.f32.mrf.mxu0
      %v2221 = vadd.f32 0.0, %v2220
      %v2222 = vpop.f32.mrf.mxu0
      %v2223 = vadd.f32 0.0, %v2222
      %2224 = vmatmul.bf16.gmra.mxu0 %v2196
      %v2225 = vpop.f32.mrf.mxu0
      %v2226 = vadd.f32 0.0, %v2225
      %v2227 = vpop.f32.mrf.mxu0
      %v2228 = vadd.f32 0.0, %v2227
      %2229 = vdwg.mxu0
      %v2230 = vadd.f32 %v1875, %v2211
      %v2231 = vadd.f32 %v1876, %v2213
      %v2232 = vadd.f32 %v1877, %v2216
      %v2233 = vadd.f32 %v1878, %v2218
      %v2234 = vadd.f32 %v1879, %v2221
      %v2235 = vadd.f32 %v1880, %v2223
      %v2236 = vadd.f32 %v1881, %v2226
      %v2237 = vadd.f32 %v1882, %v2228
      %v2238 = vld [vmem:[%s239 + $0x8] sm:$0xf]
      %v2239 = vld [vmem:[%s239 + $0xc] sm:$0xf]
      %v2240 = vld [vmem:[%s239 + $0x10] sm:$0xf]
      %v2241 = vld [vmem:[%s239 + $0x14] sm:$0xf]
      %v2242 = vld [vmem:[%s239 + $0x18] sm:$0xf]
      %v2243 = vld [vmem:[%s239 + $0x1c] sm:$0xf]
      %v2244 = vld [vmem:[%s239 + $0x20] sm:$0xf]
      %v2245 = vld [vmem:[%s239 + $0x24] sm:$0xf]
      %v2246 = vld [vmem:[%s239 + $0x28] sm:$0x1]
      %s2247 = scalar_lea.vmem %s3, 252
      %v2248 = vld [vmem:[%s2247] sm:$0xf]
      %v2249 = vld [vmem:[%s2247 + $0x4] sm:$0xf]
      %v2250 = vld [vmem:[%s2247 + $0x8] sm:$0xf]
      %v2251 = vld [vmem:[%s2247 + $0xc] sm:$0xf]
      %v2252 = vld [vmem:[%s2247 + $0x10] sm:$0xf]
      %v2253 = vld [vmem:[%s2247 + $0x14] sm:$0xf]
      %v2254 = vld [vmem:[%s2247 + $0x18] sm:$0xf]
      %v2255 = vld [vmem:[%s2247 + $0x1c] sm:$0xf]
      %v2256 = vld [vmem:[%s2247 + $0x20] sm:$0x1]
      %v2266 = vunpack.c.l.b16 %v2238
      %v2267 = vunpack.c.l.b16 %v2239
      %v2268 = vunpack.c.l.b16 %v2240
      %v2269 = vunpack.c.l.b16 %v2241
      %v2270 = vunpack.c.l.b16 %v2242
      %v2271 = vunpack.c.l.b16 %v2243
      %v2272 = vunpack.c.l.b16 %v2244
      %v2273 = vunpack.c.l.b16 %v2245
      %v2274 = vunpack.c.l.b16 %v2246
      %v2275 = vpack.c.b16 %v2267, %v2266
      %v2276 = vpack.c.b16 %v2269, %v2268
      %v2277 = vpack.c.b16 %v2271, %v2270
      %v2278 = vpack.c.b16 %v2273, %v2272
      %v2279 = vpack.c.b16 %v2274, %v2274
      %v2281 = vshrl.u32 %v2275, 16
      %v2283 = vshll.u32 %v2275, 16
      %v2285 = vrot.slane %v2283, 1
      %v2286 = vor.u32 %v2281, %v2285
      %v2288 = vshll.u32 %v2276, 16
      %v2290 = vrot.slane %v2288, 1
      %v2291 = vsel %vm561, %v2286, %v2290
      %v2292 = vshrl.u32 %v2276, 16
      %v2294 = vor.u32 %v2292, %v2290
      %v2296 = vshll.u32 %v2277, 16
      %v2298 = vrot.slane %v2296, 1
      %v2299 = vsel %vm561, %v2294, %v2298
      %v2300 = vshrl.u32 %v2277, 16
      %v2302 = vor.u32 %v2300, %v2298
      %v2304 = vshll.u32 %v2278, 16
      %v2306 = vrot.slane %v2304, 1
      %v2307 = vsel %vm561, %v2302, %v2306
      %v2308 = vshrl.u32 %v2278, 16
      %v2310 = vor.u32 %v2308, %v2306
      %v2312 = vshll.u32 %v2279, 16
      %v2314 = vrot.slane %v2312, 1
      %v2315 = vsel %vm561, %v2310, %v2314
      %v2325 = vunpack.c.l.b16 %v2248
      %v2326 = vunpack.c.l.b16 %v2249
      %v2327 = vunpack.c.l.b16 %v2250
      %v2328 = vunpack.c.l.b16 %v2251
      %v2329 = vunpack.c.l.b16 %v2252
      %v2330 = vunpack.c.l.b16 %v2253
      %v2331 = vunpack.c.l.b16 %v2254
      %v2332 = vunpack.c.l.b16 %v2255
      %v2333 = vunpack.c.l.b16 %v2256
      %v2334 = vpack.c.b16 %v2326, %v2325
      %v2335 = vpack.c.b16 %v2328, %v2327
      %v2336 = vpack.c.b16 %v2330, %v2329
      %v2337 = vpack.c.b16 %v2332, %v2331
      %v2338 = vpack.c.b16 %v2333, %v2333
      %v2344 = vsel %vm1474, %v2291, 0
      %v2347 = vsel %vm1474, %v2299, 0
      %v2350 = vsel %vm1474, %v2307, 0
      %v2353 = vsel %vm1474, %v2315, 0
      %v2356 = vsel %vm1487, %v2338, 0
      %2358 = vmatpush.bf16.msra.mxu0 0
      %2359 = vmatpush.bf16.msra.mxu0 0
      %2360 = vmatpush.bf16.msra.mxu0 0
      %2361 = vmatpush.bf16.msra.mxu0 %v2356
      %2362 = vmatpush.bf16.msra.mxu0 %v2337
      %2363 = vmatpush.bf16.msra.mxu0 %v2336
      %2364 = vmatpush.bf16.msra.mxu0 %v2335
      %2365 = vmatpush.bf16.msra.mxu0 %v2334
      %2366 = vmatmul.bf16.gmra.mxu0 %v2344
      %v2367 = vpop.f32.mrf.mxu0
      %v2368 = vadd.f32 0.0, %v2367
      %v2369 = vpop.f32.mrf.mxu0
      %v2370 = vadd.f32 0.0, %v2369
      %2371 = vmatmul.bf16.gmra.mxu0 %v2347
      %v2372 = vpop.f32.mrf.mxu0
      %v2373 = vadd.f32 0.0, %v2372
      %v2374 = vpop.f32.mrf.mxu0
      %v2375 = vadd.f32 0.0, %v2374
      %2376 = vmatmul.bf16.gmra.mxu0 %v2350
      %v2377 = vpop.f32.mrf.mxu0
      %v2378 = vadd.f32 0.0, %v2377
      %v2379 = vpop.f32.mrf.mxu0
      %v2380 = vadd.f32 0.0, %v2379
      %2381 = vmatmul.bf16.gmra.mxu0 %v2353
      %v2382 = vpop.f32.mrf.mxu0
      %v2383 = vadd.f32 0.0, %v2382
      %v2384 = vpop.f32.mrf.mxu0
      %v2385 = vadd.f32 0.0, %v2384
      %2386 = vdwg.mxu0
      %v2387 = vadd.f32 %v2032, %v2368
      %v2388 = vadd.f32 %v2033, %v2370
      %v2389 = vadd.f32 %v2034, %v2373
      %v2390 = vadd.f32 %v2035, %v2375
      %v2391 = vadd.f32 %v2036, %v2378
      %v2392 = vadd.f32 %v2037, %v2380
      %v2393 = vadd.f32 %v2038, %v2383
      %v2394 = vadd.f32 %v2039, %v2385
      %v2395 = vld [vmem:[%s239 + $0x8] sm:$0xe]
      %s2396 = scalar_lea.vmem %s3, 288
      %v2397 = vld [vmem:[%s2396] sm:$0xf]
      %v2398 = vld [vmem:[%s2396 + $0x4] sm:$0xf]
      %v2399 = vld [vmem:[%s2396 + $0x8] sm:$0xf]
      %v2400 = vld [vmem:[%s2396 + $0xc] sm:$0xf]
      %v2401 = vld [vmem:[%s2396 + $0x10] sm:$0xf]
      %v2402 = vld [vmem:[%s2396 + $0x14] sm:$0xf]
      %v2403 = vld [vmem:[%s2396 + $0x18] sm:$0xf]
      %v2404 = vld [vmem:[%s2396 + $0x1c] sm:$0xf]
      %v2405 = vld [vmem:[%s2396 + $0x20] sm:$0x1]
      %v2407 = vunpack.c.l.b16 %v2395
      %v2408 = vpack.c.b16 %v2267, %v2407
      %v2409 = vrot.slane %v2408, 1
      %v2410 = vrot.slane %v2276, 1
      %v2411 = vsel %vm820, %v2409, %v2410
      %v2412 = vrot.slane %v2277, 1
      %v2413 = vsel %vm820, %v2410, %v2412
      %v2414 = vrot.slane %v2278, 1
      %v2415 = vsel %vm820, %v2412, %v2414
      %v2416 = vrot.slane %v2279, 1
      %v2417 = vsel %vm820, %v2414, %v2416
      %v2427 = vunpack.c.l.b16 %v2397
      %v2428 = vunpack.c.l.b16 %v2398
      %v2429 = vunpack.c.l.b16 %v2399
      %v2430 = vunpack.c.l.b16 %v2400
      %v2431 = vunpack.c.l.b16 %v2401
      %v2432 = vunpack.c.l.b16 %v2402
      %v2433 = vunpack.c.l.b16 %v2403
      %v2434 = vunpack.c.l.b16 %v2404
      %v2435 = vunpack.c.l.b16 %v2405
      %v2436 = vpack.c.b16 %v2428, %v2427
      %v2437 = vpack.c.b16 %v2430, %v2429
      %v2438 = vpack.c.b16 %v2432, %v2431
      %v2439 = vpack.c.b16 %v2434, %v2433
      %v2440 = vpack.c.b16 %v2435, %v2435
      %v2446 = vsel %vm1474, %v2411, 0
      %v2449 = vsel %vm1474, %v2413, 0
      %v2452 = vsel %vm1474, %v2415, 0
      %v2455 = vsel %vm1474, %v2417, 0
      %v2458 = vsel %vm1487, %v2440, 0
      %2460 = vmatpush.bf16.msra.mxu0 0
      %2461 = vmatpush.bf16.msra.mxu0 0
      %2462 = vmatpush.bf16.msra.mxu0 0
      %2463 = vmatpush.bf16.msra.mxu0 %v2458
      %2464 = vmatpush.bf16.msra.mxu0 %v2439
      %2465 = vmatpush.bf16.msra.mxu0 %v2438
      %2466 = vmatpush.bf16.msra.mxu0 %v2437
      %2467 = vmatpush.bf16.msra.mxu0 %v2436
      %2468 = vmatmul.bf16.gmra.mxu0 %v2446
      %v2469 = vpop.f32.mrf.mxu0
      %v2470 = vadd.f32 0.0, %v2469
      %v2471 = vpop.f32.mrf.mxu0
      %v2472 = vadd.f32 0.0, %v2471
      %2473 = vmatmul.bf16.gmra.mxu0 %v2449
      %v2474 = vpop.f32.mrf.mxu0
      %v2475 = vadd.f32 0.0, %v2474
      %v2476 = vpop.f32.mrf.mxu0
      %v2477 = vadd.f32 0.0, %v2476
      %2478 = vmatmul.bf16.gmra.mxu0 %v2452
      %v2479 = vpop.f32.mrf.mxu0
      %v2480 = vadd.f32 0.0, %v2479
      %v2481 = vpop.f32.mrf.mxu0
      %v2482 = vadd.f32 0.0, %v2481
      %2483 = vmatmul.bf16.gmra.mxu0 %v2455
      %v2484 = vpop.f32.mrf.mxu0
      %v2485 = vadd.f32 0.0, %v2484
      %v2486 = vpop.f32.mrf.mxu0
      %v2487 = vadd.f32 0.0, %v2486
      %2488 = vdwg.mxu0
      %v2489 = vadd.f32 %v2134, %v2470
      %v2490 = vadd.f32 %v2135, %v2472
      %v2491 = vadd.f32 %v2136, %v2475
      %v2492 = vadd.f32 %v2137, %v2477
      %v2493 = vadd.f32 %v2138, %v2480
      %v2494 = vadd.f32 %v2139, %v2482
      %v2495 = vadd.f32 %v2140, %v2485
      %v2496 = vadd.f32 %v2141, %v2487
      %v2497 = vlaneseq
      %v2498 = vshrl.u32 %v2497, 7
      %v2499 = vadd.s32 %v2498, 8
      %v2500 = vadd.s32 %v2498, 16
      %v2501 = vadd.s32 %v2498, 24
      %v2502 = vadd.s32 %v2498, 32
      %v2503 = vadd.s32 %v2498, 40
      %v2504 = vadd.s32 %v2498, 48
      %v2505 = vadd.s32 %v2498, 56
      %vm2506 = vcmp.lt.s32.totalorder %v2498, 0
      %v2507 = vsub.s32 0, %v2498
      %v2508 = vsel %vm2506, %v2507, %v2498
      %v2509 = vshrl.u32 %v2508, 3
      %v2510 = vand.u32 %v2508, 7
      %v2511 = vsub.s32 0, %v2510
      %v2512 = vsel %vm2506, %v2511, %v2510
      %vm2513 = vcmp.lt.s32.totalorder %v2499, 0
      %v2514 = vsub.s32 0, %v2499
      %v2515 = vsel %vm2513, %v2514, %v2499
      %v2516 = vshrl.u32 %v2515, 3
      %v2517 = vand.u32 %v2515, 7
      %v2518 = vsub.s32 0, %v2517
      %v2519 = vsel %vm2513, %v2518, %v2517
      %vm2520 = vcmp.lt.s32.totalorder %v2500, 0
      %v2521 = vsub.s32 0, %v2500
      %v2522 = vsel %vm2520, %v2521, %v2500
      %v2523 = vshrl.u32 %v2522, 3
      %v2524 = vand.u32 %v2522, 7
      %v2525 = vsub.s32 0, %v2524
      %v2526 = vsel %vm2520, %v2525, %v2524
      %vm2527 = vcmp.lt.s32.totalorder %v2501, 0
      %v2528 = vsub.s32 0, %v2501
      %v2529 = vsel %vm2527, %v2528, %v2501
      %v2530 = vshrl.u32 %v2529, 3
      %v2531 = vand.u32 %v2529, 7
      %v2532 = vsub.s32 0, %v2531
      %v2533 = vsel %vm2527, %v2532, %v2531
      %vm2534 = vcmp.lt.s32.totalorder %v2502, 0
      %v2535 = vsub.s32 0, %v2502
      %v2536 = vsel %vm2534, %v2535, %v2502
      %v2537 = vshrl.u32 %v2536, 3
      %v2538 = vand.u32 %v2536, 7
      %v2539 = vsub.s32 0, %v2538
      %v2540 = vsel %vm2534, %v2539, %v2538
      %vm2541 = vcmp.lt.s32.totalorder %v2503, 0
      %v2542 = vsub.s32 0, %v2503
      %v2543 = vsel %vm2541, %v2542, %v2503
      %v2544 = vshrl.u32 %v2543, 3
      %v2545 = vand.u32 %v2543, 7
      %v2546 = vsub.s32 0, %v2545
      %v2547 = vsel %vm2541, %v2546, %v2545
      %vm2548 = vcmp.lt.s32.totalorder %v2504, 0
      %v2549 = vsub.s32 0, %v2504
      %v2550 = vsel %vm2548, %v2549, %v2504
      %v2551 = vshrl.u32 %v2550, 3
      %v2552 = vand.u32 %v2550, 7
      %v2553 = vsub.s32 0, %v2552
      %v2554 = vsel %vm2548, %v2553, %v2552
      %vm2555 = vcmp.lt.s32.totalorder %v2505, 0
      %v2556 = vsub.s32 0, %v2505
      %v2557 = vsel %vm2555, %v2556, %v2505
      %v2558 = vshrl.u32 %v2557, 3
      %v2559 = vand.u32 %v2557, 7
      %v2560 = vsub.s32 0, %v2559
      %v2561 = vsel %vm2555, %v2560, %v2559
      %vm2562 = vcmp.ne.s32.totalorder %v2512, 0
      %vm2563 = vcmp.ne.s32.totalorder %v2519, 0
      %vm2564 = vcmp.ne.s32.totalorder %v2526, 0
      %vm2565 = vcmp.ne.s32.totalorder %v2533, 0
      %vm2566 = vcmp.ne.s32.totalorder %v2540, 0
      %vm2567 = vcmp.ne.s32.totalorder %v2547, 0
      %vm2568 = vcmp.ne.s32.totalorder %v2554, 0
      %vm2569 = vcmp.ne.s32.totalorder %v2561, 0
      %vm2570 = vcmp.lt.s32.totalorder %v2512, 0
      %vm2571 = vcmp.lt.s32.totalorder %v2519, 0
      %vm2572 = vcmp.lt.s32.totalorder %v2526, 0
      %vm2573 = vcmp.lt.s32.totalorder %v2533, 0
      %vm2574 = vcmp.lt.s32.totalorder %v2540, 0
      %vm2575 = vcmp.lt.s32.totalorder %v2547, 0
      %vm2576 = vcmp.lt.s32.totalorder %v2554, 0
      %vm2577 = vcmp.lt.s32.totalorder %v2561, 0
      %vm2578 = vmand %vm2570, %vm2562
      %vm2579 = vmand %vm2571, %vm2563
      %vm2580 = vmand %vm2572, %vm2564
      %vm2581 = vmand %vm2573, %vm2565
      %vm2582 = vmand %vm2574, %vm2566
      %vm2583 = vmand %vm2575, %vm2567
      %vm2584 = vmand %vm2576, %vm2568
      %vm2585 = vmand %vm2577, %vm2569
      %v2586 = vadd.s32 %v2512, 8
      %v2587 = vadd.s32 %v2519, 8
      %v2588 = vadd.s32 %v2526, 8
      %v2589 = vadd.s32 %v2533, 8
      %v2590 = vadd.s32 %v2540, 8
      %v2591 = vadd.s32 %v2547, 8
      %v2592 = vadd.s32 %v2554, 8
      %v2593 = vadd.s32 %v2561, 8
      %v2594 = vsel %vm2578, %v2586, %v2512
      %v2595 = vsel %vm2579, %v2587, %v2519
      %v2596 = vsel %vm2580, %v2588, %v2526
      %v2597 = vsel %vm2581, %v2589, %v2533
      %v2598 = vsel %vm2582, %v2590, %v2540
      %v2599 = vsel %vm2583, %v2591, %v2547
      %v2600 = vsel %vm2584, %v2592, %v2554
      %v2601 = vsel %vm2585, %v2593, %v2561
      %vm2602 = vcmp.eq.s32.totalorder %v2594, 0
      %vm2603 = vcmp.eq.s32.totalorder %v2595, 0
      %vm2604 = vcmp.eq.s32.totalorder %v2596, 0
      %vm2605 = vcmp.eq.s32.totalorder %v2597, 0
      %vm2606 = vcmp.eq.s32.totalorder %v2598, 0
      %vm2607 = vcmp.eq.s32.totalorder %v2599, 0
      %vm2608 = vcmp.eq.s32.totalorder %v2600, 0
      %vm2609 = vcmp.eq.s32.totalorder %v2601, 0
      %v2610 = vsel %vm2602, 1, 0
      %v2611 = vsel %vm2603, 1, 0
      %v2612 = vsel %vm2604, 1, 0
      %v2613 = vsel %vm2605, 1, 0
      %v2614 = vsel %vm2606, 1, 0
      %v2615 = vsel %vm2607, 1, 0
      %v2616 = vsel %vm2608, 1, 0
      %v2617 = vsel %vm2609, 1, 0
      %vm2618 = vcmp.eq.s32.totalorder %v2610, 1
      %vm2619 = vcmp.eq.s32.totalorder %v2611, 1
      %vm2620 = vcmp.eq.s32.totalorder %v2612, 1
      %vm2621 = vcmp.eq.s32.totalorder %v2613, 1
      %vm2622 = vcmp.eq.s32.totalorder %v2614, 1
      %vm2623 = vcmp.eq.s32.totalorder %v2615, 1
      %vm2624 = vcmp.eq.s32.totalorder %v2616, 1
      %vm2625 = vcmp.eq.s32.totalorder %v2617, 1
      %v2626 = vsel %vm2618, 0.0, %v2230
      %v2627 = vsel %vm2619, 0.0, %v2231
      %v2628 = vsel %vm2620, 0.0, %v2232
      %v2629 = vsel %vm2621, 0.0, %v2233
      %v2630 = vsel %vm2622, 0.0, %v2234
      %v2631 = vsel %vm2623, 0.0, %v2235
      %v2632 = vsel %vm2624, 0.0, %v2236
      %v2633 = vsel %vm2625, 0.0, %v2237
      %v2634 = vadd.f32 %v2626, %v2387
      %v2635 = vadd.f32 %v2627, %v2388
      %v2636 = vadd.f32 %v2628, %v2389
      %v2637 = vadd.f32 %v2629, %v2390
      %v2638 = vadd.f32 %v2630, %v2391
      %v2639 = vadd.f32 %v2631, %v2392
      %v2640 = vadd.f32 %v2632, %v2393
      %v2641 = vadd.f32 %v2633, %v2394
      %vm2642 = vcmp.eq.s32.totalorder %v2594, 7
      %vm2643 = vcmp.eq.s32.totalorder %v2595, 7
      %vm2644 = vcmp.eq.s32.totalorder %v2596, 7
      %vm2645 = vcmp.eq.s32.totalorder %v2597, 7
      %vm2646 = vcmp.eq.s32.totalorder %v2598, 7
      %vm2647 = vcmp.eq.s32.totalorder %v2599, 7
      %vm2648 = vcmp.eq.s32.totalorder %v2600, 7
      %vm2649 = vcmp.eq.s32.totalorder %v2601, 7
      %v2650 = vsel %vm2642, 1, 0
      %v2651 = vsel %vm2643, 1, 0
      %v2652 = vsel %vm2644, 1, 0
      %v2653 = vsel %vm2645, 1, 0
      %v2654 = vsel %vm2646, 1, 0
      %v2655 = vsel %vm2647, 1, 0
      %v2656 = vsel %vm2648, 1, 0
      %v2657 = vsel %vm2649, 1, 0
      %vm2658 = vcmp.eq.s32.totalorder %v2650, 1
      %vm2659 = vcmp.eq.s32.totalorder %v2651, 1
      %vm2660 = vcmp.eq.s32.totalorder %v2652, 1
      %vm2661 = vcmp.eq.s32.totalorder %v2653, 1
      %vm2662 = vcmp.eq.s32.totalorder %v2654, 1
      %vm2663 = vcmp.eq.s32.totalorder %v2655, 1
      %vm2664 = vcmp.eq.s32.totalorder %v2656, 1
      %vm2665 = vcmp.eq.s32.totalorder %v2657, 1
      %v2666 = vsel %vm2658, 0.0, %v2489
      %v2667 = vsel %vm2659, 0.0, %v2490
      %v2668 = vsel %vm2660, 0.0, %v2491
      %v2669 = vsel %vm2661, 0.0, %v2492
      %v2670 = vsel %vm2662, 0.0, %v2493
      %v2671 = vsel %vm2663, 0.0, %v2494
      %v2672 = vsel %vm2664, 0.0, %v2495
      %v2673 = vsel %vm2665, 0.0, %v2496
      %v2674 = vadd.f32 %v2634, %v2666
      %v2675 = vadd.f32 %v2635, %v2667
      %v2676 = vadd.f32 %v2636, %v2668
      %v2677 = vadd.f32 %v2637, %v2669
      %v2678 = vadd.f32 %v2638, %v2670
      %v2679 = vadd.f32 %v2639, %v2671
      %v2680 = vadd.f32 %v2640, %v2672
      %v2681 = vadd.f32 %v2641, %v2673
      %v2682 = vld [vmem:[%s4] sm:$0x1]
      %v2684 = vperm.slane %v2682, 0
      %v2686 = vadd.f32 %v2674, %v2684
      %v2687 = vadd.f32 %v2675, %v2684
      %v2688 = vadd.f32 %v2676, %v2684
      %v2689 = vadd.f32 %v2677, %v2684
      %v2690 = vadd.f32 %v2678, %v2684
      %v2691 = vadd.f32 %v2679, %v2684
      %v2692 = vadd.f32 %v2680, %v2684
      %v2693 = vadd.f32 %v2681, %v2684
      %v2694 = vmax.f32 %v2686, 0.0
      %v2695 = vmax.f32 %v2687, 0.0
      %v2696 = vmax.f32 %v2688, 0.0
      %v2697 = vmax.f32 %v2689, 0.0
      %v2698 = vmax.f32 %v2690, 0.0
      %v2699 = vmax.f32 %v2691, 0.0
      %v2700 = vmax.f32 %v2692, 0.0
      %v2701 = vmax.f32 %v2693, 0.0
      %v2702 = vpack.c.bf16 %v2694, %v2694
      %v2703 = vpack.c.bf16 %v2695, %v2695
      %v2704 = vpack.c.bf16 %v2696, %v2696
      %v2705 = vpack.c.bf16 %v2697, %v2697
      %v2706 = vpack.c.bf16 %v2698, %v2698
      %v2707 = vpack.c.bf16 %v2699, %v2699
      %v2708 = vpack.c.bf16 %v2700, %v2700
      %v2709 = vpack.c.bf16 %v2701, %v2701
      %vm2710 = vcmask 519168
      %2711 = vst.msk [vmem:[%s244] sm:$0xf] %vm2710, %v2702
      %2712 = vst.msk [vmem:[%s244 + $0x4] sm:$0xf] %vm2710, %v2703
      %2713 = vst.msk [vmem:[%s244 + $0x8] sm:$0xf] %vm2710, %v2704
      %2714 = vst.msk [vmem:[%s244 + $0xc] sm:$0xf] %vm2710, %v2705
      %2715 = vst.msk [vmem:[%s244 + $0x10] sm:$0xf] %vm2710, %v2706
      %2716 = vst.msk [vmem:[%s244 + $0x14] sm:$0xf] %vm2710, %v2707
      %2717 = vst.msk [vmem:[%s244 + $0x18] sm:$0xf] %vm2710, %v2708
      %2718 = vst.msk [vmem:[%s244 + $0x1c] sm:$0xf] %vm2710, %v2709
      %p2719 = scmp.lt.s32.totalorder %s16, 1
      %s2720 = scalar_select %p2719, %s16, 1
      %s2721 = smul.addr %s2720, 8
      %s2722 = smul.addr %s2721, 4
      %s2723 = scalar_lea.vmem %s5, %s2722
      // Predicated region
      $region41: #{unet_scattering_dynamic_forward.7} parent=39 // pred_check
        %p2724 = pneg %p149
      $region42: #{unet_scattering_dynamic_forward.7} parent=39 // pred_check_branch
        %2726 = sbr.rel (%p2724) target = $region44
      $region43: #{unet_scattering_dynamic_forward.7} parent=39 // pred_region
        _
      $region44: #{unet_scattering_dynamic_forward.7} parent=39 // pred_fallthru
        _
    $region40: #{unet_scattering_dynamic_forward.7} parent=5 // pred_fallthru
      _
    %p2727 = scmp.le.s32.totalorder 2, %s11
    // Predicated region
    $region45: #{unet_scattering_dynamic_forward.7} parent=5 // pred_check
      %p2728 = pneg %p2727
    $region46: #{unet_scattering_dynamic_forward.7} parent=5 // pred_check_branch
      %2730 = sbr.rel (%p2728) target = $region48
    $region47: #{unet_scattering_dynamic_forward.7} parent=5 // pred_region
      %s2731 = ssub.s32 %s11, 2
      // Predicated region
      $region49: #{unet_scattering_dynamic_forward.7} parent=47 // pred_check
        %p2732 = pneg %p155
      $region50: #{unet_scattering_dynamic_forward.7} parent=47 // pred_check_branch
        %2734 = sbr.rel (%p2732) target = $region52
      $region51: #{unet_scattering_dynamic_forward.7} parent=47 // pred_region
        %p2735 = scmp.lt.s32.totalorder %s17, 1
        %s2736 = scalar_select %p2735, %s17, 1
        %s2737 = smul.addr %s2736, 8
        %s2738 = smul.addr %s2737, 4
        %s2739 = scalar_lea.vmem %s5, %s2738
      $region52: #{unet_scattering_dynamic_forward.7} parent=47 // pred_fallthru
        _
    $region48: #{unet_scattering_dynamic_forward.7} parent=5 // pred_fallthru
      _
  $region6: #{unet_scattering_dynamic_forward.7} parent=0 // loop_footer
    %s15 = sadd.s32 1, %s11
  $region7: #{unet_scattering_dynamic_forward.7} parent=0 // loop_footer_branch
    %10 = sbr.rel target = $region3
  $region8: #{unet_scattering_dynamic_forward.7} parent=0 // loop_exit
    _

</llo_original>
